<compile_context>
chip_gen: v7x
topology: tpu7x:2x2x1
jax: 0.10.0
libtpu: 0.0.40
codegen_flags: <defaults>
</compile_context>

<pallas_src>
import jax
import jax.numpy as jnp
from jax import lax
from jax.experimental import pallas as pl
from jax.experimental.pallas import tpu as pltpu

BN_EPS = 0.8    # nn.BatchNorm2d(in_features, 0.8): second positional arg = eps
LANE = 128      # TPU lane width; channel dim padded to a multiple of this


def _round_up(x, m):
    return (x + m - 1) // m * m


# ---------------------------------------------------------------------------
# Stage 1 kernel: conv1 (3x3 + bias) and per-image BN1 statistics
# ---------------------------------------------------------------------------
def _conv_stats_kernel(xp_ref, w_ref, b_ref, y_ref, st_ref, acc_ref):
    # xp_ref : (H+2, W+2, Cp) f32  zero-padded image (one batch element)
    # w_ref  : (9, Cp, Cp)   bf16  3x3 taps flattened (tap, Cin, Cout)
    # b_ref  : (1, Cp)       f32   conv bias
    # y_ref  : (H*W, Cp)     f32   raw conv output (pre-BN)
    # st_ref : (2, Cp)       f32   [sum, sum_sq] over this image's pixels
    # acc_ref: (H*W, Cp)     f32   VMEM accumulator scratch
    HP, WP, Cp = xp_ref.shape
    H, W = HP - 2, WP - 2

    acc_ref[...] = jnp.zeros_like(acc_ref)
    for dy in range(3):
        for dx in range(3):
            # Slice the tap window straight from the ref; one
            # (H*W, Cp) x (Cp, Cp) bf16 MXU matmul per tap, f32 accumulate.
            patch = xp_ref[dy:dy + H, dx:dx + W, :].reshape(H * W, Cp)
            acc_ref[...] += jnp.dot(patch.astype(jnp.bfloat16),
                                    w_ref[3 * dy + dx],
                                    preferred_element_type=jnp.float32)
    y = acc_ref[...] + b_ref[...]
    y_ref[...] = y
    # Fused single-pass BN statistics (sum and sum of squares).
    st_ref[...] = jnp.concatenate(
        [jnp.sum(y, axis=0, keepdims=True),
         jnp.sum(y * y, axis=0, keepdims=True)], axis=0)


# ---------------------------------------------------------------------------
# Stage 2 kernel: BN1 (folded scale/shift) + PReLU + conv2 + BN2 statistics
# ---------------------------------------------------------------------------
def _bn_prelu_conv_stats_kernel(y_ref, sc_ref, sh_ref, al_ref, w_ref, b_ref,
                                z_ref, st_ref, pad_ref, acc_ref):
    # y_ref  : (H*W, Cp) f32   raw conv1 output for one image
    # sc/sh  : (1, Cp)   f32   BN1 scale / shift folded from batch stats
    # al_ref : (1, Cp)   f32   PReLU slope (broadcast over channels)
    # w_ref  : (9, Cp, Cp) bf16 ; b_ref: (1, Cp) f32
    # z_ref  : (H*W, Cp) f32   raw conv2 output
    # st_ref : (2, Cp)   f32   [sum, sum_sq] of conv2 output
    # pad_ref: (H+2, W+2, Cp) f32 VMEM scratch (zero-padded activation)
    # acc_ref: (H*W, Cp) f32 VMEM accumulator scratch
    HW, Cp = y_ref.shape
    HP, WP, _ = pad_ref.shape
    H, W = HP - 2, WP - 2

    # BN1 affine (batch statistics) + PReLU in f32 on the VPU.
    t = y_ref[...] * sc_ref[...] + sh_ref[...]
    t = jnp.where(t > 0, t, t * al_ref[...])

    # Build the zero-padded conv2 input once in a VMEM scratch; the tap loop
    # below slices it from the ref, so the padded value is not kept live.
    t3 = t.reshape(H, W, Cp)
    zrow = jnp.zeros((1, W, Cp), jnp.float32)
    zcol = jnp.zeros((H + 2, 1, Cp), jnp.float32)
    pad_ref[...] = jnp.concatenate(
        [zcol, jnp.concatenate([zrow, t3, zrow], axis=0), zcol], axis=1)

    acc_ref[...] = jnp.zeros_like(acc_ref)
    for dy in range(3):
        for dx in range(3):
            patch = pad_ref[dy:dy + H, dx:dx + W, :].reshape(HW, Cp)
            acc_ref[...] += jnp.dot(patch.astype(jnp.bfloat16),
                                    w_ref[3 * dy + dx],
                                    preferred_element_type=jnp.float32)
    z = acc_ref[...] + b_ref[...]
    z_ref[...] = z
    st_ref[...] = jnp.concatenate(
        [jnp.sum(z, axis=0, keepdims=True),
         jnp.sum(z * z, axis=0, keepdims=True)], axis=0)


# ---------------------------------------------------------------------------
# Stage 3 kernel: BN2 affine + residual add (lane-dense elementwise)
# ---------------------------------------------------------------------------
def _bn_residual_kernel(x_ref, z_ref, sc_ref, sh_ref, o_ref):
    o_ref[...] = (x_ref[...] + z_ref[...] * sc_ref[...]
                  + sh_ref[...]).astype(o_ref.dtype)


# ---------------------------------------------------------------------------
# Tiny glue: fold accumulated (sum, sum_sq) into BN scale/shift
# ---------------------------------------------------------------------------
def _bn_fold(stats, gamma, beta, count):
    s = jnp.sum(stats, axis=0)                             # (2, Cp)
    mean = s[0] / count
    var = jnp.maximum(s[1] / count - mean * mean, 0.0)     # biased variance
    scale = gamma * lax.rsqrt(var + BN_EPS)                # (1, Cp)
    shift = beta - mean * scale                            # (1, Cp)
    return scale, shift


# ---------------------------------------------------------------------------
# Wrapper: NCHW in / NCHW out
# ---------------------------------------------------------------------------
@jax.jit
def residual_block(x_nchw, w1, b1, g1, be1, alpha, w2, b2, g2, be2):
    # x_nchw : (N, C, H, W) f32
    # w1/w2  : (3, 3, C, C) HWIO f32 (already spectrally normalized)
    # b*/g*/be* : (C,) f32 ; alpha : scalar f32 (PReLU slope)
    N, C, H, W = x_nchw.shape
    Cp = max(LANE, _round_up(C, LANE))
    HW = H * W
    count = jnp.float32(N * H * W)

    # Layout plumbing: the NCHW->NHWC transpose is mandatory for a lane-dense
    # channel layout; the channel pad / spatial halo pad fuse into that pass.
    x_nhwc = jnp.transpose(x_nchw, (0, 2, 3, 1))                    # (N,H,W,C)
    x_cp = jnp.pad(x_nhwc, ((0, 0), (0, 0), (0, 0), (0, Cp - C)))   # channel pad
    x_flat = x_cp.reshape(N, HW, Cp)                                # residual path
    xp = jnp.pad(x_cp, ((0, 0), (1, 1), (1, 1), (0, 0)))            # conv1 halo

    def pack_w(w):   # (3,3,C,C) HWIO -> (9, Cp, Cp) bf16 for the MXU
        wp = jnp.pad(w, ((0, 0), (0, 0), (0, Cp - C), (0, Cp - C)))
        return wp.reshape(9, Cp, Cp).astype(jnp.bfloat16)

    def pack_c(v):   # (C,) -> (1, Cp) f32
        return jnp.pad(v, (0, Cp - C)).reshape(1, Cp).astype(jnp.float32)

    w1p, w2p = pack_w(w1), pack_w(w2)
    b1p, g1p, be1p = pack_c(b1), pack_c(g1), pack_c(be1)
    b2p, g2p, be2p = pack_c(b2), pack_c(g2), pack_c(be2)
    alpha_p = jnp.full((1, Cp), alpha, jnp.float32)

    cparams = pltpu.CompilerParams(
        dimension_semantics=("parallel",),
        vmem_limit_bytes=32 * 1024 * 1024,
    )

    def img_spec(*shp):          # per-image block (batch dim squeezed)
        nd = len(shp)
        return pl.BlockSpec((None,) + shp, lambda n: (n,) + (0,) * nd)

    def bcast_spec(*shp):        # same (whole) block for every grid step
        nd = len(shp)
        return pl.BlockSpec(shp, lambda n: (0,) * nd)

    # -------- stage 1: conv1 + per-image BN1 statistics ----------------------
    y1, st1 = pl.pallas_call(
        _conv_stats_kernel,
        grid=(N,),
        in_specs=[img_spec(H + 2, W + 2, Cp),
                  bcast_spec(9, Cp, Cp),
                  bcast_spec(1, Cp)],
        out_specs=(img_spec(HW, Cp), img_spec(2, Cp)),
        out_shape=(jax.ShapeDtypeStruct((N, HW, Cp), jnp.float32),
                   jax.ShapeDtypeStruct((N, 2, Cp), jnp.float32)),
        scratch_shapes=[pltpu.VMEM((HW, Cp), jnp.float32)],
        compiler_params=cparams,
    )(xp, w1p, b1p)

    sc1, sh1 = _bn_fold(st1, g1p, be1p, count)

    # -------- stage 2: BN1 + PReLU + conv2 + per-image BN2 statistics --------
    z, st2 = pl.pallas_call(
        _bn_prelu_conv_stats_kernel,
        grid=(N,),
        in_specs=[img_spec(HW, Cp),
                  bcast_spec(1, Cp), bcast_spec(1, Cp), bcast_spec(1, Cp),
                  bcast_spec(9, Cp, Cp), bcast_spec(1, Cp)],
        out_specs=(img_spec(HW, Cp), img_spec(2, Cp)),
        out_shape=(jax.ShapeDtypeStruct((N, HW, Cp), jnp.float32),
                   jax.ShapeDtypeStruct((N, 2, Cp), jnp.float32)),
        scratch_shapes=[pltpu.VMEM((H + 2, W + 2, Cp), jnp.float32),
                        pltpu.VMEM((HW, Cp), jnp.float32)],
        compiler_params=cparams,
    )(y1, sc1, sh1, alpha_p, w2p, b2p)

    sc2, sh2 = _bn_fold(st2, g2p, be2p, count)

    # -------- stage 3: BN2 affine + residual add ------------------------------
    out_flat = pl.pallas_call(
        _bn_residual_kernel,
        grid=(N,),
        in_specs=[img_spec(HW, Cp), img_spec(HW, Cp),
                  bcast_spec(1, Cp), bcast_spec(1, Cp)],
        out_specs=img_spec(HW, Cp),
        out_shape=jax.ShapeDtypeStruct((N, HW, Cp), x_nchw.dtype),
        compiler_params=cparams,
    )(x_flat, z, sc2, sh2)

    out = out_flat.reshape(N, H, W, Cp)[..., :C]
    return jnp.transpose(out, (0, 3, 1, 2))                 # NHWC -> NCHW


# ---------------------------------------------------------------------------
# Parameter setup (deterministic, synthetic) + spectral-norm glue
# ---------------------------------------------------------------------------
def spectral_normalize(w_oihw, n_iter=30, eps=1e-12):
    # spectral_norm: W / sigma(W), power iteration on W reshaped to
    # (C_out, C_in*k*k), run to convergence here (PyTorch does one step per
    # forward from a persisted u; the steady state is this).
    c_out = w_oihw.shape[0]
    w_mat = w_oihw.reshape(c_out, -1)
    u = jnp.ones((c_out,), jnp.float32) / jnp.sqrt(c_out)
    for _ in range(n_iter):
        v = w_mat.T @ u
        v = v / (jnp.linalg.norm(v) + eps)
        u = w_mat @ v
        u = u / (jnp.linalg.norm(u) + eps)
    sigma = u @ (w_mat @ v)
    return w_oihw / sigma


def make_params(key, in_features):
    C = in_features
    fan_in = C * 3 * 3
    bound = 1.0 / jnp.sqrt(fan_in)
    ks = jax.random.split(key, 4)

    def conv_params(kw, kb):
        w_oihw = jax.random.uniform(kw, (C, C, 3, 3), jnp.float32, -bound, bound)
        w_oihw = spectral_normalize(w_oihw)
        w_hwio = jnp.transpose(w_oihw, (2, 3, 1, 0))      # OIHW -> HWIO
        b = jax.random.uniform(kb, (C,), jnp.float32, -bound, bound)
        return w_hwio, b

    w1, b1 = conv_params(ks[0], ks[1])
    w2, b2 = conv_params(ks[2], ks[3])
    # BatchNorm2d defaults: gamma=1, beta=0 ; PReLU default slope 0.25
    return dict(w1=w1, b1=b1, g1=jnp.ones((C,), jnp.float32),
                be1=jnp.zeros((C,), jnp.float32),
                alpha=jnp.float32(0.25),
                w2=w2, b2=b2, g2=jnp.ones((C,), jnp.float32),
                be2=jnp.zeros((C,), jnp.float32))


# ---------------------------------------------------------------------------
# Pure-JAX reference (for correctness check)
# ---------------------------------------------------------------------------
def residual_block_ref(x_nchw, p):
    x = jnp.transpose(x_nchw, (0, 2, 3, 1))

    def conv(inp, w, b):
        out = lax.conv_general_dilated(
            inp, w, (1, 1), "SAME",
            dimension_numbers=("NHWC", "HWIO", "NHWC"))
        return out + b.reshape(1, 1, 1, -1)

    def bn(y, g, be):
        m = jnp.mean(y, axis=(0, 1, 2), keepdims=True)
        v = jnp.mean((y - m) ** 2, axis=(0, 1, 2), keepdims=True)
        return (y - m) * lax.rsqrt(v + BN_EPS) * g.reshape(1, 1, 1, -1) \
               + be.reshape(1, 1, 1, -1)

    y = conv(x, p["w1"], p["b1"])
    y = bn(y, p["g1"], p["be1"])
    y = jnp.where(y > 0, y, p["alpha"] * y)
    z = conv(y, p["w2"], p["b2"])
    z = bn(z, p["g2"], p["be2"])
    return jnp.transpose(x + z, (0, 3, 1, 2))


# ---------------------------------------------------------------------------
if __name__ == "__main__":
    key = jax.random.PRNGKey(0)
    kx, kp = jax.random.split(key)

    N, C, H, W = 2, 4, 16, 16
    x = jax.random.normal(kx, (N, C, H, W), jnp.float32)   # NCHW, like PyTorch
    p = make_params(kp, C)

    out = residual_block(x, p["w1"], p["b1"], p["g1"], p["be1"], p["alpha"],
                         p["w2"], p["b2"], p["g2"], p["be2"])
    out = jax.block_until_ready(out)

    ref = jax.block_until_ready(residual_block_ref(x, p))
    assert out.shape == (N, C, H, W)
    err = float(jnp.max(jnp.abs(out - ref)))
    # bf16 MXU operands (f32 accumulation / f32 BN math) -> loosened tolerance.
    assert jnp.allclose(out, ref, rtol=2e-2, atol=2e-2), f"max abs diff {err}"

    print("KERNEL_OK")
</pallas_src>

<mosaic_0001>
module attributes {stable_mosaic.version = 11 : i64} {
  func.func @_bn_residual_kernel(%arg0: i32, %arg1: memref<1x256x128xf32, #tpu.memory_space<vmem>>, %arg2: memref<1x256x128xf32, #tpu.memory_space<vmem>>, %arg3: memref<1x128xf32, #tpu.memory_space<vmem>>, %arg4: memref<1x128xf32, #tpu.memory_space<vmem>>, %arg5: memref<1x256x128xf32, #tpu.memory_space<vmem>>) attributes {dimension_semantics = [#tpu.dimension_semantics<parallel>], iteration_bounds = array<i64: 2>, scalar_prefetch = 0 : i64, scratch_operands = 0 : i64, tpu.core_type = #tpu.core_type<tc>, window_params = [{transform_indices = @transform_0, window_bounds = array<i64: 1, 256, 128>}, {transform_indices = @transform_1, window_bounds = array<i64: 1, 256, 128>}, {pipeline_mode = #tpu.pipeline_mode<synchronous>, transform_indices = @transform_2, window_bounds = array<i64: 1, 128>}, {pipeline_mode = #tpu.pipeline_mode<synchronous>, transform_indices = @transform_3, window_bounds = array<i64: 1, 128>}, {transform_indices = @transform_4, window_bounds = array<i64: 1, 256, 128>}]} {
    %c0 = arith.constant 0 : index
    %c0_0 = arith.constant 0 : index
    %c0_1 = arith.constant 0 : index
    %0 = vector.load %arg1[%c0, %c0_0, %c0_1] : memref<1x256x128xf32, #tpu.memory_space<vmem>>, vector<1x256x128xf32>
    %1 = vector.shape_cast %0 : vector<1x256x128xf32> to vector<256x128xf32>
    %c0_2 = arith.constant 0 : index
    %c0_3 = arith.constant 0 : index
    %c0_4 = arith.constant 0 : index
    %2 = vector.load %arg2[%c0_2, %c0_3, %c0_4] : memref<1x256x128xf32, #tpu.memory_space<vmem>>, vector<1x256x128xf32>
    %3 = vector.shape_cast %2 : vector<1x256x128xf32> to vector<256x128xf32>
    %c0_5 = arith.constant 0 : index
    %c0_6 = arith.constant 0 : index
    %4 = vector.load %arg3[%c0_5, %c0_6] : memref<1x128xf32, #tpu.memory_space<vmem>>, vector<1x128xf32>
    %5 = vector.broadcast %4 : vector<1x128xf32> to vector<256x128xf32>
    %6 = arith.mulf %3, %5 : vector<256x128xf32>
    %7 = arith.addf %1, %6 : vector<256x128xf32>
    %c0_7 = arith.constant 0 : index
    %c0_8 = arith.constant 0 : index
    %8 = vector.load %arg4[%c0_7, %c0_8] : memref<1x128xf32, #tpu.memory_space<vmem>>, vector<1x128xf32>
    %9 = vector.broadcast %8 : vector<1x128xf32> to vector<256x128xf32>
    %10 = arith.addf %7, %9 : vector<256x128xf32>
    %c0_9 = arith.constant 0 : index
    %c0_10 = arith.constant 0 : index
    %c0_11 = arith.constant 0 : index
    %11 = vector.load %arg5[%c0_9, %c0_10, %c0_11] : memref<1x256x128xf32, #tpu.memory_space<vmem>>, vector<1x256x128xf32>
    %12 = vector.shape_cast %11 : vector<1x256x128xf32> to vector<256x128xf32>
    %13 = vector.shape_cast %10 : vector<256x128xf32> to vector<1x256x128xf32>
    tpu.vector_store %arg5[%c0_9, %c0_10, %c0_11], %13 {strides = array<i32>} : memref<1x256x128xf32, #tpu.memory_space<vmem>>, vector<1x256x128xf32>,
    return
  }
  func.func @transform_0(%arg0: i32) -> (i32, i32, i32) {
    %c0_i32 = arith.constant 0 : i32
    %c0_i32_0 = arith.constant 0 : i32
    %c0_i32_1 = arith.constant 0 : i32
    return %arg0, %c0_i32, %c0_i32_0 : i32, i32, i32
  }
  func.func @transform_1(%arg0: i32) -> (i32, i32, i32) {
    %c0_i32 = arith.constant 0 : i32
    %c0_i32_0 = arith.constant 0 : i32
    %c0_i32_1 = arith.constant 0 : i32
    return %arg0, %c0_i32, %c0_i32_0 : i32, i32, i32
  }
  func.func @transform_2(%arg0: i32) -> (i32, i32) {
    %c0_i32 = arith.constant 0 : i32
    %c0_i32_0 = arith.constant 0 : i32
    %c0_i32_1 = arith.constant 0 : i32
    return %c0_i32, %c0_i32_0 : i32, i32
  }
  func.func @transform_3(%arg0: i32) -> (i32, i32) {
    %c0_i32 = arith.constant 0 : i32
    %c0_i32_0 = arith.constant 0 : i32
    %c0_i32_1 = arith.constant 0 : i32
    return %c0_i32, %c0_i32_0 : i32, i32
  }
  func.func @transform_4(%arg0: i32) -> (i32, i32, i32) {
    %c0_i32 = arith.constant 0 : i32
    %c0_i32_0 = arith.constant 0 : i32
    %c0_i32_1 = arith.constant 0 : i32
    return %arg0, %c0_i32, %c0_i32_0 : i32, i32, i32
  }
}

module attributes {stable_mosaic.version = 11 : i64} {
  func.func @_conv_stats_kernel(%arg0: i32, %arg1: memref<1x18x18x128xf32, #tpu.memory_space<vmem>>, %arg2: memref<9x128x128xbf16, #tpu.memory_space<vmem>>, %arg3: memref<1x128xf32, #tpu.memory_space<vmem>>, %arg4: memref<1x256x128xf32, #tpu.memory_space<vmem>>, %arg5: memref<1x2x128xf32, #tpu.memory_space<vmem>>, %arg6: memref<256x128xf32, #tpu.memory_space<vmem>>) attributes {dimension_semantics = [#tpu.dimension_semantics<parallel>], iteration_bounds = array<i64: 2>, scalar_prefetch = 0 : i64, scratch_operands = 1 : i64, tpu.core_type = #tpu.core_type<tc>, window_params = [{transform_indices = @transform_0, window_bounds = array<i64: 1, 18, 18, 128>}, {pipeline_mode = #tpu.pipeline_mode<synchronous>, transform_indices = @transform_1, window_bounds = array<i64: 9, 128, 128>}, {pipeline_mode = #tpu.pipeline_mode<synchronous>, transform_indices = @transform_2, window_bounds = array<i64: 1, 128>}, {transform_indices = @transform_3, window_bounds = array<i64: 1, 256, 128>}, {transform_indices = @transform_4, window_bounds = array<i64: 1, 2, 128>}]} {
    %cst = arith.constant 0.000000e+00 : f32
    %0 = vector.broadcast %cst : f32 to vector<256x128xf32>
    %c0 = arith.constant 0 : index
    %c0_0 = arith.constant 0 : index
    %1 = vector.load %arg6[%c0, %c0_0] : memref<256x128xf32, #tpu.memory_space<vmem>>, vector<256x128xf32>
    tpu.vector_store %arg6[%c0, %c0_0], %0 {strides = array<i32>} : memref<256x128xf32, #tpu.memory_space<vmem>>, vector<256x128xf32>,
    %c0_1 = arith.constant 0 : index
    %c0_2 = arith.constant 0 : index
    %c0_3 = arith.constant 0 : index
    %c0_4 = arith.constant 0 : index
    %2 = vector.load %arg1[%c0_1, %c0_2, %c0_3, %c0_4] : memref<1x18x18x128xf32, #tpu.memory_space<vmem>>, vector<1x16x16x128xf32>
    %3 = vector.shape_cast %2 : vector<1x16x16x128xf32> to vector<16x16x128xf32>
    %4 = vector.shape_cast %3 : vector<16x16x128xf32> to vector<256x128xf32>
    %c0_5 = arith.constant 0 : index
    %c0_6 = arith.constant 0 : index
    %5 = vector.load %arg6[%c0_5, %c0_6] : memref<256x128xf32, #tpu.memory_space<vmem>>, vector<256x128xf32>
    %6 = arith.truncf %4 : vector<256x128xf32> to vector<256x128xbf16>
    %c0_7 = arith.constant 0 : index
    %c0_8 = arith.constant 0 : index
    %c0_9 = arith.constant 0 : index
    %7 = vector.load %arg2[%c0_7, %c0_8, %c0_9] : memref<9x128x128xbf16, #tpu.memory_space<vmem>>, vector<1x128x128xbf16>
    %8 = vector.shape_cast %7 : vector<1x128x128xbf16> to vector<128x128xbf16>
    %cst_10 = arith.constant dense<0.000000e+00> : vector<256x128xf32>
    %9 = tpu.matmul %6, %8, %cst_10 {dimension_numbers = #tpu.dot_dimension_numbers<[1], [0], [0], [1], [0, 0, 1, 1], [], []>} : vector<256x128xbf16>, vector<128x128xbf16>, vector<256x128xf32> -> vector<256x128xf32>
    %10 = arith.addf %5, %9 : vector<256x128xf32>
    %c0_11 = arith.constant 0 : index
    %c0_12 = arith.constant 0 : index
    %11 = vector.load %arg6[%c0_11, %c0_12] : memref<256x128xf32, #tpu.memory_space<vmem>>, vector<256x128xf32>
    tpu.vector_store %arg6[%c0_11, %c0_12], %10 {strides = array<i32>} : memref<256x128xf32, #tpu.memory_space<vmem>>, vector<256x128xf32>,
    %c0_13 = arith.constant 0 : index
    %c0_14 = arith.constant 0 : index
    %c1 = arith.constant 1 : index
    %c0_15 = arith.constant 0 : index
    %12 = vector.load %arg1[%c0_13, %c0_14, %c1, %c0_15] : memref<1x18x18x128xf32, #tpu.memory_space<vmem>>, vector<1x16x16x128xf32>
    %13 = vector.shape_cast %12 : vector<1x16x16x128xf32> to vector<16x16x128xf32>
    %14 = vector.shape_cast %13 : vector<16x16x128xf32> to vector<256x128xf32>
    %c0_16 = arith.constant 0 : index
    %c0_17 = arith.constant 0 : index
    %15 = vector.load %arg6[%c0_16, %c0_17] : memref<256x128xf32, #tpu.memory_space<vmem>>, vector<256x128xf32>
    %16 = arith.truncf %14 : vector<256x128xf32> to vector<256x128xbf16>
    %c1_18 = arith.constant 1 : index
    %c0_19 = arith.constant 0 : index
    %c0_20 = arith.constant 0 : index
    %17 = vector.load %arg2[%c1_18, %c0_19, %c0_20] : memref<9x128x128xbf16, #tpu.memory_space<vmem>>, vector<1x128x128xbf16>
    %18 = vector.shape_cast %17 : vector<1x128x128xbf16> to vector<128x128xbf16>
    %cst_21 = arith.constant dense<0.000000e+00> : vector<256x128xf32>
    %19 = tpu.matmul %16, %18, %cst_21 {dimension_numbers = #tpu.dot_dimension_numbers<[1], [0], [0], [1], [0, 0, 1, 1], [], []>} : vector<256x128xbf16>, vector<128x128xbf16>, vector<256x128xf32> -> vector<256x128xf32>
    %20 = arith.addf %15, %19 : vector<256x128xf32>
    %c0_22 = arith.constant 0 : index
    %c0_23 = arith.constant 0 : index
    %21 = vector.load %arg6[%c0_22, %c0_23] : memref<256x128xf32, #tpu.memory_space<vmem>>, vector<256x128xf32>
    tpu.vector_store %arg6[%c0_22, %c0_23], %20 {strides = array<i32>} : memref<256x128xf32, #tpu.memory_space<vmem>>, vector<256x128xf32>,
    %c0_24 = arith.constant 0 : index
    %c0_25 = arith.constant 0 : index
    %c2 = arith.constant 2 : index
    %c0_26 = arith.constant 0 : index
    %22 = vector.load %arg1[%c0_24, %c0_25, %c2, %c0_26] : memref<1x18x18x128xf32, #tpu.memory_space<vmem>>, vector<1x16x16x128xf32>
    %23 = vector.shape_cast %22 : vector<1x16x16x128xf32> to vector<16x16x128xf32>
    %24 = vector.shape_cast %23 : vector<16x16x128xf32> to vector<256x128xf32>
    %c0_27 = arith.constant 0 : index
    %c0_28 = arith.constant 0 : index
    %25 = vector.load %arg6[%c0_27, %c0_28] : memref<256x128xf32, #tpu.memory_space<vmem>>, vector<256x128xf32>
    %26 = arith.truncf %24 : vector<256x128xf32> to vector<256x128xbf16>
    %c2_29 = arith.constant 2 : index
    %c0_30 = arith.constant 0 : index
    %c0_31 = arith.constant 0 : index
    %27 = vector.load %arg2[%c2_29, %c0_30, %c0_31] : memref<9x128x128xbf16, #tpu.memory_space<vmem>>, vector<1x128x128xbf16>
    %28 = vector.shape_cast %27 : vector<1x128x128xbf16> to vector<128x128xbf16>
    %cst_32 = arith.constant dense<0.000000e+00> : vector<256x128xf32>
    %29 = tpu.matmul %26, %28, %cst_32 {dimension_numbers = #tpu.dot_dimension_numbers<[1], [0], [0], [1], [0, 0, 1, 1], [], []>} : vector<256x128xbf16>, vector<128x128xbf16>, vector<256x128xf32> -> vector<256x128xf32>
    %30 = arith.addf %25, %29 : vector<256x128xf32>
    %c0_33 = arith.constant 0 : index
    %c0_34 = arith.constant 0 : index
    %31 = vector.load %arg6[%c0_33, %c0_34] : memref<256x128xf32, #tpu.memory_space<vmem>>, vector<256x128xf32>
    tpu.vector_store %arg6[%c0_33, %c0_34], %30 {strides = array<i32>} : memref<256x128xf32, #tpu.memory_space<vmem>>, vector<256x128xf32>,
    %c0_35 = arith.constant 0 : index
    %c1_36 = arith.constant 1 : index
    %c0_37 = arith.constant 0 : index
    %c0_38 = arith.constant 0 : index
    %32 = vector.load %arg1[%c0_35, %c1_36, %c0_37, %c0_38] : memref<1x18x18x128xf32, #tpu.memory_space<vmem>>, vector<1x16x16x128xf32>
    %33 = vector.shape_cast %32 : vector<1x16x16x128xf32> to vector<16x16x128xf32>
    %34 = vector.shape_cast %33 : vector<16x16x128xf32> to vector<256x128xf32>
    %c0_39 = arith.constant 0 : index
    %c0_40 = arith.constant 0 : index
    %35 = vector.load %arg6[%c0_39, %c0_40] : memref<256x128xf32, #tpu.memory_space<vmem>>, vector<256x128xf32>
    %36 = arith.truncf %34 : vector<256x128xf32> to vector<256x128xbf16>
    %c3 = arith.constant 3 : index
    %c0_41 = arith.constant 0 : index
    %c0_42 = arith.constant 0 : index
    %37 = vector.load %arg2[%c3, %c0_41, %c0_42] : memref<9x128x128xbf16, #tpu.memory_space<vmem>>, vector<1x128x128xbf16>
    %38 = vector.shape_cast %37 : vector<1x128x128xbf16> to vector<128x128xbf16>
    %cst_43 = arith.constant dense<0.000000e+00> : vector<256x128xf32>
    %39 = tpu.matmul %36, %38, %cst_43 {dimension_numbers = #tpu.dot_dimension_numbers<[1], [0], [0], [1], [0, 0, 1, 1], [], []>} : vector<256x128xbf16>, vector<128x128xbf16>, vector<256x128xf32> -> vector<256x128xf32>
    %40 = arith.addf %35, %39 : vector<256x128xf32>
    %c0_44 = arith.constant 0 : index
    %c0_45 = arith.constant 0 : index
    %41 = vector.load %arg6[%c0_44, %c0_45] : memref<256x128xf32, #tpu.memory_space<vmem>>, vector<256x128xf32>
    tpu.vector_store %arg6[%c0_44, %c0_45], %40 {strides = array<i32>} : memref<256x128xf32, #tpu.memory_space<vmem>>, vector<256x128xf32>,
    %c0_46 = arith.constant 0 : index
    %c1_47 = arith.constant 1 : index
    %c1_48 = arith.constant 1 : index
    %c0_49 = arith.constant 0 : index
    %42 = vector.load %arg1[%c0_46, %c1_47, %c1_48, %c0_49] : memref<1x18x18x128xf32, #tpu.memory_space<vmem>>, vector<1x16x16x128xf32>
    %43 = vector.shape_cast %42 : vector<1x16x16x128xf32> to vector<16x16x128xf32>
    %44 = vector.shape_cast %43 : vector<16x16x128xf32> to vector<256x128xf32>
    %c0_50 = arith.constant 0 : index
    %c0_51 = arith.constant 0 : index
    %45 = vector.load %arg6[%c0_50, %c0_51] : memref<256x128xf32, #tpu.memory_space<vmem>>, vector<256x128xf32>
    %46 = arith.truncf %44 : vector<256x128xf32> to vector<256x128xbf16>
    %c4 = arith.constant 4 : index
    %c0_52 = arith.constant 0 : index
    %c0_53 = arith.constant 0 : index
    %47 = vector.load %arg2[%c4, %c0_52, %c0_53] : memref<9x128x128xbf16, #tpu.memory_space<vmem>>, vector<1x128x128xbf16>
    %48 = vector.shape_cast %47 : vector<1x128x128xbf16> to vector<128x128xbf16>
    %cst_54 = arith.constant dense<0.000000e+00> : vector<256x128xf32>
    %49 = tpu.matmul %46, %48, %cst_54 {dimension_numbers = #tpu.dot_dimension_numbers<[1], [0], [0], [1], [0, 0, 1, 1], [], []>} : vector<256x128xbf16>, vector<128x128xbf16>, vector<256x128xf32> -> vector<256x128xf32>
    %50 = arith.addf %45, %49 : vector<256x128xf32>
    %c0_55 = arith.constant 0 : index
    %c0_56 = arith.constant 0 : index
    %51 = vector.load %arg6[%c0_55, %c0_56] : memref<256x128xf32, #tpu.memory_space<vmem>>, vector<256x128xf32>
    tpu.vector_store %arg6[%c0_55, %c0_56], %50 {strides = array<i32>} : memref<256x128xf32, #tpu.memory_space<vmem>>, vector<256x128xf32>,
    %c0_57 = arith.constant 0 : index
    %c1_58 = arith.constant 1 : index
    %c2_59 = arith.constant 2 : index
    %c0_60 = arith.constant 0 : index
    %52 = vector.load %arg1[%c0_57, %c1_58, %c2_59, %c0_60] : memref<1x18x18x128xf32, #tpu.memory_space<vmem>>, vector<1x16x16x128xf32>
    %53 = vector.shape_cast %52 : vector<1x16x16x128xf32> to vector<16x16x128xf32>
    %54 = vector.shape_cast %53 : vector<16x16x128xf32> to vector<256x128xf32>
    %c0_61 = arith.constant 0 : index
    %c0_62 = arith.constant 0 : index
    %55 = vector.load %arg6[%c0_61, %c0_62] : memref<256x128xf32, #tpu.memory_space<vmem>>, vector<256x128xf32>
    %56 = arith.truncf %54 : vector<256x128xf32> to vector<256x128xbf16>
    %c5 = arith.constant 5 : index
    %c0_63 = arith.constant 0 : index
    %c0_64 = arith.constant 0 : index
    %57 = vector.load %arg2[%c5, %c0_63, %c0_64] : memref<9x128x128xbf16, #tpu.memory_space<vmem>>, vector<1x128x128xbf16>
    %58 = vector.shape_cast %57 : vector<1x128x128xbf16> to vector<128x128xbf16>
    %cst_65 = arith.constant dense<0.000000e+00> : vector<256x128xf32>
    %59 = tpu.matmul %56, %58, %cst_65 {dimension_numbers = #tpu.dot_dimension_numbers<[1], [0], [0], [1], [0, 0, 1, 1], [], []>} : vector<256x128xbf16>, vector<128x128xbf16>, vector<256x128xf32> -> vector<256x128xf32>
    %60 = arith.addf %55, %59 : vector<256x128xf32>
    %c0_66 = arith.constant 0 : index
    %c0_67 = arith.constant 0 : index
    %61 = vector.load %arg6[%c0_66, %c0_67] : memref<256x128xf32, #tpu.memory_space<vmem>>, vector<256x128xf32>
    tpu.vector_store %arg6[%c0_66, %c0_67], %60 {strides = array<i32>} : memref<256x128xf32, #tpu.memory_space<vmem>>, vector<256x128xf32>,
    %c0_68 = arith.constant 0 : index
    %c2_69 = arith.constant 2 : index
    %c0_70 = arith.constant 0 : index
    %c0_71 = arith.constant 0 : index
    %62 = vector.load %arg1[%c0_68, %c2_69, %c0_70, %c0_71] : memref<1x18x18x128xf32, #tpu.memory_space<vmem>>, vector<1x16x16x128xf32>
    %63 = vector.shape_cast %62 : vector<1x16x16x128xf32> to vector<16x16x128xf32>
    %64 = vector.shape_cast %63 : vector<16x16x128xf32> to vector<256x128xf32>
    %c0_72 = arith.constant 0 : index
    %c0_73 = arith.constant 0 : index
    %65 = vector.load %arg6[%c0_72, %c0_73] : memref<256x128xf32, #tpu.memory_space<vmem>>, vector<256x128xf32>
    %66 = arith.truncf %64 : vector<256x128xf32> to vector<256x128xbf16>
    %c6 = arith.constant 6 : index
    %c0_74 = arith.constant 0 : index
    %c0_75 = arith.constant 0 : index
    %67 = vector.load %arg2[%c6, %c0_74, %c0_75] : memref<9x128x128xbf16, #tpu.memory_space<vmem>>, vector<1x128x128xbf16>
    %68 = vector.shape_cast %67 : vector<1x128x128xbf16> to vector<128x128xbf16>
    %cst_76 = arith.constant dense<0.000000e+00> : vector<256x128xf32>
    %69 = tpu.matmul %66, %68, %cst_76 {dimension_numbers = #tpu.dot_dimension_numbers<[1], [0], [0], [1], [0, 0, 1, 1], [], []>} : vector<256x128xbf16>, vector<128x128xbf16>, vector<256x128xf32> -> vector<256x128xf32>
    %70 = arith.addf %65, %69 : vector<256x128xf32>
    %c0_77 = arith.constant 0 : index
    %c0_78 = arith.constant 0 : index
    %71 = vector.load %arg6[%c0_77, %c0_78] : memref<256x128xf32, #tpu.memory_space<vmem>>, vector<256x128xf32>
    tpu.vector_store %arg6[%c0_77, %c0_78], %70 {strides = array<i32>} : memref<256x128xf32, #tpu.memory_space<vmem>>, vector<256x128xf32>,
    %c0_79 = arith.constant 0 : index
    %c2_80 = arith.constant 2 : index
    %c1_81 = arith.constant 1 : index
    %c0_82 = arith.constant 0 : index
    %72 = vector.load %arg1[%c0_79, %c2_80, %c1_81, %c0_82] : memref<1x18x18x128xf32, #tpu.memory_space<vmem>>, vector<1x16x16x128xf32>
    %73 = vector.shape_cast %72 : vector<1x16x16x128xf32> to vector<16x16x128xf32>
    %74 = vector.shape_cast %73 : vector<16x16x128xf32> to vector<256x128xf32>
    %c0_83 = arith.constant 0 : index
    %c0_84 = arith.constant 0 : index
    %75 = vector.load %arg6[%c0_83, %c0_84] : memref<256x128xf32, #tpu.memory_space<vmem>>, vector<256x128xf32>
    %76 = arith.truncf %74 : vector<256x128xf32> to vector<256x128xbf16>
    %c7 = arith.constant 7 : index
    %c0_85 = arith.constant 0 : index
    %c0_86 = arith.constant 0 : index
    %77 = vector.load %arg2[%c7, %c0_85, %c0_86] : memref<9x128x128xbf16, #tpu.memory_space<vmem>>, vector<1x128x128xbf16>
    %78 = vector.shape_cast %77 : vector<1x128x128xbf16> to vector<128x128xbf16>
    %cst_87 = arith.constant dense<0.000000e+00> : vector<256x128xf32>
    %79 = tpu.matmul %76, %78, %cst_87 {dimension_numbers = #tpu.dot_dimension_numbers<[1], [0], [0], [1], [0, 0, 1, 1], [], []>} : vector<256x128xbf16>, vector<128x128xbf16>, vector<256x128xf32> -> vector<256x128xf32>
    %80 = arith.addf %75, %79 : vector<256x128xf32>
    %c0_88 = arith.constant 0 : index
    %c0_89 = arith.constant 0 : index
    %81 = vector.load %arg6[%c0_88, %c0_89] : memref<256x128xf32, #tpu.memory_space<vmem>>, vector<256x128xf32>
    tpu.vector_store %arg6[%c0_88, %c0_89], %80 {strides = array<i32>} : memref<256x128xf32, #tpu.memory_space<vmem>>, vector<256x128xf32>,
    %c0_90 = arith.constant 0 : index
    %c2_91 = arith.constant 2 : index
    %c2_92 = arith.constant 2 : index
    %c0_93 = arith.constant 0 : index
    %82 = vector.load %arg1[%c0_90, %c2_91, %c2_92, %c0_93] : memref<1x18x18x128xf32, #tpu.memory_space<vmem>>, vector<1x16x16x128xf32>
    %83 = vector.shape_cast %82 : vector<1x16x16x128xf32> to vector<16x16x128xf32>
    %84 = vector.shape_cast %83 : vector<16x16x128xf32> to vector<256x128xf32>
    %c0_94 = arith.constant 0 : index
    %c0_95 = arith.constant 0 : index
    %85 = vector.load %arg6[%c0_94, %c0_95] : memref<256x128xf32, #tpu.memory_space<vmem>>, vector<256x128xf32>
    %86 = arith.truncf %84 : vector<256x128xf32> to vector<256x128xbf16>
    %c8 = arith.constant 8 : index
    %c0_96 = arith.constant 0 : index
    %c0_97 = arith.constant 0 : index
    %87 = vector.load %arg2[%c8, %c0_96, %c0_97] : memref<9x128x128xbf16, #tpu.memory_space<vmem>>, vector<1x128x128xbf16>
    %88 = vector.shape_cast %87 : vector<1x128x128xbf16> to vector<128x128xbf16>
    %cst_98 = arith.constant dense<0.000000e+00> : vector<256x128xf32>
    %89 = tpu.matmul %86, %88, %cst_98 {dimension_numbers = #tpu.dot_dimension_numbers<[1], [0], [0], [1], [0, 0, 1, 1], [], []>} : vector<256x128xbf16>, vector<128x128xbf16>, vector<256x128xf32> -> vector<256x128xf32>
    %90 = arith.addf %85, %89 : vector<256x128xf32>
    %c0_99 = arith.constant 0 : index
    %c0_100 = arith.constant 0 : index
    %91 = vector.load %arg6[%c0_99, %c0_100] : memref<256x128xf32, #tpu.memory_space<vmem>>, vector<256x128xf32>
    tpu.vector_store %arg6[%c0_99, %c0_100], %90 {strides = array<i32>} : memref<256x128xf32, #tpu.memory_space<vmem>>, vector<256x128xf32>,
    %c0_101 = arith.constant 0 : index
    %c0_102 = arith.constant 0 : index
    %92 = vector.load %arg6[%c0_101, %c0_102] : memref<256x128xf32, #tpu.memory_space<vmem>>, vector<256x128xf32>
    %c0_103 = arith.constant 0 : index
    %c0_104 = arith.constant 0 : index
    %93 = vector.load %arg3[%c0_103, %c0_104] : memref<1x128xf32, #tpu.memory_space<vmem>>, vector<1x128xf32>
    %94 = vector.broadcast %93 : vector<1x128xf32> to vector<256x128xf32>
    %95 = arith.addf %92, %94 : vector<256x128xf32>
    %c0_105 = arith.constant 0 : index
    %c0_106 = arith.constant 0 : index
    %c0_107 = arith.constant 0 : index
    %96 = vector.load %arg4[%c0_105, %c0_106, %c0_107] : memref<1x256x128xf32, #tpu.memory_space<vmem>>, vector<1x256x128xf32>
    %97 = vector.shape_cast %96 : vector<1x256x128xf32> to vector<256x128xf32>
    %98 = vector.shape_cast %95 : vector<256x128xf32> to vector<1x256x128xf32>
    tpu.vector_store %arg4[%c0_105, %c0_106, %c0_107], %98 {strides = array<i32>} : memref<1x256x128xf32, #tpu.memory_space<vmem>>, vector<1x256x128xf32>,
    %cst_108 = arith.constant dense<0.000000e+00> : vector<128xf32>
    %99 = vector.multi_reduction <add>, %95, %cst_108 [0] : vector<256x128xf32> to vector<128xf32>
    %100 = vector.shape_cast %99 : vector<128xf32> to vector<1x128xf32>
    %101 = arith.mulf %95, %95 : vector<256x128xf32>
    %cst_109 = arith.constant dense<0.000000e+00> : vector<128xf32>
    %102 = vector.multi_reduction <add>, %101, %cst_109 [0] : vector<256x128xf32> to vector<128xf32>
    %103 = vector.shape_cast %102 : vector<128xf32> to vector<1x128xf32>
    %104 = tpu.concatenate %100, %103 in 0 : vector<1x128xf32>, vector<1x128xf32> -> vector<2x128xf32>
    %c0_110 = arith.constant 0 : index
    %c0_111 = arith.constant 0 : index
    %c0_112 = arith.constant 0 : index
    %105 = vector.load %arg5[%c0_110, %c0_111, %c0_112] : memref<1x2x128xf32, #tpu.memory_space<vmem>>, vector<1x2x128xf32>
    %106 = vector.shape_cast %105 : vector<1x2x128xf32> to vector<2x128xf32>
    %107 = vector.shape_cast %104 : vector<2x128xf32> to vector<1x2x128xf32>
    tpu.vector_store %arg5[%c0_110, %c0_111, %c0_112], %107 {strides = array<i32>} : memref<1x2x128xf32, #tpu.memory_space<vmem>>, vector<1x2x128xf32>,
    return
  }
  func.func @transform_0(%arg0: i32) -> (i32, i32, i32, i32) {
    %c0_i32 = arith.constant 0 : i32
    %c0_i32_0 = arith.constant 0 : i32
    %c0_i32_1 = arith.constant 0 : i32
    %c0_i32_2 = arith.constant 0 : i32
    return %arg0, %c0_i32, %c0_i32_0, %c0_i32_1 : i32, i32, i32, i32
  }
  func.func @transform_1(%arg0: i32) -> (i32, i32, i32) {
    %c0_i32 = arith.constant 0 : i32
    %c0_i32_0 = arith.constant 0 : i32
    %c0_i32_1 = arith.constant 0 : i32
    %c0_i32_2 = arith.constant 0 : i32
    return %c0_i32, %c0_i32_0, %c0_i32_1 : i32, i32, i32
  }
  func.func @transform_2(%arg0: i32) -> (i32, i32) {
    %c0_i32 = arith.constant 0 : i32
    %c0_i32_0 = arith.constant 0 : i32
    %c0_i32_1 = arith.constant 0 : i32
    return %c0_i32, %c0_i32_0 : i32, i32
  }
  func.func @transform_3(%arg0: i32) -> (i32, i32, i32) {
    %c0_i32 = arith.constant 0 : i32
    %c0_i32_0 = arith.constant 0 : i32
    %c0_i32_1 = arith.constant 0 : i32
    return %arg0, %c0_i32, %c0_i32_0 : i32, i32, i32
  }
  func.func @transform_4(%arg0: i32) -> (i32, i32, i32) {
    %c0_i32 = arith.constant 0 : i32
    %c0_i32_0 = arith.constant 0 : i32
    %c0_i32_1 = arith.constant 0 : i32
    return %arg0, %c0_i32, %c0_i32_0 : i32, i32, i32
  }
}

module attributes {stable_mosaic.version = 11 : i64} {
  func.func @_bn_prelu_conv_stats_kernel(%arg0: i32, %arg1: memref<1x256x128xf32, #tpu.memory_space<vmem>>, %arg2: memref<1x128xf32, #tpu.memory_space<vmem>>, %arg3: memref<1x128xf32, #tpu.memory_space<vmem>>, %arg4: memref<1x128xf32, #tpu.memory_space<vmem>>, %arg5: memref<9x128x128xbf16, #tpu.memory_space<vmem>>, %arg6: memref<1x128xf32, #tpu.memory_space<vmem>>, %arg7: memref<1x256x128xf32, #tpu.memory_space<vmem>>, %arg8: memref<1x2x128xf32, #tpu.memory_space<vmem>>, %arg9: memref<18x18x128xf32, #tpu.memory_space<vmem>>, %arg10: memref<256x128xf32, #tpu.memory_space<vmem>>) attributes {dimension_semantics = [#tpu.dimension_semantics<parallel>], iteration_bounds = array<i64: 2>, scalar_prefetch = 0 : i64, scratch_operands = 2 : i64, tpu.core_type = #tpu.core_type<tc>, window_params = [{transform_indices = @transform_0, window_bounds = array<i64: 1, 256, 128>}, {pipeline_mode = #tpu.pipeline_mode<synchronous>, transform_indices = @transform_1, window_bounds = array<i64: 1, 128>}, {pipeline_mode = #tpu.pipeline_mode<synchronous>, transform_indices = @transform_2, window_bounds = array<i64: 1, 128>}, {pipeline_mode = #tpu.pipeline_mode<synchronous>, transform_indices = @transform_3, window_bounds = array<i64: 1, 128>}, {pipeline_mode = #tpu.pipeline_mode<synchronous>, transform_indices = @transform_4, window_bounds = array<i64: 9, 128, 128>}, {pipeline_mode = #tpu.pipeline_mode<synchronous>, transform_indices = @transform_5, window_bounds = array<i64: 1, 128>}, {transform_indices = @transform_6, window_bounds = array<i64: 1, 256, 128>}, {transform_indices = @transform_7, window_bounds = array<i64: 1, 2, 128>}]} {
    %c0 = arith.constant 0 : index
    %c0_0 = arith.constant 0 : index
    %c0_1 = arith.constant 0 : index
    %0 = vector.load %arg1[%c0, %c0_0, %c0_1] : memref<1x256x128xf32, #tpu.memory_space<vmem>>, vector<1x256x128xf32>
    %1 = vector.shape_cast %0 : vector<1x256x128xf32> to vector<256x128xf32>
    %c0_2 = arith.constant 0 : index
    %c0_3 = arith.constant 0 : index
    %2 = vector.load %arg2[%c0_2, %c0_3] : memref<1x128xf32, #tpu.memory_space<vmem>>, vector<1x128xf32>
    %3 = vector.broadcast %2 : vector<1x128xf32> to vector<256x128xf32>
    %4 = arith.mulf %1, %3 : vector<256x128xf32>
    %c0_4 = arith.constant 0 : index
    %c0_5 = arith.constant 0 : index
    %5 = vector.load %arg3[%c0_4, %c0_5] : memref<1x128xf32, #tpu.memory_space<vmem>>, vector<1x128xf32>
    %6 = vector.broadcast %5 : vector<1x128xf32> to vector<256x128xf32>
    %7 = arith.addf %4, %6 : vector<256x128xf32>
    %cst = arith.constant 0.000000e+00 : f32
    %8 = vector.broadcast %cst : f32 to vector<256x128xf32>
    %9 = arith.cmpf ogt, %7, %8 : vector<256x128xf32>
    %c0_6 = arith.constant 0 : index
    %c0_7 = arith.constant 0 : index
    %10 = vector.load %arg4[%c0_6, %c0_7] : memref<1x128xf32, #tpu.memory_space<vmem>>, vector<1x128xf32>
    %11 = vector.broadcast %10 : vector<1x128xf32> to vector<256x128xf32>
    %12 = arith.mulf %7, %11 : vector<256x128xf32>
    %13 = arith.select %9, %7, %12 : vector<256x128xi1>, vector<256x128xf32>
    %14 = vector.shape_cast %13 : vector<256x128xf32> to vector<16x16x128xf32>
    %cst_8 = arith.constant 0.000000e+00 : f32
    %15 = vector.broadcast %cst_8 : f32 to vector<1x16x128xf32>
    %cst_9 = arith.constant 0.000000e+00 : f32
    %16 = vector.broadcast %cst_9 : f32 to vector<18x1x128xf32>
    %17 = tpu.concatenate %15, %14, %15 in 0 : vector<1x16x128xf32>, vector<16x16x128xf32>, vector<1x16x128xf32> -> vector<18x16x128xf32>
    %18 = tpu.concatenate %16, %17, %16 in 1 : vector<18x1x128xf32>, vector<18x16x128xf32>, vector<18x1x128xf32> -> vector<18x18x128xf32>
    %c0_10 = arith.constant 0 : index
    %c0_11 = arith.constant 0 : index
    %c0_12 = arith.constant 0 : index
    %19 = vector.load %arg9[%c0_10, %c0_11, %c0_12] : memref<18x18x128xf32, #tpu.memory_space<vmem>>, vector<18x18x128xf32>
    tpu.vector_store %arg9[%c0_10, %c0_11, %c0_12], %18 {strides = array<i32>} : memref<18x18x128xf32, #tpu.memory_space<vmem>>, vector<18x18x128xf32>,
    %cst_13 = arith.constant 0.000000e+00 : f32
    %20 = vector.broadcast %cst_13 : f32 to vector<256x128xf32>
    %c0_14 = arith.constant 0 : index
    %c0_15 = arith.constant 0 : index
    %21 = vector.load %arg10[%c0_14, %c0_15] : memref<256x128xf32, #tpu.memory_space<vmem>>, vector<256x128xf32>
    tpu.vector_store %arg10[%c0_14, %c0_15], %20 {strides = array<i32>} : memref<256x128xf32, #tpu.memory_space<vmem>>, vector<256x128xf32>,
    %c0_16 = arith.constant 0 : index
    %c0_17 = arith.constant 0 : index
    %c0_18 = arith.constant 0 : index
    %22 = vector.load %arg9[%c0_16, %c0_17, %c0_18] : memref<18x18x128xf32, #tpu.memory_space<vmem>>, vector<16x16x128xf32>
    %23 = vector.shape_cast %22 : vector<16x16x128xf32> to vector<256x128xf32>
    %c0_19 = arith.constant 0 : index
    %c0_20 = arith.constant 0 : index
    %24 = vector.load %arg10[%c0_19, %c0_20] : memref<256x128xf32, #tpu.memory_space<vmem>>, vector<256x128xf32>
    %25 = arith.truncf %23 : vector<256x128xf32> to vector<256x128xbf16>
    %c0_21 = arith.constant 0 : index
    %c0_22 = arith.constant 0 : index
    %c0_23 = arith.constant 0 : index
    %26 = vector.load %arg5[%c0_21, %c0_22, %c0_23] : memref<9x128x128xbf16, #tpu.memory_space<vmem>>, vector<1x128x128xbf16>
    %27 = vector.shape_cast %26 : vector<1x128x128xbf16> to vector<128x128xbf16>
    %cst_24 = arith.constant dense<0.000000e+00> : vector<256x128xf32>
    %28 = tpu.matmul %25, %27, %cst_24 {dimension_numbers = #tpu.dot_dimension_numbers<[1], [0], [0], [1], [0, 0, 1, 1], [], []>} : vector<256x128xbf16>, vector<128x128xbf16>, vector<256x128xf32> -> vector<256x128xf32>
    %29 = arith.addf %24, %28 : vector<256x128xf32>
    %c0_25 = arith.constant 0 : index
    %c0_26 = arith.constant 0 : index
    %30 = vector.load %arg10[%c0_25, %c0_26] : memref<256x128xf32, #tpu.memory_space<vmem>>, vector<256x128xf32>
    tpu.vector_store %arg10[%c0_25, %c0_26], %29 {strides = array<i32>} : memref<256x128xf32, #tpu.memory_space<vmem>>, vector<256x128xf32>,
    %c0_27 = arith.constant 0 : index
    %c1 = arith.constant 1 : index
    %c0_28 = arith.constant 0 : index
    %31 = vector.load %arg9[%c0_27, %c1, %c0_28] : memref<18x18x128xf32, #tpu.memory_space<vmem>>, vector<16x16x128xf32>
    %32 = vector.shape_cast %31 : vector<16x16x128xf32> to vector<256x128xf32>
    %c0_29 = arith.constant 0 : index
    %c0_30 = arith.constant 0 : index
    %33 = vector.load %arg10[%c0_29, %c0_30] : memref<256x128xf32, #tpu.memory_space<vmem>>, vector<256x128xf32>
    %34 = arith.truncf %32 : vector<256x128xf32> to vector<256x128xbf16>
    %c1_31 = arith.constant 1 : index
    %c0_32 = arith.constant 0 : index
    %c0_33 = arith.constant 0 : index
    %35 = vector.load %arg5[%c1_31, %c0_32, %c0_33] : memref<9x128x128xbf16, #tpu.memory_space<vmem>>, vector<1x128x128xbf16>
    %36 = vector.shape_cast %35 : vector<1x128x128xbf16> to vector<128x128xbf16>
    %cst_34 = arith.constant dense<0.000000e+00> : vector<256x128xf32>
    %37 = tpu.matmul %34, %36, %cst_34 {dimension_numbers = #tpu.dot_dimension_numbers<[1], [0], [0], [1], [0, 0, 1, 1], [], []>} : vector<256x128xbf16>, vector<128x128xbf16>, vector<256x128xf32> -> vector<256x128xf32>
    %38 = arith.addf %33, %37 : vector<256x128xf32>
    %c0_35 = arith.constant 0 : index
    %c0_36 = arith.constant 0 : index
    %39 = vector.load %arg10[%c0_35, %c0_36] : memref<256x128xf32, #tpu.memory_space<vmem>>, vector<256x128xf32>
    tpu.vector_store %arg10[%c0_35, %c0_36], %38 {strides = array<i32>} : memref<256x128xf32, #tpu.memory_space<vmem>>, vector<256x128xf32>,
    %c0_37 = arith.constant 0 : index
    %c2 = arith.constant 2 : index
    %c0_38 = arith.constant 0 : index
    %40 = vector.load %arg9[%c0_37, %c2, %c0_38] : memref<18x18x128xf32, #tpu.memory_space<vmem>>, vector<16x16x128xf32>
    %41 = vector.shape_cast %40 : vector<16x16x128xf32> to vector<256x128xf32>
    %c0_39 = arith.constant 0 : index
    %c0_40 = arith.constant 0 : index
    %42 = vector.load %arg10[%c0_39, %c0_40] : memref<256x128xf32, #tpu.memory_space<vmem>>, vector<256x128xf32>
    %43 = arith.truncf %41 : vector<256x128xf32> to vector<256x128xbf16>
    %c2_41 = arith.constant 2 : index
    %c0_42 = arith.constant 0 : index
    %c0_43 = arith.constant 0 : index
    %44 = vector.load %arg5[%c2_41, %c0_42, %c0_43] : memref<9x128x128xbf16, #tpu.memory_space<vmem>>, vector<1x128x128xbf16>
    %45 = vector.shape_cast %44 : vector<1x128x128xbf16> to vector<128x128xbf16>
    %cst_44 = arith.constant dense<0.000000e+00> : vector<256x128xf32>
    %46 = tpu.matmul %43, %45, %cst_44 {dimension_numbers = #tpu.dot_dimension_numbers<[1], [0], [0], [1], [0, 0, 1, 1], [], []>} : vector<256x128xbf16>, vector<128x128xbf16>, vector<256x128xf32> -> vector<256x128xf32>
    %47 = arith.addf %42, %46 : vector<256x128xf32>
    %c0_45 = arith.constant 0 : index
    %c0_46 = arith.constant 0 : index
    %48 = vector.load %arg10[%c0_45, %c0_46] : memref<256x128xf32, #tpu.memory_space<vmem>>, vector<256x128xf32>
    tpu.vector_store %arg10[%c0_45, %c0_46], %47 {strides = array<i32>} : memref<256x128xf32, #tpu.memory_space<vmem>>, vector<256x128xf32>,
    %c1_47 = arith.constant 1 : index
    %c0_48 = arith.constant 0 : index
    %c0_49 = arith.constant 0 : index
    %49 = vector.load %arg9[%c1_47, %c0_48, %c0_49] : memref<18x18x128xf32, #tpu.memory_space<vmem>>, vector<16x16x128xf32>
    %50 = vector.shape_cast %49 : vector<16x16x128xf32> to vector<256x128xf32>
    %c0_50 = arith.constant 0 : index
    %c0_51 = arith.constant 0 : index
    %51 = vector.load %arg10[%c0_50, %c0_51] : memref<256x128xf32, #tpu.memory_space<vmem>>, vector<256x128xf32>
    %52 = arith.truncf %50 : vector<256x128xf32> to vector<256x128xbf16>
    %c3 = arith.constant 3 : index
    %c0_52 = arith.constant 0 : index
    %c0_53 = arith.constant 0 : index
    %53 = vector.load %arg5[%c3, %c0_52, %c0_53] : memref<9x128x128xbf16, #tpu.memory_space<vmem>>, vector<1x128x128xbf16>
    %54 = vector.shape_cast %53 : vector<1x128x128xbf16> to vector<128x128xbf16>
    %cst_54 = arith.constant dense<0.000000e+00> : vector<256x128xf32>
    %55 = tpu.matmul %52, %54, %cst_54 {dimension_numbers = #tpu.dot_dimension_numbers<[1], [0], [0], [1], [0, 0, 1, 1], [], []>} : vector<256x128xbf16>, vector<128x128xbf16>, vector<256x128xf32> -> vector<256x128xf32>
    %56 = arith.addf %51, %55 : vector<256x128xf32>
    %c0_55 = arith.constant 0 : index
    %c0_56 = arith.constant 0 : index
    %57 = vector.load %arg10[%c0_55, %c0_56] : memref<256x128xf32, #tpu.memory_space<vmem>>, vector<256x128xf32>
    tpu.vector_store %arg10[%c0_55, %c0_56], %56 {strides = array<i32>} : memref<256x128xf32, #tpu.memory_space<vmem>>, vector<256x128xf32>,
    %c1_57 = arith.constant 1 : index
    %c1_58 = arith.constant 1 : index
    %c0_59 = arith.constant 0 : index
    %58 = vector.load %arg9[%c1_57, %c1_58, %c0_59] : memref<18x18x128xf32, #tpu.memory_space<vmem>>, vector<16x16x128xf32>
    %59 = vector.shape_cast %58 : vector<16x16x128xf32> to vector<256x128xf32>
    %c0_60 = arith.constant 0 : index
    %c0_61 = arith.constant 0 : index
    %60 = vector.load %arg10[%c0_60, %c0_61] : memref<256x128xf32, #tpu.memory_space<vmem>>, vector<256x128xf32>
    %61 = arith.truncf %59 : vector<256x128xf32> to vector<256x128xbf16>
    %c4 = arith.constant 4 : index
    %c0_62 = arith.constant 0 : index
    %c0_63 = arith.constant 0 : index
    %62 = vector.load %arg5[%c4, %c0_62, %c0_63] : memref<9x128x128xbf16, #tpu.memory_space<vmem>>, vector<1x128x128xbf16>
    %63 = vector.shape_cast %62 : vector<1x128x128xbf16> to vector<128x128xbf16>
    %cst_64 = arith.constant dense<0.000000e+00> : vector<256x128xf32>
    %64 = tpu.matmul %61, %63, %cst_64 {dimension_numbers = #tpu.dot_dimension_numbers<[1], [0], [0], [1], [0, 0, 1, 1], [], []>} : vector<256x128xbf16>, vector<128x128xbf16>, vector<256x128xf32> -> vector<256x128xf32>
    %65 = arith.addf %60, %64 : vector<256x128xf32>
    %c0_65 = arith.constant 0 : index
    %c0_66 = arith.constant 0 : index
    %66 = vector.load %arg10[%c0_65, %c0_66] : memref<256x128xf32, #tpu.memory_space<vmem>>, vector<256x128xf32>
    tpu.vector_store %arg10[%c0_65, %c0_66], %65 {strides = array<i32>} : memref<256x128xf32, #tpu.memory_space<vmem>>, vector<256x128xf32>,
    %c1_67 = arith.constant 1 : index
    %c2_68 = arith.constant 2 : index
    %c0_69 = arith.constant 0 : index
    %67 = vector.load %arg9[%c1_67, %c2_68, %c0_69] : memref<18x18x128xf32, #tpu.memory_space<vmem>>, vector<16x16x128xf32>
    %68 = vector.shape_cast %67 : vector<16x16x128xf32> to vector<256x128xf32>
    %c0_70 = arith.constant 0 : index
    %c0_71 = arith.constant 0 : index
    %69 = vector.load %arg10[%c0_70, %c0_71] : memref<256x128xf32, #tpu.memory_space<vmem>>, vector<256x128xf32>
    %70 = arith.truncf %68 : vector<256x128xf32> to vector<256x128xbf16>
    %c5 = arith.constant 5 : index
    %c0_72 = arith.constant 0 : index
    %c0_73 = arith.constant 0 : index
    %71 = vector.load %arg5[%c5, %c0_72, %c0_73] : memref<9x128x128xbf16, #tpu.memory_space<vmem>>, vector<1x128x128xbf16>
    %72 = vector.shape_cast %71 : vector<1x128x128xbf16> to vector<128x128xbf16>
    %cst_74 = arith.constant dense<0.000000e+00> : vector<256x128xf32>
    %73 = tpu.matmul %70, %72, %cst_74 {dimension_numbers = #tpu.dot_dimension_numbers<[1], [0], [0], [1], [0, 0, 1, 1], [], []>} : vector<256x128xbf16>, vector<128x128xbf16>, vector<256x128xf32> -> vector<256x128xf32>
    %74 = arith.addf %69, %73 : vector<256x128xf32>
    %c0_75 = arith.constant 0 : index
    %c0_76 = arith.constant 0 : index
    %75 = vector.load %arg10[%c0_75, %c0_76] : memref<256x128xf32, #tpu.memory_space<vmem>>, vector<256x128xf32>
    tpu.vector_store %arg10[%c0_75, %c0_76], %74 {strides = array<i32>} : memref<256x128xf32, #tpu.memory_space<vmem>>, vector<256x128xf32>,
    %c2_77 = arith.constant 2 : index
    %c0_78 = arith.constant 0 : index
    %c0_79 = arith.constant 0 : index
    %76 = vector.load %arg9[%c2_77, %c0_78, %c0_79] : memref<18x18x128xf32, #tpu.memory_space<vmem>>, vector<16x16x128xf32>
    %77 = vector.shape_cast %76 : vector<16x16x128xf32> to vector<256x128xf32>
    %c0_80 = arith.constant 0 : index
    %c0_81 = arith.constant 0 : index
    %78 = vector.load %arg10[%c0_80, %c0_81] : memref<256x128xf32, #tpu.memory_space<vmem>>, vector<256x128xf32>
    %79 = arith.truncf %77 : vector<256x128xf32> to vector<256x128xbf16>
    %c6 = arith.constant 6 : index
    %c0_82 = arith.constant 0 : index
    %c0_83 = arith.constant 0 : index
    %80 = vector.load %arg5[%c6, %c0_82, %c0_83] : memref<9x128x128xbf16, #tpu.memory_space<vmem>>, vector<1x128x128xbf16>
    %81 = vector.shape_cast %80 : vector<1x128x128xbf16> to vector<128x128xbf16>
    %cst_84 = arith.constant dense<0.000000e+00> : vector<256x128xf32>
    %82 = tpu.matmul %79, %81, %cst_84 {dimension_numbers = #tpu.dot_dimension_numbers<[1], [0], [0], [1], [0, 0, 1, 1], [], []>} : vector<256x128xbf16>, vector<128x128xbf16>, vector<256x128xf32> -> vector<256x128xf32>
    %83 = arith.addf %78, %82 : vector<256x128xf32>
    %c0_85 = arith.constant 0 : index
    %c0_86 = arith.constant 0 : index
    %84 = vector.load %arg10[%c0_85, %c0_86] : memref<256x128xf32, #tpu.memory_space<vmem>>, vector<256x128xf32>
    tpu.vector_store %arg10[%c0_85, %c0_86], %83 {strides = array<i32>} : memref<256x128xf32, #tpu.memory_space<vmem>>, vector<256x128xf32>,
    %c2_87 = arith.constant 2 : index
    %c1_88 = arith.constant 1 : index
    %c0_89 = arith.constant 0 : index
    %85 = vector.load %arg9[%c2_87, %c1_88, %c0_89] : memref<18x18x128xf32, #tpu.memory_space<vmem>>, vector<16x16x128xf32>
    %86 = vector.shape_cast %85 : vector<16x16x128xf32> to vector<256x128xf32>
    %c0_90 = arith.constant 0 : index
    %c0_91 = arith.constant 0 : index
    %87 = vector.load %arg10[%c0_90, %c0_91] : memref<256x128xf32, #tpu.memory_space<vmem>>, vector<256x128xf32>
    %88 = arith.truncf %86 : vector<256x128xf32> to vector<256x128xbf16>
    %c7 = arith.constant 7 : index
    %c0_92 = arith.constant 0 : index
    %c0_93 = arith.constant 0 : index
    %89 = vector.load %arg5[%c7, %c0_92, %c0_93] : memref<9x128x128xbf16, #tpu.memory_space<vmem>>, vector<1x128x128xbf16>
    %90 = vector.shape_cast %89 : vector<1x128x128xbf16> to vector<128x128xbf16>
    %cst_94 = arith.constant dense<0.000000e+00> : vector<256x128xf32>
    %91 = tpu.matmul %88, %90, %cst_94 {dimension_numbers = #tpu.dot_dimension_numbers<[1], [0], [0], [1], [0, 0, 1, 1], [], []>} : vector<256x128xbf16>, vector<128x128xbf16>, vector<256x128xf32> -> vector<256x128xf32>
    %92 = arith.addf %87, %91 : vector<256x128xf32>
    %c0_95 = arith.constant 0 : index
    %c0_96 = arith.constant 0 : index
    %93 = vector.load %arg10[%c0_95, %c0_96] : memref<256x128xf32, #tpu.memory_space<vmem>>, vector<256x128xf32>
    tpu.vector_store %arg10[%c0_95, %c0_96], %92 {strides = array<i32>} : memref<256x128xf32, #tpu.memory_space<vmem>>, vector<256x128xf32>,
    %c2_97 = arith.constant 2 : index
    %c2_98 = arith.constant 2 : index
    %c0_99 = arith.constant 0 : index
    %94 = vector.load %arg9[%c2_97, %c2_98, %c0_99] : memref<18x18x128xf32, #tpu.memory_space<vmem>>, vector<16x16x128xf32>
    %95 = vector.shape_cast %94 : vector<16x16x128xf32> to vector<256x128xf32>
    %c0_100 = arith.constant 0 : index
    %c0_101 = arith.constant 0 : index
    %96 = vector.load %arg10[%c0_100, %c0_101] : memref<256x128xf32, #tpu.memory_space<vmem>>, vector<256x128xf32>
    %97 = arith.truncf %95 : vector<256x128xf32> to vector<256x128xbf16>
    %c8 = arith.constant 8 : index
    %c0_102 = arith.constant 0 : index
    %c0_103 = arith.constant 0 : index
    %98 = vector.load %arg5[%c8, %c0_102, %c0_103] : memref<9x128x128xbf16, #tpu.memory_space<vmem>>, vector<1x128x128xbf16>
    %99 = vector.shape_cast %98 : vector<1x128x128xbf16> to vector<128x128xbf16>
    %cst_104 = arith.constant dense<0.000000e+00> : vector<256x128xf32>
    %100 = tpu.matmul %97, %99, %cst_104 {dimension_numbers = #tpu.dot_dimension_numbers<[1], [0], [0], [1], [0, 0, 1, 1], [], []>} : vector<256x128xbf16>, vector<128x128xbf16>, vector<256x128xf32> -> vector<256x128xf32>
    %101 = arith.addf %96, %100 : vector<256x128xf32>
    %c0_105 = arith.constant 0 : index
    %c0_106 = arith.constant 0 : index
    %102 = vector.load %arg10[%c0_105, %c0_106] : memref<256x128xf32, #tpu.memory_space<vmem>>, vector<256x128xf32>
    tpu.vector_store %arg10[%c0_105, %c0_106], %101 {strides = array<i32>} : memref<256x128xf32, #tpu.memory_space<vmem>>, vector<256x128xf32>,
    %c0_107 = arith.constant 0 : index
    %c0_108 = arith.constant 0 : index
    %103 = vector.load %arg10[%c0_107, %c0_108] : memref<256x128xf32, #tpu.memory_space<vmem>>, vector<256x128xf32>
    %c0_109 = arith.constant 0 : index
    %c0_110 = arith.constant 0 : index
    %104 = vector.load %arg6[%c0_109, %c0_110] : memref<1x128xf32, #tpu.memory_space<vmem>>, vector<1x128xf32>
    %105 = vector.broadcast %104 : vector<1x128xf32> to vector<256x128xf32>
    %106 = arith.addf %103, %105 : vector<256x128xf32>
    %c0_111 = arith.constant 0 : index
    %c0_112 = arith.constant 0 : index
    %c0_113 = arith.constant 0 : index
    %107 = vector.load %arg7[%c0_111, %c0_112, %c0_113] : memref<1x256x128xf32, #tpu.memory_space<vmem>>, vector<1x256x128xf32>
    %108 = vector.shape_cast %107 : vector<1x256x128xf32> to vector<256x128xf32>
    %109 = vector.shape_cast %106 : vector<256x128xf32> to vector<1x256x128xf32>
    tpu.vector_store %arg7[%c0_111, %c0_112, %c0_113], %109 {strides = array<i32>} : memref<1x256x128xf32, #tpu.memory_space<vmem>>, vector<1x256x128xf32>,
    %cst_114 = arith.constant dense<0.000000e+00> : vector<128xf32>
    %110 = vector.multi_reduction <add>, %106, %cst_114 [0] : vector<256x128xf32> to vector<128xf32>
    %111 = vector.shape_cast %110 : vector<128xf32> to vector<1x128xf32>
    %112 = arith.mulf %106, %106 : vector<256x128xf32>
    %cst_115 = arith.constant dense<0.000000e+00> : vector<128xf32>
    %113 = vector.multi_reduction <add>, %112, %cst_115 [0] : vector<256x128xf32> to vector<128xf32>
    %114 = vector.shape_cast %113 : vector<128xf32> to vector<1x128xf32>
    %115 = tpu.concatenate %111, %114 in 0 : vector<1x128xf32>, vector<1x128xf32> -> vector<2x128xf32>
    %c0_116 = arith.constant 0 : index
    %c0_117 = arith.constant 0 : index
    %c0_118 = arith.constant 0 : index
    %116 = vector.load %arg8[%c0_116, %c0_117, %c0_118] : memref<1x2x128xf32, #tpu.memory_space<vmem>>, vector<1x2x128xf32>
    %117 = vector.shape_cast %116 : vector<1x2x128xf32> to vector<2x128xf32>
    %118 = vector.shape_cast %115 : vector<2x128xf32> to vector<1x2x128xf32>
    tpu.vector_store %arg8[%c0_116, %c0_117, %c0_118], %118 {strides = array<i32>} : memref<1x2x128xf32, #tpu.memory_space<vmem>>, vector<1x2x128xf32>,
    return
  }
  func.func @transform_0(%arg0: i32) -> (i32, i32, i32) {
    %c0_i32 = arith.constant 0 : i32
    %c0_i32_0 = arith.constant 0 : i32
    %c0_i32_1 = arith.constant 0 : i32
    return %arg0, %c0_i32, %c0_i32_0 : i32, i32, i32
  }
  func.func @transform_1(%arg0: i32) -> (i32, i32) {
    %c0_i32 = arith.constant 0 : i32
    %c0_i32_0 = arith.constant 0 : i32
    %c0_i32_1 = arith.constant 0 : i32
    return %c0_i32, %c0_i32_0 : i32, i32
  }
  func.func @transform_2(%arg0: i32) -> (i32, i32) {
    %c0_i32 = arith.constant 0 : i32
    %c0_i32_0 = arith.constant 0 : i32
    %c0_i32_1 = arith.constant 0 : i32
    return %c0_i32, %c0_i32_0 : i32, i32
  }
  func.func @transform_3(%arg0: i32) -> (i32, i32) {
    %c0_i32 = arith.constant 0 : i32
    %c0_i32_0 = arith.constant 0 : i32
    %c0_i32_1 = arith.constant 0 : i32
    return %c0_i32, %c0_i32_0 : i32, i32
  }
  func.func @transform_4(%arg0: i32) -> (i32, i32, i32) {
    %c0_i32 = arith.constant 0 : i32
    %c0_i32_0 = arith.constant 0 : i32
    %c0_i32_1 = arith.constant 0 : i32
    %c0_i32_2 = arith.constant 0 : i32
    return %c0_i32, %c0_i32_0, %c0_i32_1 : i32, i32, i32
  }
  func.func @transform_5(%arg0: i32) -> (i32, i32) {
    %c0_i32 = arith.constant 0 : i32
    %c0_i32_0 = arith.constant 0 : i32
    %c0_i32_1 = arith.constant 0 : i32
    return %c0_i32, %c0_i32_0 : i32, i32
  }
  func.func @transform_6(%arg0: i32) -> (i32, i32, i32) {
    %c0_i32 = arith.constant 0 : i32
    %c0_i32_0 = arith.constant 0 : i32
    %c0_i32_1 = arith.constant 0 : i32
    return %arg0, %c0_i32, %c0_i32_0 : i32, i32, i32
  }
  func.func @transform_7(%arg0: i32) -> (i32, i32, i32) {
    %c0_i32 = arith.constant 0 : i32
    %c0_i32_0 = arith.constant 0 : i32
    %c0_i32_1 = arith.constant 0 : i32
    return %arg0, %c0_i32, %c0_i32_0 : i32, i32, i32
  }
}

</mosaic_0001>

<llo_original>
// kernel: residual_block.5
$region0: #{residual_block.5}
  #allocation0 [shape = 'u32[]', space=smem, size = 0x4, offset = 0x4, fixed_abs, tag = 'smem constant byte address 0x4 - core index']
  #allocation1 [shape = 'u32[144,128]{1,0:T(1,128)}', space=vmem, size = 0x12000, scoped, tag = 'internal scratch']
  %s0 = inlined_call_operand.vmem [shape: f32[2,256,128], index: 0, kind: input, shape index: {}]
  %s1 = inlined_call_operand.vmem [shape: f32[2,256,128], index: 1, kind: input, shape index: {}]
  %s2 = inlined_call_operand.vmem [shape: f32[1,128], index: 2, kind: input, shape index: {}]
  %s3 = inlined_call_operand.vmem [shape: f32[1,128], index: 3, kind: input, shape index: {}]
  %s4 = inlined_call_operand.vmem [shape: f32[2,256,128], index: 4, kind: output, shape index: {}]
  %s5 = sld [smem:[#allocation0]]
  $region49: #{residual_block.5} parent=0
    _
  %s7 = ssub.s32 1, %s5
  %s8 = scalar_select 0, %s7, %s5
  loop: start=0, step=1, limit=4
  $region2: #{residual_block.5} parent=0 // loop_pre_header
    _
  $region3: #{residual_block.5} parent=0 // loop_header
    %s10 = sphi 0, %s14
    %p11 = scmp.ge.s32.totalorder %s10, 4
    %s20 = sphi 0, %s22
    %s23 = sphi 0, %s20
    %s24 = sphi 0, %s23
    %s40 = sphi 0, %s24
    %s46 = sphi 0, %s48
    %s49 = sphi 0, %s46
    %s50 = sphi 0, %s49
    %s66 = sphi 0, %s50
    %s70 = sphi 0, %s70
    %s72 = sphi 0, %s70
    %s73 = sphi 0, %s72
    %s87 = sphi 0, %s73
    %s91 = sphi 0, %s91
    %s93 = sphi 0, %s91
    %s94 = sphi 0, %s93
    %s108 = sphi 0, %s94
    %s114 = sphi 0, %s116
    %s117 = sphi 0, %s114
    %s118 = sphi 0, %s117
    %s134 = sphi 0, %s118
  $region4: #{residual_block.5} parent=0 // loop_header_branch
    %13 = sbr.rel (%p11) target = $region8
  $region5: #{residual_block.5} parent=0 // loop_body
    %s15 = ssub.s32 %s10, 1
    %s16 = ssub.s32 %s10, 2
    %s17 = sadd.s32 %s10, 1
    %s18 = ssub.s32 %s10, %s17
    %p19 = scmp.eq.s32.totalorder %s18, 0
    %s21 = sadd.s32 %s20, 1
    %s22 = scalar_select %p19, %s20, %s21
    %p25 = pneg %p19
    %p26 = scmp.eq.s32.totalorder %s10, 1
    %p27 = por %p25, %p26
    %p28 = scmp.ne.s32.totalorder %s20, %s23
    %p29 = scmp.eq.s32.totalorder %s10, 0
    %p30 = por %p28, %p29
    %p31 = scmp.ne.s32.totalorder %s20, %s23
    %p32 = scmp.eq.s32.totalorder %s15, 1
    %p33 = por %p31, %p32
    %p34 = scmp.ne.s32.totalorder %s23, %s24
    %p35 = scmp.eq.s32.totalorder %s15, 0
    %p36 = por %p34, %p35
    %p37 = scmp.ne.s32.totalorder %s23, %s24
    %p38 = scmp.eq.s32.totalorder %s16, 1
    %p39 = por %p37, %p38
    %p41 = scmp.ne.s32.totalorder %s24, %s40
    %p42 = scmp.eq.s32.totalorder %s16, 0
    %p43 = por %p41, %p42
    %s44 = ssub.s32 %s10, %s17
    %p45 = scmp.eq.s32.totalorder %s44, 0
    %s47 = sadd.s32 %s46, 1
    %s48 = scalar_select %p45, %s46, %s47
    %p51 = pneg %p45
    %p52 = scmp.eq.s32.totalorder %s10, 1
    %p53 = por %p51, %p52
    %p54 = scmp.ne.s32.totalorder %s46, %s49
    %p55 = scmp.eq.s32.totalorder %s10, 0
    %p56 = por %p54, %p55
    %p57 = scmp.ne.s32.totalorder %s46, %s49
    %p58 = scmp.eq.s32.totalorder %s15, 1
    %p59 = por %p57, %p58
    %p60 = scmp.ne.s32.totalorder %s49, %s50
    %p61 = scmp.eq.s32.totalorder %s15, 0
    %p62 = por %p60, %p61
    %p63 = scmp.ne.s32.totalorder %s49, %s50
    %p64 = scmp.eq.s32.totalorder %s16, 1
    %p65 = por %p63, %p64
    %p67 = scmp.ne.s32.totalorder %s50, %s66
    %p68 = scmp.eq.s32.totalorder %s16, 0
    %p69 = por %p67, %p68
    %s71 = sadd.s32 %s70, 1
    %p74 = scmp.eq.s32.totalorder %s10, 1
    %p75 = scmp.ne.s32.totalorder %s70, %s72
    %p76 = scmp.eq.s32.totalorder %s10, 0
    %p77 = por %p75, %p76
    %p78 = scmp.ne.s32.totalorder %s70, %s72
    %p79 = scmp.eq.s32.totalorder %s15, 1
    %p80 = por %p78, %p79
    %p81 = scmp.ne.s32.totalorder %s72, %s73
    %p82 = scmp.eq.s32.totalorder %s15, 0
    %p83 = por %p81, %p82
    %p84 = scmp.ne.s32.totalorder %s72, %s73
    %p85 = scmp.eq.s32.totalorder %s16, 1
    %p86 = por %p84, %p85
    %p88 = scmp.ne.s32.totalorder %s73, %s87
    %p89 = scmp.eq.s32.totalorder %s16, 0
    %p90 = por %p88, %p89
    %s92 = sadd.s32 %s91, 1
    %p95 = scmp.eq.s32.totalorder %s10, 1
    %p96 = scmp.ne.s32.totalorder %s91, %s93
    %p97 = scmp.eq.s32.totalorder %s10, 0
    %p98 = por %p96, %p97
    %p99 = scmp.ne.s32.totalorder %s91, %s93
    %p100 = scmp.eq.s32.totalorder %s15, 1
    %p101 = por %p99, %p100
    %p102 = scmp.ne.s32.totalorder %s93, %s94
    %p103 = scmp.eq.s32.totalorder %s15, 0
    %p104 = por %p102, %p103
    %p105 = scmp.ne.s32.totalorder %s93, %s94
    %p106 = scmp.eq.s32.totalorder %s16, 1
    %p107 = por %p105, %p106
    %p109 = scmp.ne.s32.totalorder %s94, %s108
    %p110 = scmp.eq.s32.totalorder %s16, 0
    %p111 = por %p109, %p110
    %s112 = ssub.s32 %s10, %s17
    %p113 = scmp.eq.s32.totalorder %s112, 0
    %s115 = sadd.s32 %s114, 1
    %s116 = scalar_select %p113, %s114, %s115
    %p119 = pneg %p113
    %p120 = scmp.eq.s32.totalorder %s10, 1
    %p121 = por %p119, %p120
    %p122 = scmp.ne.s32.totalorder %s114, %s117
    %p123 = scmp.eq.s32.totalorder %s10, 0
    %p124 = por %p122, %p123
    %p125 = scmp.ne.s32.totalorder %s114, %s117
    %p126 = scmp.eq.s32.totalorder %s15, 1
    %p127 = por %p125, %p126
    %p128 = scmp.ne.s32.totalorder %s117, %s118
    %p129 = scmp.eq.s32.totalorder %s15, 0
    %p130 = por %p128, %p129
    %p131 = scmp.ne.s32.totalorder %s117, %s118
    %p132 = scmp.eq.s32.totalorder %s16, 1
    %p133 = por %p131, %p132
    %p135 = scmp.ne.s32.totalorder %s118, %s134
    %p136 = scmp.eq.s32.totalorder %s16, 0
    %p137 = por %p135, %p136
    %p138 = scmp.le.s32.totalorder 1, %s10
    %p139 = scmp.lt.s32.totalorder %s10, 3
    %p140 = pnand %p138, %p139
    %p141 = pneg %p140
    // Predicated region
    $region9: #{residual_block.5} parent=5 // pred_check
      _
    $region10: #{residual_block.5} parent=5 // pred_check_branch
      %143 = sbr.rel (%p140) target = $region12
    $region11: #{residual_block.5} parent=5 // pred_region
      %s144 = ssub.s32 %s10, 1
      // Predicated region
      $region13: #{residual_block.5} parent=11 // pred_check
        %p145 = pneg %p83
      $region14: #{residual_block.5} parent=11 // pred_check_branch
        %147 = sbr.rel (%p145) target = $region16
      $region15: #{residual_block.5} parent=11 // pred_region
        _
      $region16: #{residual_block.5} parent=11 // pred_fallthru
        _
      // Predicated region
      $region17: #{residual_block.5} parent=11 // pred_check
        %p148 = pneg %p104
      $region18: #{residual_block.5} parent=11 // pred_check_branch
        %150 = sbr.rel (%p148) target = $region20
      $region19: #{residual_block.5} parent=11 // pred_region
        _
      $region20: #{residual_block.5} parent=11 // pred_fallthru
        _
    $region12: #{residual_block.5} parent=5 // pred_fallthru
      _
    %p151 = scmp.lt.s32.totalorder %s10, 2
    // Predicated region
    $region21: #{residual_block.5} parent=5 // pred_check
      %p152 = pneg %p151
    $region22: #{residual_block.5} parent=5 // pred_check_branch
      %154 = sbr.rel (%p152) target = $region24
    $region23: #{residual_block.5} parent=5 // pred_region
      // Predicated region
      $region25: #{residual_block.5} parent=23 // pred_check
        %p155 = pneg %p30
      $region26: #{residual_block.5} parent=23 // pred_check_branch
        %157 = sbr.rel (%p155) target = $region28
      $region27: #{residual_block.5} parent=23 // pred_region
        %p158 = scmp.lt.s32.totalorder %s10, 1
        %s159 = scalar_select %p158, %s10, 1
        %s160 = smul.addr %s159, 32
        %s161 = smul.addr %s160, 8
        %s162 = scalar_lea.vmem %s0, %s161
      $region28: #{residual_block.5} parent=23 // pred_fallthru
        _
      // Predicated region
      $region29: #{residual_block.5} parent=23 // pred_check
        %p163 = pneg %p56
      $region30: #{residual_block.5} parent=23 // pred_check_branch
        %165 = sbr.rel (%p163) target = $region32
      $region31: #{residual_block.5} parent=23 // pred_region
        %p166 = scmp.lt.s32.totalorder %s10, 1
        %s167 = scalar_select %p166, %s10, 1
        %s168 = smul.addr %s167, 32
        %s169 = smul.addr %s168, 8
        %s170 = scalar_lea.vmem %s1, %s169
      $region32: #{residual_block.5} parent=23 // pred_fallthru
        _
    $region24: #{residual_block.5} parent=5 // pred_fallthru
      _
    %p171 = scmp.le.s32.totalorder 1, %s10
    %p172 = scmp.lt.s32.totalorder %s10, 3
    %p173 = pnand %p171, %p172
    %p174 = pneg %p173
    // Predicated region
    $region33: #{residual_block.5} parent=5 // pred_check
      _
    $region34: #{residual_block.5} parent=5 // pred_check_branch
      %176 = sbr.rel (%p173) target = $region36
    $region35: #{residual_block.5} parent=5 // pred_region
      %s177 = ssub.s32 %s10, 1
      %p178 = scmp.lt.s32.totalorder %s15, 1
      %s179 = scalar_select %p178, %s15, 1
      %s180 = smul.addr %s179, 32
      %s181 = smul.addr %s180, 8
      %s182 = scalar_lea.vmem %s0, %s181
      %p183 = pneg %p36
      %p184 = pneg %p33
      %p185 = scmp.lt.s32.totalorder %s15, 1
      %s186 = scalar_select %p185, %s15, 1
      %s187 = smul.addr %s186, 32
      %s188 = smul.addr %s187, 8
      %s189 = scalar_lea.vmem %s1, %s188
      %p190 = pneg %p62
      %p191 = pneg %p59
      %p192 = pneg %p83
      %p193 = pneg %p80
      %p194 = pneg %p104
      %p195 = pneg %p101
      %p196 = pneg %p130
      %p197 = pneg %p127
      %p198 = scmp.lt.s32.totalorder %s15, 1
      %s199 = scalar_select %p198, %s15, 1
      %s200 = smul.addr %s199, 32
      %s201 = smul.addr %s200, 8
      %s202 = scalar_lea.vmem %s4, %s201
      %p203 = scmp.lt.s32.totalorder %s15, 1
      %s204 = scalar_select %p203, %s15, 1
      %s205 = smul.addr %s204, 32
      %s206 = smul.addr %s205, 8
      %s207 = scalar_lea.vmem %s0, %s206
      %p208 = scmp.lt.s32.totalorder %s15, 1
      %s209 = scalar_select %p208, %s15, 1
      %s210 = smul.addr %s209, 32
      %s211 = smul.addr %s210, 8
      %s212 = scalar_lea.vmem %s1, %s211
      %p213 = scmp.lt.s32.totalorder %s15, 1
      %s214 = scalar_select %p213, %s15, 1
      %s215 = smul.addr %s214, 32
      %s216 = smul.addr %s215, 8
      %s217 = scalar_lea.vmem %s4, %s216
      %v218 = vld [vmem:[%s207] sm:$0xff]
      %v219 = vld [vmem:[%s207 + $0x8] sm:$0xff]
      %v220 = vld [vmem:[%s207 + $0x10] sm:$0xff]
      %v221 = vld [vmem:[%s207 + $0x18] sm:$0xff]
      %v222 = vld [vmem:[%s207 + $0x20] sm:$0xff]
      %v223 = vld [vmem:[%s207 + $0x28] sm:$0xff]
      %v224 = vld [vmem:[%s207 + $0x30] sm:$0xff]
      %v225 = vld [vmem:[%s207 + $0x38] sm:$0xff]
      %v226 = vld [vmem:[%s207 + $0x40] sm:$0xff]
      %v227 = vld [vmem:[%s207 + $0x48] sm:$0xff]
      %v228 = vld [vmem:[%s207 + $0x50] sm:$0xff]
      %v229 = vld [vmem:[%s207 + $0x58] sm:$0xff]
      %v230 = vld [vmem:[%s207 + $0x60] sm:$0xff]
      %v231 = vld [vmem:[%s207 + $0x68] sm:$0xff]
      %v232 = vld [vmem:[%s207 + $0x70] sm:$0xff]
      %v233 = vld [vmem:[%s207 + $0x78] sm:$0xff]
      %v234 = vld [vmem:[%s207 + $0x80] sm:$0xff]
      %v235 = vld [vmem:[%s207 + $0x88] sm:$0xff]
      %v236 = vld [vmem:[%s207 + $0x90] sm:$0xff]
      %v237 = vld [vmem:[%s207 + $0x98] sm:$0xff]
      %v238 = vld [vmem:[%s207 + $0xa0] sm:$0xff]
      %v239 = vld [vmem:[%s207 + $0xa8] sm:$0xff]
      %v240 = vld [vmem:[%s207 + $0xb0] sm:$0xff]
      %v241 = vld [vmem:[%s207 + $0xb8] sm:$0xff]
      %v242 = vld [vmem:[%s207 + $0xc0] sm:$0xff]
      %v243 = vld [vmem:[%s207 + $0xc8] sm:$0xff]
      %v244 = vld [vmem:[%s207 + $0xd0] sm:$0xff]
      %v245 = vld [vmem:[%s207 + $0xd8] sm:$0xff]
      %v246 = vld [vmem:[%s207 + $0xe0] sm:$0xff]
      %v247 = vld [vmem:[%s207 + $0xe8] sm:$0xff]
      %v248 = vld [vmem:[%s207 + $0xf0] sm:$0xff]
      %v249 = vld [vmem:[%s207 + $0xf8] sm:$0xff]
      %v250 = vld [vmem:[%s212] sm:$0xff]
      %v251 = vld [vmem:[%s212 + $0x8] sm:$0xff]
      %v252 = vld [vmem:[%s212 + $0x10] sm:$0xff]
      %v253 = vld [vmem:[%s212 + $0x18] sm:$0xff]
      %v254 = vld [vmem:[%s212 + $0x20] sm:$0xff]
      %v255 = vld [vmem:[%s212 + $0x28] sm:$0xff]
      %v256 = vld [vmem:[%s212 + $0x30] sm:$0xff]
      %v257 = vld [vmem:[%s212 + $0x38] sm:$0xff]
      %v258 = vld [vmem:[%s212 + $0x40] sm:$0xff]
      %v259 = vld [vmem:[%s212 + $0x48] sm:$0xff]
      %v260 = vld [vmem:[%s212 + $0x50] sm:$0xff]
      %v261 = vld [vmem:[%s212 + $0x58] sm:$0xff]
      %v262 = vld [vmem:[%s212 + $0x60] sm:$0xff]
      %v263 = vld [vmem:[%s212 + $0x68] sm:$0xff]
      %v264 = vld [vmem:[%s212 + $0x70] sm:$0xff]
      %v265 = vld [vmem:[%s212 + $0x78] sm:$0xff]
      %v266 = vld [vmem:[%s212 + $0x80] sm:$0xff]
      %v267 = vld [vmem:[%s212 + $0x88] sm:$0xff]
      %v268 = vld [vmem:[%s212 + $0x90] sm:$0xff]
      %v269 = vld [vmem:[%s212 + $0x98] sm:$0xff]
      %v270 = vld [vmem:[%s212 + $0xa0] sm:$0xff]
      %v271 = vld [vmem:[%s212 + $0xa8] sm:$0xff]
      %v272 = vld [vmem:[%s212 + $0xb0] sm:$0xff]
      %v273 = vld [vmem:[%s212 + $0xb8] sm:$0xff]
      %v274 = vld [vmem:[%s212 + $0xc0] sm:$0xff]
      %v275 = vld [vmem:[%s212 + $0xc8] sm:$0xff]
      %v276 = vld [vmem:[%s212 + $0xd0] sm:$0xff]
      %v277 = vld [vmem:[%s212 + $0xd8] sm:$0xff]
      %v278 = vld [vmem:[%s212 + $0xe0] sm:$0xff]
      %v279 = vld [vmem:[%s212 + $0xe8] sm:$0xff]
      %v280 = vld [vmem:[%s212 + $0xf0] sm:$0xff]
      %v281 = vld [vmem:[%s212 + $0xf8] sm:$0xff]
      %v282 = vld [vmem:[%s2] sm:$0x1]
      %v284 = vlaneseq
      %v285 = vshrl.u32 %v284, 7
      %v286 = vsub.s32 0, %v285
      %v287 = vrot.slane %v282, %v286
      %v289 = vmul.f32 %v250, %v287
      %v290 = vmul.f32 %v251, %v287
      %v291 = vmul.f32 %v252, %v287
      %v292 = vmul.f32 %v253, %v287
      %v293 = vmul.f32 %v254, %v287
      %v294 = vmul.f32 %v255, %v287
      %v295 = vmul.f32 %v256, %v287
      %v296 = vmul.f32 %v257, %v287
      %v297 = vmul.f32 %v258, %v287
      %v298 = vmul.f32 %v259, %v287
      %v299 = vmul.f32 %v260, %v287
      %v300 = vmul.f32 %v261, %v287
      %v301 = vmul.f32 %v262, %v287
      %v302 = vmul.f32 %v263, %v287
      %v303 = vmul.f32 %v264, %v287
      %v304 = vmul.f32 %v265, %v287
      %v305 = vmul.f32 %v266, %v287
      %v306 = vmul.f32 %v267, %v287
      %v307 = vmul.f32 %v268, %v287
      %v308 = vmul.f32 %v269, %v287
      %v309 = vmul.f32 %v270, %v287
      %v310 = vmul.f32 %v271, %v287
      %v311 = vmul.f32 %v272, %v287
      %v312 = vmul.f32 %v273, %v287
      %v313 = vmul.f32 %v274, %v287
      %v314 = vmul.f32 %v275, %v287
      %v315 = vmul.f32 %v276, %v287
      %v316 = vmul.f32 %v277, %v287
      %v317 = vmul.f32 %v278, %v287
      %v318 = vmul.f32 %v279, %v287
      %v319 = vmul.f32 %v280, %v287
      %v320 = vmul.f32 %v281, %v287
      %v321 = vadd.f32 %v218, %v289
      %v322 = vadd.f32 %v219, %v290
      %v323 = vadd.f32 %v220, %v291
      %v324 = vadd.f32 %v221, %v292
      %v325 = vadd.f32 %v222, %v293
      %v326 = vadd.f32 %v223, %v294
      %v327 = vadd.f32 %v224, %v295
      %v328 = vadd.f32 %v225, %v296
      %v329 = vadd.f32 %v226, %v297
      %v330 = vadd.f32 %v227, %v298
      %v331 = vadd.f32 %v228, %v299
      %v332 = vadd.f32 %v229, %v300
      %v333 = vadd.f32 %v230, %v301
      %v334 = vadd.f32 %v231, %v302
      %v335 = vadd.f32 %v232, %v303
      %v336 = vadd.f32 %v233, %v304
      %v337 = vadd.f32 %v234, %v305
      %v338 = vadd.f32 %v235, %v306
      %v339 = vadd.f32 %v236, %v307
      %v340 = vadd.f32 %v237, %v308
      %v341 = vadd.f32 %v238, %v309
      %v342 = vadd.f32 %v239, %v310
      %v343 = vadd.f32 %v240, %v311
      %v344 = vadd.f32 %v241, %v312
      %v345 = vadd.f32 %v242, %v313
      %v346 = vadd.f32 %v243, %v314
      %v347 = vadd.f32 %v244, %v315
      %v348 = vadd.f32 %v245, %v316
      %v349 = vadd.f32 %v246, %v317
      %v350 = vadd.f32 %v247, %v318
      %v351 = vadd.f32 %v248, %v319
      %v352 = vadd.f32 %v249, %v320
      %v353 = vld [vmem:[%s3] sm:$0x1]
      %v355 = vlaneseq
      %v356 = vshrl.u32 %v355, 7
      %v357 = vsub.s32 0, %v356
      %v358 = vrot.slane %v353, %v357
      %v360 = vadd.f32 %v321, %v358
      %v361 = vadd.f32 %v322, %v358
      %v362 = vadd.f32 %v323, %v358
      %v363 = vadd.f32 %v324, %v358
      %v364 = vadd.f32 %v325, %v358
      %v365 = vadd.f32 %v326, %v358
      %v366 = vadd.f32 %v327, %v358
      %v367 = vadd.f32 %v328, %v358
      %v368 = vadd.f32 %v329, %v358
      %v369 = vadd.f32 %v330, %v358
      %v370 = vadd.f32 %v331, %v358
      %v371 = vadd.f32 %v332, %v358
      %v372 = vadd.f32 %v333, %v358
      %v373 = vadd.f32 %v334, %v358
      %v374 = vadd.f32 %v335, %v358
      %v375 = vadd.f32 %v336, %v358
      %v376 = vadd.f32 %v337, %v358
      %v377 = vadd.f32 %v338, %v358
      %v378 = vadd.f32 %v339, %v358
      %v379 = vadd.f32 %v340, %v358
      %v380 = vadd.f32 %v341, %v358
      %v381 = vadd.f32 %v342, %v358
      %v382 = vadd.f32 %v343, %v358
      %v383 = vadd.f32 %v344, %v358
      %v384 = vadd.f32 %v345, %v358
      %v385 = vadd.f32 %v346, %v358
      %v386 = vadd.f32 %v347, %v358
      %v387 = vadd.f32 %v348, %v358
      %v388 = vadd.f32 %v349, %v358
      %v389 = vadd.f32 %v350, %v358
      %v390 = vadd.f32 %v351, %v358
      %v391 = vadd.f32 %v352, %v358
      %392 = vst [vmem:[%s217] sm:$0xff] %v360
      %393 = vst [vmem:[%s217 + $0x8] sm:$0xff] %v361
      %394 = vst [vmem:[%s217 + $0x10] sm:$0xff] %v362
      %395 = vst [vmem:[%s217 + $0x18] sm:$0xff] %v363
      %396 = vst [vmem:[%s217 + $0x20] sm:$0xff] %v364
      %397 = vst [vmem:[%s217 + $0x28] sm:$0xff] %v365
      %398 = vst [vmem:[%s217 + $0x30] sm:$0xff] %v366
      %399 = vst [vmem:[%s217 + $0x38] sm:$0xff] %v367
      %400 = vst [vmem:[%s217 + $0x40] sm:$0xff] %v368
      %401 = vst [vmem:[%s217 + $0x48] sm:$0xff] %v369
      %402 = vst [vmem:[%s217 + $0x50] sm:$0xff] %v370
      %403 = vst [vmem:[%s217 + $0x58] sm:$0xff] %v371
      %404 = vst [vmem:[%s217 + $0x60] sm:$0xff] %v372
      %405 = vst [vmem:[%s217 + $0x68] sm:$0xff] %v373
      %406 = vst [vmem:[%s217 + $0x70] sm:$0xff] %v374
      %407 = vst [vmem:[%s217 + $0x78] sm:$0xff] %v375
      %408 = vst [vmem:[%s217 + $0x80] sm:$0xff] %v376
      %409 = vst [vmem:[%s217 + $0x88] sm:$0xff] %v377
      %410 = vst [vmem:[%s217 + $0x90] sm:$0xff] %v378
      %411 = vst [vmem:[%s217 + $0x98] sm:$0xff] %v379
      %412 = vst [vmem:[%s217 + $0xa0] sm:$0xff] %v380
      %413 = vst [vmem:[%s217 + $0xa8] sm:$0xff] %v381
      %414 = vst [vmem:[%s217 + $0xb0] sm:$0xff] %v382
      %415 = vst [vmem:[%s217 + $0xb8] sm:$0xff] %v383
      %416 = vst [vmem:[%s217 + $0xc0] sm:$0xff] %v384
      %417 = vst [vmem:[%s217 + $0xc8] sm:$0xff] %v385
      %418 = vst [vmem:[%s217 + $0xd0] sm:$0xff] %v386
      %419 = vst [vmem:[%s217 + $0xd8] sm:$0xff] %v387
      %420 = vst [vmem:[%s217 + $0xe0] sm:$0xff] %v388
      %421 = vst [vmem:[%s217 + $0xe8] sm:$0xff] %v389
      %422 = vst [vmem:[%s217 + $0xf0] sm:$0xff] %v390
      %423 = vst [vmem:[%s217 + $0xf8] sm:$0xff] %v391
      %p424 = scmp.lt.s32.totalorder %s15, 1
      %s425 = scalar_select %p424, %s15, 1
      %s426 = smul.addr %s425, 32
      %s427 = smul.addr %s426, 8
      %s428 = scalar_lea.vmem %s4, %s427
      // Predicated region
      $region37: #{residual_block.5} parent=35 // pred_check
        %p429 = pneg %p127
      $region38: #{residual_block.5} parent=35 // pred_check_branch
        %431 = sbr.rel (%p429) target = $region40
      $region39: #{residual_block.5} parent=35 // pred_region
        _
      $region40: #{residual_block.5} parent=35 // pred_fallthru
        _
    $region36: #{residual_block.5} parent=5 // pred_fallthru
      _
    %p432 = scmp.le.s32.totalorder 2, %s10
    // Predicated region
    $region41: #{residual_block.5} parent=5 // pred_check
      %p433 = pneg %p432
    $region42: #{residual_block.5} parent=5 // pred_check_branch
      %435 = sbr.rel (%p433) target = $region44
    $region43: #{residual_block.5} parent=5 // pred_region
      %s436 = ssub.s32 %s10, 2
      // Predicated region
      $region45: #{residual_block.5} parent=43 // pred_check
        %p437 = pneg %p133
      $region46: #{residual_block.5} parent=43 // pred_check_branch
        %439 = sbr.rel (%p437) target = $region48
      $region47: #{residual_block.5} parent=43 // pred_region
        %p440 = scmp.lt.s32.totalorder %s16, 1
        %s441 = scalar_select %p440, %s16, 1
        %s442 = smul.addr %s441, 32
        %s443 = smul.addr %s442, 8
        %s444 = scalar_lea.vmem %s4, %s443
      $region48: #{residual_block.5} parent=43 // pred_fallthru
        _
    $region44: #{residual_block.5} parent=5 // pred_fallthru
      _
  $region6: #{residual_block.5} parent=0 // loop_footer
    %s14 = sadd.s32 1, %s10
  $region7: #{residual_block.5} parent=0 // loop_footer_branch
    %9 = sbr.rel target = $region3
  $region8: #{residual_block.5} parent=0 // loop_exit
    _

// kernel: residual_block.3
$region0: #{residual_block.3}
  #allocation0 [shape = 'u32[]', space=smem, size = 0x4, offset = 0x4, fixed_abs, tag = 'smem constant byte address 0x4 - core index']
  #allocation1 [shape = 'u32[144,128]{1,0:T(1,128)}', space=vmem, size = 0x12000, scoped, tag = 'internal scratch']
  #allocation2 [shape = 'f32[256,128]{1,0:T(8,128)}', space=vmem, size = 0x20000, scoped, tag = 'scratch operand']
  %s0 = inlined_call_operand.vmem [shape: f32[2,18,18,128], index: 0, kind: input, shape index: {}]
  %s1 = inlined_call_operand.vmem [shape: bf16[9,128,128], index: 1, kind: input, shape index: {}]
  %s2 = inlined_call_operand.vmem [shape: f32[1,128], index: 2, kind: input, shape index: {}]
  %s3 = inlined_call_operand.vmem [shape: f32[2,256,128], index: 3, kind: output, shape index: {0}]
  %s4 = inlined_call_operand.vmem [shape: f32[2,2,128], index: 4, kind: output, shape index: {1}]
  %5 = xla_tuple %s3, %s4
  %s6 = sld [smem:[#allocation0]]
  $region53: #{residual_block.3} parent=0
    _
  %s8 = ssub.s32 1, %s6
  %s9 = scalar_select 0, %s8, %s6
  loop: start=0, step=1, limit=4
  $region2: #{residual_block.3} parent=0 // loop_pre_header
    _
  $region3: #{residual_block.3} parent=0 // loop_header
    %s11 = sphi 0, %s15
    %p12 = scmp.ge.s32.totalorder %s11, 4
    %s21 = sphi 0, %s23
    %s24 = sphi 0, %s21
    %s25 = sphi 0, %s24
    %s41 = sphi 0, %s25
    %s45 = sphi 0, %s45
    %s47 = sphi 0, %s45
    %s48 = sphi 0, %s47
    %s62 = sphi 0, %s48
    %s66 = sphi 0, %s66
    %s68 = sphi 0, %s66
    %s69 = sphi 0, %s68
    %s83 = sphi 0, %s69
    %s89 = sphi 0, %s91
    %s92 = sphi 0, %s89
    %s93 = sphi 0, %s92
    %s109 = sphi 0, %s93
    %s115 = sphi 0, %s117
    %s118 = sphi 0, %s115
    %s119 = sphi 0, %s118
    %s135 = sphi 0, %s119
  $region4: #{residual_block.3} parent=0 // loop_header_branch
    %14 = sbr.rel (%p12) target = $region8
  $region5: #{residual_block.3} parent=0 // loop_body
    %s16 = ssub.s32 %s11, 1
    %s17 = ssub.s32 %s11, 2
    %s18 = sadd.s32 %s11, 1
    %s19 = ssub.s32 %s11, %s18
    %p20 = scmp.eq.s32.totalorder %s19, 0
    %s22 = sadd.s32 %s21, 1
    %s23 = scalar_select %p20, %s21, %s22
    %p26 = pneg %p20
    %p27 = scmp.eq.s32.totalorder %s11, 1
    %p28 = por %p26, %p27
    %p29 = scmp.ne.s32.totalorder %s21, %s24
    %p30 = scmp.eq.s32.totalorder %s11, 0
    %p31 = por %p29, %p30
    %p32 = scmp.ne.s32.totalorder %s21, %s24
    %p33 = scmp.eq.s32.totalorder %s16, 1
    %p34 = por %p32, %p33
    %p35 = scmp.ne.s32.totalorder %s24, %s25
    %p36 = scmp.eq.s32.totalorder %s16, 0
    %p37 = por %p35, %p36
    %p38 = scmp.ne.s32.totalorder %s24, %s25
    %p39 = scmp.eq.s32.totalorder %s17, 1
    %p40 = por %p38, %p39
    %p42 = scmp.ne.s32.totalorder %s25, %s41
    %p43 = scmp.eq.s32.totalorder %s17, 0
    %p44 = por %p42, %p43
    %s46 = sadd.s32 %s45, 1
    %p49 = scmp.eq.s32.totalorder %s11, 1
    %p50 = scmp.ne.s32.totalorder %s45, %s47
    %p51 = scmp.eq.s32.totalorder %s11, 0
    %p52 = por %p50, %p51
    %p53 = scmp.ne.s32.totalorder %s45, %s47
    %p54 = scmp.eq.s32.totalorder %s16, 1
    %p55 = por %p53, %p54
    %p56 = scmp.ne.s32.totalorder %s47, %s48
    %p57 = scmp.eq.s32.totalorder %s16, 0
    %p58 = por %p56, %p57
    %p59 = scmp.ne.s32.totalorder %s47, %s48
    %p60 = scmp.eq.s32.totalorder %s17, 1
    %p61 = por %p59, %p60
    %p63 = scmp.ne.s32.totalorder %s48, %s62
    %p64 = scmp.eq.s32.totalorder %s17, 0
    %p65 = por %p63, %p64
    %s67 = sadd.s32 %s66, 1
    %p70 = scmp.eq.s32.totalorder %s11, 1
    %p71 = scmp.ne.s32.totalorder %s66, %s68
    %p72 = scmp.eq.s32.totalorder %s11, 0
    %p73 = por %p71, %p72
    %p74 = scmp.ne.s32.totalorder %s66, %s68
    %p75 = scmp.eq.s32.totalorder %s16, 1
    %p76 = por %p74, %p75
    %p77 = scmp.ne.s32.totalorder %s68, %s69
    %p78 = scmp.eq.s32.totalorder %s16, 0
    %p79 = por %p77, %p78
    %p80 = scmp.ne.s32.totalorder %s68, %s69
    %p81 = scmp.eq.s32.totalorder %s17, 1
    %p82 = por %p80, %p81
    %p84 = scmp.ne.s32.totalorder %s69, %s83
    %p85 = scmp.eq.s32.totalorder %s17, 0
    %p86 = por %p84, %p85
    %s87 = ssub.s32 %s11, %s18
    %p88 = scmp.eq.s32.totalorder %s87, 0
    %s90 = sadd.s32 %s89, 1
    %s91 = scalar_select %p88, %s89, %s90
    %p94 = pneg %p88
    %p95 = scmp.eq.s32.totalorder %s11, 1
    %p96 = por %p94, %p95
    %p97 = scmp.ne.s32.totalorder %s89, %s92
    %p98 = scmp.eq.s32.totalorder %s11, 0
    %p99 = por %p97, %p98
    %p100 = scmp.ne.s32.totalorder %s89, %s92
    %p101 = scmp.eq.s32.totalorder %s16, 1
    %p102 = por %p100, %p101
    %p103 = scmp.ne.s32.totalorder %s92, %s93
    %p104 = scmp.eq.s32.totalorder %s16, 0
    %p105 = por %p103, %p104
    %p106 = scmp.ne.s32.totalorder %s92, %s93
    %p107 = scmp.eq.s32.totalorder %s17, 1
    %p108 = por %p106, %p107
    %p110 = scmp.ne.s32.totalorder %s93, %s109
    %p111 = scmp.eq.s32.totalorder %s17, 0
    %p112 = por %p110, %p111
    %s113 = ssub.s32 %s11, %s18
    %p114 = scmp.eq.s32.totalorder %s113, 0
    %s116 = sadd.s32 %s115, 1
    %s117 = scalar_select %p114, %s115, %s116
    %p120 = pneg %p114
    %p121 = scmp.eq.s32.totalorder %s11, 1
    %p122 = por %p120, %p121
    %p123 = scmp.ne.s32.totalorder %s115, %s118
    %p124 = scmp.eq.s32.totalorder %s11, 0
    %p125 = por %p123, %p124
    %p126 = scmp.ne.s32.totalorder %s115, %s118
    %p127 = scmp.eq.s32.totalorder %s16, 1
    %p128 = por %p126, %p127
    %p129 = scmp.ne.s32.totalorder %s118, %s119
    %p130 = scmp.eq.s32.totalorder %s16, 0
    %p131 = por %p129, %p130
    %p132 = scmp.ne.s32.totalorder %s118, %s119
    %p133 = scmp.eq.s32.totalorder %s17, 1
    %p134 = por %p132, %p133
    %p136 = scmp.ne.s32.totalorder %s119, %s135
    %p137 = scmp.eq.s32.totalorder %s17, 0
    %p138 = por %p136, %p137
    %p139 = scmp.le.s32.totalorder 1, %s11
    %p140 = scmp.lt.s32.totalorder %s11, 3
    %p141 = pnand %p139, %p140
    %p142 = pneg %p141
    // Predicated region
    $region9: #{residual_block.3} parent=5 // pred_check
      _
    $region10: #{residual_block.3} parent=5 // pred_check_branch
      %144 = sbr.rel (%p141) target = $region12
    $region11: #{residual_block.3} parent=5 // pred_region
      %s145 = ssub.s32 %s11, 1
      // Predicated region
      $region13: #{residual_block.3} parent=11 // pred_check
        %p146 = pneg %p58
      $region14: #{residual_block.3} parent=11 // pred_check_branch
        %148 = sbr.rel (%p146) target = $region16
      $region15: #{residual_block.3} parent=11 // pred_region
        _
      $region16: #{residual_block.3} parent=11 // pred_fallthru
        _
      // Predicated region
      $region17: #{residual_block.3} parent=11 // pred_check
        %p149 = pneg %p79
      $region18: #{residual_block.3} parent=11 // pred_check_branch
        %151 = sbr.rel (%p149) target = $region20
      $region19: #{residual_block.3} parent=11 // pred_region
        _
      $region20: #{residual_block.3} parent=11 // pred_fallthru
        _
    $region12: #{residual_block.3} parent=5 // pred_fallthru
      _
    %p152 = scmp.lt.s32.totalorder %s11, 2
    // Predicated region
    $region21: #{residual_block.3} parent=5 // pred_check
      %p153 = pneg %p152
    $region22: #{residual_block.3} parent=5 // pred_check_branch
      %155 = sbr.rel (%p153) target = $region24
    $region23: #{residual_block.3} parent=5 // pred_region
      // Predicated region
      $region25: #{residual_block.3} parent=23 // pred_check
        %p156 = pneg %p31
      $region26: #{residual_block.3} parent=23 // pred_check_branch
        %158 = sbr.rel (%p156) target = $region28
      $region27: #{residual_block.3} parent=23 // pred_region
        %p159 = scmp.lt.s32.totalorder %s11, 1
        %s160 = scalar_select %p159, %s11, 1
        %s161 = smul.addr %s160, 54
        %s162 = smul.addr %s161, 8
        %s163 = scalar_lea.vmem %s0, %s162
      $region28: #{residual_block.3} parent=23 // pred_fallthru
        _
    $region24: #{residual_block.3} parent=5 // pred_fallthru
      _
    %p164 = scmp.le.s32.totalorder 1, %s11
    %p165 = scmp.lt.s32.totalorder %s11, 3
    %p166 = pnand %p164, %p165
    %p167 = pneg %p166
    // Predicated region
    $region29: #{residual_block.3} parent=5 // pred_check
      _
    $region30: #{residual_block.3} parent=5 // pred_check_branch
      %169 = sbr.rel (%p166) target = $region32
    $region31: #{residual_block.3} parent=5 // pred_region
      %s170 = ssub.s32 %s11, 1
      %p171 = scmp.lt.s32.totalorder %s16, 1
      %s172 = scalar_select %p171, %s16, 1
      %s173 = smul.addr %s172, 54
      %s174 = smul.addr %s173, 8
      %s175 = scalar_lea.vmem %s0, %s174
      %p176 = pneg %p37
      %p177 = pneg %p34
      %p178 = pneg %p58
      %p179 = pneg %p55
      %p180 = pneg %p79
      %p181 = pneg %p76
      %p182 = pneg %p105
      %p183 = pneg %p102
      %p184 = scmp.lt.s32.totalorder %s16, 1
      %s185 = scalar_select %p184, %s16, 1
      %s186 = smul.addr %s185, 32
      %s187 = smul.addr %s186, 8
      %s188 = scalar_lea.vmem %s3, %s187
      %p189 = pneg %p131
      %p190 = pneg %p128
      %p191 = scmp.lt.s32.totalorder %s16, 1
      %s192 = scalar_select %p191, %s16, 1
      %s193 = smul.addr %s192, 2
      %s194 = scalar_lea.vmem %s4, %s193
      %p195 = scmp.lt.s32.totalorder %s16, 1
      %s196 = scalar_select %p195, %s16, 1
      %s197 = smul.addr %s196, 54
      %s198 = smul.addr %s197, 8
      %s199 = scalar_lea.vmem %s0, %s198
      %p200 = scmp.lt.s32.totalorder %s16, 1
      %s201 = scalar_select %p200, %s16, 1
      %s202 = smul.addr %s201, 32
      %s203 = smul.addr %s202, 8
      %s204 = scalar_lea.vmem %s3, %s203
      %p205 = scmp.lt.s32.totalorder %s16, 1
      %s206 = scalar_select %p205, %s16, 1
      %s207 = smul.addr %s206, 2
      %s208 = scalar_lea.vmem %s4, %s207
      %210 = vst [vmem:[#allocation2] sm:$0xff] 0.0
      %211 = vst [vmem:[#allocation2 + $0x8] sm:$0xff] 0.0
      %212 = vst [vmem:[#allocation2 + $0x10] sm:$0xff] 0.0
      %213 = vst [vmem:[#allocation2 + $0x18] sm:$0xff] 0.0
      %214 = vst [vmem:[#allocation2 + $0x20] sm:$0xff] 0.0
      %215 = vst [vmem:[#allocation2 + $0x28] sm:$0xff] 0.0
      %216 = vst [vmem:[#allocation2 + $0x30] sm:$0xff] 0.0
      %217 = vst [vmem:[#allocation2 + $0x38] sm:$0xff] 0.0
      %218 = vst [vmem:[#allocation2 + $0x40] sm:$0xff] 0.0
      %219 = vst [vmem:[#allocation2 + $0x48] sm:$0xff] 0.0
      %220 = vst [vmem:[#allocation2 + $0x50] sm:$0xff] 0.0
      %221 = vst [vmem:[#allocation2 + $0x58] sm:$0xff] 0.0
      %222 = vst [vmem:[#allocation2 + $0x60] sm:$0xff] 0.0
      %223 = vst [vmem:[#allocation2 + $0x68] sm:$0xff] 0.0
      %224 = vst [vmem:[#allocation2 + $0x70] sm:$0xff] 0.0
      %225 = vst [vmem:[#allocation2 + $0x78] sm:$0xff] 0.0
      %226 = vst [vmem:[#allocation2 + $0x80] sm:$0xff] 0.0
      %227 = vst [vmem:[#allocation2 + $0x88] sm:$0xff] 0.0
      %228 = vst [vmem:[#allocation2 + $0x90] sm:$0xff] 0.0
      %229 = vst [vmem:[#allocation2 + $0x98] sm:$0xff] 0.0
      %230 = vst [vmem:[#allocation2 + $0xa0] sm:$0xff] 0.0
      %231 = vst [vmem:[#allocation2 + $0xa8] sm:$0xff] 0.0
      %232 = vst [vmem:[#allocation2 + $0xb0] sm:$0xff] 0.0
      %233 = vst [vmem:[#allocation2 + $0xb8] sm:$0xff] 0.0
      %234 = vst [vmem:[#allocation2 + $0xc0] sm:$0xff] 0.0
      %235 = vst [vmem:[#allocation2 + $0xc8] sm:$0xff] 0.0
      %236 = vst [vmem:[#allocation2 + $0xd0] sm:$0xff] 0.0
      %237 = vst [vmem:[#allocation2 + $0xd8] sm:$0xff] 0.0
      %238 = vst [vmem:[#allocation2 + $0xe0] sm:$0xff] 0.0
      %239 = vst [vmem:[#allocation2 + $0xe8] sm:$0xff] 0.0
      %240 = vst [vmem:[#allocation2 + $0xf0] sm:$0xff] 0.0
      %241 = vst [vmem:[#allocation2 + $0xf8] sm:$0xff] 0.0
      %v242 = vld [vmem:[%s199] sm:$0xff]
      %v243 = vld [vmem:[%s199 + $0x8] sm:$0xff]
      %v244 = vld [vmem:[%s199 + $0x18] sm:$0xff]
      %v245 = vld [vmem:[%s199 + $0x20] sm:$0xff]
      %v246 = vld [vmem:[%s199 + $0x30] sm:$0xff]
      %v247 = vld [vmem:[%s199 + $0x38] sm:$0xff]
      %v248 = vld [vmem:[%s199 + $0x48] sm:$0xff]
      %v249 = vld [vmem:[%s199 + $0x50] sm:$0xff]
      %v250 = vld [vmem:[%s199 + $0x60] sm:$0xff]
      %v251 = vld [vmem:[%s199 + $0x68] sm:$0xff]
      %v252 = vld [vmem:[%s199 + $0x78] sm:$0xff]
      %v253 = vld [vmem:[%s199 + $0x80] sm:$0xff]
      %v254 = vld [vmem:[%s199 + $0x90] sm:$0xff]
      %v255 = vld [vmem:[%s199 + $0x98] sm:$0xff]
      %v256 = vld [vmem:[%s199 + $0xa8] sm:$0xff]
      %v257 = vld [vmem:[%s199 + $0xb0] sm:$0xff]
      %v258 = vld [vmem:[%s199 + $0xc0] sm:$0xff]
      %v259 = vld [vmem:[%s199 + $0xc8] sm:$0xff]
      %v260 = vld [vmem:[%s199 + $0xd8] sm:$0xff]
      %v261 = vld [vmem:[%s199 + $0xe0] sm:$0xff]
      %v262 = vld [vmem:[%s199 + $0xf0] sm:$0xff]
      %v263 = vld [vmem:[%s199 + $0xf8] sm:$0xff]
      %v264 = vld [vmem:[%s199 + $0x108] sm:$0xff]
      %v265 = vld [vmem:[%s199 + $0x110] sm:$0xff]
      %v266 = vld [vmem:[%s199 + $0x120] sm:$0xff]
      %v267 = vld [vmem:[%s199 + $0x128] sm:$0xff]
      %v268 = vld [vmem:[%s199 + $0x138] sm:$0xff]
      %v269 = vld [vmem:[%s199 + $0x140] sm:$0xff]
      %v270 = vld [vmem:[%s199 + $0x150] sm:$0xff]
      %v271 = vld [vmem:[%s199 + $0x158] sm:$0xff]
      %v272 = vld [vmem:[%s199 + $0x168] sm:$0xff]
      %v273 = vld [vmem:[%s199 + $0x170] sm:$0xff]
      %v274 = vld [vmem:[#allocation2] sm:$0xff]
      %v275 = vld [vmem:[#allocation2 + $0x8] sm:$0xff]
      %v276 = vld [vmem:[#allocation2 + $0x10] sm:$0xff]
      %v277 = vld [vmem:[#allocation2 + $0x18] sm:$0xff]
      %v278 = vld [vmem:[#allocation2 + $0x20] sm:$0xff]
      %v279 = vld [vmem:[#allocation2 + $0x28] sm:$0xff]
      %v280 = vld [vmem:[#allocation2 + $0x30] sm:$0xff]
      %v281 = vld [vmem:[#allocation2 + $0x38] sm:$0xff]
      %v282 = vld [vmem:[#allocation2 + $0x40] sm:$0xff]
      %v283 = vld [vmem:[#allocation2 + $0x48] sm:$0xff]
      %v284 = vld [vmem:[#allocation2 + $0x50] sm:$0xff]
      %v285 = vld [vmem:[#allocation2 + $0x58] sm:$0xff]
      %v286 = vld [vmem:[#allocation2 + $0x60] sm:$0xff]
      %v287 = vld [vmem:[#allocation2 + $0x68] sm:$0xff]
      %v288 = vld [vmem:[#allocation2 + $0x70] sm:$0xff]
      %v289 = vld [vmem:[#allocation2 + $0x78] sm:$0xff]
      %v290 = vld [vmem:[#allocation2 + $0x80] sm:$0xff]
      %v291 = vld [vmem:[#allocation2 + $0x88] sm:$0xff]
      %v292 = vld [vmem:[#allocation2 + $0x90] sm:$0xff]
      %v293 = vld [vmem:[#allocation2 + $0x98] sm:$0xff]
      %v294 = vld [vmem:[#allocation2 + $0xa0] sm:$0xff]
      %v295 = vld [vmem:[#allocation2 + $0xa8] sm:$0xff]
      %v296 = vld [vmem:[#allocation2 + $0xb0] sm:$0xff]
      %v297 = vld [vmem:[#allocation2 + $0xb8] sm:$0xff]
      %v298 = vld [vmem:[#allocation2 + $0xc0] sm:$0xff]
      %v299 = vld [vmem:[#allocation2 + $0xc8] sm:$0xff]
      %v300 = vld [vmem:[#allocation2 + $0xd0] sm:$0xff]
      %v301 = vld [vmem:[#allocation2 + $0xd8] sm:$0xff]
      %v302 = vld [vmem:[#allocation2 + $0xe0] sm:$0xff]
      %v303 = vld [vmem:[#allocation2 + $0xe8] sm:$0xff]
      %v304 = vld [vmem:[#allocation2 + $0xf0] sm:$0xff]
      %v305 = vld [vmem:[#allocation2 + $0xf8] sm:$0xff]
      %v306 = vpack.c.bf16 %v243, %v242
      %v307 = vpack.c.bf16 %v245, %v244
      %v308 = vpack.c.bf16 %v247, %v246
      %v309 = vpack.c.bf16 %v249, %v248
      %v310 = vpack.c.bf16 %v251, %v250
      %v311 = vpack.c.bf16 %v253, %v252
      %v312 = vpack.c.bf16 %v255, %v254
      %v313 = vpack.c.bf16 %v257, %v256
      %v314 = vpack.c.bf16 %v259, %v258
      %v315 = vpack.c.bf16 %v261, %v260
      %v316 = vpack.c.bf16 %v263, %v262
      %v317 = vpack.c.bf16 %v265, %v264
      %v318 = vpack.c.bf16 %v267, %v266
      %v319 = vpack.c.bf16 %v269, %v268
      %v320 = vpack.c.bf16 %v271, %v270
      %v321 = vpack.c.bf16 %v273, %v272
      %v322 = vld [vmem:[%s1] sm:$0xf]
      %v323 = vld [vmem:[%s1 + $0x4] sm:$0xf]
      %v324 = vld [vmem:[%s1 + $0x8] sm:$0xf]
      %v325 = vld [vmem:[%s1 + $0xc] sm:$0xf]
      %v326 = vld [vmem:[%s1 + $0x10] sm:$0xf]
      %v327 = vld [vmem:[%s1 + $0x14] sm:$0xf]
      %v328 = vld [vmem:[%s1 + $0x18] sm:$0xf]
      %v329 = vld [vmem:[%s1 + $0x1c] sm:$0xf]
      %v330 = vld [vmem:[%s1 + $0x20] sm:$0xf]
      %v331 = vld [vmem:[%s1 + $0x24] sm:$0xf]
      %v332 = vld [vmem:[%s1 + $0x28] sm:$0xf]
      %v333 = vld [vmem:[%s1 + $0x2c] sm:$0xf]
      %v334 = vld [vmem:[%s1 + $0x30] sm:$0xf]
      %v335 = vld [vmem:[%s1 + $0x34] sm:$0xf]
      %v336 = vld [vmem:[%s1 + $0x38] sm:$0xf]
      %v337 = vld [vmem:[%s1 + $0x3c] sm:$0xf]
      %v354 = vunpack.c.l.b16 %v322
      %v355 = vunpack.c.l.b16 %v323
      %v356 = vunpack.c.l.b16 %v324
      %v357 = vunpack.c.l.b16 %v325
      %v358 = vunpack.c.l.b16 %v326
      %v359 = vunpack.c.l.b16 %v327
      %v360 = vunpack.c.l.b16 %v328
      %v361 = vunpack.c.l.b16 %v329
      %v362 = vunpack.c.l.b16 %v330
      %v363 = vunpack.c.l.b16 %v331
      %v364 = vunpack.c.l.b16 %v332
      %v365 = vunpack.c.l.b16 %v333
      %v366 = vunpack.c.l.b16 %v334
      %v367 = vunpack.c.l.b16 %v335
      %v368 = vunpack.c.l.b16 %v336
      %v369 = vunpack.c.l.b16 %v337
      %v370 = vpack.c.b16 %v355, %v354
      %v371 = vpack.c.b16 %v357, %v356
      %v372 = vpack.c.b16 %v359, %v358
      %v373 = vpack.c.b16 %v361, %v360
      %v374 = vpack.c.b16 %v363, %v362
      %v375 = vpack.c.b16 %v365, %v364
      %v376 = vpack.c.b16 %v367, %v366
      %v377 = vpack.c.b16 %v369, %v368
      %386 = vmatprep.subr.bf16.mxu0 0
      %387 = vmatpush1.bf16.msra.mxu0 %v370
      %388 = vmatprep.subr.bf16.mxu0 0
      %389 = vmatpush1.bf16.msra.mxu0 %v371
      %390 = vmatprep.subr.bf16.mxu0 0
      %391 = vmatpush1.bf16.msra.mxu0 %v372
      %392 = vmatprep.subr.bf16.mxu0 0
      %393 = vmatpush1.bf16.msra.mxu0 %v373
      %394 = vmatprep.subr.bf16.mxu0 0
      %395 = vmatpush1.bf16.msra.mxu0 %v374
      %396 = vmatprep.subr.bf16.mxu0 0
      %397 = vmatpush1.bf16.msra.mxu0 %v375
      %398 = vmatprep.subr.bf16.mxu0 0
      %399 = vmatpush1.bf16.msra.mxu0 %v376
      %400 = vmatprep.subr.bf16.mxu0 0
      %401 = vmatpush1.bf16.msra.mxu0 %v377
      %402 = vmatprep.subr.bf16.mxu0 0
      %403 = vmatpush1.bf16.msra.mxu0 0
      %404 = vmatprep.subr.bf16.mxu0 0
      %405 = vmatpush1.bf16.msra.mxu0 0
      %406 = vmatprep.subr.bf16.mxu0 0
      %407 = vmatpush1.bf16.msra.mxu0 0
      %408 = vmatprep.subr.bf16.mxu0 0
      %409 = vmatpush1.bf16.msra.mxu0 0
      %410 = vmatprep.subr.bf16.mxu0 0
      %411 = vmatpush1.bf16.msra.mxu0 0
      %412 = vmatprep.subr.bf16.mxu0 0
      %413 = vmatpush1.bf16.msra.mxu0 0
      %414 = vmatprep.subr.bf16.mxu0 0
      %415 = vmatpush1.bf16.msra.mxu0 0
      %416 = vmatprep.subr.bf16.mxu0 0
      %417 = vmatpush1.bf16.msra.mxu0 0
      %418 = vmatprep.mubr.bf16.mxu0 0
      %419 = vmatmul.mubr.bf16.gmra.mrb[0].mxu0 %v306
      %v420 = vpop.f32.mrb[0].mxu0
      %v421 = vadd.f32 0.0, %v420
      %v422 = vpop.f32.mrb[0].mxu0
      %v423 = vpop.f32.mrb[0].mxu0
      %v424 = vadd.f32 0.0, %v423
      %v425 = vpop.f32.mrb[0].mxu0
      %426 = vmatprep.mubr.bf16.mxu0 0
      %427 = vmatmul.mubr.bf16.gmra.mrb[0].mxu0 %v307
      %v428 = vpop.f32.mrb[0].mxu0
      %v429 = vadd.f32 0.0, %v428
      %v430 = vpop.f32.mrb[0].mxu0
      %v431 = vpop.f32.mrb[0].mxu0
      %v432 = vadd.f32 0.0, %v431
      %v433 = vpop.f32.mrb[0].mxu0
      %434 = vmatprep.mubr.bf16.mxu0 0
      %435 = vmatmul.mubr.bf16.gmra.mrb[0].mxu0 %v308
      %v436 = vpop.f32.mrb[0].mxu0
      %v437 = vadd.f32 0.0, %v436
      %v438 = vpop.f32.mrb[0].mxu0
      %v439 = vpop.f32.mrb[0].mxu0
      %v440 = vadd.f32 0.0, %v439
      %v441 = vpop.f32.mrb[0].mxu0
      %442 = vmatprep.mubr.bf16.mxu0 0
      %443 = vmatmul.mubr.bf16.gmra.mrb[0].mxu0 %v309
      %v444 = vpop.f32.mrb[0].mxu0
      %v445 = vadd.f32 0.0, %v444
      %v446 = vpop.f32.mrb[0].mxu0
      %v447 = vpop.f32.mrb[0].mxu0
      %v448 = vadd.f32 0.0, %v447
      %v449 = vpop.f32.mrb[0].mxu0
      %450 = vmatprep.mubr.bf16.mxu0 0
      %451 = vmatmul.mubr.bf16.gmra.mrb[0].mxu0 %v310
      %v452 = vpop.f32.mrb[0].mxu0
      %v453 = vadd.f32 0.0, %v452
      %v454 = vpop.f32.mrb[0].mxu0
      %v455 = vpop.f32.mrb[0].mxu0
      %v456 = vadd.f32 0.0, %v455
      %v457 = vpop.f32.mrb[0].mxu0
      %458 = vmatprep.mubr.bf16.mxu0 0
      %459 = vmatmul.mubr.bf16.gmra.mrb[0].mxu0 %v311
      %v460 = vpop.f32.mrb[0].mxu0
      %v461 = vadd.f32 0.0, %v460
      %v462 = vpop.f32.mrb[0].mxu0
      %v463 = vpop.f32.mrb[0].mxu0
      %v464 = vadd.f32 0.0, %v463
      %v465 = vpop.f32.mrb[0].mxu0
      %466 = vmatprep.mubr.bf16.mxu0 0
      %467 = vmatmul.mubr.bf16.gmra.mrb[0].mxu0 %v312
      %v468 = vpop.f32.mrb[0].mxu0
      %v469 = vadd.f32 0.0, %v468
      %v470 = vpop.f32.mrb[0].mxu0
      %v471 = vpop.f32.mrb[0].mxu0
      %v472 = vadd.f32 0.0, %v471
      %v473 = vpop.f32.mrb[0].mxu0
      %474 = vmatprep.mubr.bf16.mxu0 0
      %475 = vmatmul.mubr.bf16.gmra.mrb[0].mxu0 %v313
      %v476 = vpop.f32.mrb[0].mxu0
      %v477 = vadd.f32 0.0, %v476
      %v478 = vpop.f32.mrb[0].mxu0
      %v479 = vpop.f32.mrb[0].mxu0
      %v480 = vadd.f32 0.0, %v479
      %v481 = vpop.f32.mrb[0].mxu0
      %482 = vmatprep.mubr.bf16.mxu0 0
      %483 = vmatmul.mubr.bf16.gmra.mrb[0].mxu0 %v314
      %v484 = vpop.f32.mrb[0].mxu0
      %v485 = vadd.f32 0.0, %v484
      %v486 = vpop.f32.mrb[0].mxu0
      %v487 = vpop.f32.mrb[0].mxu0
      %v488 = vadd.f32 0.0, %v487
      %v489 = vpop.f32.mrb[0].mxu0
      %490 = vmatprep.mubr.bf16.mxu0 0
      %491 = vmatmul.mubr.bf16.gmra.mrb[0].mxu0 %v315
      %v492 = vpop.f32.mrb[0].mxu0
      %v493 = vadd.f32 0.0, %v492
      %v494 = vpop.f32.mrb[0].mxu0
      %v495 = vpop.f32.mrb[0].mxu0
      %v496 = vadd.f32 0.0, %v495
      %v497 = vpop.f32.mrb[0].mxu0
      %498 = vmatprep.mubr.bf16.mxu0 0
      %499 = vmatmul.mubr.bf16.gmra.mrb[0].mxu0 %v316
      %v500 = vpop.f32.mrb[0].mxu0
      %v501 = vadd.f32 0.0, %v500
      %v502 = vpop.f32.mrb[0].mxu0
      %v503 = vpop.f32.mrb[0].mxu0
      %v504 = vadd.f32 0.0, %v503
      %v505 = vpop.f32.mrb[0].mxu0
      %506 = vmatprep.mubr.bf16.mxu0 0
      %507 = vmatmul.mubr.bf16.gmra.mrb[0].mxu0 %v317
      %v508 = vpop.f32.mrb[0].mxu0
      %v509 = vadd.f32 0.0, %v508
      %v510 = vpop.f32.mrb[0].mxu0
      %v511 = vpop.f32.mrb[0].mxu0
      %v512 = vadd.f32 0.0, %v511
      %v513 = vpop.f32.mrb[0].mxu0
      %514 = vmatprep.mubr.bf16.mxu0 0
      %515 = vmatmul.mubr.bf16.gmra.mrb[0].mxu0 %v318
      %v516 = vpop.f32.mrb[0].mxu0
      %v517 = vadd.f32 0.0, %v516
      %v518 = vpop.f32.mrb[0].mxu0
      %v519 = vpop.f32.mrb[0].mxu0
      %v520 = vadd.f32 0.0, %v519
      %v521 = vpop.f32.mrb[0].mxu0
      %522 = vmatprep.mubr.bf16.mxu0 0
      %523 = vmatmul.mubr.bf16.gmra.mrb[0].mxu0 %v319
      %v524 = vpop.f32.mrb[0].mxu0
      %v525 = vadd.f32 0.0, %v524
      %v526 = vpop.f32.mrb[0].mxu0
      %v527 = vpop.f32.mrb[0].mxu0
      %v528 = vadd.f32 0.0, %v527
      %v529 = vpop.f32.mrb[0].mxu0
      %530 = vmatprep.mubr.bf16.mxu0 0
      %531 = vmatmul.mubr.bf16.gmra.mrb[0].mxu0 %v320
      %v532 = vpop.f32.mrb[0].mxu0
      %v533 = vadd.f32 0.0, %v532
      %v534 = vpop.f32.mrb[0].mxu0
      %v535 = vpop.f32.mrb[0].mxu0
      %v536 = vadd.f32 0.0, %v535
      %v537 = vpop.f32.mrb[0].mxu0
      %538 = vmatprep.mubr.bf16.mxu0 0
      %539 = vmatmul.mubr.bf16.gmra.mrb[0].mxu0 %v321
      %v540 = vpop.f32.mrb[0].mxu0
      %v541 = vadd.f32 0.0, %v540
      %v542 = vpop.f32.mrb[0].mxu0
      %v543 = vpop.f32.mrb[0].mxu0
      %v544 = vadd.f32 0.0, %v543
      %v545 = vpop.f32.mrb[0].mxu0
      %546 = vdwg.mxu0
      %v547 = vadd.f32 %v274, %v421
      %v548 = vadd.f32 %v275, %v424
      %v549 = vadd.f32 %v276, %v429
      %v550 = vadd.f32 %v277, %v432
      %v551 = vadd.f32 %v278, %v437
      %v552 = vadd.f32 %v279, %v440
      %v553 = vadd.f32 %v280, %v445
      %v554 = vadd.f32 %v281, %v448
      %v555 = vadd.f32 %v282, %v453
      %v556 = vadd.f32 %v283, %v456
      %v557 = vadd.f32 %v284, %v461
      %v558 = vadd.f32 %v285, %v464
      %v559 = vadd.f32 %v286, %v469
      %v560 = vadd.f32 %v287, %v472
      %v561 = vadd.f32 %v288, %v477
      %v562 = vadd.f32 %v289, %v480
      %v563 = vadd.f32 %v290, %v485
      %v564 = vadd.f32 %v291, %v488
      %v565 = vadd.f32 %v292, %v493
      %v566 = vadd.f32 %v293, %v496
      %v567 = vadd.f32 %v294, %v501
      %v568 = vadd.f32 %v295, %v504
      %v569 = vadd.f32 %v296, %v509
      %v570 = vadd.f32 %v297, %v512
      %v571 = vadd.f32 %v298, %v517
      %v572 = vadd.f32 %v299, %v520
      %v573 = vadd.f32 %v300, %v525
      %v574 = vadd.f32 %v301, %v528
      %v575 = vadd.f32 %v302, %v533
      %v576 = vadd.f32 %v303, %v536
      %v577 = vadd.f32 %v304, %v541
      %v578 = vadd.f32 %v305, %v544
      %579 = vst [vmem:[#allocation2] sm:$0xff] %v547
      %580 = vst [vmem:[#allocation2 + $0x8] sm:$0xff] %v548
      %581 = vst [vmem:[#allocation2 + $0x10] sm:$0xff] %v549
      %582 = vst [vmem:[#allocation2 + $0x18] sm:$0xff] %v550
      %583 = vst [vmem:[#allocation2 + $0x20] sm:$0xff] %v551
      %584 = vst [vmem:[#allocation2 + $0x28] sm:$0xff] %v552
      %585 = vst [vmem:[#allocation2 + $0x30] sm:$0xff] %v553
      %586 = vst [vmem:[#allocation2 + $0x38] sm:$0xff] %v554
      %587 = vst [vmem:[#allocation2 + $0x40] sm:$0xff] %v555
      %588 = vst [vmem:[#allocation2 + $0x48] sm:$0xff] %v556
      %589 = vst [vmem:[#allocation2 + $0x50] sm:$0xff] %v557
      %590 = vst [vmem:[#allocation2 + $0x58] sm:$0xff] %v558
      %591 = vst [vmem:[#allocation2 + $0x60] sm:$0xff] %v559
      %592 = vst [vmem:[#allocation2 + $0x68] sm:$0xff] %v560
      %593 = vst [vmem:[#allocation2 + $0x70] sm:$0xff] %v561
      %594 = vst [vmem:[#allocation2 + $0x78] sm:$0xff] %v562
      %595 = vst [vmem:[#allocation2 + $0x80] sm:$0xff] %v563
      %596 = vst [vmem:[#allocation2 + $0x88] sm:$0xff] %v564
      %597 = vst [vmem:[#allocation2 + $0x90] sm:$0xff] %v565
      %598 = vst [vmem:[#allocation2 + $0x98] sm:$0xff] %v566
      %599 = vst [vmem:[#allocation2 + $0xa0] sm:$0xff] %v567
      %600 = vst [vmem:[#allocation2 + $0xa8] sm:$0xff] %v568
      %601 = vst [vmem:[#allocation2 + $0xb0] sm:$0xff] %v569
      %602 = vst [vmem:[#allocation2 + $0xb8] sm:$0xff] %v570
      %603 = vst [vmem:[#allocation2 + $0xc0] sm:$0xff] %v571
      %604 = vst [vmem:[#allocation2 + $0xc8] sm:$0xff] %v572
      %605 = vst [vmem:[#allocation2 + $0xd0] sm:$0xff] %v573
      %606 = vst [vmem:[#allocation2 + $0xd8] sm:$0xff] %v574
      %607 = vst [vmem:[#allocation2 + $0xe0] sm:$0xff] %v575
      %608 = vst [vmem:[#allocation2 + $0xe8] sm:$0xff] %v576
      %609 = vst [vmem:[#allocation2 + $0xf0] sm:$0xff] %v577
      %610 = vst [vmem:[#allocation2 + $0xf8] sm:$0xff] %v578
      %v611 = vld [vmem:[%s199 + $0x1] sm:$0xff]
      %v612 = vld [vmem:[%s199 + $0x9] sm:$0xff]
      %v613 = vld [vmem:[%s199 + $0x19] sm:$0xff]
      %v614 = vld [vmem:[%s199 + $0x21] sm:$0xff]
      %v615 = vld [vmem:[%s199 + $0x31] sm:$0xff]
      %v616 = vld [vmem:[%s199 + $0x39] sm:$0xff]
      %v617 = vld [vmem:[%s199 + $0x49] sm:$0xff]
      %v618 = vld [vmem:[%s199 + $0x51] sm:$0xff]
      %v619 = vld [vmem:[%s199 + $0x61] sm:$0xff]
      %v620 = vld [vmem:[%s199 + $0x69] sm:$0xff]
      %v621 = vld [vmem:[%s199 + $0x79] sm:$0xff]
      %v622 = vld [vmem:[%s199 + $0x81] sm:$0xff]
      %v623 = vld [vmem:[%s199 + $0x91] sm:$0xff]
      %v624 = vld [vmem:[%s199 + $0x99] sm:$0xff]
      %v625 = vld [vmem:[%s199 + $0xa9] sm:$0xff]
      %v626 = vld [vmem:[%s199 + $0xb1] sm:$0xff]
      %v627 = vld [vmem:[%s199 + $0xc1] sm:$0xff]
      %v628 = vld [vmem:[%s199 + $0xc9] sm:$0xff]
      %v629 = vld [vmem:[%s199 + $0xd9] sm:$0xff]
      %v630 = vld [vmem:[%s199 + $0xe1] sm:$0xff]
      %v631 = vld [vmem:[%s199 + $0xf1] sm:$0xff]
      %v632 = vld [vmem:[%s199 + $0xf9] sm:$0xff]
      %v633 = vld [vmem:[%s199 + $0x109] sm:$0xff]
      %v634 = vld [vmem:[%s199 + $0x111] sm:$0xff]
      %v635 = vld [vmem:[%s199 + $0x121] sm:$0xff]
      %v636 = vld [vmem:[%s199 + $0x129] sm:$0xff]
      %v637 = vld [vmem:[%s199 + $0x139] sm:$0xff]
      %v638 = vld [vmem:[%s199 + $0x141] sm:$0xff]
      %v639 = vld [vmem:[%s199 + $0x151] sm:$0xff]
      %v640 = vld [vmem:[%s199 + $0x159] sm:$0xff]
      %v641 = vld [vmem:[%s199 + $0x169] sm:$0xff]
      %v642 = vld [vmem:[%s199 + $0x171] sm:$0xff]
      %v643 = vld [vmem:[#allocation2] sm:$0xff]
      %v644 = vld [vmem:[#allocation2 + $0x8] sm:$0xff]
      %v645 = vld [vmem:[#allocation2 + $0x10] sm:$0xff]
      %v646 = vld [vmem:[#allocation2 + $0x18] sm:$0xff]
      %v647 = vld [vmem:[#allocation2 + $0x20] sm:$0xff]
      %v648 = vld [vmem:[#allocation2 + $0x28] sm:$0xff]
      %v649 = vld [vmem:[#allocation2 + $0x30] sm:$0xff]
      %v650 = vld [vmem:[#allocation2 + $0x38] sm:$0xff]
      %v651 = vld [vmem:[#allocation2 + $0x40] sm:$0xff]
      %v652 = vld [vmem:[#allocation2 + $0x48] sm:$0xff]
      %v653 = vld [vmem:[#allocation2 + $0x50] sm:$0xff]
      %v654 = vld [vmem:[#allocation2 + $0x58] sm:$0xff]
      %v655 = vld [vmem:[#allocation2 + $0x60] sm:$0xff]
      %v656 = vld [vmem:[#allocation2 + $0x68] sm:$0xff]
      %v657 = vld [vmem:[#allocation2 + $0x70] sm:$0xff]
      %v658 = vld [vmem:[#allocation2 + $0x78] sm:$0xff]
      %v659 = vld [vmem:[#allocation2 + $0x80] sm:$0xff]
      %v660 = vld [vmem:[#allocation2 + $0x88] sm:$0xff]
      %v661 = vld [vmem:[#allocation2 + $0x90] sm:$0xff]
      %v662 = vld [vmem:[#allocation2 + $0x98] sm:$0xff]
      %v663 = vld [vmem:[#allocation2 + $0xa0] sm:$0xff]
      %v664 = vld [vmem:[#allocation2 + $0xa8] sm:$0xff]
      %v665 = vld [vmem:[#allocation2 + $0xb0] sm:$0xff]
      %v666 = vld [vmem:[#allocation2 + $0xb8] sm:$0xff]
      %v667 = vld [vmem:[#allocation2 + $0xc0] sm:$0xff]
      %v668 = vld [vmem:[#allocation2 + $0xc8] sm:$0xff]
      %v669 = vld [vmem:[#allocation2 + $0xd0] sm:$0xff]
      %v670 = vld [vmem:[#allocation2 + $0xd8] sm:$0xff]
      %v671 = vld [vmem:[#allocation2 + $0xe0] sm:$0xff]
      %v672 = vld [vmem:[#allocation2 + $0xe8] sm:$0xff]
      %v673 = vld [vmem:[#allocation2 + $0xf0] sm:$0xff]
      %v674 = vld [vmem:[#allocation2 + $0xf8] sm:$0xff]
      %v675 = vpack.c.bf16 %v612, %v611
      %v676 = vpack.c.bf16 %v614, %v613
      %v677 = vpack.c.bf16 %v616, %v615
      %v678 = vpack.c.bf16 %v618, %v617
      %v679 = vpack.c.bf16 %v620, %v619
      %v680 = vpack.c.bf16 %v622, %v621
      %v681 = vpack.c.bf16 %v624, %v623
      %v682 = vpack.c.bf16 %v626, %v625
      %v683 = vpack.c.bf16 %v628, %v627
      %v684 = vpack.c.bf16 %v630, %v629
      %v685 = vpack.c.bf16 %v632, %v631
      %v686 = vpack.c.bf16 %v634, %v633
      %v687 = vpack.c.bf16 %v636, %v635
      %v688 = vpack.c.bf16 %v638, %v637
      %v689 = vpack.c.bf16 %v640, %v639
      %v690 = vpack.c.bf16 %v642, %v641
      %s691 = scalar_lea.vmem %s1, 64
      %v692 = vld [vmem:[%s691] sm:$0xf]
      %v693 = vld [vmem:[%s691 + $0x4] sm:$0xf]
      %v694 = vld [vmem:[%s691 + $0x8] sm:$0xf]
      %v695 = vld [vmem:[%s691 + $0xc] sm:$0xf]
      %v696 = vld [vmem:[%s691 + $0x10] sm:$0xf]
      %v697 = vld [vmem:[%s691 + $0x14] sm:$0xf]
      %v698 = vld [vmem:[%s691 + $0x18] sm:$0xf]
      %v699 = vld [vmem:[%s691 + $0x1c] sm:$0xf]
      %v700 = vld [vmem:[%s691 + $0x20] sm:$0xf]
      %v701 = vld [vmem:[%s691 + $0x24] sm:$0xf]
      %v702 = vld [vmem:[%s691 + $0x28] sm:$0xf]
      %v703 = vld [vmem:[%s691 + $0x2c] sm:$0xf]
      %v704 = vld [vmem:[%s691 + $0x30] sm:$0xf]
      %v705 = vld [vmem:[%s691 + $0x34] sm:$0xf]
      %v706 = vld [vmem:[%s691 + $0x38] sm:$0xf]
      %v707 = vld [vmem:[%s691 + $0x3c] sm:$0xf]
      %v724 = vunpack.c.l.b16 %v692
      %v725 = vunpack.c.l.b16 %v693
      %v726 = vunpack.c.l.b16 %v694
      %v727 = vunpack.c.l.b16 %v695
      %v728 = vunpack.c.l.b16 %v696
      %v729 = vunpack.c.l.b16 %v697
      %v730 = vunpack.c.l.b16 %v698
      %v731 = vunpack.c.l.b16 %v699
      %v732 = vunpack.c.l.b16 %v700
      %v733 = vunpack.c.l.b16 %v701
      %v734 = vunpack.c.l.b16 %v702
      %v735 = vunpack.c.l.b16 %v703
      %v736 = vunpack.c.l.b16 %v704
      %v737 = vunpack.c.l.b16 %v705
      %v738 = vunpack.c.l.b16 %v706
      %v739 = vunpack.c.l.b16 %v707
      %v740 = vpack.c.b16 %v725, %v724
      %v741 = vpack.c.b16 %v727, %v726
      %v742 = vpack.c.b16 %v729, %v728
      %v743 = vpack.c.b16 %v731, %v730
      %v744 = vpack.c.b16 %v733, %v732
      %v745 = vpack.c.b16 %v735, %v734
      %v746 = vpack.c.b16 %v737, %v736
      %v747 = vpack.c.b16 %v739, %v738
      %756 = vmatprep.subr.bf16.mxu0 0
      %757 = vmatpush1.bf16.msra.mxu0 %v740
      %758 = vmatprep.subr.bf16.mxu0 0
      %759 = vmatpush1.bf16.msra.mxu0 %v741
      %760 = vmatprep.subr.bf16.mxu0 0
      %761 = vmatpush1.bf16.msra.mxu0 %v742
      %762 = vmatprep.subr.bf16.mxu0 0
      %763 = vmatpush1.bf16.msra.mxu0 %v743
      %764 = vmatprep.subr.bf16.mxu0 0
      %765 = vmatpush1.bf16.msra.mxu0 %v744
      %766 = vmatprep.subr.bf16.mxu0 0
      %767 = vmatpush1.bf16.msra.mxu0 %v745
      %768 = vmatprep.subr.bf16.mxu0 0
      %769 = vmatpush1.bf16.msra.mxu0 %v746
      %770 = vmatprep.subr.bf16.mxu0 0
      %771 = vmatpush1.bf16.msra.mxu0 %v747
      %772 = vmatprep.subr.bf16.mxu0 0
      %773 = vmatpush1.bf16.msra.mxu0 0
      %774 = vmatprep.subr.bf16.mxu0 0
      %775 = vmatpush1.bf16.msra.mxu0 0
      %776 = vmatprep.subr.bf16.mxu0 0
      %777 = vmatpush1.bf16.msra.mxu0 0
      %778 = vmatprep.subr.bf16.mxu0 0
      %779 = vmatpush1.bf16.msra.mxu0 0
      %780 = vmatprep.subr.bf16.mxu0 0
      %781 = vmatpush1.bf16.msra.mxu0 0
      %782 = vmatprep.subr.bf16.mxu0 0
      %783 = vmatpush1.bf16.msra.mxu0 0
      %784 = vmatprep.subr.bf16.mxu0 0
      %785 = vmatpush1.bf16.msra.mxu0 0
      %786 = vmatprep.subr.bf16.mxu0 0
      %787 = vmatpush1.bf16.msra.mxu0 0
      %788 = vmatprep.mubr.bf16.mxu0 0
      %789 = vmatmul.mubr.bf16.gmra.mrb[0].mxu0 %v675
      %v790 = vpop.f32.mrb[0].mxu0
      %v791 = vadd.f32 0.0, %v790
      %v792 = vpop.f32.mrb[0].mxu0
      %v793 = vpop.f32.mrb[0].mxu0
      %v794 = vadd.f32 0.0, %v793
      %v795 = vpop.f32.mrb[0].mxu0
      %796 = vmatprep.mubr.bf16.mxu0 0
      %797 = vmatmul.mubr.bf16.gmra.mrb[0].mxu0 %v676
      %v798 = vpop.f32.mrb[0].mxu0
      %v799 = vadd.f32 0.0, %v798
      %v800 = vpop.f32.mrb[0].mxu0
      %v801 = vpop.f32.mrb[0].mxu0
      %v802 = vadd.f32 0.0, %v801
      %v803 = vpop.f32.mrb[0].mxu0
      %804 = vmatprep.mubr.bf16.mxu0 0
      %805 = vmatmul.mubr.bf16.gmra.mrb[0].mxu0 %v677
      %v806 = vpop.f32.mrb[0].mxu0
      %v807 = vadd.f32 0.0, %v806
      %v808 = vpop.f32.mrb[0].mxu0
      %v809 = vpop.f32.mrb[0].mxu0
      %v810 = vadd.f32 0.0, %v809
      %v811 = vpop.f32.mrb[0].mxu0
      %812 = vmatprep.mubr.bf16.mxu0 0
      %813 = vmatmul.mubr.bf16.gmra.mrb[0].mxu0 %v678
      %v814 = vpop.f32.mrb[0].mxu0
      %v815 = vadd.f32 0.0, %v814
      %v816 = vpop.f32.mrb[0].mxu0
      %v817 = vpop.f32.mrb[0].mxu0
      %v818 = vadd.f32 0.0, %v817
      %v819 = vpop.f32.mrb[0].mxu0
      %820 = vmatprep.mubr.bf16.mxu0 0
      %821 = vmatmul.mubr.bf16.gmra.mrb[0].mxu0 %v679
      %v822 = vpop.f32.mrb[0].mxu0
      %v823 = vadd.f32 0.0, %v822
      %v824 = vpop.f32.mrb[0].mxu0
      %v825 = vpop.f32.mrb[0].mxu0
      %v826 = vadd.f32 0.0, %v825
      %v827 = vpop.f32.mrb[0].mxu0
      %828 = vmatprep.mubr.bf16.mxu0 0
      %829 = vmatmul.mubr.bf16.gmra.mrb[0].mxu0 %v680
      %v830 = vpop.f32.mrb[0].mxu0
      %v831 = vadd.f32 0.0, %v830
      %v832 = vpop.f32.mrb[0].mxu0
      %v833 = vpop.f32.mrb[0].mxu0
      %v834 = vadd.f32 0.0, %v833
      %v835 = vpop.f32.mrb[0].mxu0
      %836 = vmatprep.mubr.bf16.mxu0 0
      %837 = vmatmul.mubr.bf16.gmra.mrb[0].mxu0 %v681
      %v838 = vpop.f32.mrb[0].mxu0
      %v839 = vadd.f32 0.0, %v838
      %v840 = vpop.f32.mrb[0].mxu0
      %v841 = vpop.f32.mrb[0].mxu0
      %v842 = vadd.f32 0.0, %v841
      %v843 = vpop.f32.mrb[0].mxu0
      %844 = vmatprep.mubr.bf16.mxu0 0
      %845 = vmatmul.mubr.bf16.gmra.mrb[0].mxu0 %v682
      %v846 = vpop.f32.mrb[0].mxu0
      %v847 = vadd.f32 0.0, %v846
      %v848 = vpop.f32.mrb[0].mxu0
      %v849 = vpop.f32.mrb[0].mxu0
      %v850 = vadd.f32 0.0, %v849
      %v851 = vpop.f32.mrb[0].mxu0
      %852 = vmatprep.mubr.bf16.mxu0 0
      %853 = vmatmul.mubr.bf16.gmra.mrb[0].mxu0 %v683
      %v854 = vpop.f32.mrb[0].mxu0
      %v855 = vadd.f32 0.0, %v854
      %v856 = vpop.f32.mrb[0].mxu0
      %v857 = vpop.f32.mrb[0].mxu0
      %v858 = vadd.f32 0.0, %v857
      %v859 = vpop.f32.mrb[0].mxu0
      %860 = vmatprep.mubr.bf16.mxu0 0
      %861 = vmatmul.mubr.bf16.gmra.mrb[0].mxu0 %v684
      %v862 = vpop.f32.mrb[0].mxu0
      %v863 = vadd.f32 0.0, %v862
      %v864 = vpop.f32.mrb[0].mxu0
      %v865 = vpop.f32.mrb[0].mxu0
      %v866 = vadd.f32 0.0, %v865
      %v867 = vpop.f32.mrb[0].mxu0
      %868 = vmatprep.mubr.bf16.mxu0 0
      %869 = vmatmul.mubr.bf16.gmra.mrb[0].mxu0 %v685
      %v870 = vpop.f32.mrb[0].mxu0
      %v871 = vadd.f32 0.0, %v870
      %v872 = vpop.f32.mrb[0].mxu0
      %v873 = vpop.f32.mrb[0].mxu0
      %v874 = vadd.f32 0.0, %v873
      %v875 = vpop.f32.mrb[0].mxu0
      %876 = vmatprep.mubr.bf16.mxu0 0
      %877 = vmatmul.mubr.bf16.gmra.mrb[0].mxu0 %v686
      %v878 = vpop.f32.mrb[0].mxu0
      %v879 = vadd.f32 0.0, %v878
      %v880 = vpop.f32.mrb[0].mxu0
      %v881 = vpop.f32.mrb[0].mxu0
      %v882 = vadd.f32 0.0, %v881
      %v883 = vpop.f32.mrb[0].mxu0
      %884 = vmatprep.mubr.bf16.mxu0 0
      %885 = vmatmul.mubr.bf16.gmra.mrb[0].mxu0 %v687
      %v886 = vpop.f32.mrb[0].mxu0
      %v887 = vadd.f32 0.0, %v886
      %v888 = vpop.f32.mrb[0].mxu0
      %v889 = vpop.f32.mrb[0].mxu0
      %v890 = vadd.f32 0.0, %v889
      %v891 = vpop.f32.mrb[0].mxu0
      %892 = vmatprep.mubr.bf16.mxu0 0
      %893 = vmatmul.mubr.bf16.gmra.mrb[0].mxu0 %v688
      %v894 = vpop.f32.mrb[0].mxu0
      %v895 = vadd.f32 0.0, %v894
      %v896 = vpop.f32.mrb[0].mxu0
      %v897 = vpop.f32.mrb[0].mxu0
      %v898 = vadd.f32 0.0, %v897
      %v899 = vpop.f32.mrb[0].mxu0
      %900 = vmatprep.mubr.bf16.mxu0 0
      %901 = vmatmul.mubr.bf16.gmra.mrb[0].mxu0 %v689
      %v902 = vpop.f32.mrb[0].mxu0
      %v903 = vadd.f32 0.0, %v902
      %v904 = vpop.f32.mrb[0].mxu0
      %v905 = vpop.f32.mrb[0].mxu0
      %v906 = vadd.f32 0.0, %v905
      %v907 = vpop.f32.mrb[0].mxu0
      %908 = vmatprep.mubr.bf16.mxu0 0
      %909 = vmatmul.mubr.bf16.gmra.mrb[0].mxu0 %v690
      %v910 = vpop.f32.mrb[0].mxu0
      %v911 = vadd.f32 0.0, %v910
      %v912 = vpop.f32.mrb[0].mxu0
      %v913 = vpop.f32.mrb[0].mxu0
      %v914 = vadd.f32 0.0, %v913
      %v915 = vpop.f32.mrb[0].mxu0
      %916 = vdwg.mxu0
      %v917 = vadd.f32 %v643, %v791
      %v918 = vadd.f32 %v644, %v794
      %v919 = vadd.f32 %v645, %v799
      %v920 = vadd.f32 %v646, %v802
      %v921 = vadd.f32 %v647, %v807
      %v922 = vadd.f32 %v648, %v810
      %v923 = vadd.f32 %v649, %v815
      %v924 = vadd.f32 %v650, %v818
      %v925 = vadd.f32 %v651, %v823
      %v926 = vadd.f32 %v652, %v826
      %v927 = vadd.f32 %v653, %v831
      %v928 = vadd.f32 %v654, %v834
      %v929 = vadd.f32 %v655, %v839
      %v930 = vadd.f32 %v656, %v842
      %v931 = vadd.f32 %v657, %v847
      %v932 = vadd.f32 %v658, %v850
      %v933 = vadd.f32 %v659, %v855
      %v934 = vadd.f32 %v660, %v858
      %v935 = vadd.f32 %v661, %v863
      %v936 = vadd.f32 %v662, %v866
      %v937 = vadd.f32 %v663, %v871
      %v938 = vadd.f32 %v664, %v874
      %v939 = vadd.f32 %v665, %v879
      %v940 = vadd.f32 %v666, %v882
      %v941 = vadd.f32 %v667, %v887
      %v942 = vadd.f32 %v668, %v890
      %v943 = vadd.f32 %v669, %v895
      %v944 = vadd.f32 %v670, %v898
      %v945 = vadd.f32 %v671, %v903
      %v946 = vadd.f32 %v672, %v906
      %v947 = vadd.f32 %v673, %v911
      %v948 = vadd.f32 %v674, %v914
      %949 = vst [vmem:[#allocation2] sm:$0xff] %v917
      %950 = vst [vmem:[#allocation2 + $0x8] sm:$0xff] %v918
      %951 = vst [vmem:[#allocation2 + $0x10] sm:$0xff] %v919
      %952 = vst [vmem:[#allocation2 + $0x18] sm:$0xff] %v920
      %953 = vst [vmem:[#allocation2 + $0x20] sm:$0xff] %v921
      %954 = vst [vmem:[#allocation2 + $0x28] sm:$0xff] %v922
      %955 = vst [vmem:[#allocation2 + $0x30] sm:$0xff] %v923
      %956 = vst [vmem:[#allocation2 + $0x38] sm:$0xff] %v924
      %957 = vst [vmem:[#allocation2 + $0x40] sm:$0xff] %v925
      %958 = vst [vmem:[#allocation2 + $0x48] sm:$0xff] %v926
      %959 = vst [vmem:[#allocation2 + $0x50] sm:$0xff] %v927
      %960 = vst [vmem:[#allocation2 + $0x58] sm:$0xff] %v928
      %961 = vst [vmem:[#allocation2 + $0x60] sm:$0xff] %v929
      %962 = vst [vmem:[#allocation2 + $0x68] sm:$0xff] %v930
      %963 = vst [vmem:[#allocation2 + $0x70] sm:$0xff] %v931
      %964 = vst [vmem:[#allocation2 + $0x78] sm:$0xff] %v932
      %965 = vst [vmem:[#allocation2 + $0x80] sm:$0xff] %v933
      %966 = vst [vmem:[#allocation2 + $0x88] sm:$0xff] %v934
      %967 = vst [vmem:[#allocation2 + $0x90] sm:$0xff] %v935
      %968 = vst [vmem:[#allocation2 + $0x98] sm:$0xff] %v936
      %969 = vst [vmem:[#allocation2 + $0xa0] sm:$0xff] %v937
      %970 = vst [vmem:[#allocation2 + $0xa8] sm:$0xff] %v938
      %971 = vst [vmem:[#allocation2 + $0xb0] sm:$0xff] %v939
      %972 = vst [vmem:[#allocation2 + $0xb8] sm:$0xff] %v940
      %973 = vst [vmem:[#allocation2 + $0xc0] sm:$0xff] %v941
      %974 = vst [vmem:[#allocation2 + $0xc8] sm:$0xff] %v942
      %975 = vst [vmem:[#allocation2 + $0xd0] sm:$0xff] %v943
      %976 = vst [vmem:[#allocation2 + $0xd8] sm:$0xff] %v944
      %977 = vst [vmem:[#allocation2 + $0xe0] sm:$0xff] %v945
      %978 = vst [vmem:[#allocation2 + $0xe8] sm:$0xff] %v946
      %979 = vst [vmem:[#allocation2 + $0xf0] sm:$0xff] %v947
      %980 = vst [vmem:[#allocation2 + $0xf8] sm:$0xff] %v948
      %v981 = vld [vmem:[%s199 + $0x2] sm:$0xff]
      %v982 = vld [vmem:[%s199 + $0xa] sm:$0xff]
      %v983 = vld [vmem:[%s199 + $0x1a] sm:$0xff]
      %v984 = vld [vmem:[%s199 + $0x22] sm:$0xff]
      %v985 = vld [vmem:[%s199 + $0x32] sm:$0xff]
      %v986 = vld [vmem:[%s199 + $0x3a] sm:$0xff]
      %v987 = vld [vmem:[%s199 + $0x4a] sm:$0xff]
      %v988 = vld [vmem:[%s199 + $0x52] sm:$0xff]
      %v989 = vld [vmem:[%s199 + $0x62] sm:$0xff]
      %v990 = vld [vmem:[%s199 + $0x6a] sm:$0xff]
      %v991 = vld [vmem:[%s199 + $0x7a] sm:$0xff]
      %v992 = vld [vmem:[%s199 + $0x82] sm:$0xff]
      %v993 = vld [vmem:[%s199 + $0x92] sm:$0xff]
      %v994 = vld [vmem:[%s199 + $0x9a] sm:$0xff]
      %v995 = vld [vmem:[%s199 + $0xaa] sm:$0xff]
      %v996 = vld [vmem:[%s199 + $0xb2] sm:$0xff]
      %v997 = vld [vmem:[%s199 + $0xc2] sm:$0xff]
      %v998 = vld [vmem:[%s199 + $0xca] sm:$0xff]
      %v999 = vld [vmem:[%s199 + $0xda] sm:$0xff]
      %v1000 = vld [vmem:[%s199 + $0xe2] sm:$0xff]
      %v1001 = vld [vmem:[%s199 + $0xf2] sm:$0xff]
      %v1002 = vld [vmem:[%s199 + $0xfa] sm:$0xff]
      %v1003 = vld [vmem:[%s199 + $0x10a] sm:$0xff]
      %v1004 = vld [vmem:[%s199 + $0x112] sm:$0xff]
      %v1005 = vld [vmem:[%s199 + $0x122] sm:$0xff]
      %v1006 = vld [vmem:[%s199 + $0x12a] sm:$0xff]
      %v1007 = vld [vmem:[%s199 + $0x13a] sm:$0xff]
      %v1008 = vld [vmem:[%s199 + $0x142] sm:$0xff]
      %v1009 = vld [vmem:[%s199 + $0x152] sm:$0xff]
      %v1010 = vld [vmem:[%s199 + $0x15a] sm:$0xff]
      %v1011 = vld [vmem:[%s199 + $0x16a] sm:$0xff]
      %v1012 = vld [vmem:[%s199 + $0x172] sm:$0xff]
      %v1013 = vld [vmem:[#allocation2] sm:$0xff]
      %v1014 = vld [vmem:[#allocation2 + $0x8] sm:$0xff]
      %v1015 = vld [vmem:[#allocation2 + $0x10] sm:$0xff]
      %v1016 = vld [vmem:[#allocation2 + $0x18] sm:$0xff]
      %v1017 = vld [vmem:[#allocation2 + $0x20] sm:$0xff]
      %v1018 = vld [vmem:[#allocation2 + $0x28] sm:$0xff]
      %v1019 = vld [vmem:[#allocation2 + $0x30] sm:$0xff]
      %v1020 = vld [vmem:[#allocation2 + $0x38] sm:$0xff]
      %v1021 = vld [vmem:[#allocation2 + $0x40] sm:$0xff]
      %v1022 = vld [vmem:[#allocation2 + $0x48] sm:$0xff]
      %v1023 = vld [vmem:[#allocation2 + $0x50] sm:$0xff]
      %v1024 = vld [vmem:[#allocation2 + $0x58] sm:$0xff]
      %v1025 = vld [vmem:[#allocation2 + $0x60] sm:$0xff]
      %v1026 = vld [vmem:[#allocation2 + $0x68] sm:$0xff]
      %v1027 = vld [vmem:[#allocation2 + $0x70] sm:$0xff]
      %v1028 = vld [vmem:[#allocation2 + $0x78] sm:$0xff]
      %v1029 = vld [vmem:[#allocation2 + $0x80] sm:$0xff]
      %v1030 = vld [vmem:[#allocation2 + $0x88] sm:$0xff]
      %v1031 = vld [vmem:[#allocation2 + $0x90] sm:$0xff]
      %v1032 = vld [vmem:[#allocation2 + $0x98] sm:$0xff]
      %v1033 = vld [vmem:[#allocation2 + $0xa0] sm:$0xff]
      %v1034 = vld [vmem:[#allocation2 + $0xa8] sm:$0xff]
      %v1035 = vld [vmem:[#allocation2 + $0xb0] sm:$0xff]
      %v1036 = vld [vmem:[#allocation2 + $0xb8] sm:$0xff]
      %v1037 = vld [vmem:[#allocation2 + $0xc0] sm:$0xff]
      %v1038 = vld [vmem:[#allocation2 + $0xc8] sm:$0xff]
      %v1039 = vld [vmem:[#allocation2 + $0xd0] sm:$0xff]
      %v1040 = vld [vmem:[#allocation2 + $0xd8] sm:$0xff]
      %v1041 = vld [vmem:[#allocation2 + $0xe0] sm:$0xff]
      %v1042 = vld [vmem:[#allocation2 + $0xe8] sm:$0xff]
      %v1043 = vld [vmem:[#allocation2 + $0xf0] sm:$0xff]
      %v1044 = vld [vmem:[#allocation2 + $0xf8] sm:$0xff]
      %v1045 = vpack.c.bf16 %v982, %v981
      %v1046 = vpack.c.bf16 %v984, %v983
      %v1047 = vpack.c.bf16 %v986, %v985
      %v1048 = vpack.c.bf16 %v988, %v987
      %v1049 = vpack.c.bf16 %v990, %v989
      %v1050 = vpack.c.bf16 %v992, %v991
      %v1051 = vpack.c.bf16 %v994, %v993
      %v1052 = vpack.c.bf16 %v996, %v995
      %v1053 = vpack.c.bf16 %v998, %v997
      %v1054 = vpack.c.bf16 %v1000, %v999
      %v1055 = vpack.c.bf16 %v1002, %v1001
      %v1056 = vpack.c.bf16 %v1004, %v1003
      %v1057 = vpack.c.bf16 %v1006, %v1005
      %v1058 = vpack.c.bf16 %v1008, %v1007
      %v1059 = vpack.c.bf16 %v1010, %v1009
      %v1060 = vpack.c.bf16 %v1012, %v1011
      %s1061 = scalar_lea.vmem %s1, 128
      %v1062 = vld [vmem:[%s1061] sm:$0xf]
      %v1063 = vld [vmem:[%s1061 + $0x4] sm:$0xf]
      %v1064 = vld [vmem:[%s1061 + $0x8] sm:$0xf]
      %v1065 = vld [vmem:[%s1061 + $0xc] sm:$0xf]
      %v1066 = vld [vmem:[%s1061 + $0x10] sm:$0xf]
      %v1067 = vld [vmem:[%s1061 + $0x14] sm:$0xf]
      %v1068 = vld [vmem:[%s1061 + $0x18] sm:$0xf]
      %v1069 = vld [vmem:[%s1061 + $0x1c] sm:$0xf]
      %v1070 = vld [vmem:[%s1061 + $0x20] sm:$0xf]
      %v1071 = vld [vmem:[%s1061 + $0x24] sm:$0xf]
      %v1072 = vld [vmem:[%s1061 + $0x28] sm:$0xf]
      %v1073 = vld [vmem:[%s1061 + $0x2c] sm:$0xf]
      %v1074 = vld [vmem:[%s1061 + $0x30] sm:$0xf]
      %v1075 = vld [vmem:[%s1061 + $0x34] sm:$0xf]
      %v1076 = vld [vmem:[%s1061 + $0x38] sm:$0xf]
      %v1077 = vld [vmem:[%s1061 + $0x3c] sm:$0xf]
      %v1094 = vunpack.c.l.b16 %v1062
      %v1095 = vunpack.c.l.b16 %v1063
      %v1096 = vunpack.c.l.b16 %v1064
      %v1097 = vunpack.c.l.b16 %v1065
      %v1098 = vunpack.c.l.b16 %v1066
      %v1099 = vunpack.c.l.b16 %v1067
      %v1100 = vunpack.c.l.b16 %v1068
      %v1101 = vunpack.c.l.b16 %v1069
      %v1102 = vunpack.c.l.b16 %v1070
      %v1103 = vunpack.c.l.b16 %v1071
      %v1104 = vunpack.c.l.b16 %v1072
      %v1105 = vunpack.c.l.b16 %v1073
      %v1106 = vunpack.c.l.b16 %v1074
      %v1107 = vunpack.c.l.b16 %v1075
      %v1108 = vunpack.c.l.b16 %v1076
      %v1109 = vunpack.c.l.b16 %v1077
      %v1110 = vpack.c.b16 %v1095, %v1094
      %v1111 = vpack.c.b16 %v1097, %v1096
      %v1112 = vpack.c.b16 %v1099, %v1098
      %v1113 = vpack.c.b16 %v1101, %v1100
      %v1114 = vpack.c.b16 %v1103, %v1102
      %v1115 = vpack.c.b16 %v1105, %v1104
      %v1116 = vpack.c.b16 %v1107, %v1106
      %v1117 = vpack.c.b16 %v1109, %v1108
      %1126 = vmatprep.subr.bf16.mxu0 0
      %1127 = vmatpush1.bf16.msra.mxu0 %v1110
      %1128 = vmatprep.subr.bf16.mxu0 0
      %1129 = vmatpush1.bf16.msra.mxu0 %v1111
      %1130 = vmatprep.subr.bf16.mxu0 0
      %1131 = vmatpush1.bf16.msra.mxu0 %v1112
      %1132 = vmatprep.subr.bf16.mxu0 0
      %1133 = vmatpush1.bf16.msra.mxu0 %v1113
      %1134 = vmatprep.subr.bf16.mxu0 0
      %1135 = vmatpush1.bf16.msra.mxu0 %v1114
      %1136 = vmatprep.subr.bf16.mxu0 0
      %1137 = vmatpush1.bf16.msra.mxu0 %v1115
      %1138 = vmatprep.subr.bf16.mxu0 0
      %1139 = vmatpush1.bf16.msra.mxu0 %v1116
      %1140 = vmatprep.subr.bf16.mxu0 0
      %1141 = vmatpush1.bf16.msra.mxu0 %v1117
      %1142 = vmatprep.subr.bf16.mxu0 0
      %1143 = vmatpush1.bf16.msra.mxu0 0
      %1144 = vmatprep.subr.bf16.mxu0 0
      %1145 = vmatpush1.bf16.msra.mxu0 0
      %1146 = vmatprep.subr.bf16.mxu0 0
      %1147 = vmatpush1.bf16.msra.mxu0 0
      %1148 = vmatprep.subr.bf16.mxu0 0
      %1149 = vmatpush1.bf16.msra.mxu0 0
      %1150 = vmatprep.subr.bf16.mxu0 0
      %1151 = vmatpush1.bf16.msra.mxu0 0
      %1152 = vmatprep.subr.bf16.mxu0 0
      %1153 = vmatpush1.bf16.msra.mxu0 0
      %1154 = vmatprep.subr.bf16.mxu0 0
      %1155 = vmatpush1.bf16.msra.mxu0 0
      %1156 = vmatprep.subr.bf16.mxu0 0
      %1157 = vmatpush1.bf16.msra.mxu0 0
      %1158 = vmatprep.mubr.bf16.mxu0 0
      %1159 = vmatmul.mubr.bf16.gmra.mrb[0].mxu0 %v1045
      %v1160 = vpop.f32.mrb[0].mxu0
      %v1161 = vadd.f32 0.0, %v1160
      %v1162 = vpop.f32.mrb[0].mxu0
      %v1163 = vpop.f32.mrb[0].mxu0
      %v1164 = vadd.f32 0.0, %v1163
      %v1165 = vpop.f32.mrb[0].mxu0
      %1166 = vmatprep.mubr.bf16.mxu0 0
      %1167 = vmatmul.mubr.bf16.gmra.mrb[0].mxu0 %v1046
      %v1168 = vpop.f32.mrb[0].mxu0
      %v1169 = vadd.f32 0.0, %v1168
      %v1170 = vpop.f32.mrb[0].mxu0
      %v1171 = vpop.f32.mrb[0].mxu0
      %v1172 = vadd.f32 0.0, %v1171
      %v1173 = vpop.f32.mrb[0].mxu0
      %1174 = vmatprep.mubr.bf16.mxu0 0
      %1175 = vmatmul.mubr.bf16.gmra.mrb[0].mxu0 %v1047
      %v1176 = vpop.f32.mrb[0].mxu0
      %v1177 = vadd.f32 0.0, %v1176
      %v1178 = vpop.f32.mrb[0].mxu0
      %v1179 = vpop.f32.mrb[0].mxu0
      %v1180 = vadd.f32 0.0, %v1179
      %v1181 = vpop.f32.mrb[0].mxu0
      %1182 = vmatprep.mubr.bf16.mxu0 0
      %1183 = vmatmul.mubr.bf16.gmra.mrb[0].mxu0 %v1048
      %v1184 = vpop.f32.mrb[0].mxu0
      %v1185 = vadd.f32 0.0, %v1184
      %v1186 = vpop.f32.mrb[0].mxu0
      %v1187 = vpop.f32.mrb[0].mxu0
      %v1188 = vadd.f32 0.0, %v1187
      %v1189 = vpop.f32.mrb[0].mxu0
      %1190 = vmatprep.mubr.bf16.mxu0 0
      %1191 = vmatmul.mubr.bf16.gmra.mrb[0].mxu0 %v1049
      %v1192 = vpop.f32.mrb[0].mxu0
      %v1193 = vadd.f32 0.0, %v1192
      %v1194 = vpop.f32.mrb[0].mxu0
      %v1195 = vpop.f32.mrb[0].mxu0
      %v1196 = vadd.f32 0.0, %v1195
      %v1197 = vpop.f32.mrb[0].mxu0
      %1198 = vmatprep.mubr.bf16.mxu0 0
      %1199 = vmatmul.mubr.bf16.gmra.mrb[0].mxu0 %v1050
      %v1200 = vpop.f32.mrb[0].mxu0
      %v1201 = vadd.f32 0.0, %v1200
      %v1202 = vpop.f32.mrb[0].mxu0
      %v1203 = vpop.f32.mrb[0].mxu0
      %v1204 = vadd.f32 0.0, %v1203
      %v1205 = vpop.f32.mrb[0].mxu0
      %1206 = vmatprep.mubr.bf16.mxu0 0
      %1207 = vmatmul.mubr.bf16.gmra.mrb[0].mxu0 %v1051
      %v1208 = vpop.f32.mrb[0].mxu0
      %v1209 = vadd.f32 0.0, %v1208
      %v1210 = vpop.f32.mrb[0].mxu0
      %v1211 = vpop.f32.mrb[0].mxu0
      %v1212 = vadd.f32 0.0, %v1211
      %v1213 = vpop.f32.mrb[0].mxu0
      %1214 = vmatprep.mubr.bf16.mxu0 0
      %1215 = vmatmul.mubr.bf16.gmra.mrb[0].mxu0 %v1052
      %v1216 = vpop.f32.mrb[0].mxu0
      %v1217 = vadd.f32 0.0, %v1216
      %v1218 = vpop.f32.mrb[0].mxu0
      %v1219 = vpop.f32.mrb[0].mxu0
      %v1220 = vadd.f32 0.0, %v1219
      %v1221 = vpop.f32.mrb[0].mxu0
      %1222 = vmatprep.mubr.bf16.mxu0 0
      %1223 = vmatmul.mubr.bf16.gmra.mrb[0].mxu0 %v1053
      %v1224 = vpop.f32.mrb[0].mxu0
      %v1225 = vadd.f32 0.0, %v1224
      %v1226 = vpop.f32.mrb[0].mxu0
      %v1227 = vpop.f32.mrb[0].mxu0
      %v1228 = vadd.f32 0.0, %v1227
      %v1229 = vpop.f32.mrb[0].mxu0
      %1230 = vmatprep.mubr.bf16.mxu0 0
      %1231 = vmatmul.mubr.bf16.gmra.mrb[0].mxu0 %v1054
      %v1232 = vpop.f32.mrb[0].mxu0
      %v1233 = vadd.f32 0.0, %v1232
      %v1234 = vpop.f32.mrb[0].mxu0
      %v1235 = vpop.f32.mrb[0].mxu0
      %v1236 = vadd.f32 0.0, %v1235
      %v1237 = vpop.f32.mrb[0].mxu0
      %1238 = vmatprep.mubr.bf16.mxu0 0
      %1239 = vmatmul.mubr.bf16.gmra.mrb[0].mxu0 %v1055
      %v1240 = vpop.f32.mrb[0].mxu0
      %v1241 = vadd.f32 0.0, %v1240
      %v1242 = vpop.f32.mrb[0].mxu0
      %v1243 = vpop.f32.mrb[0].mxu0
      %v1244 = vadd.f32 0.0, %v1243
      %v1245 = vpop.f32.mrb[0].mxu0
      %1246 = vmatprep.mubr.bf16.mxu0 0
      %1247 = vmatmul.mubr.bf16.gmra.mrb[0].mxu0 %v1056
      %v1248 = vpop.f32.mrb[0].mxu0
      %v1249 = vadd.f32 0.0, %v1248
      %v1250 = vpop.f32.mrb[0].mxu0
      %v1251 = vpop.f32.mrb[0].mxu0
      %v1252 = vadd.f32 0.0, %v1251
      %v1253 = vpop.f32.mrb[0].mxu0
      %1254 = vmatprep.mubr.bf16.mxu0 0
      %1255 = vmatmul.mubr.bf16.gmra.mrb[0].mxu0 %v1057
      %v1256 = vpop.f32.mrb[0].mxu0
      %v1257 = vadd.f32 0.0, %v1256
      %v1258 = vpop.f32.mrb[0].mxu0
      %v1259 = vpop.f32.mrb[0].mxu0
      %v1260 = vadd.f32 0.0, %v1259
      %v1261 = vpop.f32.mrb[0].mxu0
      %1262 = vmatprep.mubr.bf16.mxu0 0
      %1263 = vmatmul.mubr.bf16.gmra.mrb[0].mxu0 %v1058
      %v1264 = vpop.f32.mrb[0].mxu0
      %v1265 = vadd.f32 0.0, %v1264
      %v1266 = vpop.f32.mrb[0].mxu0
      %v1267 = vpop.f32.mrb[0].mxu0
      %v1268 = vadd.f32 0.0, %v1267
      %v1269 = vpop.f32.mrb[0].mxu0
      %1270 = vmatprep.mubr.bf16.mxu0 0
      %1271 = vmatmul.mubr.bf16.gmra.mrb[0].mxu0 %v1059
      %v1272 = vpop.f32.mrb[0].mxu0
      %v1273 = vadd.f32 0.0, %v1272
      %v1274 = vpop.f32.mrb[0].mxu0
      %v1275 = vpop.f32.mrb[0].mxu0
      %v1276 = vadd.f32 0.0, %v1275
      %v1277 = vpop.f32.mrb[0].mxu0
      %1278 = vmatprep.mubr.bf16.mxu0 0
      %1279 = vmatmul.mubr.bf16.gmra.mrb[0].mxu0 %v1060
      %v1280 = vpop.f32.mrb[0].mxu0
      %v1281 = vadd.f32 0.0, %v1280
      %v1282 = vpop.f32.mrb[0].mxu0
      %v1283 = vpop.f32.mrb[0].mxu0
      %v1284 = vadd.f32 0.0, %v1283
      %v1285 = vpop.f32.mrb[0].mxu0
      %1286 = vdwg.mxu0
      %v1287 = vadd.f32 %v1013, %v1161
      %v1288 = vadd.f32 %v1014, %v1164
      %v1289 = vadd.f32 %v1015, %v1169
      %v1290 = vadd.f32 %v1016, %v1172
      %v1291 = vadd.f32 %v1017, %v1177
      %v1292 = vadd.f32 %v1018, %v1180
      %v1293 = vadd.f32 %v1019, %v1185
      %v1294 = vadd.f32 %v1020, %v1188
      %v1295 = vadd.f32 %v1021, %v1193
      %v1296 = vadd.f32 %v1022, %v1196
      %v1297 = vadd.f32 %v1023, %v1201
      %v1298 = vadd.f32 %v1024, %v1204
      %v1299 = vadd.f32 %v1025, %v1209
      %v1300 = vadd.f32 %v1026, %v1212
      %v1301 = vadd.f32 %v1027, %v1217
      %v1302 = vadd.f32 %v1028, %v1220
      %v1303 = vadd.f32 %v1029, %v1225
      %v1304 = vadd.f32 %v1030, %v1228
      %v1305 = vadd.f32 %v1031, %v1233
      %v1306 = vadd.f32 %v1032, %v1236
      %v1307 = vadd.f32 %v1033, %v1241
      %v1308 = vadd.f32 %v1034, %v1244
      %v1309 = vadd.f32 %v1035, %v1249
      %v1310 = vadd.f32 %v1036, %v1252
      %v1311 = vadd.f32 %v1037, %v1257
      %v1312 = vadd.f32 %v1038, %v1260
      %v1313 = vadd.f32 %v1039, %v1265
      %v1314 = vadd.f32 %v1040, %v1268
      %v1315 = vadd.f32 %v1041, %v1273
      %v1316 = vadd.f32 %v1042, %v1276
      %v1317 = vadd.f32 %v1043, %v1281
      %v1318 = vadd.f32 %v1044, %v1284
      %1319 = vst [vmem:[#allocation2] sm:$0xff] %v1287
      %1320 = vst [vmem:[#allocation2 + $0x8] sm:$0xff] %v1288
      %1321 = vst [vmem:[#allocation2 + $0x10] sm:$0xff] %v1289
      %1322 = vst [vmem:[#allocation2 + $0x18] sm:$0xff] %v1290
      %1323 = vst [vmem:[#allocation2 + $0x20] sm:$0xff] %v1291
      %1324 = vst [vmem:[#allocation2 + $0x28] sm:$0xff] %v1292
      %1325 = vst [vmem:[#allocation2 + $0x30] sm:$0xff] %v1293
      %1326 = vst [vmem:[#allocation2 + $0x38] sm:$0xff] %v1294
      %1327 = vst [vmem:[#allocation2 + $0x40] sm:$0xff] %v1295
      %1328 = vst [vmem:[#allocation2 + $0x48] sm:$0xff] %v1296
      %1329 = vst [vmem:[#allocation2 + $0x50] sm:$0xff] %v1297
      %1330 = vst [vmem:[#allocation2 + $0x58] sm:$0xff] %v1298
      %1331 = vst [vmem:[#allocation2 + $0x60] sm:$0xff] %v1299
      %1332 = vst [vmem:[#allocation2 + $0x68] sm:$0xff] %v1300
      %1333 = vst [vmem:[#allocation2 + $0x70] sm:$0xff] %v1301
      %1334 = vst [vmem:[#allocation2 + $0x78] sm:$0xff] %v1302
      %1335 = vst [vmem:[#allocation2 + $0x80] sm:$0xff] %v1303
      %1336 = vst [vmem:[#allocation2 + $0x88] sm:$0xff] %v1304
      %1337 = vst [vmem:[#allocation2 + $0x90] sm:$0xff] %v1305
      %1338 = vst [vmem:[#allocation2 + $0x98] sm:$0xff] %v1306
      %1339 = vst [vmem:[#allocation2 + $0xa0] sm:$0xff] %v1307
      %1340 = vst [vmem:[#allocation2 + $0xa8] sm:$0xff] %v1308
      %1341 = vst [vmem:[#allocation2 + $0xb0] sm:$0xff] %v1309
      %1342 = vst [vmem:[#allocation2 + $0xb8] sm:$0xff] %v1310
      %1343 = vst [vmem:[#allocation2 + $0xc0] sm:$0xff] %v1311
      %1344 = vst [vmem:[#allocation2 + $0xc8] sm:$0xff] %v1312
      %1345 = vst [vmem:[#allocation2 + $0xd0] sm:$0xff] %v1313
      %1346 = vst [vmem:[#allocation2 + $0xd8] sm:$0xff] %v1314
      %1347 = vst [vmem:[#allocation2 + $0xe0] sm:$0xff] %v1315
      %1348 = vst [vmem:[#allocation2 + $0xe8] sm:$0xff] %v1316
      %1349 = vst [vmem:[#allocation2 + $0xf0] sm:$0xff] %v1317
      %1350 = vst [vmem:[#allocation2 + $0xf8] sm:$0xff] %v1318
      %s1351 = scalar_lea.vmem %s199, 24
      %v1352 = vld [vmem:[%s1351] sm:$0xff]
      %v1353 = vld [vmem:[%s1351 + $0x8] sm:$0xff]
      %v1354 = vld [vmem:[%s1351 + $0x18] sm:$0xff]
      %v1355 = vld [vmem:[%s1351 + $0x20] sm:$0xff]
      %v1356 = vld [vmem:[%s1351 + $0x30] sm:$0xff]
      %v1357 = vld [vmem:[%s1351 + $0x38] sm:$0xff]
      %v1358 = vld [vmem:[%s1351 + $0x48] sm:$0xff]
      %v1359 = vld [vmem:[%s1351 + $0x50] sm:$0xff]
      %v1360 = vld [vmem:[%s1351 + $0x60] sm:$0xff]
      %v1361 = vld [vmem:[%s1351 + $0x68] sm:$0xff]
      %v1362 = vld [vmem:[%s1351 + $0x78] sm:$0xff]
      %v1363 = vld [vmem:[%s1351 + $0x80] sm:$0xff]
      %v1364 = vld [vmem:[%s1351 + $0x90] sm:$0xff]
      %v1365 = vld [vmem:[%s1351 + $0x98] sm:$0xff]
      %v1366 = vld [vmem:[%s1351 + $0xa8] sm:$0xff]
      %v1367 = vld [vmem:[%s1351 + $0xb0] sm:$0xff]
      %v1368 = vld [vmem:[%s1351 + $0xc0] sm:$0xff]
      %v1369 = vld [vmem:[%s1351 + $0xc8] sm:$0xff]
      %v1370 = vld [vmem:[%s1351 + $0xd8] sm:$0xff]
      %v1371 = vld [vmem:[%s1351 + $0xe0] sm:$0xff]
      %v1372 = vld [vmem:[%s1351 + $0xf0] sm:$0xff]
      %v1373 = vld [vmem:[%s1351 + $0xf8] sm:$0xff]
      %v1374 = vld [vmem:[%s1351 + $0x108] sm:$0xff]
      %v1375 = vld [vmem:[%s1351 + $0x110] sm:$0xff]
      %v1376 = vld [vmem:[%s1351 + $0x120] sm:$0xff]
      %v1377 = vld [vmem:[%s1351 + $0x128] sm:$0xff]
      %v1378 = vld [vmem:[%s1351 + $0x138] sm:$0xff]
      %v1379 = vld [vmem:[%s1351 + $0x140] sm:$0xff]
      %v1380 = vld [vmem:[%s1351 + $0x150] sm:$0xff]
      %v1381 = vld [vmem:[%s1351 + $0x158] sm:$0xff]
      %v1382 = vld [vmem:[%s1351 + $0x168] sm:$0xff]
      %v1383 = vld [vmem:[%s1351 + $0x170] sm:$0xff]
      %v1384 = vld [vmem:[#allocation2] sm:$0xff]
      %v1385 = vld [vmem:[#allocation2 + $0x8] sm:$0xff]
      %v1386 = vld [vmem:[#allocation2 + $0x10] sm:$0xff]
      %v1387 = vld [vmem:[#allocation2 + $0x18] sm:$0xff]
      %v1388 = vld [vmem:[#allocation2 + $0x20] sm:$0xff]
      %v1389 = vld [vmem:[#allocation2 + $0x28] sm:$0xff]
      %v1390 = vld [vmem:[#allocation2 + $0x30] sm:$0xff]
      %v1391 = vld [vmem:[#allocation2 + $0x38] sm:$0xff]
      %v1392 = vld [vmem:[#allocation2 + $0x40] sm:$0xff]
      %v1393 = vld [vmem:[#allocation2 + $0x48] sm:$0xff]
      %v1394 = vld [vmem:[#allocation2 + $0x50] sm:$0xff]
      %v1395 = vld [vmem:[#allocation2 + $0x58] sm:$0xff]
      %v1396 = vld [vmem:[#allocation2 + $0x60] sm:$0xff]
      %v1397 = vld [vmem:[#allocation2 + $0x68] sm:$0xff]
      %v1398 = vld [vmem:[#allocation2 + $0x70] sm:$0xff]
      %v1399 = vld [vmem:[#allocation2 + $0x78] sm:$0xff]
      %v1400 = vld [vmem:[#allocation2 + $0x80] sm:$0xff]
      %v1401 = vld [vmem:[#allocation2 + $0x88] sm:$0xff]
      %v1402 = vld [vmem:[#allocation2 + $0x90] sm:$0xff]
      %v1403 = vld [vmem:[#allocation2 + $0x98] sm:$0xff]
      %v1404 = vld [vmem:[#allocation2 + $0xa0] sm:$0xff]
      %v1405 = vld [vmem:[#allocation2 + $0xa8] sm:$0xff]
      %v1406 = vld [vmem:[#allocation2 + $0xb0] sm:$0xff]
      %v1407 = vld [vmem:[#allocation2 + $0xb8] sm:$0xff]
      %v1408 = vld [vmem:[#allocation2 + $0xc0] sm:$0xff]
      %v1409 = vld [vmem:[#allocation2 + $0xc8] sm:$0xff]
      %v1410 = vld [vmem:[#allocation2 + $0xd0] sm:$0xff]
      %v1411 = vld [vmem:[#allocation2 + $0xd8] sm:$0xff]
      %v1412 = vld [vmem:[#allocation2 + $0xe0] sm:$0xff]
      %v1413 = vld [vmem:[#allocation2 + $0xe8] sm:$0xff]
      %v1414 = vld [vmem:[#allocation2 + $0xf0] sm:$0xff]
      %v1415 = vld [vmem:[#allocation2 + $0xf8] sm:$0xff]
      %v1416 = vpack.c.bf16 %v1353, %v1352
      %v1417 = vpack.c.bf16 %v1355, %v1354
      %v1418 = vpack.c.bf16 %v1357, %v1356
      %v1419 = vpack.c.bf16 %v1359, %v1358
      %v1420 = vpack.c.bf16 %v1361, %v1360
      %v1421 = vpack.c.bf16 %v1363, %v1362
      %v1422 = vpack.c.bf16 %v1365, %v1364
      %v1423 = vpack.c.bf16 %v1367, %v1366
      %v1424 = vpack.c.bf16 %v1369, %v1368
      %v1425 = vpack.c.bf16 %v1371, %v1370
      %v1426 = vpack.c.bf16 %v1373, %v1372
      %v1427 = vpack.c.bf16 %v1375, %v1374
      %v1428 = vpack.c.bf16 %v1377, %v1376
      %v1429 = vpack.c.bf16 %v1379, %v1378
      %v1430 = vpack.c.bf16 %v1381, %v1380
      %v1431 = vpack.c.bf16 %v1383, %v1382
      %s1432 = scalar_lea.vmem %s1, 192
      %v1433 = vld [vmem:[%s1432] sm:$0xf]
      %v1434 = vld [vmem:[%s1432 + $0x4] sm:$0xf]
      %v1435 = vld [vmem:[%s1432 + $0x8] sm:$0xf]
      %v1436 = vld [vmem:[%s1432 + $0xc] sm:$0xf]
      %v1437 = vld [vmem:[%s1432 + $0x10] sm:$0xf]
      %v1438 = vld [vmem:[%s1432 + $0x14] sm:$0xf]
      %v1439 = vld [vmem:[%s1432 + $0x18] sm:$0xf]
      %v1440 = vld [vmem:[%s1432 + $0x1c] sm:$0xf]
      %v1441 = vld [vmem:[%s1432 + $0x20] sm:$0xf]
      %v1442 = vld [vmem:[%s1432 + $0x24] sm:$0xf]
      %v1443 = vld [vmem:[%s1432 + $0x28] sm:$0xf]
      %v1444 = vld [vmem:[%s1432 + $0x2c] sm:$0xf]
      %v1445 = vld [vmem:[%s1432 + $0x30] sm:$0xf]
      %v1446 = vld [vmem:[%s1432 + $0x34] sm:$0xf]
      %v1447 = vld [vmem:[%s1432 + $0x38] sm:$0xf]
      %v1448 = vld [vmem:[%s1432 + $0x3c] sm:$0xf]
      %v1465 = vunpack.c.l.b16 %v1433
      %v1466 = vunpack.c.l.b16 %v1434
      %v1467 = vunpack.c.l.b16 %v1435
      %v1468 = vunpack.c.l.b16 %v1436
      %v1469 = vunpack.c.l.b16 %v1437
      %v1470 = vunpack.c.l.b16 %v1438
      %v1471 = vunpack.c.l.b16 %v1439
      %v1472 = vunpack.c.l.b16 %v1440
      %v1473 = vunpack.c.l.b16 %v1441
      %v1474 = vunpack.c.l.b16 %v1442
      %v1475 = vunpack.c.l.b16 %v1443
      %v1476 = vunpack.c.l.b16 %v1444
      %v1477 = vunpack.c.l.b16 %v1445
      %v1478 = vunpack.c.l.b16 %v1446
      %v1479 = vunpack.c.l.b16 %v1447
      %v1480 = vunpack.c.l.b16 %v1448
      %v1481 = vpack.c.b16 %v1466, %v1465
      %v1482 = vpack.c.b16 %v1468, %v1467
      %v1483 = vpack.c.b16 %v1470, %v1469
      %v1484 = vpack.c.b16 %v1472, %v1471
      %v1485 = vpack.c.b16 %v1474, %v1473
      %v1486 = vpack.c.b16 %v1476, %v1475
      %v1487 = vpack.c.b16 %v1478, %v1477
      %v1488 = vpack.c.b16 %v1480, %v1479
      %1497 = vmatprep.subr.bf16.mxu0 0
      %1498 = vmatpush1.bf16.msra.mxu0 %v1481
      %1499 = vmatprep.subr.bf16.mxu0 0
      %1500 = vmatpush1.bf16.msra.mxu0 %v1482
      %1501 = vmatprep.subr.bf16.mxu0 0
      %1502 = vmatpush1.bf16.msra.mxu0 %v1483
      %1503 = vmatprep.subr.bf16.mxu0 0
      %1504 = vmatpush1.bf16.msra.mxu0 %v1484
      %1505 = vmatprep.subr.bf16.mxu0 0
      %1506 = vmatpush1.bf16.msra.mxu0 %v1485
      %1507 = vmatprep.subr.bf16.mxu0 0
      %1508 = vmatpush1.bf16.msra.mxu0 %v1486
      %1509 = vmatprep.subr.bf16.mxu0 0
      %1510 = vmatpush1.bf16.msra.mxu0 %v1487
      %1511 = vmatprep.subr.bf16.mxu0 0
      %1512 = vmatpush1.bf16.msra.mxu0 %v1488
      %1513 = vmatprep.subr.bf16.mxu0 0
      %1514 = vmatpush1.bf16.msra.mxu0 0
      %1515 = vmatprep.subr.bf16.mxu0 0
      %1516 = vmatpush1.bf16.msra.mxu0 0
      %1517 = vmatprep.subr.bf16.mxu0 0
      %1518 = vmatpush1.bf16.msra.mxu0 0
      %1519 = vmatprep.subr.bf16.mxu0 0
      %1520 = vmatpush1.bf16.msra.mxu0 0
      %1521 = vmatprep.subr.bf16.mxu0 0
      %1522 = vmatpush1.bf16.msra.mxu0 0
      %1523 = vmatprep.subr.bf16.mxu0 0
      %1524 = vmatpush1.bf16.msra.mxu0 0
      %1525 = vmatprep.subr.bf16.mxu0 0
      %1526 = vmatpush1.bf16.msra.mxu0 0
      %1527 = vmatprep.subr.bf16.mxu0 0
      %1528 = vmatpush1.bf16.msra.mxu0 0
      %1529 = vmatprep.mubr.bf16.mxu0 0
      %1530 = vmatmul.mubr.bf16.gmra.mrb[0].mxu0 %v1416
      %v1531 = vpop.f32.mrb[0].mxu0
      %v1532 = vadd.f32 0.0, %v1531
      %v1533 = vpop.f32.mrb[0].mxu0
      %v1534 = vpop.f32.mrb[0].mxu0
      %v1535 = vadd.f32 0.0, %v1534
      %v1536 = vpop.f32.mrb[0].mxu0
      %1537 = vmatprep.mubr.bf16.mxu0 0
      %1538 = vmatmul.mubr.bf16.gmra.mrb[0].mxu0 %v1417
      %v1539 = vpop.f32.mrb[0].mxu0
      %v1540 = vadd.f32 0.0, %v1539
      %v1541 = vpop.f32.mrb[0].mxu0
      %v1542 = vpop.f32.mrb[0].mxu0
      %v1543 = vadd.f32 0.0, %v1542
      %v1544 = vpop.f32.mrb[0].mxu0
      %1545 = vmatprep.mubr.bf16.mxu0 0
      %1546 = vmatmul.mubr.bf16.gmra.mrb[0].mxu0 %v1418
      %v1547 = vpop.f32.mrb[0].mxu0
      %v1548 = vadd.f32 0.0, %v1547
      %v1549 = vpop.f32.mrb[0].mxu0
      %v1550 = vpop.f32.mrb[0].mxu0
      %v1551 = vadd.f32 0.0, %v1550
      %v1552 = vpop.f32.mrb[0].mxu0
      %1553 = vmatprep.mubr.bf16.mxu0 0
      %1554 = vmatmul.mubr.bf16.gmra.mrb[0].mxu0 %v1419
      %v1555 = vpop.f32.mrb[0].mxu0
      %v1556 = vadd.f32 0.0, %v1555
      %v1557 = vpop.f32.mrb[0].mxu0
      %v1558 = vpop.f32.mrb[0].mxu0
      %v1559 = vadd.f32 0.0, %v1558
      %v1560 = vpop.f32.mrb[0].mxu0
      %1561 = vmatprep.mubr.bf16.mxu0 0
      %1562 = vmatmul.mubr.bf16.gmra.mrb[0].mxu0 %v1420
      %v1563 = vpop.f32.mrb[0].mxu0
      %v1564 = vadd.f32 0.0, %v1563
      %v1565 = vpop.f32.mrb[0].mxu0
      %v1566 = vpop.f32.mrb[0].mxu0
      %v1567 = vadd.f32 0.0, %v1566
      %v1568 = vpop.f32.mrb[0].mxu0
      %1569 = vmatprep.mubr.bf16.mxu0 0
      %1570 = vmatmul.mubr.bf16.gmra.mrb[0].mxu0 %v1421
      %v1571 = vpop.f32.mrb[0].mxu0
      %v1572 = vadd.f32 0.0, %v1571
      %v1573 = vpop.f32.mrb[0].mxu0
      %v1574 = vpop.f32.mrb[0].mxu0
      %v1575 = vadd.f32 0.0, %v1574
      %v1576 = vpop.f32.mrb[0].mxu0
      %1577 = vmatprep.mubr.bf16.mxu0 0
      %1578 = vmatmul.mubr.bf16.gmra.mrb[0].mxu0 %v1422
      %v1579 = vpop.f32.mrb[0].mxu0
      %v1580 = vadd.f32 0.0, %v1579
      %v1581 = vpop.f32.mrb[0].mxu0
      %v1582 = vpop.f32.mrb[0].mxu0
      %v1583 = vadd.f32 0.0, %v1582
      %v1584 = vpop.f32.mrb[0].mxu0
      %1585 = vmatprep.mubr.bf16.mxu0 0
      %1586 = vmatmul.mubr.bf16.gmra.mrb[0].mxu0 %v1423
      %v1587 = vpop.f32.mrb[0].mxu0
      %v1588 = vadd.f32 0.0, %v1587
      %v1589 = vpop.f32.mrb[0].mxu0
      %v1590 = vpop.f32.mrb[0].mxu0
      %v1591 = vadd.f32 0.0, %v1590
      %v1592 = vpop.f32.mrb[0].mxu0
      %1593 = vmatprep.mubr.bf16.mxu0 0
      %1594 = vmatmul.mubr.bf16.gmra.mrb[0].mxu0 %v1424
      %v1595 = vpop.f32.mrb[0].mxu0
      %v1596 = vadd.f32 0.0, %v1595
      %v1597 = vpop.f32.mrb[0].mxu0
      %v1598 = vpop.f32.mrb[0].mxu0
      %v1599 = vadd.f32 0.0, %v1598
      %v1600 = vpop.f32.mrb[0].mxu0
      %1601 = vmatprep.mubr.bf16.mxu0 0
      %1602 = vmatmul.mubr.bf16.gmra.mrb[0].mxu0 %v1425
      %v1603 = vpop.f32.mrb[0].mxu0
      %v1604 = vadd.f32 0.0, %v1603
      %v1605 = vpop.f32.mrb[0].mxu0
      %v1606 = vpop.f32.mrb[0].mxu0
      %v1607 = vadd.f32 0.0, %v1606
      %v1608 = vpop.f32.mrb[0].mxu0
      %1609 = vmatprep.mubr.bf16.mxu0 0
      %1610 = vmatmul.mubr.bf16.gmra.mrb[0].mxu0 %v1426
      %v1611 = vpop.f32.mrb[0].mxu0
      %v1612 = vadd.f32 0.0, %v1611
      %v1613 = vpop.f32.mrb[0].mxu0
      %v1614 = vpop.f32.mrb[0].mxu0
      %v1615 = vadd.f32 0.0, %v1614
      %v1616 = vpop.f32.mrb[0].mxu0
      %1617 = vmatprep.mubr.bf16.mxu0 0
      %1618 = vmatmul.mubr.bf16.gmra.mrb[0].mxu0 %v1427
      %v1619 = vpop.f32.mrb[0].mxu0
      %v1620 = vadd.f32 0.0, %v1619
      %v1621 = vpop.f32.mrb[0].mxu0
      %v1622 = vpop.f32.mrb[0].mxu0
      %v1623 = vadd.f32 0.0, %v1622
      %v1624 = vpop.f32.mrb[0].mxu0
      %1625 = vmatprep.mubr.bf16.mxu0 0
      %1626 = vmatmul.mubr.bf16.gmra.mrb[0].mxu0 %v1428
      %v1627 = vpop.f32.mrb[0].mxu0
      %v1628 = vadd.f32 0.0, %v1627
      %v1629 = vpop.f32.mrb[0].mxu0
      %v1630 = vpop.f32.mrb[0].mxu0
      %v1631 = vadd.f32 0.0, %v1630
      %v1632 = vpop.f32.mrb[0].mxu0
      %1633 = vmatprep.mubr.bf16.mxu0 0
      %1634 = vmatmul.mubr.bf16.gmra.mrb[0].mxu0 %v1429
      %v1635 = vpop.f32.mrb[0].mxu0
      %v1636 = vadd.f32 0.0, %v1635
      %v1637 = vpop.f32.mrb[0].mxu0
      %v1638 = vpop.f32.mrb[0].mxu0
      %v1639 = vadd.f32 0.0, %v1638
      %v1640 = vpop.f32.mrb[0].mxu0
      %1641 = vmatprep.mubr.bf16.mxu0 0
      %1642 = vmatmul.mubr.bf16.gmra.mrb[0].mxu0 %v1430
      %v1643 = vpop.f32.mrb[0].mxu0
      %v1644 = vadd.f32 0.0, %v1643
      %v1645 = vpop.f32.mrb[0].mxu0
      %v1646 = vpop.f32.mrb[0].mxu0
      %v1647 = vadd.f32 0.0, %v1646
      %v1648 = vpop.f32.mrb[0].mxu0
      %1649 = vmatprep.mubr.bf16.mxu0 0
      %1650 = vmatmul.mubr.bf16.gmra.mrb[0].mxu0 %v1431
      %v1651 = vpop.f32.mrb[0].mxu0
      %v1652 = vadd.f32 0.0, %v1651
      %v1653 = vpop.f32.mrb[0].mxu0
      %v1654 = vpop.f32.mrb[0].mxu0
      %v1655 = vadd.f32 0.0, %v1654
      %v1656 = vpop.f32.mrb[0].mxu0
      %1657 = vdwg.mxu0
      %v1658 = vadd.f32 %v1384, %v1532
      %v1659 = vadd.f32 %v1385, %v1535
      %v1660 = vadd.f32 %v1386, %v1540
      %v1661 = vadd.f32 %v1387, %v1543
      %v1662 = vadd.f32 %v1388, %v1548
      %v1663 = vadd.f32 %v1389, %v1551
      %v1664 = vadd.f32 %v1390, %v1556
      %v1665 = vadd.f32 %v1391, %v1559
      %v1666 = vadd.f32 %v1392, %v1564
      %v1667 = vadd.f32 %v1393, %v1567
      %v1668 = vadd.f32 %v1394, %v1572
      %v1669 = vadd.f32 %v1395, %v1575
      %v1670 = vadd.f32 %v1396, %v1580
      %v1671 = vadd.f32 %v1397, %v1583
      %v1672 = vadd.f32 %v1398, %v1588
      %v1673 = vadd.f32 %v1399, %v1591
      %v1674 = vadd.f32 %v1400, %v1596
      %v1675 = vadd.f32 %v1401, %v1599
      %v1676 = vadd.f32 %v1402, %v1604
      %v1677 = vadd.f32 %v1403, %v1607
      %v1678 = vadd.f32 %v1404, %v1612
      %v1679 = vadd.f32 %v1405, %v1615
      %v1680 = vadd.f32 %v1406, %v1620
      %v1681 = vadd.f32 %v1407, %v1623
      %v1682 = vadd.f32 %v1408, %v1628
      %v1683 = vadd.f32 %v1409, %v1631
      %v1684 = vadd.f32 %v1410, %v1636
      %v1685 = vadd.f32 %v1411, %v1639
      %v1686 = vadd.f32 %v1412, %v1644
      %v1687 = vadd.f32 %v1413, %v1647
      %v1688 = vadd.f32 %v1414, %v1652
      %v1689 = vadd.f32 %v1415, %v1655
      %1690 = vst [vmem:[#allocation2] sm:$0xff] %v1658
      %1691 = vst [vmem:[#allocation2 + $0x8] sm:$0xff] %v1659
      %1692 = vst [vmem:[#allocation2 + $0x10] sm:$0xff] %v1660
      %1693 = vst [vmem:[#allocation2 + $0x18] sm:$0xff] %v1661
      %1694 = vst [vmem:[#allocation2 + $0x20] sm:$0xff] %v1662
      %1695 = vst [vmem:[#allocation2 + $0x28] sm:$0xff] %v1663
      %1696 = vst [vmem:[#allocation2 + $0x30] sm:$0xff] %v1664
      %1697 = vst [vmem:[#allocation2 + $0x38] sm:$0xff] %v1665
      %1698 = vst [vmem:[#allocation2 + $0x40] sm:$0xff] %v1666
      %1699 = vst [vmem:[#allocation2 + $0x48] sm:$0xff] %v1667
      %1700 = vst [vmem:[#allocation2 + $0x50] sm:$0xff] %v1668
      %1701 = vst [vmem:[#allocation2 + $0x58] sm:$0xff] %v1669
      %1702 = vst [vmem:[#allocation2 + $0x60] sm:$0xff] %v1670
      %1703 = vst [vmem:[#allocation2 + $0x68] sm:$0xff] %v1671
      %1704 = vst [vmem:[#allocation2 + $0x70] sm:$0xff] %v1672
      %1705 = vst [vmem:[#allocation2 + $0x78] sm:$0xff] %v1673
      %1706 = vst [vmem:[#allocation2 + $0x80] sm:$0xff] %v1674
      %1707 = vst [vmem:[#allocation2 + $0x88] sm:$0xff] %v1675
      %1708 = vst [vmem:[#allocation2 + $0x90] sm:$0xff] %v1676
      %1709 = vst [vmem:[#allocation2 + $0x98] sm:$0xff] %v1677
      %1710 = vst [vmem:[#allocation2 + $0xa0] sm:$0xff] %v1678
      %1711 = vst [vmem:[#allocation2 + $0xa8] sm:$0xff] %v1679
      %1712 = vst [vmem:[#allocation2 + $0xb0] sm:$0xff] %v1680
      %1713 = vst [vmem:[#allocation2 + $0xb8] sm:$0xff] %v1681
      %1714 = vst [vmem:[#allocation2 + $0xc0] sm:$0xff] %v1682
      %1715 = vst [vmem:[#allocation2 + $0xc8] sm:$0xff] %v1683
      %1716 = vst [vmem:[#allocation2 + $0xd0] sm:$0xff] %v1684
      %1717 = vst [vmem:[#allocation2 + $0xd8] sm:$0xff] %v1685
      %1718 = vst [vmem:[#allocation2 + $0xe0] sm:$0xff] %v1686
      %1719 = vst [vmem:[#allocation2 + $0xe8] sm:$0xff] %v1687
      %1720 = vst [vmem:[#allocation2 + $0xf0] sm:$0xff] %v1688
      %1721 = vst [vmem:[#allocation2 + $0xf8] sm:$0xff] %v1689
      %v1722 = vld [vmem:[%s1351 + $0x1] sm:$0xff]
      %v1723 = vld [vmem:[%s1351 + $0x9] sm:$0xff]
      %v1724 = vld [vmem:[%s1351 + $0x19] sm:$0xff]
      %v1725 = vld [vmem:[%s1351 + $0x21] sm:$0xff]
      %v1726 = vld [vmem:[%s1351 + $0x31] sm:$0xff]
      %v1727 = vld [vmem:[%s1351 + $0x39] sm:$0xff]
      %v1728 = vld [vmem:[%s1351 + $0x49] sm:$0xff]
      %v1729 = vld [vmem:[%s1351 + $0x51] sm:$0xff]
      %v1730 = vld [vmem:[%s1351 + $0x61] sm:$0xff]
      %v1731 = vld [vmem:[%s1351 + $0x69] sm:$0xff]
      %v1732 = vld [vmem:[%s1351 + $0x79] sm:$0xff]
      %v1733 = vld [vmem:[%s1351 + $0x81] sm:$0xff]
      %v1734 = vld [vmem:[%s1351 + $0x91] sm:$0xff]
      %v1735 = vld [vmem:[%s1351 + $0x99] sm:$0xff]
      %v1736 = vld [vmem:[%s1351 + $0xa9] sm:$0xff]
      %v1737 = vld [vmem:[%s1351 + $0xb1] sm:$0xff]
      %v1738 = vld [vmem:[%s1351 + $0xc1] sm:$0xff]
      %v1739 = vld [vmem:[%s1351 + $0xc9] sm:$0xff]
      %v1740 = vld [vmem:[%s1351 + $0xd9] sm:$0xff]
      %v1741 = vld [vmem:[%s1351 + $0xe1] sm:$0xff]
      %v1742 = vld [vmem:[%s1351 + $0xf1] sm:$0xff]
      %v1743 = vld [vmem:[%s1351 + $0xf9] sm:$0xff]
      %v1744 = vld [vmem:[%s1351 + $0x109] sm:$0xff]
      %v1745 = vld [vmem:[%s1351 + $0x111] sm:$0xff]
      %v1746 = vld [vmem:[%s1351 + $0x121] sm:$0xff]
      %v1747 = vld [vmem:[%s1351 + $0x129] sm:$0xff]
      %v1748 = vld [vmem:[%s1351 + $0x139] sm:$0xff]
      %v1749 = vld [vmem:[%s1351 + $0x141] sm:$0xff]
      %v1750 = vld [vmem:[%s1351 + $0x151] sm:$0xff]
      %v1751 = vld [vmem:[%s1351 + $0x159] sm:$0xff]
      %v1752 = vld [vmem:[%s1351 + $0x169] sm:$0xff]
      %v1753 = vld [vmem:[%s1351 + $0x171] sm:$0xff]
      %v1754 = vld [vmem:[#allocation2] sm:$0xff]
      %v1755 = vld [vmem:[#allocation2 + $0x8] sm:$0xff]
      %v1756 = vld [vmem:[#allocation2 + $0x10] sm:$0xff]
      %v1757 = vld [vmem:[#allocation2 + $0x18] sm:$0xff]
      %v1758 = vld [vmem:[#allocation2 + $0x20] sm:$0xff]
      %v1759 = vld [vmem:[#allocation2 + $0x28] sm:$0xff]
      %v1760 = vld [vmem:[#allocation2 + $0x30] sm:$0xff]
      %v1761 = vld [vmem:[#allocation2 + $0x38] sm:$0xff]
      %v1762 = vld [vmem:[#allocation2 + $0x40] sm:$0xff]
      %v1763 = vld [vmem:[#allocation2 + $0x48] sm:$0xff]
      %v1764 = vld [vmem:[#allocation2 + $0x50] sm:$0xff]
      %v1765 = vld [vmem:[#allocation2 + $0x58] sm:$0xff]
      %v1766 = vld [vmem:[#allocation2 + $0x60] sm:$0xff]
      %v1767 = vld [vmem:[#allocation2 + $0x68] sm:$0xff]
      %v1768 = vld [vmem:[#allocation2 + $0x70] sm:$0xff]
      %v1769 = vld [vmem:[#allocation2 + $0x78] sm:$0xff]
      %v1770 = vld [vmem:[#allocation2 + $0x80] sm:$0xff]
      %v1771 = vld [vmem:[#allocation2 + $0x88] sm:$0xff]
      %v1772 = vld [vmem:[#allocation2 + $0x90] sm:$0xff]
      %v1773 = vld [vmem:[#allocation2 + $0x98] sm:$0xff]
      %v1774 = vld [vmem:[#allocation2 + $0xa0] sm:$0xff]
      %v1775 = vld [vmem:[#allocation2 + $0xa8] sm:$0xff]
      %v1776 = vld [vmem:[#allocation2 + $0xb0] sm:$0xff]
      %v1777 = vld [vmem:[#allocation2 + $0xb8] sm:$0xff]
      %v1778 = vld [vmem:[#allocation2 + $0xc0] sm:$0xff]
      %v1779 = vld [vmem:[#allocation2 + $0xc8] sm:$0xff]
      %v1780 = vld [vmem:[#allocation2 + $0xd0] sm:$0xff]
      %v1781 = vld [vmem:[#allocation2 + $0xd8] sm:$0xff]
      %v1782 = vld [vmem:[#allocation2 + $0xe0] sm:$0xff]
      %v1783 = vld [vmem:[#allocation2 + $0xe8] sm:$0xff]
      %v1784 = vld [vmem:[#allocation2 + $0xf0] sm:$0xff]
      %v1785 = vld [vmem:[#allocation2 + $0xf8] sm:$0xff]
      %v1786 = vpack.c.bf16 %v1723, %v1722
      %v1787 = vpack.c.bf16 %v1725, %v1724
      %v1788 = vpack.c.bf16 %v1727, %v1726
      %v1789 = vpack.c.bf16 %v1729, %v1728
      %v1790 = vpack.c.bf16 %v1731, %v1730
      %v1791 = vpack.c.bf16 %v1733, %v1732
      %v1792 = vpack.c.bf16 %v1735, %v1734
      %v1793 = vpack.c.bf16 %v1737, %v1736
      %v1794 = vpack.c.bf16 %v1739, %v1738
      %v1795 = vpack.c.bf16 %v1741, %v1740
      %v1796 = vpack.c.bf16 %v1743, %v1742
      %v1797 = vpack.c.bf16 %v1745, %v1744
      %v1798 = vpack.c.bf16 %v1747, %v1746
      %v1799 = vpack.c.bf16 %v1749, %v1748
      %v1800 = vpack.c.bf16 %v1751, %v1750
      %v1801 = vpack.c.bf16 %v1753, %v1752
      %s1802 = scalar_lea.vmem %s1, 256
      %v1803 = vld [vmem:[%s1802] sm:$0xf]
      %v1804 = vld [vmem:[%s1802 + $0x4] sm:$0xf]
      %v1805 = vld [vmem:[%s1802 + $0x8] sm:$0xf]
      %v1806 = vld [vmem:[%s1802 + $0xc] sm:$0xf]
      %v1807 = vld [vmem:[%s1802 + $0x10] sm:$0xf]
      %v1808 = vld [vmem:[%s1802 + $0x14] sm:$0xf]
      %v1809 = vld [vmem:[%s1802 + $0x18] sm:$0xf]
      %v1810 = vld [vmem:[%s1802 + $0x1c] sm:$0xf]
      %v1811 = vld [vmem:[%s1802 + $0x20] sm:$0xf]
      %v1812 = vld [vmem:[%s1802 + $0x24] sm:$0xf]
      %v1813 = vld [vmem:[%s1802 + $0x28] sm:$0xf]
      %v1814 = vld [vmem:[%s1802 + $0x2c] sm:$0xf]
      %v1815 = vld [vmem:[%s1802 + $0x30] sm:$0xf]
      %v1816 = vld [vmem:[%s1802 + $0x34] sm:$0xf]
      %v1817 = vld [vmem:[%s1802 + $0x38] sm:$0xf]
      %v1818 = vld [vmem:[%s1802 + $0x3c] sm:$0xf]
      %v1835 = vunpack.c.l.b16 %v1803
      %v1836 = vunpack.c.l.b16 %v1804
      %v1837 = vunpack.c.l.b16 %v1805
      %v1838 = vunpack.c.l.b16 %v1806
      %v1839 = vunpack.c.l.b16 %v1807
      %v1840 = vunpack.c.l.b16 %v1808
      %v1841 = vunpack.c.l.b16 %v1809
      %v1842 = vunpack.c.l.b16 %v1810
      %v1843 = vunpack.c.l.b16 %v1811
      %v1844 = vunpack.c.l.b16 %v1812
      %v1845 = vunpack.c.l.b16 %v1813
      %v1846 = vunpack.c.l.b16 %v1814
      %v1847 = vunpack.c.l.b16 %v1815
      %v1848 = vunpack.c.l.b16 %v1816
      %v1849 = vunpack.c.l.b16 %v1817
      %v1850 = vunpack.c.l.b16 %v1818
      %v1851 = vpack.c.b16 %v1836, %v1835
      %v1852 = vpack.c.b16 %v1838, %v1837
      %v1853 = vpack.c.b16 %v1840, %v1839
      %v1854 = vpack.c.b16 %v1842, %v1841
      %v1855 = vpack.c.b16 %v1844, %v1843
      %v1856 = vpack.c.b16 %v1846, %v1845
      %v1857 = vpack.c.b16 %v1848, %v1847
      %v1858 = vpack.c.b16 %v1850, %v1849
      %1867 = vmatprep.subr.bf16.mxu0 0
      %1868 = vmatpush1.bf16.msra.mxu0 %v1851
      %1869 = vmatprep.subr.bf16.mxu0 0
      %1870 = vmatpush1.bf16.msra.mxu0 %v1852
      %1871 = vmatprep.subr.bf16.mxu0 0
      %1872 = vmatpush1.bf16.msra.mxu0 %v1853
      %1873 = vmatprep.subr.bf16.mxu0 0
      %1874 = vmatpush1.bf16.msra.mxu0 %v1854
      %1875 = vmatprep.subr.bf16.mxu0 0
      %1876 = vmatpush1.bf16.msra.mxu0 %v1855
      %1877 = vmatprep.subr.bf16.mxu0 0
      %1878 = vmatpush1.bf16.msra.mxu0 %v1856
      %1879 = vmatprep.subr.bf16.mxu0 0
      %1880 = vmatpush1.bf16.msra.mxu0 %v1857
      %1881 = vmatprep.subr.bf16.mxu0 0
      %1882 = vmatpush1.bf16.msra.mxu0 %v1858
      %1883 = vmatprep.subr.bf16.mxu0 0
      %1884 = vmatpush1.bf16.msra.mxu0 0
      %1885 = vmatprep.subr.bf16.mxu0 0
      %1886 = vmatpush1.bf16.msra.mxu0 0
      %1887 = vmatprep.subr.bf16.mxu0 0
      %1888 = vmatpush1.bf16.msra.mxu0 0
      %1889 = vmatprep.subr.bf16.mxu0 0
      %1890 = vmatpush1.bf16.msra.mxu0 0
      %1891 = vmatprep.subr.bf16.mxu0 0
      %1892 = vmatpush1.bf16.msra.mxu0 0
      %1893 = vmatprep.subr.bf16.mxu0 0
      %1894 = vmatpush1.bf16.msra.mxu0 0
      %1895 = vmatprep.subr.bf16.mxu0 0
      %1896 = vmatpush1.bf16.msra.mxu0 0
      %1897 = vmatprep.subr.bf16.mxu0 0
      %1898 = vmatpush1.bf16.msra.mxu0 0
      %1899 = vmatprep.mubr.bf16.mxu0 0
      %1900 = vmatmul.mubr.bf16.gmra.mrb[0].mxu0 %v1786
      %v1901 = vpop.f32.mrb[0].mxu0
      %v1902 = vadd.f32 0.0, %v1901
      %v1903 = vpop.f32.mrb[0].mxu0
      %v1904 = vpop.f32.mrb[0].mxu0
      %v1905 = vadd.f32 0.0, %v1904
      %v1906 = vpop.f32.mrb[0].mxu0
      %1907 = vmatprep.mubr.bf16.mxu0 0
      %1908 = vmatmul.mubr.bf16.gmra.mrb[0].mxu0 %v1787
      %v1909 = vpop.f32.mrb[0].mxu0
      %v1910 = vadd.f32 0.0, %v1909
      %v1911 = vpop.f32.mrb[0].mxu0
      %v1912 = vpop.f32.mrb[0].mxu0
      %v1913 = vadd.f32 0.0, %v1912
      %v1914 = vpop.f32.mrb[0].mxu0
      %1915 = vmatprep.mubr.bf16.mxu0 0
      %1916 = vmatmul.mubr.bf16.gmra.mrb[0].mxu0 %v1788
      %v1917 = vpop.f32.mrb[0].mxu0
      %v1918 = vadd.f32 0.0, %v1917
      %v1919 = vpop.f32.mrb[0].mxu0
      %v1920 = vpop.f32.mrb[0].mxu0
      %v1921 = vadd.f32 0.0, %v1920
      %v1922 = vpop.f32.mrb[0].mxu0
      %1923 = vmatprep.mubr.bf16.mxu0 0
      %1924 = vmatmul.mubr.bf16.gmra.mrb[0].mxu0 %v1789
      %v1925 = vpop.f32.mrb[0].mxu0
      %v1926 = vadd.f32 0.0, %v1925
      %v1927 = vpop.f32.mrb[0].mxu0
      %v1928 = vpop.f32.mrb[0].mxu0
      %v1929 = vadd.f32 0.0, %v1928
      %v1930 = vpop.f32.mrb[0].mxu0
      %1931 = vmatprep.mubr.bf16.mxu0 0
      %1932 = vmatmul.mubr.bf16.gmra.mrb[0].mxu0 %v1790
      %v1933 = vpop.f32.mrb[0].mxu0
      %v1934 = vadd.f32 0.0, %v1933
      %v1935 = vpop.f32.mrb[0].mxu0
      %v1936 = vpop.f32.mrb[0].mxu0
      %v1937 = vadd.f32 0.0, %v1936
      %v1938 = vpop.f32.mrb[0].mxu0
      %1939 = vmatprep.mubr.bf16.mxu0 0
      %1940 = vmatmul.mubr.bf16.gmra.mrb[0].mxu0 %v1791
      %v1941 = vpop.f32.mrb[0].mxu0
      %v1942 = vadd.f32 0.0, %v1941
      %v1943 = vpop.f32.mrb[0].mxu0
      %v1944 = vpop.f32.mrb[0].mxu0
      %v1945 = vadd.f32 0.0, %v1944
      %v1946 = vpop.f32.mrb[0].mxu0
      %1947 = vmatprep.mubr.bf16.mxu0 0
      %1948 = vmatmul.mubr.bf16.gmra.mrb[0].mxu0 %v1792
      %v1949 = vpop.f32.mrb[0].mxu0
      %v1950 = vadd.f32 0.0, %v1949
      %v1951 = vpop.f32.mrb[0].mxu0
      %v1952 = vpop.f32.mrb[0].mxu0
      %v1953 = vadd.f32 0.0, %v1952
      %v1954 = vpop.f32.mrb[0].mxu0
      %1955 = vmatprep.mubr.bf16.mxu0 0
      %1956 = vmatmul.mubr.bf16.gmra.mrb[0].mxu0 %v1793
      %v1957 = vpop.f32.mrb[0].mxu0
      %v1958 = vadd.f32 0.0, %v1957
      %v1959 = vpop.f32.mrb[0].mxu0
      %v1960 = vpop.f32.mrb[0].mxu0
      %v1961 = vadd.f32 0.0, %v1960
      %v1962 = vpop.f32.mrb[0].mxu0
      %1963 = vmatprep.mubr.bf16.mxu0 0
      %1964 = vmatmul.mubr.bf16.gmra.mrb[0].mxu0 %v1794
      %v1965 = vpop.f32.mrb[0].mxu0
      %v1966 = vadd.f32 0.0, %v1965
      %v1967 = vpop.f32.mrb[0].mxu0
      %v1968 = vpop.f32.mrb[0].mxu0
      %v1969 = vadd.f32 0.0, %v1968
      %v1970 = vpop.f32.mrb[0].mxu0
      %1971 = vmatprep.mubr.bf16.mxu0 0
      %1972 = vmatmul.mubr.bf16.gmra.mrb[0].mxu0 %v1795
      %v1973 = vpop.f32.mrb[0].mxu0
      %v1974 = vadd.f32 0.0, %v1973
      %v1975 = vpop.f32.mrb[0].mxu0
      %v1976 = vpop.f32.mrb[0].mxu0
      %v1977 = vadd.f32 0.0, %v1976
      %v1978 = vpop.f32.mrb[0].mxu0
      %1979 = vmatprep.mubr.bf16.mxu0 0
      %1980 = vmatmul.mubr.bf16.gmra.mrb[0].mxu0 %v1796
      %v1981 = vpop.f32.mrb[0].mxu0
      %v1982 = vadd.f32 0.0, %v1981
      %v1983 = vpop.f32.mrb[0].mxu0
      %v1984 = vpop.f32.mrb[0].mxu0
      %v1985 = vadd.f32 0.0, %v1984
      %v1986 = vpop.f32.mrb[0].mxu0
      %1987 = vmatprep.mubr.bf16.mxu0 0
      %1988 = vmatmul.mubr.bf16.gmra.mrb[0].mxu0 %v1797
      %v1989 = vpop.f32.mrb[0].mxu0
      %v1990 = vadd.f32 0.0, %v1989
      %v1991 = vpop.f32.mrb[0].mxu0
      %v1992 = vpop.f32.mrb[0].mxu0
      %v1993 = vadd.f32 0.0, %v1992
      %v1994 = vpop.f32.mrb[0].mxu0
      %1995 = vmatprep.mubr.bf16.mxu0 0
      %1996 = vmatmul.mubr.bf16.gmra.mrb[0].mxu0 %v1798
      %v1997 = vpop.f32.mrb[0].mxu0
      %v1998 = vadd.f32 0.0, %v1997
      %v1999 = vpop.f32.mrb[0].mxu0
      %v2000 = vpop.f32.mrb[0].mxu0
      %v2001 = vadd.f32 0.0, %v2000
      %v2002 = vpop.f32.mrb[0].mxu0
      %2003 = vmatprep.mubr.bf16.mxu0 0
      %2004 = vmatmul.mubr.bf16.gmra.mrb[0].mxu0 %v1799
      %v2005 = vpop.f32.mrb[0].mxu0
      %v2006 = vadd.f32 0.0, %v2005
      %v2007 = vpop.f32.mrb[0].mxu0
      %v2008 = vpop.f32.mrb[0].mxu0
      %v2009 = vadd.f32 0.0, %v2008
      %v2010 = vpop.f32.mrb[0].mxu0
      %2011 = vmatprep.mubr.bf16.mxu0 0
      %2012 = vmatmul.mubr.bf16.gmra.mrb[0].mxu0 %v1800
      %v2013 = vpop.f32.mrb[0].mxu0
      %v2014 = vadd.f32 0.0, %v2013
      %v2015 = vpop.f32.mrb[0].mxu0
      %v2016 = vpop.f32.mrb[0].mxu0
      %v2017 = vadd.f32 0.0, %v2016
      %v2018 = vpop.f32.mrb[0].mxu0
      %2019 = vmatprep.mubr.bf16.mxu0 0
      %2020 = vmatmul.mubr.bf16.gmra.mrb[0].mxu0 %v1801
      %v2021 = vpop.f32.mrb[0].mxu0
      %v2022 = vadd.f32 0.0, %v2021
      %v2023 = vpop.f32.mrb[0].mxu0
      %v2024 = vpop.f32.mrb[0].mxu0
      %v2025 = vadd.f32 0.0, %v2024
      %v2026 = vpop.f32.mrb[0].mxu0
      %2027 = vdwg.mxu0
      %v2028 = vadd.f32 %v1754, %v1902
      %v2029 = vadd.f32 %v1755, %v1905
      %v2030 = vadd.f32 %v1756, %v1910
      %v2031 = vadd.f32 %v1757, %v1913
      %v2032 = vadd.f32 %v1758, %v1918
      %v2033 = vadd.f32 %v1759, %v1921
      %v2034 = vadd.f32 %v1760, %v1926
      %v2035 = vadd.f32 %v1761, %v1929
      %v2036 = vadd.f32 %v1762, %v1934
      %v2037 = vadd.f32 %v1763, %v1937
      %v2038 = vadd.f32 %v1764, %v1942
      %v2039 = vadd.f32 %v1765, %v1945
      %v2040 = vadd.f32 %v1766, %v1950
      %v2041 = vadd.f32 %v1767, %v1953
      %v2042 = vadd.f32 %v1768, %v1958
      %v2043 = vadd.f32 %v1769, %v1961
      %v2044 = vadd.f32 %v1770, %v1966
      %v2045 = vadd.f32 %v1771, %v1969
      %v2046 = vadd.f32 %v1772, %v1974
      %v2047 = vadd.f32 %v1773, %v1977
      %v2048 = vadd.f32 %v1774, %v1982
      %v2049 = vadd.f32 %v1775, %v1985
      %v2050 = vadd.f32 %v1776, %v1990
      %v2051 = vadd.f32 %v1777, %v1993
      %v2052 = vadd.f32 %v1778, %v1998
      %v2053 = vadd.f32 %v1779, %v2001
      %v2054 = vadd.f32 %v1780, %v2006
      %v2055 = vadd.f32 %v1781, %v2009
      %v2056 = vadd.f32 %v1782, %v2014
      %v2057 = vadd.f32 %v1783, %v2017
      %v2058 = vadd.f32 %v1784, %v2022
      %v2059 = vadd.f32 %v1785, %v2025
      %2060 = vst [vmem:[#allocation2] sm:$0xff] %v2028
      %2061 = vst [vmem:[#allocation2 + $0x8] sm:$0xff] %v2029
      %2062 = vst [vmem:[#allocation2 + $0x10] sm:$0xff] %v2030
      %2063 = vst [vmem:[#allocation2 + $0x18] sm:$0xff] %v2031
      %2064 = vst [vmem:[#allocation2 + $0x20] sm:$0xff] %v2032
      %2065 = vst [vmem:[#allocation2 + $0x28] sm:$0xff] %v2033
      %2066 = vst [vmem:[#allocation2 + $0x30] sm:$0xff] %v2034
      %2067 = vst [vmem:[#allocation2 + $0x38] sm:$0xff] %v2035
      %2068 = vst [vmem:[#allocation2 + $0x40] sm:$0xff] %v2036
      %2069 = vst [vmem:[#allocation2 + $0x48] sm:$0xff] %v2037
      %2070 = vst [vmem:[#allocation2 + $0x50] sm:$0xff] %v2038
      %2071 = vst [vmem:[#allocation2 + $0x58] sm:$0xff] %v2039
      %2072 = vst [vmem:[#allocation2 + $0x60] sm:$0xff] %v2040
      %2073 = vst [vmem:[#allocation2 + $0x68] sm:$0xff] %v2041
      %2074 = vst [vmem:[#allocation2 + $0x70] sm:$0xff] %v2042
      %2075 = vst [vmem:[#allocation2 + $0x78] sm:$0xff] %v2043
      %2076 = vst [vmem:[#allocation2 + $0x80] sm:$0xff] %v2044
      %2077 = vst [vmem:[#allocation2 + $0x88] sm:$0xff] %v2045
      %2078 = vst [vmem:[#allocation2 + $0x90] sm:$0xff] %v2046
      %2079 = vst [vmem:[#allocation2 + $0x98] sm:$0xff] %v2047
      %2080 = vst [vmem:[#allocation2 + $0xa0] sm:$0xff] %v2048
      %2081 = vst [vmem:[#allocation2 + $0xa8] sm:$0xff] %v2049
      %2082 = vst [vmem:[#allocation2 + $0xb0] sm:$0xff] %v2050
      %2083 = vst [vmem:[#allocation2 + $0xb8] sm:$0xff] %v2051
      %2084 = vst [vmem:[#allocation2 + $0xc0] sm:$0xff] %v2052
      %2085 = vst [vmem:[#allocation2 + $0xc8] sm:$0xff] %v2053
      %2086 = vst [vmem:[#allocation2 + $0xd0] sm:$0xff] %v2054
      %2087 = vst [vmem:[#allocation2 + $0xd8] sm:$0xff] %v2055
      %2088 = vst [vmem:[#allocation2 + $0xe0] sm:$0xff] %v2056
      %2089 = vst [vmem:[#allocation2 + $0xe8] sm:$0xff] %v2057
      %2090 = vst [vmem:[#allocation2 + $0xf0] sm:$0xff] %v2058
      %2091 = vst [vmem:[#allocation2 + $0xf8] sm:$0xff] %v2059
      %v2092 = vld [vmem:[%s1351 + $0x2] sm:$0xff]
      %v2093 = vld [vmem:[%s1351 + $0xa] sm:$0xff]
      %v2094 = vld [vmem:[%s1351 + $0x1a] sm:$0xff]
      %v2095 = vld [vmem:[%s1351 + $0x22] sm:$0xff]
      %v2096 = vld [vmem:[%s1351 + $0x32] sm:$0xff]
      %v2097 = vld [vmem:[%s1351 + $0x3a] sm:$0xff]
      %v2098 = vld [vmem:[%s1351 + $0x4a] sm:$0xff]
      %v2099 = vld [vmem:[%s1351 + $0x52] sm:$0xff]
      %v2100 = vld [vmem:[%s1351 + $0x62] sm:$0xff]
      %v2101 = vld [vmem:[%s1351 + $0x6a] sm:$0xff]
      %v2102 = vld [vmem:[%s1351 + $0x7a] sm:$0xff]
      %v2103 = vld [vmem:[%s1351 + $0x82] sm:$0xff]
      %v2104 = vld [vmem:[%s1351 + $0x92] sm:$0xff]
      %v2105 = vld [vmem:[%s1351 + $0x9a] sm:$0xff]
      %v2106 = vld [vmem:[%s1351 + $0xaa] sm:$0xff]
      %v2107 = vld [vmem:[%s1351 + $0xb2] sm:$0xff]
      %v2108 = vld [vmem:[%s1351 + $0xc2] sm:$0xff]
      %v2109 = vld [vmem:[%s1351 + $0xca] sm:$0xff]
      %v2110 = vld [vmem:[%s1351 + $0xda] sm:$0xff]
      %v2111 = vld [vmem:[%s1351 + $0xe2] sm:$0xff]
      %v2112 = vld [vmem:[%s1351 + $0xf2] sm:$0xff]
      %v2113 = vld [vmem:[%s1351 + $0xfa] sm:$0xff]
      %v2114 = vld [vmem:[%s1351 + $0x10a] sm:$0xff]
      %v2115 = vld [vmem:[%s1351 + $0x112] sm:$0xff]
      %v2116 = vld [vmem:[%s1351 + $0x122] sm:$0xff]
      %v2117 = vld [vmem:[%s1351 + $0x12a] sm:$0xff]
      %v2118 = vld [vmem:[%s1351 + $0x13a] sm:$0xff]
      %v2119 = vld [vmem:[%s1351 + $0x142] sm:$0xff]
      %v2120 = vld [vmem:[%s1351 + $0x152] sm:$0xff]
      %v2121 = vld [vmem:[%s1351 + $0x15a] sm:$0xff]
      %v2122 = vld [vmem:[%s1351 + $0x16a] sm:$0xff]
      %v2123 = vld [vmem:[%s1351 + $0x172] sm:$0xff]
      %v2124 = vld [vmem:[#allocation2] sm:$0xff]
      %v2125 = vld [vmem:[#allocation2 + $0x8] sm:$0xff]
      %v2126 = vld [vmem:[#allocation2 + $0x10] sm:$0xff]
      %v2127 = vld [vmem:[#allocation2 + $0x18] sm:$0xff]
      %v2128 = vld [vmem:[#allocation2 + $0x20] sm:$0xff]
      %v2129 = vld [vmem:[#allocation2 + $0x28] sm:$0xff]
      %v2130 = vld [vmem:[#allocation2 + $0x30] sm:$0xff]
      %v2131 = vld [vmem:[#allocation2 + $0x38] sm:$0xff]
      %v2132 = vld [vmem:[#allocation2 + $0x40] sm:$0xff]
      %v2133 = vld [vmem:[#allocation2 + $0x48] sm:$0xff]
      %v2134 = vld [vmem:[#allocation2 + $0x50] sm:$0xff]
      %v2135 = vld [vmem:[#allocation2 + $0x58] sm:$0xff]
      %v2136 = vld [vmem:[#allocation2 + $0x60] sm:$0xff]
      %v2137 = vld [vmem:[#allocation2 + $0x68] sm:$0xff]
      %v2138 = vld [vmem:[#allocation2 + $0x70] sm:$0xff]
      %v2139 = vld [vmem:[#allocation2 + $0x78] sm:$0xff]
      %v2140 = vld [vmem:[#allocation2 + $0x80] sm:$0xff]
      %v2141 = vld [vmem:[#allocation2 + $0x88] sm:$0xff]
      %v2142 = vld [vmem:[#allocation2 + $0x90] sm:$0xff]
      %v2143 = vld [vmem:[#allocation2 + $0x98] sm:$0xff]
      %v2144 = vld [vmem:[#allocation2 + $0xa0] sm:$0xff]
      %v2145 = vld [vmem:[#allocation2 + $0xa8] sm:$0xff]
      %v2146 = vld [vmem:[#allocation2 + $0xb0] sm:$0xff]
      %v2147 = vld [vmem:[#allocation2 + $0xb8] sm:$0xff]
      %v2148 = vld [vmem:[#allocation2 + $0xc0] sm:$0xff]
      %v2149 = vld [vmem:[#allocation2 + $0xc8] sm:$0xff]
      %v2150 = vld [vmem:[#allocation2 + $0xd0] sm:$0xff]
      %v2151 = vld [vmem:[#allocation2 + $0xd8] sm:$0xff]
      %v2152 = vld [vmem:[#allocation2 + $0xe0] sm:$0xff]
      %v2153 = vld [vmem:[#allocation2 + $0xe8] sm:$0xff]
      %v2154 = vld [vmem:[#allocation2 + $0xf0] sm:$0xff]
      %v2155 = vld [vmem:[#allocation2 + $0xf8] sm:$0xff]
      %v2156 = vpack.c.bf16 %v2093, %v2092
      %v2157 = vpack.c.bf16 %v2095, %v2094
      %v2158 = vpack.c.bf16 %v2097, %v2096
      %v2159 = vpack.c.bf16 %v2099, %v2098
      %v2160 = vpack.c.bf16 %v2101, %v2100
      %v2161 = vpack.c.bf16 %v2103, %v2102
      %v2162 = vpack.c.bf16 %v2105, %v2104
      %v2163 = vpack.c.bf16 %v2107, %v2106
      %v2164 = vpack.c.bf16 %v2109, %v2108
      %v2165 = vpack.c.bf16 %v2111, %v2110
      %v2166 = vpack.c.bf16 %v2113, %v2112
      %v2167 = vpack.c.bf16 %v2115, %v2114
      %v2168 = vpack.c.bf16 %v2117, %v2116
      %v2169 = vpack.c.bf16 %v2119, %v2118
      %v2170 = vpack.c.bf16 %v2121, %v2120
      %v2171 = vpack.c.bf16 %v2123, %v2122
      %s2172 = scalar_lea.vmem %s1, 320
      %v2173 = vld [vmem:[%s2172] sm:$0xf]
      %v2174 = vld [vmem:[%s2172 + $0x4] sm:$0xf]
      %v2175 = vld [vmem:[%s2172 + $0x8] sm:$0xf]
      %v2176 = vld [vmem:[%s2172 + $0xc] sm:$0xf]
      %v2177 = vld [vmem:[%s2172 + $0x10] sm:$0xf]
      %v2178 = vld [vmem:[%s2172 + $0x14] sm:$0xf]
      %v2179 = vld [vmem:[%s2172 + $0x18] sm:$0xf]
      %v2180 = vld [vmem:[%s2172 + $0x1c] sm:$0xf]
      %v2181 = vld [vmem:[%s2172 + $0x20] sm:$0xf]
      %v2182 = vld [vmem:[%s2172 + $0x24] sm:$0xf]
      %v2183 = vld [vmem:[%s2172 + $0x28] sm:$0xf]
      %v2184 = vld [vmem:[%s2172 + $0x2c] sm:$0xf]
      %v2185 = vld [vmem:[%s2172 + $0x30] sm:$0xf]
      %v2186 = vld [vmem:[%s2172 + $0x34] sm:$0xf]
      %v2187 = vld [vmem:[%s2172 + $0x38] sm:$0xf]
      %v2188 = vld [vmem:[%s2172 + $0x3c] sm:$0xf]
      %v2205 = vunpack.c.l.b16 %v2173
      %v2206 = vunpack.c.l.b16 %v2174
      %v2207 = vunpack.c.l.b16 %v2175
      %v2208 = vunpack.c.l.b16 %v2176
      %v2209 = vunpack.c.l.b16 %v2177
      %v2210 = vunpack.c.l.b16 %v2178
      %v2211 = vunpack.c.l.b16 %v2179
      %v2212 = vunpack.c.l.b16 %v2180
      %v2213 = vunpack.c.l.b16 %v2181
      %v2214 = vunpack.c.l.b16 %v2182
      %v2215 = vunpack.c.l.b16 %v2183
      %v2216 = vunpack.c.l.b16 %v2184
      %v2217 = vunpack.c.l.b16 %v2185
      %v2218 = vunpack.c.l.b16 %v2186
      %v2219 = vunpack.c.l.b16 %v2187
      %v2220 = vunpack.c.l.b16 %v2188
      %v2221 = vpack.c.b16 %v2206, %v2205
      %v2222 = vpack.c.b16 %v2208, %v2207
      %v2223 = vpack.c.b16 %v2210, %v2209
      %v2224 = vpack.c.b16 %v2212, %v2211
      %v2225 = vpack.c.b16 %v2214, %v2213
      %v2226 = vpack.c.b16 %v2216, %v2215
      %v2227 = vpack.c.b16 %v2218, %v2217
      %v2228 = vpack.c.b16 %v2220, %v2219
      %2237 = vmatprep.subr.bf16.mxu0 0
      %2238 = vmatpush1.bf16.msra.mxu0 %v2221
      %2239 = vmatprep.subr.bf16.mxu0 0
      %2240 = vmatpush1.bf16.msra.mxu0 %v2222
      %2241 = vmatprep.subr.bf16.mxu0 0
      %2242 = vmatpush1.bf16.msra.mxu0 %v2223
      %2243 = vmatprep.subr.bf16.mxu0 0
      %2244 = vmatpush1.bf16.msra.mxu0 %v2224
      %2245 = vmatprep.subr.bf16.mxu0 0
      %2246 = vmatpush1.bf16.msra.mxu0 %v2225
      %2247 = vmatprep.subr.bf16.mxu0 0
      %2248 = vmatpush1.bf16.msra.mxu0 %v2226
      %2249 = vmatprep.subr.bf16.mxu0 0
      %2250 = vmatpush1.bf16.msra.mxu0 %v2227
      %2251 = vmatprep.subr.bf16.mxu0 0
      %2252 = vmatpush1.bf16.msra.mxu0 %v2228
      %2253 = vmatprep.subr.bf16.mxu0 0
      %2254 = vmatpush1.bf16.msra.mxu0 0
      %2255 = vmatprep.subr.bf16.mxu0 0
      %2256 = vmatpush1.bf16.msra.mxu0 0
      %2257 = vmatprep.subr.bf16.mxu0 0
      %2258 = vmatpush1.bf16.msra.mxu0 0
      %2259 = vmatprep.subr.bf16.mxu0 0
      %2260 = vmatpush1.bf16.msra.mxu0 0
      %2261 = vmatprep.subr.bf16.mxu0 0
      %2262 = vmatpush1.bf16.msra.mxu0 0
      %2263 = vmatprep.subr.bf16.mxu0 0
      %2264 = vmatpush1.bf16.msra.mxu0 0
      %2265 = vmatprep.subr.bf16.mxu0 0
      %2266 = vmatpush1.bf16.msra.mxu0 0
      %2267 = vmatprep.subr.bf16.mxu0 0
      %2268 = vmatpush1.bf16.msra.mxu0 0
      %2269 = vmatprep.mubr.bf16.mxu0 0
      %2270 = vmatmul.mubr.bf16.gmra.mrb[0].mxu0 %v2156
      %v2271 = vpop.f32.mrb[0].mxu0
      %v2272 = vadd.f32 0.0, %v2271
      %v2273 = vpop.f32.mrb[0].mxu0
      %v2274 = vpop.f32.mrb[0].mxu0
      %v2275 = vadd.f32 0.0, %v2274
      %v2276 = vpop.f32.mrb[0].mxu0
      %2277 = vmatprep.mubr.bf16.mxu0 0
      %2278 = vmatmul.mubr.bf16.gmra.mrb[0].mxu0 %v2157
      %v2279 = vpop.f32.mrb[0].mxu0
      %v2280 = vadd.f32 0.0, %v2279
      %v2281 = vpop.f32.mrb[0].mxu0
      %v2282 = vpop.f32.mrb[0].mxu0
      %v2283 = vadd.f32 0.0, %v2282
      %v2284 = vpop.f32.mrb[0].mxu0
      %2285 = vmatprep.mubr.bf16.mxu0 0
      %2286 = vmatmul.mubr.bf16.gmra.mrb[0].mxu0 %v2158
      %v2287 = vpop.f32.mrb[0].mxu0
      %v2288 = vadd.f32 0.0, %v2287
      %v2289 = vpop.f32.mrb[0].mxu0
      %v2290 = vpop.f32.mrb[0].mxu0
      %v2291 = vadd.f32 0.0, %v2290
      %v2292 = vpop.f32.mrb[0].mxu0
      %2293 = vmatprep.mubr.bf16.mxu0 0
      %2294 = vmatmul.mubr.bf16.gmra.mrb[0].mxu0 %v2159
      %v2295 = vpop.f32.mrb[0].mxu0
      %v2296 = vadd.f32 0.0, %v2295
      %v2297 = vpop.f32.mrb[0].mxu0
      %v2298 = vpop.f32.mrb[0].mxu0
      %v2299 = vadd.f32 0.0, %v2298
      %v2300 = vpop.f32.mrb[0].mxu0
      %2301 = vmatprep.mubr.bf16.mxu0 0
      %2302 = vmatmul.mubr.bf16.gmra.mrb[0].mxu0 %v2160
      %v2303 = vpop.f32.mrb[0].mxu0
      %v2304 = vadd.f32 0.0, %v2303
      %v2305 = vpop.f32.mrb[0].mxu0
      %v2306 = vpop.f32.mrb[0].mxu0
      %v2307 = vadd.f32 0.0, %v2306
      %v2308 = vpop.f32.mrb[0].mxu0
      %2309 = vmatprep.mubr.bf16.mxu0 0
      %2310 = vmatmul.mubr.bf16.gmra.mrb[0].mxu0 %v2161
      %v2311 = vpop.f32.mrb[0].mxu0
      %v2312 = vadd.f32 0.0, %v2311
      %v2313 = vpop.f32.mrb[0].mxu0
      %v2314 = vpop.f32.mrb[0].mxu0
      %v2315 = vadd.f32 0.0, %v2314
      %v2316 = vpop.f32.mrb[0].mxu0
      %2317 = vmatprep.mubr.bf16.mxu0 0
      %2318 = vmatmul.mubr.bf16.gmra.mrb[0].mxu0 %v2162
      %v2319 = vpop.f32.mrb[0].mxu0
      %v2320 = vadd.f32 0.0, %v2319
      %v2321 = vpop.f32.mrb[0].mxu0
      %v2322 = vpop.f32.mrb[0].mxu0
      %v2323 = vadd.f32 0.0, %v2322
      %v2324 = vpop.f32.mrb[0].mxu0
      %2325 = vmatprep.mubr.bf16.mxu0 0
      %2326 = vmatmul.mubr.bf16.gmra.mrb[0].mxu0 %v2163
      %v2327 = vpop.f32.mrb[0].mxu0
      %v2328 = vadd.f32 0.0, %v2327
      %v2329 = vpop.f32.mrb[0].mxu0
      %v2330 = vpop.f32.mrb[0].mxu0
      %v2331 = vadd.f32 0.0, %v2330
      %v2332 = vpop.f32.mrb[0].mxu0
      %2333 = vmatprep.mubr.bf16.mxu0 0
      %2334 = vmatmul.mubr.bf16.gmra.mrb[0].mxu0 %v2164
      %v2335 = vpop.f32.mrb[0].mxu0
      %v2336 = vadd.f32 0.0, %v2335
      %v2337 = vpop.f32.mrb[0].mxu0
      %v2338 = vpop.f32.mrb[0].mxu0
      %v2339 = vadd.f32 0.0, %v2338
      %v2340 = vpop.f32.mrb[0].mxu0
      %2341 = vmatprep.mubr.bf16.mxu0 0
      %2342 = vmatmul.mubr.bf16.gmra.mrb[0].mxu0 %v2165
      %v2343 = vpop.f32.mrb[0].mxu0
      %v2344 = vadd.f32 0.0, %v2343
      %v2345 = vpop.f32.mrb[0].mxu0
      %v2346 = vpop.f32.mrb[0].mxu0
      %v2347 = vadd.f32 0.0, %v2346
      %v2348 = vpop.f32.mrb[0].mxu0
      %2349 = vmatprep.mubr.bf16.mxu0 0
      %2350 = vmatmul.mubr.bf16.gmra.mrb[0].mxu0 %v2166
      %v2351 = vpop.f32.mrb[0].mxu0
      %v2352 = vadd.f32 0.0, %v2351
      %v2353 = vpop.f32.mrb[0].mxu0
      %v2354 = vpop.f32.mrb[0].mxu0
      %v2355 = vadd.f32 0.0, %v2354
      %v2356 = vpop.f32.mrb[0].mxu0
      %2357 = vmatprep.mubr.bf16.mxu0 0
      %2358 = vmatmul.mubr.bf16.gmra.mrb[0].mxu0 %v2167
      %v2359 = vpop.f32.mrb[0].mxu0
      %v2360 = vadd.f32 0.0, %v2359
      %v2361 = vpop.f32.mrb[0].mxu0
      %v2362 = vpop.f32.mrb[0].mxu0
      %v2363 = vadd.f32 0.0, %v2362
      %v2364 = vpop.f32.mrb[0].mxu0
      %2365 = vmatprep.mubr.bf16.mxu0 0
      %2366 = vmatmul.mubr.bf16.gmra.mrb[0].mxu0 %v2168
      %v2367 = vpop.f32.mrb[0].mxu0
      %v2368 = vadd.f32 0.0, %v2367
      %v2369 = vpop.f32.mrb[0].mxu0
      %v2370 = vpop.f32.mrb[0].mxu0
      %v2371 = vadd.f32 0.0, %v2370
      %v2372 = vpop.f32.mrb[0].mxu0
      %2373 = vmatprep.mubr.bf16.mxu0 0
      %2374 = vmatmul.mubr.bf16.gmra.mrb[0].mxu0 %v2169
      %v2375 = vpop.f32.mrb[0].mxu0
      %v2376 = vadd.f32 0.0, %v2375
      %v2377 = vpop.f32.mrb[0].mxu0
      %v2378 = vpop.f32.mrb[0].mxu0
      %v2379 = vadd.f32 0.0, %v2378
      %v2380 = vpop.f32.mrb[0].mxu0
      %2381 = vmatprep.mubr.bf16.mxu0 0
      %2382 = vmatmul.mubr.bf16.gmra.mrb[0].mxu0 %v2170
      %v2383 = vpop.f32.mrb[0].mxu0
      %v2384 = vadd.f32 0.0, %v2383
      %v2385 = vpop.f32.mrb[0].mxu0
      %v2386 = vpop.f32.mrb[0].mxu0
      %v2387 = vadd.f32 0.0, %v2386
      %v2388 = vpop.f32.mrb[0].mxu0
      %2389 = vmatprep.mubr.bf16.mxu0 0
      %2390 = vmatmul.mubr.bf16.gmra.mrb[0].mxu0 %v2171
      %v2391 = vpop.f32.mrb[0].mxu0
      %v2392 = vadd.f32 0.0, %v2391
      %v2393 = vpop.f32.mrb[0].mxu0
      %v2394 = vpop.f32.mrb[0].mxu0
      %v2395 = vadd.f32 0.0, %v2394
      %v2396 = vpop.f32.mrb[0].mxu0
      %2397 = vdwg.mxu0
      %v2398 = vadd.f32 %v2124, %v2272
      %v2399 = vadd.f32 %v2125, %v2275
      %v2400 = vadd.f32 %v2126, %v2280
      %v2401 = vadd.f32 %v2127, %v2283
      %v2402 = vadd.f32 %v2128, %v2288
      %v2403 = vadd.f32 %v2129, %v2291
      %v2404 = vadd.f32 %v2130, %v2296
      %v2405 = vadd.f32 %v2131, %v2299
      %v2406 = vadd.f32 %v2132, %v2304
      %v2407 = vadd.f32 %v2133, %v2307
      %v2408 = vadd.f32 %v2134, %v2312
      %v2409 = vadd.f32 %v2135, %v2315
      %v2410 = vadd.f32 %v2136, %v2320
      %v2411 = vadd.f32 %v2137, %v2323
      %v2412 = vadd.f32 %v2138, %v2328
      %v2413 = vadd.f32 %v2139, %v2331
      %v2414 = vadd.f32 %v2140, %v2336
      %v2415 = vadd.f32 %v2141, %v2339
      %v2416 = vadd.f32 %v2142, %v2344
      %v2417 = vadd.f32 %v2143, %v2347
      %v2418 = vadd.f32 %v2144, %v2352
      %v2419 = vadd.f32 %v2145, %v2355
      %v2420 = vadd.f32 %v2146, %v2360
      %v2421 = vadd.f32 %v2147, %v2363
      %v2422 = vadd.f32 %v2148, %v2368
      %v2423 = vadd.f32 %v2149, %v2371
      %v2424 = vadd.f32 %v2150, %v2376
      %v2425 = vadd.f32 %v2151, %v2379
      %v2426 = vadd.f32 %v2152, %v2384
      %v2427 = vadd.f32 %v2153, %v2387
      %v2428 = vadd.f32 %v2154, %v2392
      %v2429 = vadd.f32 %v2155, %v2395
      %2430 = vst [vmem:[#allocation2] sm:$0xff] %v2398
      %2431 = vst [vmem:[#allocation2 + $0x8] sm:$0xff] %v2399
      %2432 = vst [vmem:[#allocation2 + $0x10] sm:$0xff] %v2400
      %2433 = vst [vmem:[#allocation2 + $0x18] sm:$0xff] %v2401
      %2434 = vst [vmem:[#allocation2 + $0x20] sm:$0xff] %v2402
      %2435 = vst [vmem:[#allocation2 + $0x28] sm:$0xff] %v2403
      %2436 = vst [vmem:[#allocation2 + $0x30] sm:$0xff] %v2404
      %2437 = vst [vmem:[#allocation2 + $0x38] sm:$0xff] %v2405
      %2438 = vst [vmem:[#allocation2 + $0x40] sm:$0xff] %v2406
      %2439 = vst [vmem:[#allocation2 + $0x48] sm:$0xff] %v2407
      %2440 = vst [vmem:[#allocation2 + $0x50] sm:$0xff] %v2408
      %2441 = vst [vmem:[#allocation2 + $0x58] sm:$0xff] %v2409
      %2442 = vst [vmem:[#allocation2 + $0x60] sm:$0xff] %v2410
      %2443 = vst [vmem:[#allocation2 + $0x68] sm:$0xff] %v2411
      %2444 = vst [vmem:[#allocation2 + $0x70] sm:$0xff] %v2412
      %2445 = vst [vmem:[#allocation2 + $0x78] sm:$0xff] %v2413
      %2446 = vst [vmem:[#allocation2 + $0x80] sm:$0xff] %v2414
      %2447 = vst [vmem:[#allocation2 + $0x88] sm:$0xff] %v2415
      %2448 = vst [vmem:[#allocation2 + $0x90] sm:$0xff] %v2416
      %2449 = vst [vmem:[#allocation2 + $0x98] sm:$0xff] %v2417
      %2450 = vst [vmem:[#allocation2 + $0xa0] sm:$0xff] %v2418
      %2451 = vst [vmem:[#allocation2 + $0xa8] sm:$0xff] %v2419
      %2452 = vst [vmem:[#allocation2 + $0xb0] sm:$0xff] %v2420
      %2453 = vst [vmem:[#allocation2 + $0xb8] sm:$0xff] %v2421
      %2454 = vst [vmem:[#allocation2 + $0xc0] sm:$0xff] %v2422
      %2455 = vst [vmem:[#allocation2 + $0xc8] sm:$0xff] %v2423
      %2456 = vst [vmem:[#allocation2 + $0xd0] sm:$0xff] %v2424
      %2457 = vst [vmem:[#allocation2 + $0xd8] sm:$0xff] %v2425
      %2458 = vst [vmem:[#allocation2 + $0xe0] sm:$0xff] %v2426
      %2459 = vst [vmem:[#allocation2 + $0xe8] sm:$0xff] %v2427
      %2460 = vst [vmem:[#allocation2 + $0xf0] sm:$0xff] %v2428
      %2461 = vst [vmem:[#allocation2 + $0xf8] sm:$0xff] %v2429
      %s2462 = scalar_lea.vmem %s199, 48
      %v2463 = vld [vmem:[%s2462] sm:$0xff]
      %v2464 = vld [vmem:[%s2462 + $0x8] sm:$0xff]
      %v2465 = vld [vmem:[%s2462 + $0x18] sm:$0xff]
      %v2466 = vld [vmem:[%s2462 + $0x20] sm:$0xff]
      %v2467 = vld [vmem:[%s2462 + $0x30] sm:$0xff]
      %v2468 = vld [vmem:[%s2462 + $0x38] sm:$0xff]
      %v2469 = vld [vmem:[%s2462 + $0x48] sm:$0xff]
      %v2470 = vld [vmem:[%s2462 + $0x50] sm:$0xff]
      %v2471 = vld [vmem:[%s2462 + $0x60] sm:$0xff]
      %v2472 = vld [vmem:[%s2462 + $0x68] sm:$0xff]
      %v2473 = vld [vmem:[%s2462 + $0x78] sm:$0xff]
      %v2474 = vld [vmem:[%s2462 + $0x80] sm:$0xff]
      %v2475 = vld [vmem:[%s2462 + $0x90] sm:$0xff]
      %v2476 = vld [vmem:[%s2462 + $0x98] sm:$0xff]
      %v2477 = vld [vmem:[%s2462 + $0xa8] sm:$0xff]
      %v2478 = vld [vmem:[%s2462 + $0xb0] sm:$0xff]
      %v2479 = vld [vmem:[%s2462 + $0xc0] sm:$0xff]
      %v2480 = vld [vmem:[%s2462 + $0xc8] sm:$0xff]
      %v2481 = vld [vmem:[%s2462 + $0xd8] sm:$0xff]
      %v2482 = vld [vmem:[%s2462 + $0xe0] sm:$0xff]
      %v2483 = vld [vmem:[%s2462 + $0xf0] sm:$0xff]
      %v2484 = vld [vmem:[%s2462 + $0xf8] sm:$0xff]
      %v2485 = vld [vmem:[%s2462 + $0x108] sm:$0xff]
      %v2486 = vld [vmem:[%s2462 + $0x110] sm:$0xff]
      %v2487 = vld [vmem:[%s2462 + $0x120] sm:$0xff]
      %v2488 = vld [vmem:[%s2462 + $0x128] sm:$0xff]
      %v2489 = vld [vmem:[%s2462 + $0x138] sm:$0xff]
      %v2490 = vld [vmem:[%s2462 + $0x140] sm:$0xff]
      %v2491 = vld [vmem:[%s2462 + $0x150] sm:$0xff]
      %v2492 = vld [vmem:[%s2462 + $0x158] sm:$0xff]
      %v2493 = vld [vmem:[%s2462 + $0x168] sm:$0xff]
      %v2494 = vld [vmem:[%s2462 + $0x170] sm:$0xff]
      %v2495 = vld [vmem:[#allocation2] sm:$0xff]
      %v2496 = vld [vmem:[#allocation2 + $0x8] sm:$0xff]
      %v2497 = vld [vmem:[#allocation2 + $0x10] sm:$0xff]
      %v2498 = vld [vmem:[#allocation2 + $0x18] sm:$0xff]
      %v2499 = vld [vmem:[#allocation2 + $0x20] sm:$0xff]
      %v2500 = vld [vmem:[#allocation2 + $0x28] sm:$0xff]
      %v2501 = vld [vmem:[#allocation2 + $0x30] sm:$0xff]
      %v2502 = vld [vmem:[#allocation2 + $0x38] sm:$0xff]
      %v2503 = vld [vmem:[#allocation2 + $0x40] sm:$0xff]
      %v2504 = vld [vmem:[#allocation2 + $0x48] sm:$0xff]
      %v2505 = vld [vmem:[#allocation2 + $0x50] sm:$0xff]
      %v2506 = vld [vmem:[#allocation2 + $0x58] sm:$0xff]
      %v2507 = vld [vmem:[#allocation2 + $0x60] sm:$0xff]
      %v2508 = vld [vmem:[#allocation2 + $0x68] sm:$0xff]
      %v2509 = vld [vmem:[#allocation2 + $0x70] sm:$0xff]
      %v2510 = vld [vmem:[#allocation2 + $0x78] sm:$0xff]
      %v2511 = vld [vmem:[#allocation2 + $0x80] sm:$0xff]
      %v2512 = vld [vmem:[#allocation2 + $0x88] sm:$0xff]
      %v2513 = vld [vmem:[#allocation2 + $0x90] sm:$0xff]
      %v2514 = vld [vmem:[#allocation2 + $0x98] sm:$0xff]
      %v2515 = vld [vmem:[#allocation2 + $0xa0] sm:$0xff]
      %v2516 = vld [vmem:[#allocation2 + $0xa8] sm:$0xff]
      %v2517 = vld [vmem:[#allocation2 + $0xb0] sm:$0xff]
      %v2518 = vld [vmem:[#allocation2 + $0xb8] sm:$0xff]
      %v2519 = vld [vmem:[#allocation2 + $0xc0] sm:$0xff]
      %v2520 = vld [vmem:[#allocation2 + $0xc8] sm:$0xff]
      %v2521 = vld [vmem:[#allocation2 + $0xd0] sm:$0xff]
      %v2522 = vld [vmem:[#allocation2 + $0xd8] sm:$0xff]
      %v2523 = vld [vmem:[#allocation2 + $0xe0] sm:$0xff]
      %v2524 = vld [vmem:[#allocation2 + $0xe8] sm:$0xff]
      %v2525 = vld [vmem:[#allocation2 + $0xf0] sm:$0xff]
      %v2526 = vld [vmem:[#allocation2 + $0xf8] sm:$0xff]
      %v2527 = vpack.c.bf16 %v2464, %v2463
      %v2528 = vpack.c.bf16 %v2466, %v2465
      %v2529 = vpack.c.bf16 %v2468, %v2467
      %v2530 = vpack.c.bf16 %v2470, %v2469
      %v2531 = vpack.c.bf16 %v2472, %v2471
      %v2532 = vpack.c.bf16 %v2474, %v2473
      %v2533 = vpack.c.bf16 %v2476, %v2475
      %v2534 = vpack.c.bf16 %v2478, %v2477
      %v2535 = vpack.c.bf16 %v2480, %v2479
      %v2536 = vpack.c.bf16 %v2482, %v2481
      %v2537 = vpack.c.bf16 %v2484, %v2483
      %v2538 = vpack.c.bf16 %v2486, %v2485
      %v2539 = vpack.c.bf16 %v2488, %v2487
      %v2540 = vpack.c.bf16 %v2490, %v2489
      %v2541 = vpack.c.bf16 %v2492, %v2491
      %v2542 = vpack.c.bf16 %v2494, %v2493
      %s2543 = scalar_lea.vmem %s1, 384
      %v2544 = vld [vmem:[%s2543] sm:$0xf]
      %v2545 = vld [vmem:[%s2543 + $0x4] sm:$0xf]
      %v2546 = vld [vmem:[%s2543 + $0x8] sm:$0xf]
      %v2547 = vld [vmem:[%s2543 + $0xc] sm:$0xf]
      %v2548 = vld [vmem:[%s2543 + $0x10] sm:$0xf]
      %v2549 = vld [vmem:[%s2543 + $0x14] sm:$0xf]
      %v2550 = vld [vmem:[%s2543 + $0x18] sm:$0xf]
      %v2551 = vld [vmem:[%s2543 + $0x1c] sm:$0xf]
      %v2552 = vld [vmem:[%s2543 + $0x20] sm:$0xf]
      %v2553 = vld [vmem:[%s2543 + $0x24] sm:$0xf]
      %v2554 = vld [vmem:[%s2543 + $0x28] sm:$0xf]
      %v2555 = vld [vmem:[%s2543 + $0x2c] sm:$0xf]
      %v2556 = vld [vmem:[%s2543 + $0x30] sm:$0xf]
      %v2557 = vld [vmem:[%s2543 + $0x34] sm:$0xf]
      %v2558 = vld [vmem:[%s2543 + $0x38] sm:$0xf]
      %v2559 = vld [vmem:[%s2543 + $0x3c] sm:$0xf]
      %v2576 = vunpack.c.l.b16 %v2544
      %v2577 = vunpack.c.l.b16 %v2545
      %v2578 = vunpack.c.l.b16 %v2546
      %v2579 = vunpack.c.l.b16 %v2547
      %v2580 = vunpack.c.l.b16 %v2548
      %v2581 = vunpack.c.l.b16 %v2549
      %v2582 = vunpack.c.l.b16 %v2550
      %v2583 = vunpack.c.l.b16 %v2551
      %v2584 = vunpack.c.l.b16 %v2552
      %v2585 = vunpack.c.l.b16 %v2553
      %v2586 = vunpack.c.l.b16 %v2554
      %v2587 = vunpack.c.l.b16 %v2555
      %v2588 = vunpack.c.l.b16 %v2556
      %v2589 = vunpack.c.l.b16 %v2557
      %v2590 = vunpack.c.l.b16 %v2558
      %v2591 = vunpack.c.l.b16 %v2559
      %v2592 = vpack.c.b16 %v2577, %v2576
      %v2593 = vpack.c.b16 %v2579, %v2578
      %v2594 = vpack.c.b16 %v2581, %v2580
      %v2595 = vpack.c.b16 %v2583, %v2582
      %v2596 = vpack.c.b16 %v2585, %v2584
      %v2597 = vpack.c.b16 %v2587, %v2586
      %v2598 = vpack.c.b16 %v2589, %v2588
      %v2599 = vpack.c.b16 %v2591, %v2590
      %2608 = vmatprep.subr.bf16.mxu0 0
      %2609 = vmatpush1.bf16.msra.mxu0 %v2592
      %2610 = vmatprep.subr.bf16.mxu0 0
      %2611 = vmatpush1.bf16.msra.mxu0 %v2593
      %2612 = vmatprep.subr.bf16.mxu0 0
      %2613 = vmatpush1.bf16.msra.mxu0 %v2594
      %2614 = vmatprep.subr.bf16.mxu0 0
      %2615 = vmatpush1.bf16.msra.mxu0 %v2595
      %2616 = vmatprep.subr.bf16.mxu0 0
      %2617 = vmatpush1.bf16.msra.mxu0 %v2596
      %2618 = vmatprep.subr.bf16.mxu0 0
      %2619 = vmatpush1.bf16.msra.mxu0 %v2597
      %2620 = vmatprep.subr.bf16.mxu0 0
      %2621 = vmatpush1.bf16.msra.mxu0 %v2598
      %2622 = vmatprep.subr.bf16.mxu0 0
      %2623 = vmatpush1.bf16.msra.mxu0 %v2599
      %2624 = vmatprep.subr.bf16.mxu0 0
      %2625 = vmatpush1.bf16.msra.mxu0 0
      %2626 = vmatprep.subr.bf16.mxu0 0
      %2627 = vmatpush1.bf16.msra.mxu0 0
      %2628 = vmatprep.subr.bf16.mxu0 0
      %2629 = vmatpush1.bf16.msra.mxu0 0
      %2630 = vmatprep.subr.bf16.mxu0 0
      %2631 = vmatpush1.bf16.msra.mxu0 0
      %2632 = vmatprep.subr.bf16.mxu0 0
      %2633 = vmatpush1.bf16.msra.mxu0 0
      %2634 = vmatprep.subr.bf16.mxu0 0
      %2635 = vmatpush1.bf16.msra.mxu0 0
      %2636 = vmatprep.subr.bf16.mxu0 0
      %2637 = vmatpush1.bf16.msra.mxu0 0
      %2638 = vmatprep.subr.bf16.mxu0 0
      %2639 = vmatpush1.bf16.msra.mxu0 0
      %2640 = vmatprep.mubr.bf16.mxu0 0
      %2641 = vmatmul.mubr.bf16.gmra.mrb[0].mxu0 %v2527
      %v2642 = vpop.f32.mrb[0].mxu0
      %v2643 = vadd.f32 0.0, %v2642
      %v2644 = vpop.f32.mrb[0].mxu0
      %v2645 = vpop.f32.mrb[0].mxu0
      %v2646 = vadd.f32 0.0, %v2645
      %v2647 = vpop.f32.mrb[0].mxu0
      %2648 = vmatprep.mubr.bf16.mxu0 0
      %2649 = vmatmul.mubr.bf16.gmra.mrb[0].mxu0 %v2528
      %v2650 = vpop.f32.mrb[0].mxu0
      %v2651 = vadd.f32 0.0, %v2650
      %v2652 = vpop.f32.mrb[0].mxu0
      %v2653 = vpop.f32.mrb[0].mxu0
      %v2654 = vadd.f32 0.0, %v2653
      %v2655 = vpop.f32.mrb[0].mxu0
      %2656 = vmatprep.mubr.bf16.mxu0 0
      %2657 = vmatmul.mubr.bf16.gmra.mrb[0].mxu0 %v2529
      %v2658 = vpop.f32.mrb[0].mxu0
      %v2659 = vadd.f32 0.0, %v2658
      %v2660 = vpop.f32.mrb[0].mxu0
      %v2661 = vpop.f32.mrb[0].mxu0
      %v2662 = vadd.f32 0.0, %v2661
      %v2663 = vpop.f32.mrb[0].mxu0
      %2664 = vmatprep.mubr.bf16.mxu0 0
      %2665 = vmatmul.mubr.bf16.gmra.mrb[0].mxu0 %v2530
      %v2666 = vpop.f32.mrb[0].mxu0
      %v2667 = vadd.f32 0.0, %v2666
      %v2668 = vpop.f32.mrb[0].mxu0
      %v2669 = vpop.f32.mrb[0].mxu0
      %v2670 = vadd.f32 0.0, %v2669
      %v2671 = vpop.f32.mrb[0].mxu0
      %2672 = vmatprep.mubr.bf16.mxu0 0
      %2673 = vmatmul.mubr.bf16.gmra.mrb[0].mxu0 %v2531
      %v2674 = vpop.f32.mrb[0].mxu0
      %v2675 = vadd.f32 0.0, %v2674
      %v2676 = vpop.f32.mrb[0].mxu0
      %v2677 = vpop.f32.mrb[0].mxu0
      %v2678 = vadd.f32 0.0, %v2677
      %v2679 = vpop.f32.mrb[0].mxu0
      %2680 = vmatprep.mubr.bf16.mxu0 0
      %2681 = vmatmul.mubr.bf16.gmra.mrb[0].mxu0 %v2532
      %v2682 = vpop.f32.mrb[0].mxu0
      %v2683 = vadd.f32 0.0, %v2682
      %v2684 = vpop.f32.mrb[0].mxu0
      %v2685 = vpop.f32.mrb[0].mxu0
      %v2686 = vadd.f32 0.0, %v2685
      %v2687 = vpop.f32.mrb[0].mxu0
      %2688 = vmatprep.mubr.bf16.mxu0 0
      %2689 = vmatmul.mubr.bf16.gmra.mrb[0].mxu0 %v2533
      %v2690 = vpop.f32.mrb[0].mxu0
      %v2691 = vadd.f32 0.0, %v2690
      %v2692 = vpop.f32.mrb[0].mxu0
      %v2693 = vpop.f32.mrb[0].mxu0
      %v2694 = vadd.f32 0.0, %v2693
      %v2695 = vpop.f32.mrb[0].mxu0
      %2696 = vmatprep.mubr.bf16.mxu0 0
      %2697 = vmatmul.mubr.bf16.gmra.mrb[0].mxu0 %v2534
      %v2698 = vpop.f32.mrb[0].mxu0
      %v2699 = vadd.f32 0.0, %v2698
      %v2700 = vpop.f32.mrb[0].mxu0
      %v2701 = vpop.f32.mrb[0].mxu0
      %v2702 = vadd.f32 0.0, %v2701
      %v2703 = vpop.f32.mrb[0].mxu0
      %2704 = vmatprep.mubr.bf16.mxu0 0
      %2705 = vmatmul.mubr.bf16.gmra.mrb[0].mxu0 %v2535
      %v2706 = vpop.f32.mrb[0].mxu0
      %v2707 = vadd.f32 0.0, %v2706
      %v2708 = vpop.f32.mrb[0].mxu0
      %v2709 = vpop.f32.mrb[0].mxu0
      %v2710 = vadd.f32 0.0, %v2709
      %v2711 = vpop.f32.mrb[0].mxu0
      %2712 = vmatprep.mubr.bf16.mxu0 0
      %2713 = vmatmul.mubr.bf16.gmra.mrb[0].mxu0 %v2536
      %v2714 = vpop.f32.mrb[0].mxu0
      %v2715 = vadd.f32 0.0, %v2714
      %v2716 = vpop.f32.mrb[0].mxu0
      %v2717 = vpop.f32.mrb[0].mxu0
      %v2718 = vadd.f32 0.0, %v2717
      %v2719 = vpop.f32.mrb[0].mxu0
      %2720 = vmatprep.mubr.bf16.mxu0 0
      %2721 = vmatmul.mubr.bf16.gmra.mrb[0].mxu0 %v2537
      %v2722 = vpop.f32.mrb[0].mxu0
      %v2723 = vadd.f32 0.0, %v2722
      %v2724 = vpop.f32.mrb[0].mxu0
      %v2725 = vpop.f32.mrb[0].mxu0
      %v2726 = vadd.f32 0.0, %v2725
      %v2727 = vpop.f32.mrb[0].mxu0
      %2728 = vmatprep.mubr.bf16.mxu0 0
      %2729 = vmatmul.mubr.bf16.gmra.mrb[0].mxu0 %v2538
      %v2730 = vpop.f32.mrb[0].mxu0
      %v2731 = vadd.f32 0.0, %v2730
      %v2732 = vpop.f32.mrb[0].mxu0
      %v2733 = vpop.f32.mrb[0].mxu0
      %v2734 = vadd.f32 0.0, %v2733
      %v2735 = vpop.f32.mrb[0].mxu0
      %2736 = vmatprep.mubr.bf16.mxu0 0
      %2737 = vmatmul.mubr.bf16.gmra.mrb[0].mxu0 %v2539
      %v2738 = vpop.f32.mrb[0].mxu0
      %v2739 = vadd.f32 0.0, %v2738
      %v2740 = vpop.f32.mrb[0].mxu0
      %v2741 = vpop.f32.mrb[0].mxu0
      %v2742 = vadd.f32 0.0, %v2741
      %v2743 = vpop.f32.mrb[0].mxu0
      %2744 = vmatprep.mubr.bf16.mxu0 0
      %2745 = vmatmul.mubr.bf16.gmra.mrb[0].mxu0 %v2540
      %v2746 = vpop.f32.mrb[0].mxu0
      %v2747 = vadd.f32 0.0, %v2746
      %v2748 = vpop.f32.mrb[0].mxu0
      %v2749 = vpop.f32.mrb[0].mxu0
      %v2750 = vadd.f32 0.0, %v2749
      %v2751 = vpop.f32.mrb[0].mxu0
      %2752 = vmatprep.mubr.bf16.mxu0 0
      %2753 = vmatmul.mubr.bf16.gmra.mrb[0].mxu0 %v2541
      %v2754 = vpop.f32.mrb[0].mxu0
      %v2755 = vadd.f32 0.0, %v2754
      %v2756 = vpop.f32.mrb[0].mxu0
      %v2757 = vpop.f32.mrb[0].mxu0
      %v2758 = vadd.f32 0.0, %v2757
      %v2759 = vpop.f32.mrb[0].mxu0
      %2760 = vmatprep.mubr.bf16.mxu0 0
      %2761 = vmatmul.mubr.bf16.gmra.mrb[0].mxu0 %v2542
      %v2762 = vpop.f32.mrb[0].mxu0
      %v2763 = vadd.f32 0.0, %v2762
      %v2764 = vpop.f32.mrb[0].mxu0
      %v2765 = vpop.f32.mrb[0].mxu0
      %v2766 = vadd.f32 0.0, %v2765
      %v2767 = vpop.f32.mrb[0].mxu0
      %2768 = vdwg.mxu0
      %v2769 = vadd.f32 %v2495, %v2643
      %v2770 = vadd.f32 %v2496, %v2646
      %v2771 = vadd.f32 %v2497, %v2651
      %v2772 = vadd.f32 %v2498, %v2654
      %v2773 = vadd.f32 %v2499, %v2659
      %v2774 = vadd.f32 %v2500, %v2662
      %v2775 = vadd.f32 %v2501, %v2667
      %v2776 = vadd.f32 %v2502, %v2670
      %v2777 = vadd.f32 %v2503, %v2675
      %v2778 = vadd.f32 %v2504, %v2678
      %v2779 = vadd.f32 %v2505, %v2683
      %v2780 = vadd.f32 %v2506, %v2686
      %v2781 = vadd.f32 %v2507, %v2691
      %v2782 = vadd.f32 %v2508, %v2694
      %v2783 = vadd.f32 %v2509, %v2699
      %v2784 = vadd.f32 %v2510, %v2702
      %v2785 = vadd.f32 %v2511, %v2707
      %v2786 = vadd.f32 %v2512, %v2710
      %v2787 = vadd.f32 %v2513, %v2715
      %v2788 = vadd.f32 %v2514, %v2718
      %v2789 = vadd.f32 %v2515, %v2723
      %v2790 = vadd.f32 %v2516, %v2726
      %v2791 = vadd.f32 %v2517, %v2731
      %v2792 = vadd.f32 %v2518, %v2734
      %v2793 = vadd.f32 %v2519, %v2739
      %v2794 = vadd.f32 %v2520, %v2742
      %v2795 = vadd.f32 %v2521, %v2747
      %v2796 = vadd.f32 %v2522, %v2750
      %v2797 = vadd.f32 %v2523, %v2755
      %v2798 = vadd.f32 %v2524, %v2758
      %v2799 = vadd.f32 %v2525, %v2763
      %v2800 = vadd.f32 %v2526, %v2766
      %2801 = vst [vmem:[#allocation2] sm:$0xff] %v2769
      %2802 = vst [vmem:[#allocation2 + $0x8] sm:$0xff] %v2770
      %2803 = vst [vmem:[#allocation2 + $0x10] sm:$0xff] %v2771
      %2804 = vst [vmem:[#allocation2 + $0x18] sm:$0xff] %v2772
      %2805 = vst [vmem:[#allocation2 + $0x20] sm:$0xff] %v2773
      %2806 = vst [vmem:[#allocation2 + $0x28] sm:$0xff] %v2774
      %2807 = vst [vmem:[#allocation2 + $0x30] sm:$0xff] %v2775
      %2808 = vst [vmem:[#allocation2 + $0x38] sm:$0xff] %v2776
      %2809 = vst [vmem:[#allocation2 + $0x40] sm:$0xff] %v2777
      %2810 = vst [vmem:[#allocation2 + $0x48] sm:$0xff] %v2778
      %2811 = vst [vmem:[#allocation2 + $0x50] sm:$0xff] %v2779
      %2812 = vst [vmem:[#allocation2 + $0x58] sm:$0xff] %v2780
      %2813 = vst [vmem:[#allocation2 + $0x60] sm:$0xff] %v2781
      %2814 = vst [vmem:[#allocation2 + $0x68] sm:$0xff] %v2782
      %2815 = vst [vmem:[#allocation2 + $0x70] sm:$0xff] %v2783
      %2816 = vst [vmem:[#allocation2 + $0x78] sm:$0xff] %v2784
      %2817 = vst [vmem:[#allocation2 + $0x80] sm:$0xff] %v2785
      %2818 = vst [vmem:[#allocation2 + $0x88] sm:$0xff] %v2786
      %2819 = vst [vmem:[#allocation2 + $0x90] sm:$0xff] %v2787
      %2820 = vst [vmem:[#allocation2 + $0x98] sm:$0xff] %v2788
      %2821 = vst [vmem:[#allocation2 + $0xa0] sm:$0xff] %v2789
      %2822 = vst [vmem:[#allocation2 + $0xa8] sm:$0xff] %v2790
      %2823 = vst [vmem:[#allocation2 + $0xb0] sm:$0xff] %v2791
      %2824 = vst [vmem:[#allocation2 + $0xb8] sm:$0xff] %v2792
      %2825 = vst [vmem:[#allocation2 + $0xc0] sm:$0xff] %v2793
      %2826 = vst [vmem:[#allocation2 + $0xc8] sm:$0xff] %v2794
      %2827 = vst [vmem:[#allocation2 + $0xd0] sm:$0xff] %v2795
      %2828 = vst [vmem:[#allocation2 + $0xd8] sm:$0xff] %v2796
      %2829 = vst [vmem:[#allocation2 + $0xe0] sm:$0xff] %v2797
      %2830 = vst [vmem:[#allocation2 + $0xe8] sm:$0xff] %v2798
      %2831 = vst [vmem:[#allocation2 + $0xf0] sm:$0xff] %v2799
      %2832 = vst [vmem:[#allocation2 + $0xf8] sm:$0xff] %v2800
      %v2833 = vld [vmem:[%s2462 + $0x1] sm:$0xff]
      %v2834 = vld [vmem:[%s2462 + $0x9] sm:$0xff]
      %v2835 = vld [vmem:[%s2462 + $0x19] sm:$0xff]
      %v2836 = vld [vmem:[%s2462 + $0x21] sm:$0xff]
      %v2837 = vld [vmem:[%s2462 + $0x31] sm:$0xff]
      %v2838 = vld [vmem:[%s2462 + $0x39] sm:$0xff]
      %v2839 = vld [vmem:[%s2462 + $0x49] sm:$0xff]
      %v2840 = vld [vmem:[%s2462 + $0x51] sm:$0xff]
      %v2841 = vld [vmem:[%s2462 + $0x61] sm:$0xff]
      %v2842 = vld [vmem:[%s2462 + $0x69] sm:$0xff]
      %v2843 = vld [vmem:[%s2462 + $0x79] sm:$0xff]
      %v2844 = vld [vmem:[%s2462 + $0x81] sm:$0xff]
      %v2845 = vld [vmem:[%s2462 + $0x91] sm:$0xff]
      %v2846 = vld [vmem:[%s2462 + $0x99] sm:$0xff]
      %v2847 = vld [vmem:[%s2462 + $0xa9] sm:$0xff]
      %v2848 = vld [vmem:[%s2462 + $0xb1] sm:$0xff]
      %v2849 = vld [vmem:[%s2462 + $0xc1] sm:$0xff]
      %v2850 = vld [vmem:[%s2462 + $0xc9] sm:$0xff]
      %v2851 = vld [vmem:[%s2462 + $0xd9] sm:$0xff]
      %v2852 = vld [vmem:[%s2462 + $0xe1] sm:$0xff]
      %v2853 = vld [vmem:[%s2462 + $0xf1] sm:$0xff]
      %v2854 = vld [vmem:[%s2462 + $0xf9] sm:$0xff]
      %v2855 = vld [vmem:[%s2462 + $0x109] sm:$0xff]
      %v2856 = vld [vmem:[%s2462 + $0x111] sm:$0xff]
      %v2857 = vld [vmem:[%s2462 + $0x121] sm:$0xff]
      %v2858 = vld [vmem:[%s2462 + $0x129] sm:$0xff]
      %v2859 = vld [vmem:[%s2462 + $0x139] sm:$0xff]
      %v2860 = vld [vmem:[%s2462 + $0x141] sm:$0xff]
      %v2861 = vld [vmem:[%s2462 + $0x151] sm:$0xff]
      %v2862 = vld [vmem:[%s2462 + $0x159] sm:$0xff]
      %v2863 = vld [vmem:[%s2462 + $0x169] sm:$0xff]
      %v2864 = vld [vmem:[%s2462 + $0x171] sm:$0xff]
      %v2865 = vld [vmem:[#allocation2] sm:$0xff]
      %v2866 = vld [vmem:[#allocation2 + $0x8] sm:$0xff]
      %v2867 = vld [vmem:[#allocation2 + $0x10] sm:$0xff]
      %v2868 = vld [vmem:[#allocation2 + $0x18] sm:$0xff]
      %v2869 = vld [vmem:[#allocation2 + $0x20] sm:$0xff]
      %v2870 = vld [vmem:[#allocation2 + $0x28] sm:$0xff]
      %v2871 = vld [vmem:[#allocation2 + $0x30] sm:$0xff]
      %v2872 = vld [vmem:[#allocation2 + $0x38] sm:$0xff]
      %v2873 = vld [vmem:[#allocation2 + $0x40] sm:$0xff]
      %v2874 = vld [vmem:[#allocation2 + $0x48] sm:$0xff]
      %v2875 = vld [vmem:[#allocation2 + $0x50] sm:$0xff]
      %v2876 = vld [vmem:[#allocation2 + $0x58] sm:$0xff]
      %v2877 = vld [vmem:[#allocation2 + $0x60] sm:$0xff]
      %v2878 = vld [vmem:[#allocation2 + $0x68] sm:$0xff]
      %v2879 = vld [vmem:[#allocation2 + $0x70] sm:$0xff]
      %v2880 = vld [vmem:[#allocation2 + $0x78] sm:$0xff]
      %v2881 = vld [vmem:[#allocation2 + $0x80] sm:$0xff]
      %v2882 = vld [vmem:[#allocation2 + $0x88] sm:$0xff]
      %v2883 = vld [vmem:[#allocation2 + $0x90] sm:$0xff]
      %v2884 = vld [vmem:[#allocation2 + $0x98] sm:$0xff]
      %v2885 = vld [vmem:[#allocation2 + $0xa0] sm:$0xff]
      %v2886 = vld [vmem:[#allocation2 + $0xa8] sm:$0xff]
      %v2887 = vld [vmem:[#allocation2 + $0xb0] sm:$0xff]
      %v2888 = vld [vmem:[#allocation2 + $0xb8] sm:$0xff]
      %v2889 = vld [vmem:[#allocation2 + $0xc0] sm:$0xff]
      %v2890 = vld [vmem:[#allocation2 + $0xc8] sm:$0xff]
      %v2891 = vld [vmem:[#allocation2 + $0xd0] sm:$0xff]
      %v2892 = vld [vmem:[#allocation2 + $0xd8] sm:$0xff]
      %v2893 = vld [vmem:[#allocation2 + $0xe0] sm:$0xff]
      %v2894 = vld [vmem:[#allocation2 + $0xe8] sm:$0xff]
      %v2895 = vld [vmem:[#allocation2 + $0xf0] sm:$0xff]
      %v2896 = vld [vmem:[#allocation2 + $0xf8] sm:$0xff]
      %v2897 = vpack.c.bf16 %v2834, %v2833
      %v2898 = vpack.c.bf16 %v2836, %v2835
      %v2899 = vpack.c.bf16 %v2838, %v2837
      %v2900 = vpack.c.bf16 %v2840, %v2839
      %v2901 = vpack.c.bf16 %v2842, %v2841
      %v2902 = vpack.c.bf16 %v2844, %v2843
      %v2903 = vpack.c.bf16 %v2846, %v2845
      %v2904 = vpack.c.bf16 %v2848, %v2847
      %v2905 = vpack.c.bf16 %v2850, %v2849
      %v2906 = vpack.c.bf16 %v2852, %v2851
      %v2907 = vpack.c.bf16 %v2854, %v2853
      %v2908 = vpack.c.bf16 %v2856, %v2855
      %v2909 = vpack.c.bf16 %v2858, %v2857
      %v2910 = vpack.c.bf16 %v2860, %v2859
      %v2911 = vpack.c.bf16 %v2862, %v2861
      %v2912 = vpack.c.bf16 %v2864, %v2863
      %s2913 = scalar_lea.vmem %s1, 448
      %v2914 = vld [vmem:[%s2913] sm:$0xf]
      %v2915 = vld [vmem:[%s2913 + $0x4] sm:$0xf]
      %v2916 = vld [vmem:[%s2913 + $0x8] sm:$0xf]
      %v2917 = vld [vmem:[%s2913 + $0xc] sm:$0xf]
      %v2918 = vld [vmem:[%s2913 + $0x10] sm:$0xf]
      %v2919 = vld [vmem:[%s2913 + $0x14] sm:$0xf]
      %v2920 = vld [vmem:[%s2913 + $0x18] sm:$0xf]
      %v2921 = vld [vmem:[%s2913 + $0x1c] sm:$0xf]
      %v2922 = vld [vmem:[%s2913 + $0x20] sm:$0xf]
      %v2923 = vld [vmem:[%s2913 + $0x24] sm:$0xf]
      %v2924 = vld [vmem:[%s2913 + $0x28] sm:$0xf]
      %v2925 = vld [vmem:[%s2913 + $0x2c] sm:$0xf]
      %v2926 = vld [vmem:[%s2913 + $0x30] sm:$0xf]
      %v2927 = vld [vmem:[%s2913 + $0x34] sm:$0xf]
      %v2928 = vld [vmem:[%s2913 + $0x38] sm:$0xf]
      %v2929 = vld [vmem:[%s2913 + $0x3c] sm:$0xf]
      %v2946 = vunpack.c.l.b16 %v2914
      %v2947 = vunpack.c.l.b16 %v2915
      %v2948 = vunpack.c.l.b16 %v2916
      %v2949 = vunpack.c.l.b16 %v2917
      %v2950 = vunpack.c.l.b16 %v2918
      %v2951 = vunpack.c.l.b16 %v2919
      %v2952 = vunpack.c.l.b16 %v2920
      %v2953 = vunpack.c.l.b16 %v2921
      %v2954 = vunpack.c.l.b16 %v2922
      %v2955 = vunpack.c.l.b16 %v2923
      %v2956 = vunpack.c.l.b16 %v2924
      %v2957 = vunpack.c.l.b16 %v2925
      %v2958 = vunpack.c.l.b16 %v2926
      %v2959 = vunpack.c.l.b16 %v2927
      %v2960 = vunpack.c.l.b16 %v2928
      %v2961 = vunpack.c.l.b16 %v2929
      %v2962 = vpack.c.b16 %v2947, %v2946
      %v2963 = vpack.c.b16 %v2949, %v2948
      %v2964 = vpack.c.b16 %v2951, %v2950
      %v2965 = vpack.c.b16 %v2953, %v2952
      %v2966 = vpack.c.b16 %v2955, %v2954
      %v2967 = vpack.c.b16 %v2957, %v2956
      %v2968 = vpack.c.b16 %v2959, %v2958
      %v2969 = vpack.c.b16 %v2961, %v2960
      %2978 = vmatprep.subr.bf16.mxu0 0
      %2979 = vmatpush1.bf16.msra.mxu0 %v2962
      %2980 = vmatprep.subr.bf16.mxu0 0
      %2981 = vmatpush1.bf16.msra.mxu0 %v2963
      %2982 = vmatprep.subr.bf16.mxu0 0
      %2983 = vmatpush1.bf16.msra.mxu0 %v2964
      %2984 = vmatprep.subr.bf16.mxu0 0
      %2985 = vmatpush1.bf16.msra.mxu0 %v2965
      %2986 = vmatprep.subr.bf16.mxu0 0
      %2987 = vmatpush1.bf16.msra.mxu0 %v2966
      %2988 = vmatprep.subr.bf16.mxu0 0
      %2989 = vmatpush1.bf16.msra.mxu0 %v2967
      %2990 = vmatprep.subr.bf16.mxu0 0
      %2991 = vmatpush1.bf16.msra.mxu0 %v2968
      %2992 = vmatprep.subr.bf16.mxu0 0
      %2993 = vmatpush1.bf16.msra.mxu0 %v2969
      %2994 = vmatprep.subr.bf16.mxu0 0
      %2995 = vmatpush1.bf16.msra.mxu0 0
      %2996 = vmatprep.subr.bf16.mxu0 0
      %2997 = vmatpush1.bf16.msra.mxu0 0
      %2998 = vmatprep.subr.bf16.mxu0 0
      %2999 = vmatpush1.bf16.msra.mxu0 0
      %3000 = vmatprep.subr.bf16.mxu0 0
      %3001 = vmatpush1.bf16.msra.mxu0 0
      %3002 = vmatprep.subr.bf16.mxu0 0
      %3003 = vmatpush1.bf16.msra.mxu0 0
      %3004 = vmatprep.subr.bf16.mxu0 0
      %3005 = vmatpush1.bf16.msra.mxu0 0
      %3006 = vmatprep.subr.bf16.mxu0 0
      %3007 = vmatpush1.bf16.msra.mxu0 0
      %3008 = vmatprep.subr.bf16.mxu0 0
      %3009 = vmatpush1.bf16.msra.mxu0 0
      %3010 = vmatprep.mubr.bf16.mxu0 0
      %3011 = vmatmul.mubr.bf16.gmra.mrb[0].mxu0 %v2897
      %v3012 = vpop.f32.mrb[0].mxu0
      %v3013 = vadd.f32 0.0, %v3012
      %v3014 = vpop.f32.mrb[0].mxu0
      %v3015 = vpop.f32.mrb[0].mxu0
      %v3016 = vadd.f32 0.0, %v3015
      %v3017 = vpop.f32.mrb[0].mxu0
      %3018 = vmatprep.mubr.bf16.mxu0 0
      %3019 = vmatmul.mubr.bf16.gmra.mrb[0].mxu0 %v2898
      %v3020 = vpop.f32.mrb[0].mxu0
      %v3021 = vadd.f32 0.0, %v3020
      %v3022 = vpop.f32.mrb[0].mxu0
      %v3023 = vpop.f32.mrb[0].mxu0
      %v3024 = vadd.f32 0.0, %v3023
      %v3025 = vpop.f32.mrb[0].mxu0
      %3026 = vmatprep.mubr.bf16.mxu0 0
      %3027 = vmatmul.mubr.bf16.gmra.mrb[0].mxu0 %v2899
      %v3028 = vpop.f32.mrb[0].mxu0
      %v3029 = vadd.f32 0.0, %v3028
      %v3030 = vpop.f32.mrb[0].mxu0
      %v3031 = vpop.f32.mrb[0].mxu0
      %v3032 = vadd.f32 0.0, %v3031
      %v3033 = vpop.f32.mrb[0].mxu0
      %3034 = vmatprep.mubr.bf16.mxu0 0
      %3035 = vmatmul.mubr.bf16.gmra.mrb[0].mxu0 %v2900
      %v3036 = vpop.f32.mrb[0].mxu0
      %v3037 = vadd.f32 0.0, %v3036
      %v3038 = vpop.f32.mrb[0].mxu0
      %v3039 = vpop.f32.mrb[0].mxu0
      %v3040 = vadd.f32 0.0, %v3039
      %v3041 = vpop.f32.mrb[0].mxu0
      %3042 = vmatprep.mubr.bf16.mxu0 0
      %3043 = vmatmul.mubr.bf16.gmra.mrb[0].mxu0 %v2901
      %v3044 = vpop.f32.mrb[0].mxu0
      %v3045 = vadd.f32 0.0, %v3044
      %v3046 = vpop.f32.mrb[0].mxu0
      %v3047 = vpop.f32.mrb[0].mxu0
      %v3048 = vadd.f32 0.0, %v3047
      %v3049 = vpop.f32.mrb[0].mxu0
      %3050 = vmatprep.mubr.bf16.mxu0 0
      %3051 = vmatmul.mubr.bf16.gmra.mrb[0].mxu0 %v2902
      %v3052 = vpop.f32.mrb[0].mxu0
      %v3053 = vadd.f32 0.0, %v3052
      %v3054 = vpop.f32.mrb[0].mxu0
      %v3055 = vpop.f32.mrb[0].mxu0
      %v3056 = vadd.f32 0.0, %v3055
      %v3057 = vpop.f32.mrb[0].mxu0
      %3058 = vmatprep.mubr.bf16.mxu0 0
      %3059 = vmatmul.mubr.bf16.gmra.mrb[0].mxu0 %v2903
      %v3060 = vpop.f32.mrb[0].mxu0
      %v3061 = vadd.f32 0.0, %v3060
      %v3062 = vpop.f32.mrb[0].mxu0
      %v3063 = vpop.f32.mrb[0].mxu0
      %v3064 = vadd.f32 0.0, %v3063
      %v3065 = vpop.f32.mrb[0].mxu0
      %3066 = vmatprep.mubr.bf16.mxu0 0
      %3067 = vmatmul.mubr.bf16.gmra.mrb[0].mxu0 %v2904
      %v3068 = vpop.f32.mrb[0].mxu0
      %v3069 = vadd.f32 0.0, %v3068
      %v3070 = vpop.f32.mrb[0].mxu0
      %v3071 = vpop.f32.mrb[0].mxu0
      %v3072 = vadd.f32 0.0, %v3071
      %v3073 = vpop.f32.mrb[0].mxu0
      %3074 = vmatprep.mubr.bf16.mxu0 0
      %3075 = vmatmul.mubr.bf16.gmra.mrb[0].mxu0 %v2905
      %v3076 = vpop.f32.mrb[0].mxu0
      %v3077 = vadd.f32 0.0, %v3076
      %v3078 = vpop.f32.mrb[0].mxu0
      %v3079 = vpop.f32.mrb[0].mxu0
      %v3080 = vadd.f32 0.0, %v3079
      %v3081 = vpop.f32.mrb[0].mxu0
      %3082 = vmatprep.mubr.bf16.mxu0 0
      %3083 = vmatmul.mubr.bf16.gmra.mrb[0].mxu0 %v2906
      %v3084 = vpop.f32.mrb[0].mxu0
      %v3085 = vadd.f32 0.0, %v3084
      %v3086 = vpop.f32.mrb[0].mxu0
      %v3087 = vpop.f32.mrb[0].mxu0
      %v3088 = vadd.f32 0.0, %v3087
      %v3089 = vpop.f32.mrb[0].mxu0
      %3090 = vmatprep.mubr.bf16.mxu0 0
      %3091 = vmatmul.mubr.bf16.gmra.mrb[0].mxu0 %v2907
      %v3092 = vpop.f32.mrb[0].mxu0
      %v3093 = vadd.f32 0.0, %v3092
      %v3094 = vpop.f32.mrb[0].mxu0
      %v3095 = vpop.f32.mrb[0].mxu0
      %v3096 = vadd.f32 0.0, %v3095
      %v3097 = vpop.f32.mrb[0].mxu0
      %3098 = vmatprep.mubr.bf16.mxu0 0
      %3099 = vmatmul.mubr.bf16.gmra.mrb[0].mxu0 %v2908
      %v3100 = vpop.f32.mrb[0].mxu0
      %v3101 = vadd.f32 0.0, %v3100
      %v3102 = vpop.f32.mrb[0].mxu0
      %v3103 = vpop.f32.mrb[0].mxu0
      %v3104 = vadd.f32 0.0, %v3103
      %v3105 = vpop.f32.mrb[0].mxu0
      %3106 = vmatprep.mubr.bf16.mxu0 0
      %3107 = vmatmul.mubr.bf16.gmra.mrb[0].mxu0 %v2909
      %v3108 = vpop.f32.mrb[0].mxu0
      %v3109 = vadd.f32 0.0, %v3108
      %v3110 = vpop.f32.mrb[0].mxu0
      %v3111 = vpop.f32.mrb[0].mxu0
      %v3112 = vadd.f32 0.0, %v3111
      %v3113 = vpop.f32.mrb[0].mxu0
      %3114 = vmatprep.mubr.bf16.mxu0 0
      %3115 = vmatmul.mubr.bf16.gmra.mrb[0].mxu0 %v2910
      %v3116 = vpop.f32.mrb[0].mxu0
      %v3117 = vadd.f32 0.0, %v3116
      %v3118 = vpop.f32.mrb[0].mxu0
      %v3119 = vpop.f32.mrb[0].mxu0
      %v3120 = vadd.f32 0.0, %v3119
      %v3121 = vpop.f32.mrb[0].mxu0
      %3122 = vmatprep.mubr.bf16.mxu0 0
      %3123 = vmatmul.mubr.bf16.gmra.mrb[0].mxu0 %v2911
      %v3124 = vpop.f32.mrb[0].mxu0
      %v3125 = vadd.f32 0.0, %v3124
      %v3126 = vpop.f32.mrb[0].mxu0
      %v3127 = vpop.f32.mrb[0].mxu0
      %v3128 = vadd.f32 0.0, %v3127
      %v3129 = vpop.f32.mrb[0].mxu0
      %3130 = vmatprep.mubr.bf16.mxu0 0
      %3131 = vmatmul.mubr.bf16.gmra.mrb[0].mxu0 %v2912
      %v3132 = vpop.f32.mrb[0].mxu0
      %v3133 = vadd.f32 0.0, %v3132
      %v3134 = vpop.f32.mrb[0].mxu0
      %v3135 = vpop.f32.mrb[0].mxu0
      %v3136 = vadd.f32 0.0, %v3135
      %v3137 = vpop.f32.mrb[0].mxu0
      %3138 = vdwg.mxu0
      %v3139 = vadd.f32 %v2865, %v3013
      %v3140 = vadd.f32 %v2866, %v3016
      %v3141 = vadd.f32 %v2867, %v3021
      %v3142 = vadd.f32 %v2868, %v3024
      %v3143 = vadd.f32 %v2869, %v3029
      %v3144 = vadd.f32 %v2870, %v3032
      %v3145 = vadd.f32 %v2871, %v3037
      %v3146 = vadd.f32 %v2872, %v3040
      %v3147 = vadd.f32 %v2873, %v3045
      %v3148 = vadd.f32 %v2874, %v3048
      %v3149 = vadd.f32 %v2875, %v3053
      %v3150 = vadd.f32 %v2876, %v3056
      %v3151 = vadd.f32 %v2877, %v3061
      %v3152 = vadd.f32 %v2878, %v3064
      %v3153 = vadd.f32 %v2879, %v3069
      %v3154 = vadd.f32 %v2880, %v3072
      %v3155 = vadd.f32 %v2881, %v3077
      %v3156 = vadd.f32 %v2882, %v3080
      %v3157 = vadd.f32 %v2883, %v3085
      %v3158 = vadd.f32 %v2884, %v3088
      %v3159 = vadd.f32 %v2885, %v3093
      %v3160 = vadd.f32 %v2886, %v3096
      %v3161 = vadd.f32 %v2887, %v3101
      %v3162 = vadd.f32 %v2888, %v3104
      %v3163 = vadd.f32 %v2889, %v3109
      %v3164 = vadd.f32 %v2890, %v3112
      %v3165 = vadd.f32 %v2891, %v3117
      %v3166 = vadd.f32 %v2892, %v3120
      %v3167 = vadd.f32 %v2893, %v3125
      %v3168 = vadd.f32 %v2894, %v3128
      %v3169 = vadd.f32 %v2895, %v3133
      %v3170 = vadd.f32 %v2896, %v3136
      %3171 = vst [vmem:[#allocation2] sm:$0xff] %v3139
      %3172 = vst [vmem:[#allocation2 + $0x8] sm:$0xff] %v3140
      %3173 = vst [vmem:[#allocation2 + $0x10] sm:$0xff] %v3141
      %3174 = vst [vmem:[#allocation2 + $0x18] sm:$0xff] %v3142
      %3175 = vst [vmem:[#allocation2 + $0x20] sm:$0xff] %v3143
      %3176 = vst [vmem:[#allocation2 + $0x28] sm:$0xff] %v3144
      %3177 = vst [vmem:[#allocation2 + $0x30] sm:$0xff] %v3145
      %3178 = vst [vmem:[#allocation2 + $0x38] sm:$0xff] %v3146
      %3179 = vst [vmem:[#allocation2 + $0x40] sm:$0xff] %v3147
      %3180 = vst [vmem:[#allocation2 + $0x48] sm:$0xff] %v3148
      %3181 = vst [vmem:[#allocation2 + $0x50] sm:$0xff] %v3149
      %3182 = vst [vmem:[#allocation2 + $0x58] sm:$0xff] %v3150
      %3183 = vst [vmem:[#allocation2 + $0x60] sm:$0xff] %v3151
      %3184 = vst [vmem:[#allocation2 + $0x68] sm:$0xff] %v3152
      %3185 = vst [vmem:[#allocation2 + $0x70] sm:$0xff] %v3153
      %3186 = vst [vmem:[#allocation2 + $0x78] sm:$0xff] %v3154
      %3187 = vst [vmem:[#allocation2 + $0x80] sm:$0xff] %v3155
      %3188 = vst [vmem:[#allocation2 + $0x88] sm:$0xff] %v3156
      %3189 = vst [vmem:[#allocation2 + $0x90] sm:$0xff] %v3157
      %3190 = vst [vmem:[#allocation2 + $0x98] sm:$0xff] %v3158
      %3191 = vst [vmem:[#allocation2 + $0xa0] sm:$0xff] %v3159
      %3192 = vst [vmem:[#allocation2 + $0xa8] sm:$0xff] %v3160
      %3193 = vst [vmem:[#allocation2 + $0xb0] sm:$0xff] %v3161
      %3194 = vst [vmem:[#allocation2 + $0xb8] sm:$0xff] %v3162
      %3195 = vst [vmem:[#allocation2 + $0xc0] sm:$0xff] %v3163
      %3196 = vst [vmem:[#allocation2 + $0xc8] sm:$0xff] %v3164
      %3197 = vst [vmem:[#allocation2 + $0xd0] sm:$0xff] %v3165
      %3198 = vst [vmem:[#allocation2 + $0xd8] sm:$0xff] %v3166
      %3199 = vst [vmem:[#allocation2 + $0xe0] sm:$0xff] %v3167
      %3200 = vst [vmem:[#allocation2 + $0xe8] sm:$0xff] %v3168
      %3201 = vst [vmem:[#allocation2 + $0xf0] sm:$0xff] %v3169
      %3202 = vst [vmem:[#allocation2 + $0xf8] sm:$0xff] %v3170
      %v3203 = vld [vmem:[%s2462 + $0x2] sm:$0xff]
      %v3204 = vld [vmem:[%s2462 + $0xa] sm:$0xff]
      %v3205 = vld [vmem:[%s2462 + $0x1a] sm:$0xff]
      %v3206 = vld [vmem:[%s2462 + $0x22] sm:$0xff]
      %v3207 = vld [vmem:[%s2462 + $0x32] sm:$0xff]
      %v3208 = vld [vmem:[%s2462 + $0x3a] sm:$0xff]
      %v3209 = vld [vmem:[%s2462 + $0x4a] sm:$0xff]
      %v3210 = vld [vmem:[%s2462 + $0x52] sm:$0xff]
      %v3211 = vld [vmem:[%s2462 + $0x62] sm:$0xff]
      %v3212 = vld [vmem:[%s2462 + $0x6a] sm:$0xff]
      %v3213 = vld [vmem:[%s2462 + $0x7a] sm:$0xff]
      %v3214 = vld [vmem:[%s2462 + $0x82] sm:$0xff]
      %v3215 = vld [vmem:[%s2462 + $0x92] sm:$0xff]
      %v3216 = vld [vmem:[%s2462 + $0x9a] sm:$0xff]
      %v3217 = vld [vmem:[%s2462 + $0xaa] sm:$0xff]
      %v3218 = vld [vmem:[%s2462 + $0xb2] sm:$0xff]
      %v3219 = vld [vmem:[%s2462 + $0xc2] sm:$0xff]
      %v3220 = vld [vmem:[%s2462 + $0xca] sm:$0xff]
      %v3221 = vld [vmem:[%s2462 + $0xda] sm:$0xff]
      %v3222 = vld [vmem:[%s2462 + $0xe2] sm:$0xff]
      %v3223 = vld [vmem:[%s2462 + $0xf2] sm:$0xff]
      %v3224 = vld [vmem:[%s2462 + $0xfa] sm:$0xff]
      %v3225 = vld [vmem:[%s2462 + $0x10a] sm:$0xff]
      %v3226 = vld [vmem:[%s2462 + $0x112] sm:$0xff]
      %v3227 = vld [vmem:[%s2462 + $0x122] sm:$0xff]
      %v3228 = vld [vmem:[%s2462 + $0x12a] sm:$0xff]
      %v3229 = vld [vmem:[%s2462 + $0x13a] sm:$0xff]
      %v3230 = vld [vmem:[%s2462 + $0x142] sm:$0xff]
      %v3231 = vld [vmem:[%s2462 + $0x152] sm:$0xff]
      %v3232 = vld [vmem:[%s2462 + $0x15a] sm:$0xff]
      %v3233 = vld [vmem:[%s2462 + $0x16a] sm:$0xff]
      %v3234 = vld [vmem:[%s2462 + $0x172] sm:$0xff]
      %v3235 = vld [vmem:[#allocation2] sm:$0xff]
      %v3236 = vld [vmem:[#allocation2 + $0x8] sm:$0xff]
      %v3237 = vld [vmem:[#allocation2 + $0x10] sm:$0xff]
      %v3238 = vld [vmem:[#allocation2 + $0x18] sm:$0xff]
      %v3239 = vld [vmem:[#allocation2 + $0x20] sm:$0xff]
      %v3240 = vld [vmem:[#allocation2 + $0x28] sm:$0xff]
      %v3241 = vld [vmem:[#allocation2 + $0x30] sm:$0xff]
      %v3242 = vld [vmem:[#allocation2 + $0x38] sm:$0xff]
      %v3243 = vld [vmem:[#allocation2 + $0x40] sm:$0xff]
      %v3244 = vld [vmem:[#allocation2 + $0x48] sm:$0xff]
      %v3245 = vld [vmem:[#allocation2 + $0x50] sm:$0xff]
      %v3246 = vld [vmem:[#allocation2 + $0x58] sm:$0xff]
      %v3247 = vld [vmem:[#allocation2 + $0x60] sm:$0xff]
      %v3248 = vld [vmem:[#allocation2 + $0x68] sm:$0xff]
      %v3249 = vld [vmem:[#allocation2 + $0x70] sm:$0xff]
      %v3250 = vld [vmem:[#allocation2 + $0x78] sm:$0xff]
      %v3251 = vld [vmem:[#allocation2 + $0x80] sm:$0xff]
      %v3252 = vld [vmem:[#allocation2 + $0x88] sm:$0xff]
      %v3253 = vld [vmem:[#allocation2 + $0x90] sm:$0xff]
      %v3254 = vld [vmem:[#allocation2 + $0x98] sm:$0xff]
      %v3255 = vld [vmem:[#allocation2 + $0xa0] sm:$0xff]
      %v3256 = vld [vmem:[#allocation2 + $0xa8] sm:$0xff]
      %v3257 = vld [vmem:[#allocation2 + $0xb0] sm:$0xff]
      %v3258 = vld [vmem:[#allocation2 + $0xb8] sm:$0xff]
      %v3259 = vld [vmem:[#allocation2 + $0xc0] sm:$0xff]
      %v3260 = vld [vmem:[#allocation2 + $0xc8] sm:$0xff]
      %v3261 = vld [vmem:[#allocation2 + $0xd0] sm:$0xff]
      %v3262 = vld [vmem:[#allocation2 + $0xd8] sm:$0xff]
      %v3263 = vld [vmem:[#allocation2 + $0xe0] sm:$0xff]
      %v3264 = vld [vmem:[#allocation2 + $0xe8] sm:$0xff]
      %v3265 = vld [vmem:[#allocation2 + $0xf0] sm:$0xff]
      %v3266 = vld [vmem:[#allocation2 + $0xf8] sm:$0xff]
      %v3267 = vpack.c.bf16 %v3204, %v3203
      %v3268 = vpack.c.bf16 %v3206, %v3205
      %v3269 = vpack.c.bf16 %v3208, %v3207
      %v3270 = vpack.c.bf16 %v3210, %v3209
      %v3271 = vpack.c.bf16 %v3212, %v3211
      %v3272 = vpack.c.bf16 %v3214, %v3213
      %v3273 = vpack.c.bf16 %v3216, %v3215
      %v3274 = vpack.c.bf16 %v3218, %v3217
      %v3275 = vpack.c.bf16 %v3220, %v3219
      %v3276 = vpack.c.bf16 %v3222, %v3221
      %v3277 = vpack.c.bf16 %v3224, %v3223
      %v3278 = vpack.c.bf16 %v3226, %v3225
      %v3279 = vpack.c.bf16 %v3228, %v3227
      %v3280 = vpack.c.bf16 %v3230, %v3229
      %v3281 = vpack.c.bf16 %v3232, %v3231
      %v3282 = vpack.c.bf16 %v3234, %v3233
      %s3283 = scalar_lea.vmem %s1, 512
      %v3284 = vld [vmem:[%s3283] sm:$0xf]
      %v3285 = vld [vmem:[%s3283 + $0x4] sm:$0xf]
      %v3286 = vld [vmem:[%s3283 + $0x8] sm:$0xf]
      %v3287 = vld [vmem:[%s3283 + $0xc] sm:$0xf]
      %v3288 = vld [vmem:[%s3283 + $0x10] sm:$0xf]
      %v3289 = vld [vmem:[%s3283 + $0x14] sm:$0xf]
      %v3290 = vld [vmem:[%s3283 + $0x18] sm:$0xf]
      %v3291 = vld [vmem:[%s3283 + $0x1c] sm:$0xf]
      %v3292 = vld [vmem:[%s3283 + $0x20] sm:$0xf]
      %v3293 = vld [vmem:[%s3283 + $0x24] sm:$0xf]
      %v3294 = vld [vmem:[%s3283 + $0x28] sm:$0xf]
      %v3295 = vld [vmem:[%s3283 + $0x2c] sm:$0xf]
      %v3296 = vld [vmem:[%s3283 + $0x30] sm:$0xf]
      %v3297 = vld [vmem:[%s3283 + $0x34] sm:$0xf]
      %v3298 = vld [vmem:[%s3283 + $0x38] sm:$0xf]
      %v3299 = vld [vmem:[%s3283 + $0x3c] sm:$0xf]
      %v3316 = vunpack.c.l.b16 %v3284
      %v3317 = vunpack.c.l.b16 %v3285
      %v3318 = vunpack.c.l.b16 %v3286
      %v3319 = vunpack.c.l.b16 %v3287
      %v3320 = vunpack.c.l.b16 %v3288
      %v3321 = vunpack.c.l.b16 %v3289
      %v3322 = vunpack.c.l.b16 %v3290
      %v3323 = vunpack.c.l.b16 %v3291
      %v3324 = vunpack.c.l.b16 %v3292
      %v3325 = vunpack.c.l.b16 %v3293
      %v3326 = vunpack.c.l.b16 %v3294
      %v3327 = vunpack.c.l.b16 %v3295
      %v3328 = vunpack.c.l.b16 %v3296
      %v3329 = vunpack.c.l.b16 %v3297
      %v3330 = vunpack.c.l.b16 %v3298
      %v3331 = vunpack.c.l.b16 %v3299
      %v3332 = vpack.c.b16 %v3317, %v3316
      %v3333 = vpack.c.b16 %v3319, %v3318
      %v3334 = vpack.c.b16 %v3321, %v3320
      %v3335 = vpack.c.b16 %v3323, %v3322
      %v3336 = vpack.c.b16 %v3325, %v3324
      %v3337 = vpack.c.b16 %v3327, %v3326
      %v3338 = vpack.c.b16 %v3329, %v3328
      %v3339 = vpack.c.b16 %v3331, %v3330
      %3348 = vmatprep.subr.bf16.mxu0 0
      %3349 = vmatpush1.bf16.msra.mxu0 %v3332
      %3350 = vmatprep.subr.bf16.mxu0 0
      %3351 = vmatpush1.bf16.msra.mxu0 %v3333
      %3352 = vmatprep.subr.bf16.mxu0 0
      %3353 = vmatpush1.bf16.msra.mxu0 %v3334
      %3354 = vmatprep.subr.bf16.mxu0 0
      %3355 = vmatpush1.bf16.msra.mxu0 %v3335
      %3356 = vmatprep.subr.bf16.mxu0 0
      %3357 = vmatpush1.bf16.msra.mxu0 %v3336
      %3358 = vmatprep.subr.bf16.mxu0 0
      %3359 = vmatpush1.bf16.msra.mxu0 %v3337
      %3360 = vmatprep.subr.bf16.mxu0 0
      %3361 = vmatpush1.bf16.msra.mxu0 %v3338
      %3362 = vmatprep.subr.bf16.mxu0 0
      %3363 = vmatpush1.bf16.msra.mxu0 %v3339
      %3364 = vmatprep.subr.bf16.mxu0 0
      %3365 = vmatpush1.bf16.msra.mxu0 0
      %3366 = vmatprep.subr.bf16.mxu0 0
      %3367 = vmatpush1.bf16.msra.mxu0 0
      %3368 = vmatprep.subr.bf16.mxu0 0
      %3369 = vmatpush1.bf16.msra.mxu0 0
      %3370 = vmatprep.subr.bf16.mxu0 0
      %3371 = vmatpush1.bf16.msra.mxu0 0
      %3372 = vmatprep.subr.bf16.mxu0 0
      %3373 = vmatpush1.bf16.msra.mxu0 0
      %3374 = vmatprep.subr.bf16.mxu0 0
      %3375 = vmatpush1.bf16.msra.mxu0 0
      %3376 = vmatprep.subr.bf16.mxu0 0
      %3377 = vmatpush1.bf16.msra.mxu0 0
      %3378 = vmatprep.subr.bf16.mxu0 0
      %3379 = vmatpush1.bf16.msra.mxu0 0
      %3380 = vmatprep.mubr.bf16.mxu0 0
      %3381 = vmatmul.mubr.bf16.gmra.mrb[0].mxu0 %v3267
      %v3382 = vpop.f32.mrb[0].mxu0
      %v3383 = vadd.f32 0.0, %v3382
      %v3384 = vpop.f32.mrb[0].mxu0
      %v3385 = vpop.f32.mrb[0].mxu0
      %v3386 = vadd.f32 0.0, %v3385
      %v3387 = vpop.f32.mrb[0].mxu0
      %3388 = vmatprep.mubr.bf16.mxu0 0
      %3389 = vmatmul.mubr.bf16.gmra.mrb[0].mxu0 %v3268
      %v3390 = vpop.f32.mrb[0].mxu0
      %v3391 = vadd.f32 0.0, %v3390
      %v3392 = vpop.f32.mrb[0].mxu0
      %v3393 = vpop.f32.mrb[0].mxu0
      %v3394 = vadd.f32 0.0, %v3393
      %v3395 = vpop.f32.mrb[0].mxu0
      %3396 = vmatprep.mubr.bf16.mxu0 0
      %3397 = vmatmul.mubr.bf16.gmra.mrb[0].mxu0 %v3269
      %v3398 = vpop.f32.mrb[0].mxu0
      %v3399 = vadd.f32 0.0, %v3398
      %v3400 = vpop.f32.mrb[0].mxu0
      %v3401 = vpop.f32.mrb[0].mxu0
      %v3402 = vadd.f32 0.0, %v3401
      %v3403 = vpop.f32.mrb[0].mxu0
      %3404 = vmatprep.mubr.bf16.mxu0 0
      %3405 = vmatmul.mubr.bf16.gmra.mrb[0].mxu0 %v3270
      %v3406 = vpop.f32.mrb[0].mxu0
      %v3407 = vadd.f32 0.0, %v3406
      %v3408 = vpop.f32.mrb[0].mxu0
      %v3409 = vpop.f32.mrb[0].mxu0
      %v3410 = vadd.f32 0.0, %v3409
      %v3411 = vpop.f32.mrb[0].mxu0
      %3412 = vmatprep.mubr.bf16.mxu0 0
      %3413 = vmatmul.mubr.bf16.gmra.mrb[0].mxu0 %v3271
      %v3414 = vpop.f32.mrb[0].mxu0
      %v3415 = vadd.f32 0.0, %v3414
      %v3416 = vpop.f32.mrb[0].mxu0
      %v3417 = vpop.f32.mrb[0].mxu0
      %v3418 = vadd.f32 0.0, %v3417
      %v3419 = vpop.f32.mrb[0].mxu0
      %3420 = vmatprep.mubr.bf16.mxu0 0
      %3421 = vmatmul.mubr.bf16.gmra.mrb[0].mxu0 %v3272
      %v3422 = vpop.f32.mrb[0].mxu0
      %v3423 = vadd.f32 0.0, %v3422
      %v3424 = vpop.f32.mrb[0].mxu0
      %v3425 = vpop.f32.mrb[0].mxu0
      %v3426 = vadd.f32 0.0, %v3425
      %v3427 = vpop.f32.mrb[0].mxu0
      %3428 = vmatprep.mubr.bf16.mxu0 0
      %3429 = vmatmul.mubr.bf16.gmra.mrb[0].mxu0 %v3273
      %v3430 = vpop.f32.mrb[0].mxu0
      %v3431 = vadd.f32 0.0, %v3430
      %v3432 = vpop.f32.mrb[0].mxu0
      %v3433 = vpop.f32.mrb[0].mxu0
      %v3434 = vadd.f32 0.0, %v3433
      %v3435 = vpop.f32.mrb[0].mxu0
      %3436 = vmatprep.mubr.bf16.mxu0 0
      %3437 = vmatmul.mubr.bf16.gmra.mrb[0].mxu0 %v3274
      %v3438 = vpop.f32.mrb[0].mxu0
      %v3439 = vadd.f32 0.0, %v3438
      %v3440 = vpop.f32.mrb[0].mxu0
      %v3441 = vpop.f32.mrb[0].mxu0
      %v3442 = vadd.f32 0.0, %v3441
      %v3443 = vpop.f32.mrb[0].mxu0
      %3444 = vmatprep.mubr.bf16.mxu0 0
      %3445 = vmatmul.mubr.bf16.gmra.mrb[0].mxu0 %v3275
      %v3446 = vpop.f32.mrb[0].mxu0
      %v3447 = vadd.f32 0.0, %v3446
      %v3448 = vpop.f32.mrb[0].mxu0
      %v3449 = vpop.f32.mrb[0].mxu0
      %v3450 = vadd.f32 0.0, %v3449
      %v3451 = vpop.f32.mrb[0].mxu0
      %3452 = vmatprep.mubr.bf16.mxu0 0
      %3453 = vmatmul.mubr.bf16.gmra.mrb[0].mxu0 %v3276
      %v3454 = vpop.f32.mrb[0].mxu0
      %v3455 = vadd.f32 0.0, %v3454
      %v3456 = vpop.f32.mrb[0].mxu0
      %v3457 = vpop.f32.mrb[0].mxu0
      %v3458 = vadd.f32 0.0, %v3457
      %v3459 = vpop.f32.mrb[0].mxu0
      %3460 = vmatprep.mubr.bf16.mxu0 0
      %3461 = vmatmul.mubr.bf16.gmra.mrb[0].mxu0 %v3277
      %v3462 = vpop.f32.mrb[0].mxu0
      %v3463 = vadd.f32 0.0, %v3462
      %v3464 = vpop.f32.mrb[0].mxu0
      %v3465 = vpop.f32.mrb[0].mxu0
      %v3466 = vadd.f32 0.0, %v3465
      %v3467 = vpop.f32.mrb[0].mxu0
      %3468 = vmatprep.mubr.bf16.mxu0 0
      %3469 = vmatmul.mubr.bf16.gmra.mrb[0].mxu0 %v3278
      %v3470 = vpop.f32.mrb[0].mxu0
      %v3471 = vadd.f32 0.0, %v3470
      %v3472 = vpop.f32.mrb[0].mxu0
      %v3473 = vpop.f32.mrb[0].mxu0
      %v3474 = vadd.f32 0.0, %v3473
      %v3475 = vpop.f32.mrb[0].mxu0
      %3476 = vmatprep.mubr.bf16.mxu0 0
      %3477 = vmatmul.mubr.bf16.gmra.mrb[0].mxu0 %v3279
      %v3478 = vpop.f32.mrb[0].mxu0
      %v3479 = vadd.f32 0.0, %v3478
      %v3480 = vpop.f32.mrb[0].mxu0
      %v3481 = vpop.f32.mrb[0].mxu0
      %v3482 = vadd.f32 0.0, %v3481
      %v3483 = vpop.f32.mrb[0].mxu0
      %3484 = vmatprep.mubr.bf16.mxu0 0
      %3485 = vmatmul.mubr.bf16.gmra.mrb[0].mxu0 %v3280
      %v3486 = vpop.f32.mrb[0].mxu0
      %v3487 = vadd.f32 0.0, %v3486
      %v3488 = vpop.f32.mrb[0].mxu0
      %v3489 = vpop.f32.mrb[0].mxu0
      %v3490 = vadd.f32 0.0, %v3489
      %v3491 = vpop.f32.mrb[0].mxu0
      %3492 = vmatprep.mubr.bf16.mxu0 0
      %3493 = vmatmul.mubr.bf16.gmra.mrb[0].mxu0 %v3281
      %v3494 = vpop.f32.mrb[0].mxu0
      %v3495 = vadd.f32 0.0, %v3494
      %v3496 = vpop.f32.mrb[0].mxu0
      %v3497 = vpop.f32.mrb[0].mxu0
      %v3498 = vadd.f32 0.0, %v3497
      %v3499 = vpop.f32.mrb[0].mxu0
      %3500 = vmatprep.mubr.bf16.mxu0 0
      %3501 = vmatmul.mubr.bf16.gmra.mrb[0].mxu0 %v3282
      %v3502 = vpop.f32.mrb[0].mxu0
      %v3503 = vadd.f32 0.0, %v3502
      %v3504 = vpop.f32.mrb[0].mxu0
      %v3505 = vpop.f32.mrb[0].mxu0
      %v3506 = vadd.f32 0.0, %v3505
      %v3507 = vpop.f32.mrb[0].mxu0
      %3508 = vdwg.mxu0
      %v3509 = vadd.f32 %v3235, %v3383
      %v3510 = vadd.f32 %v3236, %v3386
      %v3511 = vadd.f32 %v3237, %v3391
      %v3512 = vadd.f32 %v3238, %v3394
      %v3513 = vadd.f32 %v3239, %v3399
      %v3514 = vadd.f32 %v3240, %v3402
      %v3515 = vadd.f32 %v3241, %v3407
      %v3516 = vadd.f32 %v3242, %v3410
      %v3517 = vadd.f32 %v3243, %v3415
      %v3518 = vadd.f32 %v3244, %v3418
      %v3519 = vadd.f32 %v3245, %v3423
      %v3520 = vadd.f32 %v3246, %v3426
      %v3521 = vadd.f32 %v3247, %v3431
      %v3522 = vadd.f32 %v3248, %v3434
      %v3523 = vadd.f32 %v3249, %v3439
      %v3524 = vadd.f32 %v3250, %v3442
      %v3525 = vadd.f32 %v3251, %v3447
      %v3526 = vadd.f32 %v3252, %v3450
      %v3527 = vadd.f32 %v3253, %v3455
      %v3528 = vadd.f32 %v3254, %v3458
      %v3529 = vadd.f32 %v3255, %v3463
      %v3530 = vadd.f32 %v3256, %v3466
      %v3531 = vadd.f32 %v3257, %v3471
      %v3532 = vadd.f32 %v3258, %v3474
      %v3533 = vadd.f32 %v3259, %v3479
      %v3534 = vadd.f32 %v3260, %v3482
      %v3535 = vadd.f32 %v3261, %v3487
      %v3536 = vadd.f32 %v3262, %v3490
      %v3537 = vadd.f32 %v3263, %v3495
      %v3538 = vadd.f32 %v3264, %v3498
      %v3539 = vadd.f32 %v3265, %v3503
      %v3540 = vadd.f32 %v3266, %v3506
      %3541 = vst [vmem:[#allocation2] sm:$0xff] %v3509
      %3542 = vst [vmem:[#allocation2 + $0x8] sm:$0xff] %v3510
      %3543 = vst [vmem:[#allocation2 + $0x10] sm:$0xff] %v3511
      %3544 = vst [vmem:[#allocation2 + $0x18] sm:$0xff] %v3512
      %3545 = vst [vmem:[#allocation2 + $0x20] sm:$0xff] %v3513
      %3546 = vst [vmem:[#allocation2 + $0x28] sm:$0xff] %v3514
      %3547 = vst [vmem:[#allocation2 + $0x30] sm:$0xff] %v3515
      %3548 = vst [vmem:[#allocation2 + $0x38] sm:$0xff] %v3516
      %3549 = vst [vmem:[#allocation2 + $0x40] sm:$0xff] %v3517
      %3550 = vst [vmem:[#allocation2 + $0x48] sm:$0xff] %v3518
      %3551 = vst [vmem:[#allocation2 + $0x50] sm:$0xff] %v3519
      %3552 = vst [vmem:[#allocation2 + $0x58] sm:$0xff] %v3520
      %3553 = vst [vmem:[#allocation2 + $0x60] sm:$0xff] %v3521
      %3554 = vst [vmem:[#allocation2 + $0x68] sm:$0xff] %v3522
      %3555 = vst [vmem:[#allocation2 + $0x70] sm:$0xff] %v3523
      %3556 = vst [vmem:[#allocation2 + $0x78] sm:$0xff] %v3524
      %3557 = vst [vmem:[#allocation2 + $0x80] sm:$0xff] %v3525
      %3558 = vst [vmem:[#allocation2 + $0x88] sm:$0xff] %v3526
      %3559 = vst [vmem:[#allocation2 + $0x90] sm:$0xff] %v3527
      %3560 = vst [vmem:[#allocation2 + $0x98] sm:$0xff] %v3528
      %3561 = vst [vmem:[#allocation2 + $0xa0] sm:$0xff] %v3529
      %3562 = vst [vmem:[#allocation2 + $0xa8] sm:$0xff] %v3530
      %3563 = vst [vmem:[#allocation2 + $0xb0] sm:$0xff] %v3531
      %3564 = vst [vmem:[#allocation2 + $0xb8] sm:$0xff] %v3532
      %3565 = vst [vmem:[#allocation2 + $0xc0] sm:$0xff] %v3533
      %3566 = vst [vmem:[#allocation2 + $0xc8] sm:$0xff] %v3534
      %3567 = vst [vmem:[#allocation2 + $0xd0] sm:$0xff] %v3535
      %3568 = vst [vmem:[#allocation2 + $0xd8] sm:$0xff] %v3536
      %3569 = vst [vmem:[#allocation2 + $0xe0] sm:$0xff] %v3537
      %3570 = vst [vmem:[#allocation2 + $0xe8] sm:$0xff] %v3538
      %3571 = vst [vmem:[#allocation2 + $0xf0] sm:$0xff] %v3539
      %3572 = vst [vmem:[#allocation2 + $0xf8] sm:$0xff] %v3540
      %v3573 = vld [vmem:[#allocation2] sm:$0xff]
      %v3574 = vld [vmem:[#allocation2 + $0x8] sm:$0xff]
      %v3575 = vld [vmem:[#allocation2 + $0x10] sm:$0xff]
      %v3576 = vld [vmem:[#allocation2 + $0x18] sm:$0xff]
      %v3577 = vld [vmem:[#allocation2 + $0x20] sm:$0xff]
      %v3578 = vld [vmem:[#allocation2 + $0x28] sm:$0xff]
      %v3579 = vld [vmem:[#allocation2 + $0x30] sm:$0xff]
      %v3580 = vld [vmem:[#allocation2 + $0x38] sm:$0xff]
      %v3581 = vld [vmem:[#allocation2 + $0x40] sm:$0xff]
      %v3582 = vld [vmem:[#allocation2 + $0x48] sm:$0xff]
      %v3583 = vld [vmem:[#allocation2 + $0x50] sm:$0xff]
      %v3584 = vld [vmem:[#allocation2 + $0x58] sm:$0xff]
      %v3585 = vld [vmem:[#allocation2 + $0x60] sm:$0xff]
      %v3586 = vld [vmem:[#allocation2 + $0x68] sm:$0xff]
      %v3587 = vld [vmem:[#allocation2 + $0x70] sm:$0xff]
      %v3588 = vld [vmem:[#allocation2 + $0x78] sm:$0xff]
      %v3589 = vld [vmem:[#allocation2 + $0x80] sm:$0xff]
      %v3590 = vld [vmem:[#allocation2 + $0x88] sm:$0xff]
      %v3591 = vld [vmem:[#allocation2 + $0x90] sm:$0xff]
      %v3592 = vld [vmem:[#allocation2 + $0x98] sm:$0xff]
      %v3593 = vld [vmem:[#allocation2 + $0xa0] sm:$0xff]
      %v3594 = vld [vmem:[#allocation2 + $0xa8] sm:$0xff]
      %v3595 = vld [vmem:[#allocation2 + $0xb0] sm:$0xff]
      %v3596 = vld [vmem:[#allocation2 + $0xb8] sm:$0xff]
      %v3597 = vld [vmem:[#allocation2 + $0xc0] sm:$0xff]
      %v3598 = vld [vmem:[#allocation2 + $0xc8] sm:$0xff]
      %v3599 = vld [vmem:[#allocation2 + $0xd0] sm:$0xff]
      %v3600 = vld [vmem:[#allocation2 + $0xd8] sm:$0xff]
      %v3601 = vld [vmem:[#allocation2 + $0xe0] sm:$0xff]
      %v3602 = vld [vmem:[#allocation2 + $0xe8] sm:$0xff]
      %v3603 = vld [vmem:[#allocation2 + $0xf0] sm:$0xff]
      %v3604 = vld [vmem:[#allocation2 + $0xf8] sm:$0xff]
      %v3605 = vld [vmem:[%s2] sm:$0x1]
      %v3607 = vlaneseq
      %v3608 = vshrl.u32 %v3607, 7
      %v3609 = vsub.s32 0, %v3608
      %v3610 = vrot.slane %v3605, %v3609
      %v3612 = vadd.f32 %v3573, %v3610
      %v3613 = vadd.f32 %v3574, %v3610
      %v3614 = vadd.f32 %v3575, %v3610
      %v3615 = vadd.f32 %v3576, %v3610
      %v3616 = vadd.f32 %v3577, %v3610
      %v3617 = vadd.f32 %v3578, %v3610
      %v3618 = vadd.f32 %v3579, %v3610
      %v3619 = vadd.f32 %v3580, %v3610
      %v3620 = vadd.f32 %v3581, %v3610
      %v3621 = vadd.f32 %v3582, %v3610
      %v3622 = vadd.f32 %v3583, %v3610
      %v3623 = vadd.f32 %v3584, %v3610
      %v3624 = vadd.f32 %v3585, %v3610
      %v3625 = vadd.f32 %v3586, %v3610
      %v3626 = vadd.f32 %v3587, %v3610
      %v3627 = vadd.f32 %v3588, %v3610
      %v3628 = vadd.f32 %v3589, %v3610
      %v3629 = vadd.f32 %v3590, %v3610
      %v3630 = vadd.f32 %v3591, %v3610
      %v3631 = vadd.f32 %v3592, %v3610
      %v3632 = vadd.f32 %v3593, %v3610
      %v3633 = vadd.f32 %v3594, %v3610
      %v3634 = vadd.f32 %v3595, %v3610
      %v3635 = vadd.f32 %v3596, %v3610
      %v3636 = vadd.f32 %v3597, %v3610
      %v3637 = vadd.f32 %v3598, %v3610
      %v3638 = vadd.f32 %v3599, %v3610
      %v3639 = vadd.f32 %v3600, %v3610
      %v3640 = vadd.f32 %v3601, %v3610
      %v3641 = vadd.f32 %v3602, %v3610
      %v3642 = vadd.f32 %v3603, %v3610
      %v3643 = vadd.f32 %v3604, %v3610
      %3644 = vst [vmem:[%s204] sm:$0xff] %v3612
      %3645 = vst [vmem:[%s204 + $0x8] sm:$0xff] %v3613
      %3646 = vst [vmem:[%s204 + $0x10] sm:$0xff] %v3614
      %3647 = vst [vmem:[%s204 + $0x18] sm:$0xff] %v3615
      %3648 = vst [vmem:[%s204 + $0x20] sm:$0xff] %v3616
      %3649 = vst [vmem:[%s204 + $0x28] sm:$0xff] %v3617
      %3650 = vst [vmem:[%s204 + $0x30] sm:$0xff] %v3618
      %3651 = vst [vmem:[%s204 + $0x38] sm:$0xff] %v3619
      %3652 = vst [vmem:[%s204 + $0x40] sm:$0xff] %v3620
      %3653 = vst [vmem:[%s204 + $0x48] sm:$0xff] %v3621
      %3654 = vst [vmem:[%s204 + $0x50] sm:$0xff] %v3622
      %3655 = vst [vmem:[%s204 + $0x58] sm:$0xff] %v3623
      %3656 = vst [vmem:[%s204 + $0x60] sm:$0xff] %v3624
      %3657 = vst [vmem:[%s204 + $0x68] sm:$0xff] %v3625
      %3658 = vst [vmem:[%s204 + $0x70] sm:$0xff] %v3626
      %3659 = vst [vmem:[%s204 + $0x78] sm:$0xff] %v3627
      %3660 = vst [vmem:[%s204 + $0x80] sm:$0xff] %v3628
      %3661 = vst [vmem:[%s204 + $0x88] sm:$0xff] %v3629
      %3662 = vst [vmem:[%s204 + $0x90] sm:$0xff] %v3630
      %3663 = vst [vmem:[%s204 + $0x98] sm:$0xff] %v3631
      %3664 = vst [vmem:[%s204 + $0xa0] sm:$0xff] %v3632
      %3665 = vst [vmem:[%s204 + $0xa8] sm:$0xff] %v3633
      %3666 = vst [vmem:[%s204 + $0xb0] sm:$0xff] %v3634
      %3667 = vst [vmem:[%s204 + $0xb8] sm:$0xff] %v3635
      %3668 = vst [vmem:[%s204 + $0xc0] sm:$0xff] %v3636
      %3669 = vst [vmem:[%s204 + $0xc8] sm:$0xff] %v3637
      %3670 = vst [vmem:[%s204 + $0xd0] sm:$0xff] %v3638
      %3671 = vst [vmem:[%s204 + $0xd8] sm:$0xff] %v3639
      %3672 = vst [vmem:[%s204 + $0xe0] sm:$0xff] %v3640
      %3673 = vst [vmem:[%s204 + $0xe8] sm:$0xff] %v3641
      %3674 = vst [vmem:[%s204 + $0xf0] sm:$0xff] %v3642
      %3675 = vst [vmem:[%s204 + $0xf8] sm:$0xff] %v3643
      %v3676 = vadd.f32 %v3612, %v3613
      %v3677 = vadd.f32 %v3676, %v3614
      %v3678 = vadd.f32 %v3677, %v3615
      %v3679 = vadd.f32 %v3678, %v3616
      %v3680 = vadd.f32 %v3679, %v3617
      %v3681 = vadd.f32 %v3680, %v3618
      %v3682 = vadd.f32 %v3681, %v3619
      %v3683 = vadd.f32 %v3682, %v3620
      %v3684 = vadd.f32 %v3683, %v3621
      %v3685 = vadd.f32 %v3684, %v3622
      %v3686 = vadd.f32 %v3685, %v3623
      %v3687 = vadd.f32 %v3686, %v3624
      %v3688 = vadd.f32 %v3687, %v3625
      %v3689 = vadd.f32 %v3688, %v3626
      %v3690 = vadd.f32 %v3689, %v3627
      %v3691 = vadd.f32 %v3690, %v3628
      %v3692 = vadd.f32 %v3691, %v3629
      %v3693 = vadd.f32 %v3692, %v3630
      %v3694 = vadd.f32 %v3693, %v3631
      %v3695 = vadd.f32 %v3694, %v3632
      %v3696 = vadd.f32 %v3695, %v3633
      %v3697 = vadd.f32 %v3696, %v3634
      %v3698 = vadd.f32 %v3697, %v3635
      %v3699 = vadd.f32 %v3698, %v3636
      %v3700 = vadd.f32 %v3699, %v3637
      %v3701 = vadd.f32 %v3700, %v3638
      %v3702 = vadd.f32 %v3701, %v3639
      %v3703 = vadd.f32 %v3702, %v3640
      %v3704 = vadd.f32 %v3703, %v3641
      %v3705 = vadd.f32 %v3704, %v3642
      %v3706 = vadd.f32 %v3705, %v3643
      %v3707 = vrot.slane %v3706, 4
      %v3708 = vadd.f32 %v3706, %v3707
      %v3709 = vrot.slane %v3708, 2
      %v3710 = vadd.f32 %v3708, %v3709
      %v3711 = vrot.slane %v3710, 1
      %v3712 = vadd.f32 %v3710, %v3711
      %v3713 = vmul.f32 %v3612, %v3612
      %v3714 = vmul.f32 %v3613, %v3613
      %v3715 = vmul.f32 %v3614, %v3614
      %v3716 = vmul.f32 %v3615, %v3615
      %v3717 = vmul.f32 %v3616, %v3616
      %v3718 = vmul.f32 %v3617, %v3617
      %v3719 = vmul.f32 %v3618, %v3618
      %v3720 = vmul.f32 %v3619, %v3619
      %v3721 = vmul.f32 %v3620, %v3620
      %v3722 = vmul.f32 %v3621, %v3621
      %v3723 = vmul.f32 %v3622, %v3622
      %v3724 = vmul.f32 %v3623, %v3623
      %v3725 = vmul.f32 %v3624, %v3624
      %v3726 = vmul.f32 %v3625, %v3625
      %v3727 = vmul.f32 %v3626, %v3626
      %v3728 = vmul.f32 %v3627, %v3627
      %v3729 = vmul.f32 %v3628, %v3628
      %v3730 = vmul.f32 %v3629, %v3629
      %v3731 = vmul.f32 %v3630, %v3630
      %v3732 = vmul.f32 %v3631, %v3631
      %v3733 = vmul.f32 %v3632, %v3632
      %v3734 = vmul.f32 %v3633, %v3633
      %v3735 = vmul.f32 %v3634, %v3634
      %v3736 = vmul.f32 %v3635, %v3635
      %v3737 = vmul.f32 %v3636, %v3636
      %v3738 = vmul.f32 %v3637, %v3637
      %v3739 = vmul.f32 %v3638, %v3638
      %v3740 = vmul.f32 %v3639, %v3639
      %v3741 = vmul.f32 %v3640, %v3640
      %v3742 = vmul.f32 %v3641, %v3641
      %v3743 = vmul.f32 %v3642, %v3642
      %v3744 = vmul.f32 %v3643, %v3643
      %v3745 = vadd.f32 %v3713, %v3714
      %v3746 = vadd.f32 %v3745, %v3715
      %v3747 = vadd.f32 %v3746, %v3716
      %v3748 = vadd.f32 %v3747, %v3717
      %v3749 = vadd.f32 %v3748, %v3718
      %v3750 = vadd.f32 %v3749, %v3719
      %v3751 = vadd.f32 %v3750, %v3720
      %v3752 = vadd.f32 %v3751, %v3721
      %v3753 = vadd.f32 %v3752, %v3722
      %v3754 = vadd.f32 %v3753, %v3723
      %v3755 = vadd.f32 %v3754, %v3724
      %v3756 = vadd.f32 %v3755, %v3725
      %v3757 = vadd.f32 %v3756, %v3726
      %v3758 = vadd.f32 %v3757, %v3727
      %v3759 = vadd.f32 %v3758, %v3728
      %v3760 = vadd.f32 %v3759, %v3729
      %v3761 = vadd.f32 %v3760, %v3730
      %v3762 = vadd.f32 %v3761, %v3731
      %v3763 = vadd.f32 %v3762, %v3732
      %v3764 = vadd.f32 %v3763, %v3733
      %v3765 = vadd.f32 %v3764, %v3734
      %v3766 = vadd.f32 %v3765, %v3735
      %v3767 = vadd.f32 %v3766, %v3736
      %v3768 = vadd.f32 %v3767, %v3737
      %v3769 = vadd.f32 %v3768, %v3738
      %v3770 = vadd.f32 %v3769, %v3739
      %v3771 = vadd.f32 %v3770, %v3740
      %v3772 = vadd.f32 %v3771, %v3741
      %v3773 = vadd.f32 %v3772, %v3742
      %v3774 = vadd.f32 %v3773, %v3743
      %v3775 = vadd.f32 %v3774, %v3744
      %v3776 = vrot.slane %v3775, 4
      %v3777 = vadd.f32 %v3775, %v3776
      %v3778 = vrot.slane %v3777, 2
      %v3779 = vadd.f32 %v3777, %v3778
      %v3780 = vrot.slane %v3779, 1
      %v3781 = vadd.f32 %v3779, %v3780
      %vm3782 = vcmask 1040384
      %v3783 = vsel %vm3782, %v3712, %v3781
      %3784 = vst [vmem:[%s208] sm:$0x3] %v3783
      %p3785 = scmp.lt.s32.totalorder %s16, 1
      %s3786 = scalar_select %p3785, %s16, 1
      %s3787 = smul.addr %s3786, 32
      %s3788 = smul.addr %s3787, 8
      %s3789 = scalar_lea.vmem %s3, %s3788
      %p3790 = scmp.lt.s32.totalorder %s16, 1
      %s3791 = scalar_select %p3790, %s16, 1
      %s3792 = smul.addr %s3791, 2
      %s3793 = scalar_lea.vmem %s4, %s3792
      // Predicated region
      $region33: #{residual_block.3} parent=31 // pred_check
        %p3794 = pneg %p102
      $region34: #{residual_block.3} parent=31 // pred_check_branch
        %3796 = sbr.rel (%p3794) target = $region36
      $region35: #{residual_block.3} parent=31 // pred_region
        _
      $region36: #{residual_block.3} parent=31 // pred_fallthru
        _
      // Predicated region
      $region37: #{residual_block.3} parent=31 // pred_check
        %p3797 = pneg %p128
      $region38: #{residual_block.3} parent=31 // pred_check_branch
        %3799 = sbr.rel (%p3797) target = $region40
      $region39: #{residual_block.3} parent=31 // pred_region
        _
      $region40: #{residual_block.3} parent=31 // pred_fallthru
        _
    $region32: #{residual_block.3} parent=5 // pred_fallthru
      _
    %p3800 = scmp.le.s32.totalorder 2, %s11
    // Predicated region
    $region41: #{residual_block.3} parent=5 // pred_check
      %p3801 = pneg %p3800
    $region42: #{residual_block.3} parent=5 // pred_check_branch
      %3803 = sbr.rel (%p3801) target = $region44
    $region43: #{residual_block.3} parent=5 // pred_region
      %s3804 = ssub.s32 %s11, 2
      // Predicated region
      $region45: #{residual_block.3} parent=43 // pred_check
        %p3805 = pneg %p108
      $region46: #{residual_block.3} parent=43 // pred_check_branch
        %3807 = sbr.rel (%p3805) target = $region48
      $region47: #{residual_block.3} parent=43 // pred_region
        %p3808 = scmp.lt.s32.totalorder %s17, 1
        %s3809 = scalar_select %p3808, %s17, 1
        %s3810 = smul.addr %s3809, 32
        %s3811 = smul.addr %s3810, 8
        %s3812 = scalar_lea.vmem %s3, %s3811
      $region48: #{residual_block.3} parent=43 // pred_fallthru
        _
      // Predicated region
      $region49: #{residual_block.3} parent=43 // pred_check
        %p3813 = pneg %p134
      $region50: #{residual_block.3} parent=43 // pred_check_branch
        %3815 = sbr.rel (%p3813) target = $region52
      $region51: #{residual_block.3} parent=43 // pred_region
        %p3816 = scmp.lt.s32.totalorder %s17, 1
        %s3817 = scalar_select %p3816, %s17, 1
        %s3818 = smul.addr %s3817, 2
        %s3819 = scalar_lea.vmem %s4, %s3818
      $region52: #{residual_block.3} parent=43 // pred_fallthru
        _
    $region44: #{residual_block.3} parent=5 // pred_fallthru
      _
  $region6: #{residual_block.3} parent=0 // loop_footer
    %s15 = sadd.s32 1, %s11
  $region7: #{residual_block.3} parent=0 // loop_footer_branch
    %10 = sbr.rel target = $region3
  $region8: #{residual_block.3} parent=0 // loop_exit
    _

// kernel: residual_block.4
$region0: #{residual_block.4}
  #allocation0 [shape = 'u32[]', space=smem, size = 0x4, offset = 0x4, fixed_abs, tag = 'smem constant byte address 0x4 - core index']
  #allocation1 [shape = 'u32[144,128]{1,0:T(1,128)}', space=vmem, size = 0x12000, scoped, tag = 'internal scratch']
  #allocation2 [shape = 'f32[18,18,128]{2,1,0:T(8,128)}', space=vmem, size = 0x36000, scoped, tag = 'scratch operand']
  #allocation3 [shape = 'f32[256,128]{1,0:T(8,128)}', space=vmem, size = 0x20000, scoped, tag = 'scratch operand']
  %s0 = inlined_call_operand.vmem [shape: f32[2,256,128], index: 0, kind: input, shape index: {}]
  %s1 = inlined_call_operand.vmem [shape: f32[1,128], index: 1, kind: input, shape index: {}]
  %s2 = inlined_call_operand.vmem [shape: f32[1,128], index: 2, kind: input, shape index: {}]
  %s3 = inlined_call_operand.vmem [shape: f32[1,128], index: 3, kind: input, shape index: {}]
  %s4 = inlined_call_operand.vmem [shape: bf16[9,128,128], index: 4, kind: input, shape index: {}]
  %s5 = inlined_call_operand.vmem [shape: f32[1,128], index: 5, kind: input, shape index: {}]
  %s6 = inlined_call_operand.vmem [shape: f32[2,256,128], index: 6, kind: output, shape index: {0}]
  %s7 = inlined_call_operand.vmem [shape: f32[2,2,128], index: 7, kind: output, shape index: {1}]
  %8 = xla_tuple %s6, %s7
  %s9 = sld [smem:[#allocation0]]
  $region65: #{residual_block.4} parent=0
    _
  %s11 = ssub.s32 1, %s9
  %s12 = scalar_select 0, %s11, %s9
  loop: start=0, step=1, limit=4
  $region2: #{residual_block.4} parent=0 // loop_pre_header
    _
  $region3: #{residual_block.4} parent=0 // loop_header
    %s14 = sphi 0, %s18
    %p15 = scmp.ge.s32.totalorder %s14, 4
    %s24 = sphi 0, %s26
    %s27 = sphi 0, %s24
    %s28 = sphi 0, %s27
    %s44 = sphi 0, %s28
    %s48 = sphi 0, %s48
    %s50 = sphi 0, %s48
    %s51 = sphi 0, %s50
    %s65 = sphi 0, %s51
    %s69 = sphi 0, %s69
    %s71 = sphi 0, %s69
    %s72 = sphi 0, %s71
    %s86 = sphi 0, %s72
    %s90 = sphi 0, %s90
    %s92 = sphi 0, %s90
    %s93 = sphi 0, %s92
    %s107 = sphi 0, %s93
    %s111 = sphi 0, %s111
    %s113 = sphi 0, %s111
    %s114 = sphi 0, %s113
    %s128 = sphi 0, %s114
    %s132 = sphi 0, %s132
    %s134 = sphi 0, %s132
    %s135 = sphi 0, %s134
    %s149 = sphi 0, %s135
    %s155 = sphi 0, %s157
    %s158 = sphi 0, %s155
    %s159 = sphi 0, %s158
    %s175 = sphi 0, %s159
    %s181 = sphi 0, %s183
    %s184 = sphi 0, %s181
    %s185 = sphi 0, %s184
    %s201 = sphi 0, %s185
  $region4: #{residual_block.4} parent=0 // loop_header_branch
    %17 = sbr.rel (%p15) target = $region8
  $region5: #{residual_block.4} parent=0 // loop_body
    %s19 = ssub.s32 %s14, 1
    %s20 = ssub.s32 %s14, 2
    %s21 = sadd.s32 %s14, 1
    %s22 = ssub.s32 %s14, %s21
    %p23 = scmp.eq.s32.totalorder %s22, 0
    %s25 = sadd.s32 %s24, 1
    %s26 = scalar_select %p23, %s24, %s25
    %p29 = pneg %p23
    %p30 = scmp.eq.s32.totalorder %s14, 1
    %p31 = por %p29, %p30
    %p32 = scmp.ne.s32.totalorder %s24, %s27
    %p33 = scmp.eq.s32.totalorder %s14, 0
    %p34 = por %p32, %p33
    %p35 = scmp.ne.s32.totalorder %s24, %s27
    %p36 = scmp.eq.s32.totalorder %s19, 1
    %p37 = por %p35, %p36
    %p38 = scmp.ne.s32.totalorder %s27, %s28
    %p39 = scmp.eq.s32.totalorder %s19, 0
    %p40 = por %p38, %p39
    %p41 = scmp.ne.s32.totalorder %s27, %s28
    %p42 = scmp.eq.s32.totalorder %s20, 1
    %p43 = por %p41, %p42
    %p45 = scmp.ne.s32.totalorder %s28, %s44
    %p46 = scmp.eq.s32.totalorder %s20, 0
    %p47 = por %p45, %p46
    %s49 = sadd.s32 %s48, 1
    %p52 = scmp.eq.s32.totalorder %s14, 1
    %p53 = scmp.ne.s32.totalorder %s48, %s50
    %p54 = scmp.eq.s32.totalorder %s14, 0
    %p55 = por %p53, %p54
    %p56 = scmp.ne.s32.totalorder %s48, %s50
    %p57 = scmp.eq.s32.totalorder %s19, 1
    %p58 = por %p56, %p57
    %p59 = scmp.ne.s32.totalorder %s50, %s51
    %p60 = scmp.eq.s32.totalorder %s19, 0
    %p61 = por %p59, %p60
    %p62 = scmp.ne.s32.totalorder %s50, %s51
    %p63 = scmp.eq.s32.totalorder %s20, 1
    %p64 = por %p62, %p63
    %p66 = scmp.ne.s32.totalorder %s51, %s65
    %p67 = scmp.eq.s32.totalorder %s20, 0
    %p68 = por %p66, %p67
    %s70 = sadd.s32 %s69, 1
    %p73 = scmp.eq.s32.totalorder %s14, 1
    %p74 = scmp.ne.s32.totalorder %s69, %s71
    %p75 = scmp.eq.s32.totalorder %s14, 0
    %p76 = por %p74, %p75
    %p77 = scmp.ne.s32.totalorder %s69, %s71
    %p78 = scmp.eq.s32.totalorder %s19, 1
    %p79 = por %p77, %p78
    %p80 = scmp.ne.s32.totalorder %s71, %s72
    %p81 = scmp.eq.s32.totalorder %s19, 0
    %p82 = por %p80, %p81
    %p83 = scmp.ne.s32.totalorder %s71, %s72
    %p84 = scmp.eq.s32.totalorder %s20, 1
    %p85 = por %p83, %p84
    %p87 = scmp.ne.s32.totalorder %s72, %s86
    %p88 = scmp.eq.s32.totalorder %s20, 0
    %p89 = por %p87, %p88
    %s91 = sadd.s32 %s90, 1
    %p94 = scmp.eq.s32.totalorder %s14, 1
    %p95 = scmp.ne.s32.totalorder %s90, %s92
    %p96 = scmp.eq.s32.totalorder %s14, 0
    %p97 = por %p95, %p96
    %p98 = scmp.ne.s32.totalorder %s90, %s92
    %p99 = scmp.eq.s32.totalorder %s19, 1
    %p100 = por %p98, %p99
    %p101 = scmp.ne.s32.totalorder %s92, %s93
    %p102 = scmp.eq.s32.totalorder %s19, 0
    %p103 = por %p101, %p102
    %p104 = scmp.ne.s32.totalorder %s92, %s93
    %p105 = scmp.eq.s32.totalorder %s20, 1
    %p106 = por %p104, %p105
    %p108 = scmp.ne.s32.totalorder %s93, %s107
    %p109 = scmp.eq.s32.totalorder %s20, 0
    %p110 = por %p108, %p109
    %s112 = sadd.s32 %s111, 1
    %p115 = scmp.eq.s32.totalorder %s14, 1
    %p116 = scmp.ne.s32.totalorder %s111, %s113
    %p117 = scmp.eq.s32.totalorder %s14, 0
    %p118 = por %p116, %p117
    %p119 = scmp.ne.s32.totalorder %s111, %s113
    %p120 = scmp.eq.s32.totalorder %s19, 1
    %p121 = por %p119, %p120
    %p122 = scmp.ne.s32.totalorder %s113, %s114
    %p123 = scmp.eq.s32.totalorder %s19, 0
    %p124 = por %p122, %p123
    %p125 = scmp.ne.s32.totalorder %s113, %s114
    %p126 = scmp.eq.s32.totalorder %s20, 1
    %p127 = por %p125, %p126
    %p129 = scmp.ne.s32.totalorder %s114, %s128
    %p130 = scmp.eq.s32.totalorder %s20, 0
    %p131 = por %p129, %p130
    %s133 = sadd.s32 %s132, 1
    %p136 = scmp.eq.s32.totalorder %s14, 1
    %p137 = scmp.ne.s32.totalorder %s132, %s134
    %p138 = scmp.eq.s32.totalorder %s14, 0
    %p139 = por %p137, %p138
    %p140 = scmp.ne.s32.totalorder %s132, %s134
    %p141 = scmp.eq.s32.totalorder %s19, 1
    %p142 = por %p140, %p141
    %p143 = scmp.ne.s32.totalorder %s134, %s135
    %p144 = scmp.eq.s32.totalorder %s19, 0
    %p145 = por %p143, %p144
    %p146 = scmp.ne.s32.totalorder %s134, %s135
    %p147 = scmp.eq.s32.totalorder %s20, 1
    %p148 = por %p146, %p147
    %p150 = scmp.ne.s32.totalorder %s135, %s149
    %p151 = scmp.eq.s32.totalorder %s20, 0
    %p152 = por %p150, %p151
    %s153 = ssub.s32 %s14, %s21
    %p154 = scmp.eq.s32.totalorder %s153, 0
    %s156 = sadd.s32 %s155, 1
    %s157 = scalar_select %p154, %s155, %s156
    %p160 = pneg %p154
    %p161 = scmp.eq.s32.totalorder %s14, 1
    %p162 = por %p160, %p161
    %p163 = scmp.ne.s32.totalorder %s155, %s158
    %p164 = scmp.eq.s32.totalorder %s14, 0
    %p165 = por %p163, %p164
    %p166 = scmp.ne.s32.totalorder %s155, %s158
    %p167 = scmp.eq.s32.totalorder %s19, 1
    %p168 = por %p166, %p167
    %p169 = scmp.ne.s32.totalorder %s158, %s159
    %p170 = scmp.eq.s32.totalorder %s19, 0
    %p171 = por %p169, %p170
    %p172 = scmp.ne.s32.totalorder %s158, %s159
    %p173 = scmp.eq.s32.totalorder %s20, 1
    %p174 = por %p172, %p173
    %p176 = scmp.ne.s32.totalorder %s159, %s175
    %p177 = scmp.eq.s32.totalorder %s20, 0
    %p178 = por %p176, %p177
    %s179 = ssub.s32 %s14, %s21
    %p180 = scmp.eq.s32.totalorder %s179, 0
    %s182 = sadd.s32 %s181, 1
    %s183 = scalar_select %p180, %s181, %s182
    %p186 = pneg %p180
    %p187 = scmp.eq.s32.totalorder %s14, 1
    %p188 = por %p186, %p187
    %p189 = scmp.ne.s32.totalorder %s181, %s184
    %p190 = scmp.eq.s32.totalorder %s14, 0
    %p191 = por %p189, %p190
    %p192 = scmp.ne.s32.totalorder %s181, %s184
    %p193 = scmp.eq.s32.totalorder %s19, 1
    %p194 = por %p192, %p193
    %p195 = scmp.ne.s32.totalorder %s184, %s185
    %p196 = scmp.eq.s32.totalorder %s19, 0
    %p197 = por %p195, %p196
    %p198 = scmp.ne.s32.totalorder %s184, %s185
    %p199 = scmp.eq.s32.totalorder %s20, 1
    %p200 = por %p198, %p199
    %p202 = scmp.ne.s32.totalorder %s185, %s201
    %p203 = scmp.eq.s32.totalorder %s20, 0
    %p204 = por %p202, %p203
    %p205 = scmp.le.s32.totalorder 1, %s14
    %p206 = scmp.lt.s32.totalorder %s14, 3
    %p207 = pnand %p205, %p206
    %p208 = pneg %p207
    // Predicated region
    $region9: #{residual_block.4} parent=5 // pred_check
      _
    $region10: #{residual_block.4} parent=5 // pred_check_branch
      %210 = sbr.rel (%p207) target = $region12
    $region11: #{residual_block.4} parent=5 // pred_region
      %s211 = ssub.s32 %s14, 1
      // Predicated region
      $region13: #{residual_block.4} parent=11 // pred_check
        %p212 = pneg %p61
      $region14: #{residual_block.4} parent=11 // pred_check_branch
        %214 = sbr.rel (%p212) target = $region16
      $region15: #{residual_block.4} parent=11 // pred_region
        _
      $region16: #{residual_block.4} parent=11 // pred_fallthru
        _
      // Predicated region
      $region17: #{residual_block.4} parent=11 // pred_check
        %p215 = pneg %p82
      $region18: #{residual_block.4} parent=11 // pred_check_branch
        %217 = sbr.rel (%p215) target = $region20
      $region19: #{residual_block.4} parent=11 // pred_region
        _
      $region20: #{residual_block.4} parent=11 // pred_fallthru
        _
      // Predicated region
      $region21: #{residual_block.4} parent=11 // pred_check
        %p218 = pneg %p103
      $region22: #{residual_block.4} parent=11 // pred_check_branch
        %220 = sbr.rel (%p218) target = $region24
      $region23: #{residual_block.4} parent=11 // pred_region
        _
      $region24: #{residual_block.4} parent=11 // pred_fallthru
        _
      // Predicated region
      $region25: #{residual_block.4} parent=11 // pred_check
        %p221 = pneg %p124
      $region26: #{residual_block.4} parent=11 // pred_check_branch
        %223 = sbr.rel (%p221) target = $region28
      $region27: #{residual_block.4} parent=11 // pred_region
        _
      $region28: #{residual_block.4} parent=11 // pred_fallthru
        _
      // Predicated region
      $region29: #{residual_block.4} parent=11 // pred_check
        %p224 = pneg %p145
      $region30: #{residual_block.4} parent=11 // pred_check_branch
        %226 = sbr.rel (%p224) target = $region32
      $region31: #{residual_block.4} parent=11 // pred_region
        _
      $region32: #{residual_block.4} parent=11 // pred_fallthru
        _
    $region12: #{residual_block.4} parent=5 // pred_fallthru
      _
    %p227 = scmp.lt.s32.totalorder %s14, 2
    // Predicated region
    $region33: #{residual_block.4} parent=5 // pred_check
      %p228 = pneg %p227
    $region34: #{residual_block.4} parent=5 // pred_check_branch
      %230 = sbr.rel (%p228) target = $region36
    $region35: #{residual_block.4} parent=5 // pred_region
      // Predicated region
      $region37: #{residual_block.4} parent=35 // pred_check
        %p231 = pneg %p34
      $region38: #{residual_block.4} parent=35 // pred_check_branch
        %233 = sbr.rel (%p231) target = $region40
      $region39: #{residual_block.4} parent=35 // pred_region
        %p234 = scmp.lt.s32.totalorder %s14, 1
        %s235 = scalar_select %p234, %s14, 1
        %s236 = smul.addr %s235, 32
        %s237 = smul.addr %s236, 8
        %s238 = scalar_lea.vmem %s0, %s237
      $region40: #{residual_block.4} parent=35 // pred_fallthru
        _
    $region36: #{residual_block.4} parent=5 // pred_fallthru
      _
    %p239 = scmp.le.s32.totalorder 1, %s14
    %p240 = scmp.lt.s32.totalorder %s14, 3
    %p241 = pnand %p239, %p240
    %p242 = pneg %p241
    // Predicated region
    $region41: #{residual_block.4} parent=5 // pred_check
      _
    $region42: #{residual_block.4} parent=5 // pred_check_branch
      %244 = sbr.rel (%p241) target = $region44
    $region43: #{residual_block.4} parent=5 // pred_region
      %s245 = ssub.s32 %s14, 1
      %p246 = scmp.lt.s32.totalorder %s19, 1
      %s247 = scalar_select %p246, %s19, 1
      %s248 = smul.addr %s247, 32
      %s249 = smul.addr %s248, 8
      %s250 = scalar_lea.vmem %s0, %s249
      %p251 = pneg %p40
      %p252 = pneg %p37
      %p253 = pneg %p61
      %p254 = pneg %p58
      %p255 = pneg %p82
      %p256 = pneg %p79
      %p257 = pneg %p103
      %p258 = pneg %p100
      %p259 = pneg %p124
      %p260 = pneg %p121
      %p261 = pneg %p145
      %p262 = pneg %p142
      %p263 = pneg %p171
      %p264 = pneg %p168
      %p265 = scmp.lt.s32.totalorder %s19, 1
      %s266 = scalar_select %p265, %s19, 1
      %s267 = smul.addr %s266, 32
      %s268 = smul.addr %s267, 8
      %s269 = scalar_lea.vmem %s6, %s268
      %p270 = pneg %p197
      %p271 = pneg %p194
      %p272 = scmp.lt.s32.totalorder %s19, 1
      %s273 = scalar_select %p272, %s19, 1
      %s274 = smul.addr %s273, 2
      %s275 = scalar_lea.vmem %s7, %s274
      %p276 = scmp.lt.s32.totalorder %s19, 1
      %s277 = scalar_select %p276, %s19, 1
      %s278 = smul.addr %s277, 32
      %s279 = smul.addr %s278, 8
      %s280 = scalar_lea.vmem %s0, %s279
      %p281 = scmp.lt.s32.totalorder %s19, 1
      %s282 = scalar_select %p281, %s19, 1
      %s283 = smul.addr %s282, 32
      %s284 = smul.addr %s283, 8
      %s285 = scalar_lea.vmem %s6, %s284
      %p286 = scmp.lt.s32.totalorder %s19, 1
      %s287 = scalar_select %p286, %s19, 1
      %s288 = smul.addr %s287, 2
      %s289 = scalar_lea.vmem %s7, %s288
      %v291 = vld [vmem:[%s280] sm:$0xff]
      %v292 = vld [vmem:[%s280 + $0x8] sm:$0xff]
      %v293 = vld [vmem:[%s280 + $0x10] sm:$0xff]
      %v294 = vld [vmem:[%s280 + $0x18] sm:$0xff]
      %v295 = vld [vmem:[%s280 + $0x20] sm:$0xff]
      %v296 = vld [vmem:[%s280 + $0x28] sm:$0xff]
      %v297 = vld [vmem:[%s280 + $0x30] sm:$0xff]
      %v298 = vld [vmem:[%s280 + $0x38] sm:$0xff]
      %v299 = vld [vmem:[%s280 + $0x40] sm:$0xff]
      %v300 = vld [vmem:[%s280 + $0x48] sm:$0xff]
      %v301 = vld [vmem:[%s280 + $0x50] sm:$0xff]
      %v302 = vld [vmem:[%s280 + $0x58] sm:$0xff]
      %v303 = vld [vmem:[%s280 + $0x60] sm:$0xff]
      %v304 = vld [vmem:[%s280 + $0x68] sm:$0xff]
      %v305 = vld [vmem:[%s280 + $0x70] sm:$0xff]
      %v306 = vld [vmem:[%s280 + $0x78] sm:$0xff]
      %v307 = vld [vmem:[%s280 + $0x80] sm:$0xff]
      %v308 = vld [vmem:[%s280 + $0x88] sm:$0xff]
      %v309 = vld [vmem:[%s280 + $0x90] sm:$0xff]
      %v310 = vld [vmem:[%s280 + $0x98] sm:$0xff]
      %v311 = vld [vmem:[%s280 + $0xa0] sm:$0xff]
      %v312 = vld [vmem:[%s280 + $0xa8] sm:$0xff]
      %v313 = vld [vmem:[%s280 + $0xb0] sm:$0xff]
      %v314 = vld [vmem:[%s280 + $0xb8] sm:$0xff]
      %v315 = vld [vmem:[%s280 + $0xc0] sm:$0xff]
      %v316 = vld [vmem:[%s280 + $0xc8] sm:$0xff]
      %v317 = vld [vmem:[%s280 + $0xd0] sm:$0xff]
      %v318 = vld [vmem:[%s280 + $0xd8] sm:$0xff]
      %v319 = vld [vmem:[%s280 + $0xe0] sm:$0xff]
      %v320 = vld [vmem:[%s280 + $0xe8] sm:$0xff]
      %v321 = vld [vmem:[%s280 + $0xf0] sm:$0xff]
      %v322 = vld [vmem:[%s280 + $0xf8] sm:$0xff]
      %v323 = vld [vmem:[%s1] sm:$0x1]
      %v325 = vlaneseq
      %v326 = vshrl.u32 %v325, 7
      %v327 = vsub.s32 0, %v326
      %v328 = vrot.slane %v323, %v327
      %v330 = vmul.f32 %v291, %v328
      %v331 = vmul.f32 %v292, %v328
      %v332 = vmul.f32 %v293, %v328
      %v333 = vmul.f32 %v294, %v328
      %v334 = vmul.f32 %v295, %v328
      %v335 = vmul.f32 %v296, %v328
      %v336 = vmul.f32 %v297, %v328
      %v337 = vmul.f32 %v298, %v328
      %v338 = vmul.f32 %v299, %v328
      %v339 = vmul.f32 %v300, %v328
      %v340 = vmul.f32 %v301, %v328
      %v341 = vmul.f32 %v302, %v328
      %v342 = vmul.f32 %v303, %v328
      %v343 = vmul.f32 %v304, %v328
      %v344 = vmul.f32 %v305, %v328
      %v345 = vmul.f32 %v306, %v328
      %v346 = vmul.f32 %v307, %v328
      %v347 = vmul.f32 %v308, %v328
      %v348 = vmul.f32 %v309, %v328
      %v349 = vmul.f32 %v310, %v328
      %v350 = vmul.f32 %v311, %v328
      %v351 = vmul.f32 %v312, %v328
      %v352 = vmul.f32 %v313, %v328
      %v353 = vmul.f32 %v314, %v328
      %v354 = vmul.f32 %v315, %v328
      %v355 = vmul.f32 %v316, %v328
      %v356 = vmul.f32 %v317, %v328
      %v357 = vmul.f32 %v318, %v328
      %v358 = vmul.f32 %v319, %v328
      %v359 = vmul.f32 %v320, %v328
      %v360 = vmul.f32 %v321, %v328
      %v361 = vmul.f32 %v322, %v328
      %v362 = vld [vmem:[%s2] sm:$0x1]
      %v364 = vlaneseq
      %v365 = vshrl.u32 %v364, 7
      %v366 = vsub.s32 0, %v365
      %v367 = vrot.slane %v362, %v366
      %v369 = vadd.f32 %v330, %v367
      %v370 = vadd.f32 %v331, %v367
      %v371 = vadd.f32 %v332, %v367
      %v372 = vadd.f32 %v333, %v367
      %v373 = vadd.f32 %v334, %v367
      %v374 = vadd.f32 %v335, %v367
      %v375 = vadd.f32 %v336, %v367
      %v376 = vadd.f32 %v337, %v367
      %v377 = vadd.f32 %v338, %v367
      %v378 = vadd.f32 %v339, %v367
      %v379 = vadd.f32 %v340, %v367
      %v380 = vadd.f32 %v341, %v367
      %v381 = vadd.f32 %v342, %v367
      %v382 = vadd.f32 %v343, %v367
      %v383 = vadd.f32 %v344, %v367
      %v384 = vadd.f32 %v345, %v367
      %v385 = vadd.f32 %v346, %v367
      %v386 = vadd.f32 %v347, %v367
      %v387 = vadd.f32 %v348, %v367
      %v388 = vadd.f32 %v349, %v367
      %v389 = vadd.f32 %v350, %v367
      %v390 = vadd.f32 %v351, %v367
      %v391 = vadd.f32 %v352, %v367
      %v392 = vadd.f32 %v353, %v367
      %v393 = vadd.f32 %v354, %v367
      %v394 = vadd.f32 %v355, %v367
      %v395 = vadd.f32 %v356, %v367
      %v396 = vadd.f32 %v357, %v367
      %v397 = vadd.f32 %v358, %v367
      %v398 = vadd.f32 %v359, %v367
      %v399 = vadd.f32 %v360, %v367
      %v400 = vadd.f32 %v361, %v367
      %vm401 = vcmp.gt.f32.partialorder %v369, 0.0
      %vm402 = vcmp.gt.f32.partialorder %v370, 0.0
      %vm403 = vcmp.gt.f32.partialorder %v371, 0.0
      %vm404 = vcmp.gt.f32.partialorder %v372, 0.0
      %vm405 = vcmp.gt.f32.partialorder %v373, 0.0
      %vm406 = vcmp.gt.f32.partialorder %v374, 0.0
      %vm407 = vcmp.gt.f32.partialorder %v375, 0.0
      %vm408 = vcmp.gt.f32.partialorder %v376, 0.0
      %vm409 = vcmp.gt.f32.partialorder %v377, 0.0
      %vm410 = vcmp.gt.f32.partialorder %v378, 0.0
      %vm411 = vcmp.gt.f32.partialorder %v379, 0.0
      %vm412 = vcmp.gt.f32.partialorder %v380, 0.0
      %vm413 = vcmp.gt.f32.partialorder %v381, 0.0
      %vm414 = vcmp.gt.f32.partialorder %v382, 0.0
      %vm415 = vcmp.gt.f32.partialorder %v383, 0.0
      %vm416 = vcmp.gt.f32.partialorder %v384, 0.0
      %vm417 = vcmp.gt.f32.partialorder %v385, 0.0
      %vm418 = vcmp.gt.f32.partialorder %v386, 0.0
      %vm419 = vcmp.gt.f32.partialorder %v387, 0.0
      %vm420 = vcmp.gt.f32.partialorder %v388, 0.0
      %vm421 = vcmp.gt.f32.partialorder %v389, 0.0
      %vm422 = vcmp.gt.f32.partialorder %v390, 0.0
      %vm423 = vcmp.gt.f32.partialorder %v391, 0.0
      %vm424 = vcmp.gt.f32.partialorder %v392, 0.0
      %vm425 = vcmp.gt.f32.partialorder %v393, 0.0
      %vm426 = vcmp.gt.f32.partialorder %v394, 0.0
      %vm427 = vcmp.gt.f32.partialorder %v395, 0.0
      %vm428 = vcmp.gt.f32.partialorder %v396, 0.0
      %vm429 = vcmp.gt.f32.partialorder %v397, 0.0
      %vm430 = vcmp.gt.f32.partialorder %v398, 0.0
      %vm431 = vcmp.gt.f32.partialorder %v399, 0.0
      %vm432 = vcmp.gt.f32.partialorder %v400, 0.0
      %v433 = vld [vmem:[%s3] sm:$0x1]
      %v435 = vlaneseq
      %v436 = vshrl.u32 %v435, 7
      %v437 = vsub.s32 0, %v436
      %v438 = vrot.slane %v433, %v437
      %v440 = vmul.f32 %v369, %v438
      %v441 = vmul.f32 %v370, %v438
      %v442 = vmul.f32 %v371, %v438
      %v443 = vmul.f32 %v372, %v438
      %v444 = vmul.f32 %v373, %v438
      %v445 = vmul.f32 %v374, %v438
      %v446 = vmul.f32 %v375, %v438
      %v447 = vmul.f32 %v376, %v438
      %v448 = vmul.f32 %v377, %v438
      %v449 = vmul.f32 %v378, %v438
      %v450 = vmul.f32 %v379, %v438
      %v451 = vmul.f32 %v380, %v438
      %v452 = vmul.f32 %v381, %v438
      %v453 = vmul.f32 %v382, %v438
      %v454 = vmul.f32 %v383, %v438
      %v455 = vmul.f32 %v384, %v438
      %v456 = vmul.f32 %v385, %v438
      %v457 = vmul.f32 %v386, %v438
      %v458 = vmul.f32 %v387, %v438
      %v459 = vmul.f32 %v388, %v438
      %v460 = vmul.f32 %v389, %v438
      %v461 = vmul.f32 %v390, %v438
      %v462 = vmul.f32 %v391, %v438
      %v463 = vmul.f32 %v392, %v438
      %v464 = vmul.f32 %v393, %v438
      %v465 = vmul.f32 %v394, %v438
      %v466 = vmul.f32 %v395, %v438
      %v467 = vmul.f32 %v396, %v438
      %v468 = vmul.f32 %v397, %v438
      %v469 = vmul.f32 %v398, %v438
      %v470 = vmul.f32 %v399, %v438
      %v471 = vmul.f32 %v400, %v438
      %v472 = vsel %vm401, %v369, %v440
      %v473 = vsel %vm402, %v370, %v441
      %v474 = vsel %vm403, %v371, %v442
      %v475 = vsel %vm404, %v372, %v443
      %v476 = vsel %vm405, %v373, %v444
      %v477 = vsel %vm406, %v374, %v445
      %v478 = vsel %vm407, %v375, %v446
      %v479 = vsel %vm408, %v376, %v447
      %v480 = vsel %vm409, %v377, %v448
      %v481 = vsel %vm410, %v378, %v449
      %v482 = vsel %vm411, %v379, %v450
      %v483 = vsel %vm412, %v380, %v451
      %v484 = vsel %vm413, %v381, %v452
      %v485 = vsel %vm414, %v382, %v453
      %v486 = vsel %vm415, %v383, %v454
      %v487 = vsel %vm416, %v384, %v455
      %v488 = vsel %vm417, %v385, %v456
      %v489 = vsel %vm418, %v386, %v457
      %v490 = vsel %vm419, %v387, %v458
      %v491 = vsel %vm420, %v388, %v459
      %v492 = vsel %vm421, %v389, %v460
      %v493 = vsel %vm422, %v390, %v461
      %v494 = vsel %vm423, %v391, %v462
      %v495 = vsel %vm424, %v392, %v463
      %v496 = vsel %vm425, %v393, %v464
      %v497 = vsel %vm426, %v394, %v465
      %v498 = vsel %vm427, %v395, %v466
      %v499 = vsel %vm428, %v396, %v467
      %v500 = vsel %vm429, %v397, %v468
      %v501 = vsel %vm430, %v398, %v469
      %v502 = vsel %vm431, %v399, %v470
      %v503 = vsel %vm432, %v400, %v471
      %vm537 = vcmask 1040384
      %v538 = vrot.slane 0.0, 7
      %v539 = vsel %vm537, %v538, %v538
      %v540 = vrot.slane %v472, 7
      %v541 = vrot.slane %v473, 7
      %v542 = vsel %vm537, %v540, %v541
      %v543 = vrot.slane %v474, 7
      %v544 = vrot.slane %v475, 7
      %v545 = vsel %vm537, %v543, %v544
      %v546 = vrot.slane %v476, 7
      %v547 = vrot.slane %v477, 7
      %v548 = vsel %vm537, %v546, %v547
      %v549 = vrot.slane %v478, 7
      %v550 = vrot.slane %v479, 7
      %v551 = vsel %vm537, %v549, %v550
      %v552 = vrot.slane %v480, 7
      %v553 = vrot.slane %v481, 7
      %v554 = vsel %vm537, %v552, %v553
      %v555 = vrot.slane %v482, 7
      %v556 = vrot.slane %v483, 7
      %v557 = vsel %vm537, %v555, %v556
      %v558 = vrot.slane %v484, 7
      %v559 = vrot.slane %v485, 7
      %v560 = vsel %vm537, %v558, %v559
      %v561 = vrot.slane %v486, 7
      %v562 = vrot.slane %v487, 7
      %v563 = vsel %vm537, %v561, %v562
      %v564 = vrot.slane %v488, 7
      %v565 = vrot.slane %v489, 7
      %v566 = vsel %vm537, %v564, %v565
      %v567 = vrot.slane %v490, 7
      %v568 = vrot.slane %v491, 7
      %v569 = vsel %vm537, %v567, %v568
      %v570 = vrot.slane %v492, 7
      %v571 = vrot.slane %v493, 7
      %v572 = vsel %vm537, %v570, %v571
      %v573 = vrot.slane %v494, 7
      %v574 = vrot.slane %v495, 7
      %v575 = vsel %vm537, %v573, %v574
      %v576 = vrot.slane %v496, 7
      %v577 = vrot.slane %v497, 7
      %v578 = vsel %vm537, %v576, %v577
      %v579 = vrot.slane %v498, 7
      %v580 = vrot.slane %v499, 7
      %v581 = vsel %vm537, %v579, %v580
      %v582 = vrot.slane %v500, 7
      %v583 = vrot.slane %v501, 7
      %v584 = vsel %vm537, %v582, %v583
      %v585 = vrot.slane %v502, 7
      %v586 = vrot.slane %v503, 7
      %v587 = vsel %vm537, %v585, %v586
      %v638 = vsel %vm537, 0.0, %v538
      %v639 = vsel %vm537, 0.0, %v540
      %v640 = vsel %vm537, 0.0, %v543
      %v641 = vsel %vm537, 0.0, %v546
      %v642 = vsel %vm537, 0.0, %v549
      %v643 = vsel %vm537, 0.0, %v552
      %v644 = vsel %vm537, 0.0, %v555
      %v645 = vsel %vm537, 0.0, %v558
      %v646 = vsel %vm537, 0.0, %v561
      %v647 = vsel %vm537, 0.0, %v564
      %v648 = vsel %vm537, 0.0, %v567
      %v649 = vsel %vm537, 0.0, %v570
      %v650 = vsel %vm537, 0.0, %v573
      %v651 = vsel %vm537, 0.0, %v576
      %v652 = vsel %vm537, 0.0, %v579
      %v653 = vsel %vm537, 0.0, %v582
      %v654 = vsel %vm537, 0.0, %v585
      %v655 = vsel %vm537, %v538, 0.0
      %v656 = vsel %vm537, %v541, 0.0
      %v657 = vsel %vm537, %v544, 0.0
      %v658 = vsel %vm537, %v547, 0.0
      %v659 = vsel %vm537, %v550, 0.0
      %v660 = vsel %vm537, %v553, 0.0
      %v661 = vsel %vm537, %v556, 0.0
      %v662 = vsel %vm537, %v559, 0.0
      %v663 = vsel %vm537, %v562, 0.0
      %v664 = vsel %vm537, %v565, 0.0
      %v665 = vsel %vm537, %v568, 0.0
      %v666 = vsel %vm537, %v571, 0.0
      %v667 = vsel %vm537, %v574, 0.0
      %v668 = vsel %vm537, %v577, 0.0
      %v669 = vsel %vm537, %v580, 0.0
      %v670 = vsel %vm537, %v583, 0.0
      %v671 = vsel %vm537, %v586, 0.0
      %672 = vst [vmem:[#allocation2] sm:$0xff] %v638
      %673 = vst [vmem:[#allocation2 + $0x8] sm:$0xff] %v539
      %674 = vst [vmem:[#allocation2 + $0x10] sm:$0x3] %v655
      %675 = vst [vmem:[#allocation2 + $0x18] sm:$0xff] %v639
      %676 = vst [vmem:[#allocation2 + $0x20] sm:$0xff] %v542
      %677 = vst [vmem:[#allocation2 + $0x28] sm:$0x3] %v656
      %678 = vst [vmem:[#allocation2 + $0x30] sm:$0xff] %v640
      %679 = vst [vmem:[#allocation2 + $0x38] sm:$0xff] %v545
      %680 = vst [vmem:[#allocation2 + $0x40] sm:$0x3] %v657
      %681 = vst [vmem:[#allocation2 + $0x48] sm:$0xff] %v641
      %682 = vst [vmem:[#allocation2 + $0x50] sm:$0xff] %v548
      %683 = vst [vmem:[#allocation2 + $0x58] sm:$0x3] %v658
      %684 = vst [vmem:[#allocation2 + $0x60] sm:$0xff] %v642
      %685 = vst [vmem:[#allocation2 + $0x68] sm:$0xff] %v551
      %686 = vst [vmem:[#allocation2 + $0x70] sm:$0x3] %v659
      %687 = vst [vmem:[#allocation2 + $0x78] sm:$0xff] %v643
      %688 = vst [vmem:[#allocation2 + $0x80] sm:$0xff] %v554
      %689 = vst [vmem:[#allocation2 + $0x88] sm:$0x3] %v660
      %690 = vst [vmem:[#allocation2 + $0x90] sm:$0xff] %v644
      %691 = vst [vmem:[#allocation2 + $0x98] sm:$0xff] %v557
      %692 = vst [vmem:[#allocation2 + $0xa0] sm:$0x3] %v661
      %693 = vst [vmem:[#allocation2 + $0xa8] sm:$0xff] %v645
      %694 = vst [vmem:[#allocation2 + $0xb0] sm:$0xff] %v560
      %695 = vst [vmem:[#allocation2 + $0xb8] sm:$0x3] %v662
      %696 = vst [vmem:[#allocation2 + $0xc0] sm:$0xff] %v646
      %697 = vst [vmem:[#allocation2 + $0xc8] sm:$0xff] %v563
      %698 = vst [vmem:[#allocation2 + $0xd0] sm:$0x3] %v663
      %699 = vst [vmem:[#allocation2 + $0xd8] sm:$0xff] %v647
      %700 = vst [vmem:[#allocation2 + $0xe0] sm:$0xff] %v566
      %701 = vst [vmem:[#allocation2 + $0xe8] sm:$0x3] %v664
      %702 = vst [vmem:[#allocation2 + $0xf0] sm:$0xff] %v648
      %703 = vst [vmem:[#allocation2 + $0xf8] sm:$0xff] %v569
      %704 = vst [vmem:[#allocation2 + $0x100] sm:$0x3] %v665
      %705 = vst [vmem:[#allocation2 + $0x108] sm:$0xff] %v649
      %706 = vst [vmem:[#allocation2 + $0x110] sm:$0xff] %v572
      %707 = vst [vmem:[#allocation2 + $0x118] sm:$0x3] %v666
      %708 = vst [vmem:[#allocation2 + $0x120] sm:$0xff] %v650
      %709 = vst [vmem:[#allocation2 + $0x128] sm:$0xff] %v575
      %710 = vst [vmem:[#allocation2 + $0x130] sm:$0x3] %v667
      %711 = vst [vmem:[#allocation2 + $0x138] sm:$0xff] %v651
      %712 = vst [vmem:[#allocation2 + $0x140] sm:$0xff] %v578
      %713 = vst [vmem:[#allocation2 + $0x148] sm:$0x3] %v668
      %714 = vst [vmem:[#allocation2 + $0x150] sm:$0xff] %v652
      %715 = vst [vmem:[#allocation2 + $0x158] sm:$0xff] %v581
      %716 = vst [vmem:[#allocation2 + $0x160] sm:$0x3] %v669
      %717 = vst [vmem:[#allocation2 + $0x168] sm:$0xff] %v653
      %718 = vst [vmem:[#allocation2 + $0x170] sm:$0xff] %v584
      %719 = vst [vmem:[#allocation2 + $0x178] sm:$0x3] %v670
      %720 = vst [vmem:[#allocation2 + $0x180] sm:$0xff] %v654
      %721 = vst [vmem:[#allocation2 + $0x188] sm:$0xff] %v587
      %722 = vst [vmem:[#allocation2 + $0x190] sm:$0x3] %v671
      %723 = vst [vmem:[#allocation2 + $0x198] sm:$0xff] %v638
      %724 = vst [vmem:[#allocation2 + $0x1a0] sm:$0xff] %v539
      %725 = vst [vmem:[#allocation2 + $0x1a8] sm:$0x3] %v655
      %726 = vst [vmem:[#allocation3] sm:$0xff] 0.0
      %727 = vst [vmem:[#allocation3 + $0x8] sm:$0xff] 0.0
      %728 = vst [vmem:[#allocation3 + $0x10] sm:$0xff] 0.0
      %729 = vst [vmem:[#allocation3 + $0x18] sm:$0xff] 0.0
      %730 = vst [vmem:[#allocation3 + $0x20] sm:$0xff] 0.0
      %731 = vst [vmem:[#allocation3 + $0x28] sm:$0xff] 0.0
      %732 = vst [vmem:[#allocation3 + $0x30] sm:$0xff] 0.0
      %733 = vst [vmem:[#allocation3 + $0x38] sm:$0xff] 0.0
      %734 = vst [vmem:[#allocation3 + $0x40] sm:$0xff] 0.0
      %735 = vst [vmem:[#allocation3 + $0x48] sm:$0xff] 0.0
      %736 = vst [vmem:[#allocation3 + $0x50] sm:$0xff] 0.0
      %737 = vst [vmem:[#allocation3 + $0x58] sm:$0xff] 0.0
      %738 = vst [vmem:[#allocation3 + $0x60] sm:$0xff] 0.0
      %739 = vst [vmem:[#allocation3 + $0x68] sm:$0xff] 0.0
      %740 = vst [vmem:[#allocation3 + $0x70] sm:$0xff] 0.0
      %741 = vst [vmem:[#allocation3 + $0x78] sm:$0xff] 0.0
      %742 = vst [vmem:[#allocation3 + $0x80] sm:$0xff] 0.0
      %743 = vst [vmem:[#allocation3 + $0x88] sm:$0xff] 0.0
      %744 = vst [vmem:[#allocation3 + $0x90] sm:$0xff] 0.0
      %745 = vst [vmem:[#allocation3 + $0x98] sm:$0xff] 0.0
      %746 = vst [vmem:[#allocation3 + $0xa0] sm:$0xff] 0.0
      %747 = vst [vmem:[#allocation3 + $0xa8] sm:$0xff] 0.0
      %748 = vst [vmem:[#allocation3 + $0xb0] sm:$0xff] 0.0
      %749 = vst [vmem:[#allocation3 + $0xb8] sm:$0xff] 0.0
      %750 = vst [vmem:[#allocation3 + $0xc0] sm:$0xff] 0.0
      %751 = vst [vmem:[#allocation3 + $0xc8] sm:$0xff] 0.0
      %752 = vst [vmem:[#allocation3 + $0xd0] sm:$0xff] 0.0
      %753 = vst [vmem:[#allocation3 + $0xd8] sm:$0xff] 0.0
      %754 = vst [vmem:[#allocation3 + $0xe0] sm:$0xff] 0.0
      %755 = vst [vmem:[#allocation3 + $0xe8] sm:$0xff] 0.0
      %756 = vst [vmem:[#allocation3 + $0xf0] sm:$0xff] 0.0
      %757 = vst [vmem:[#allocation3 + $0xf8] sm:$0xff] 0.0
      %v758 = vld [vmem:[#allocation2] sm:$0xff]
      %v759 = vld [vmem:[#allocation2 + $0x8] sm:$0xff]
      %v760 = vld [vmem:[#allocation2 + $0x18] sm:$0xff]
      %v761 = vld [vmem:[#allocation2 + $0x20] sm:$0xff]
      %v762 = vld [vmem:[#allocation2 + $0x30] sm:$0xff]
      %v763 = vld [vmem:[#allocation2 + $0x38] sm:$0xff]
      %v764 = vld [vmem:[#allocation2 + $0x48] sm:$0xff]
      %v765 = vld [vmem:[#allocation2 + $0x50] sm:$0xff]
      %v766 = vld [vmem:[#allocation2 + $0x60] sm:$0xff]
      %v767 = vld [vmem:[#allocation2 + $0x68] sm:$0xff]
      %v768 = vld [vmem:[#allocation2 + $0x78] sm:$0xff]
      %v769 = vld [vmem:[#allocation2 + $0x80] sm:$0xff]
      %v770 = vld [vmem:[#allocation2 + $0x90] sm:$0xff]
      %v771 = vld [vmem:[#allocation2 + $0x98] sm:$0xff]
      %v772 = vld [vmem:[#allocation2 + $0xa8] sm:$0xff]
      %v773 = vld [vmem:[#allocation2 + $0xb0] sm:$0xff]
      %v774 = vld [vmem:[#allocation2 + $0xc0] sm:$0xff]
      %v775 = vld [vmem:[#allocation2 + $0xc8] sm:$0xff]
      %v776 = vld [vmem:[#allocation2 + $0xd8] sm:$0xff]
      %v777 = vld [vmem:[#allocation2 + $0xe0] sm:$0xff]
      %v778 = vld [vmem:[#allocation2 + $0xf0] sm:$0xff]
      %v779 = vld [vmem:[#allocation2 + $0xf8] sm:$0xff]
      %v780 = vld [vmem:[#allocation2 + $0x108] sm:$0xff]
      %v781 = vld [vmem:[#allocation2 + $0x110] sm:$0xff]
      %v782 = vld [vmem:[#allocation2 + $0x120] sm:$0xff]
      %v783 = vld [vmem:[#allocation2 + $0x128] sm:$0xff]
      %v784 = vld [vmem:[#allocation2 + $0x138] sm:$0xff]
      %v785 = vld [vmem:[#allocation2 + $0x140] sm:$0xff]
      %v786 = vld [vmem:[#allocation2 + $0x150] sm:$0xff]
      %v787 = vld [vmem:[#allocation2 + $0x158] sm:$0xff]
      %v788 = vld [vmem:[#allocation2 + $0x168] sm:$0xff]
      %v789 = vld [vmem:[#allocation2 + $0x170] sm:$0xff]
      %v790 = vld [vmem:[#allocation3] sm:$0xff]
      %v791 = vld [vmem:[#allocation3 + $0x8] sm:$0xff]
      %v792 = vld [vmem:[#allocation3 + $0x10] sm:$0xff]
      %v793 = vld [vmem:[#allocation3 + $0x18] sm:$0xff]
      %v794 = vld [vmem:[#allocation3 + $0x20] sm:$0xff]
      %v795 = vld [vmem:[#allocation3 + $0x28] sm:$0xff]
      %v796 = vld [vmem:[#allocation3 + $0x30] sm:$0xff]
      %v797 = vld [vmem:[#allocation3 + $0x38] sm:$0xff]
      %v798 = vld [vmem:[#allocation3 + $0x40] sm:$0xff]
      %v799 = vld [vmem:[#allocation3 + $0x48] sm:$0xff]
      %v800 = vld [vmem:[#allocation3 + $0x50] sm:$0xff]
      %v801 = vld [vmem:[#allocation3 + $0x58] sm:$0xff]
      %v802 = vld [vmem:[#allocation3 + $0x60] sm:$0xff]
      %v803 = vld [vmem:[#allocation3 + $0x68] sm:$0xff]
      %v804 = vld [vmem:[#allocation3 + $0x70] sm:$0xff]
      %v805 = vld [vmem:[#allocation3 + $0x78] sm:$0xff]
      %v806 = vld [vmem:[#allocation3 + $0x80] sm:$0xff]
      %v807 = vld [vmem:[#allocation3 + $0x88] sm:$0xff]
      %v808 = vld [vmem:[#allocation3 + $0x90] sm:$0xff]
      %v809 = vld [vmem:[#allocation3 + $0x98] sm:$0xff]
      %v810 = vld [vmem:[#allocation3 + $0xa0] sm:$0xff]
      %v811 = vld [vmem:[#allocation3 + $0xa8] sm:$0xff]
      %v812 = vld [vmem:[#allocation3 + $0xb0] sm:$0xff]
      %v813 = vld [vmem:[#allocation3 + $0xb8] sm:$0xff]
      %v814 = vld [vmem:[#allocation3 + $0xc0] sm:$0xff]
      %v815 = vld [vmem:[#allocation3 + $0xc8] sm:$0xff]
      %v816 = vld [vmem:[#allocation3 + $0xd0] sm:$0xff]
      %v817 = vld [vmem:[#allocation3 + $0xd8] sm:$0xff]
      %v818 = vld [vmem:[#allocation3 + $0xe0] sm:$0xff]
      %v819 = vld [vmem:[#allocation3 + $0xe8] sm:$0xff]
      %v820 = vld [vmem:[#allocation3 + $0xf0] sm:$0xff]
      %v821 = vld [vmem:[#allocation3 + $0xf8] sm:$0xff]
      %v822 = vpack.c.bf16 %v759, %v758
      %v823 = vpack.c.bf16 %v761, %v760
      %v824 = vpack.c.bf16 %v763, %v762
      %v825 = vpack.c.bf16 %v765, %v764
      %v826 = vpack.c.bf16 %v767, %v766
      %v827 = vpack.c.bf16 %v769, %v768
      %v828 = vpack.c.bf16 %v771, %v770
      %v829 = vpack.c.bf16 %v773, %v772
      %v830 = vpack.c.bf16 %v775, %v774
      %v831 = vpack.c.bf16 %v777, %v776
      %v832 = vpack.c.bf16 %v779, %v778
      %v833 = vpack.c.bf16 %v781, %v780
      %v834 = vpack.c.bf16 %v783, %v782
      %v835 = vpack.c.bf16 %v785, %v784
      %v836 = vpack.c.bf16 %v787, %v786
      %v837 = vpack.c.bf16 %v789, %v788
      %v838 = vld [vmem:[%s4] sm:$0xf]
      %v839 = vld [vmem:[%s4 + $0x4] sm:$0xf]
      %v840 = vld [vmem:[%s4 + $0x8] sm:$0xf]
      %v841 = vld [vmem:[%s4 + $0xc] sm:$0xf]
      %v842 = vld [vmem:[%s4 + $0x10] sm:$0xf]
      %v843 = vld [vmem:[%s4 + $0x14] sm:$0xf]
      %v844 = vld [vmem:[%s4 + $0x18] sm:$0xf]
      %v845 = vld [vmem:[%s4 + $0x1c] sm:$0xf]
      %v846 = vld [vmem:[%s4 + $0x20] sm:$0xf]
      %v847 = vld [vmem:[%s4 + $0x24] sm:$0xf]
      %v848 = vld [vmem:[%s4 + $0x28] sm:$0xf]
      %v849 = vld [vmem:[%s4 + $0x2c] sm:$0xf]
      %v850 = vld [vmem:[%s4 + $0x30] sm:$0xf]
      %v851 = vld [vmem:[%s4 + $0x34] sm:$0xf]
      %v852 = vld [vmem:[%s4 + $0x38] sm:$0xf]
      %v853 = vld [vmem:[%s4 + $0x3c] sm:$0xf]
      %v870 = vunpack.c.l.b16 %v838
      %v871 = vunpack.c.l.b16 %v839
      %v872 = vunpack.c.l.b16 %v840
      %v873 = vunpack.c.l.b16 %v841
      %v874 = vunpack.c.l.b16 %v842
      %v875 = vunpack.c.l.b16 %v843
      %v876 = vunpack.c.l.b16 %v844
      %v877 = vunpack.c.l.b16 %v845
      %v878 = vunpack.c.l.b16 %v846
      %v879 = vunpack.c.l.b16 %v847
      %v880 = vunpack.c.l.b16 %v848
      %v881 = vunpack.c.l.b16 %v849
      %v882 = vunpack.c.l.b16 %v850
      %v883 = vunpack.c.l.b16 %v851
      %v884 = vunpack.c.l.b16 %v852
      %v885 = vunpack.c.l.b16 %v853
      %v886 = vpack.c.b16 %v871, %v870
      %v887 = vpack.c.b16 %v873, %v872
      %v888 = vpack.c.b16 %v875, %v874
      %v889 = vpack.c.b16 %v877, %v876
      %v890 = vpack.c.b16 %v879, %v878
      %v891 = vpack.c.b16 %v881, %v880
      %v892 = vpack.c.b16 %v883, %v882
      %v893 = vpack.c.b16 %v885, %v884
      %902 = vmatprep.subr.bf16.mxu0 0
      %903 = vmatpush1.bf16.msra.mxu0 %v886
      %904 = vmatprep.subr.bf16.mxu0 0
      %905 = vmatpush1.bf16.msra.mxu0 %v887
      %906 = vmatprep.subr.bf16.mxu0 0
      %907 = vmatpush1.bf16.msra.mxu0 %v888
      %908 = vmatprep.subr.bf16.mxu0 0
      %909 = vmatpush1.bf16.msra.mxu0 %v889
      %910 = vmatprep.subr.bf16.mxu0 0
      %911 = vmatpush1.bf16.msra.mxu0 %v890
      %912 = vmatprep.subr.bf16.mxu0 0
      %913 = vmatpush1.bf16.msra.mxu0 %v891
      %914 = vmatprep.subr.bf16.mxu0 0
      %915 = vmatpush1.bf16.msra.mxu0 %v892
      %916 = vmatprep.subr.bf16.mxu0 0
      %917 = vmatpush1.bf16.msra.mxu0 %v893
      %918 = vmatprep.subr.bf16.mxu0 0
      %919 = vmatpush1.bf16.msra.mxu0 0
      %920 = vmatprep.subr.bf16.mxu0 0
      %921 = vmatpush1.bf16.msra.mxu0 0
      %922 = vmatprep.subr.bf16.mxu0 0
      %923 = vmatpush1.bf16.msra.mxu0 0
      %924 = vmatprep.subr.bf16.mxu0 0
      %925 = vmatpush1.bf16.msra.mxu0 0
      %926 = vmatprep.subr.bf16.mxu0 0
      %927 = vmatpush1.bf16.msra.mxu0 0
      %928 = vmatprep.subr.bf16.mxu0 0
      %929 = vmatpush1.bf16.msra.mxu0 0
      %930 = vmatprep.subr.bf16.mxu0 0
      %931 = vmatpush1.bf16.msra.mxu0 0
      %932 = vmatprep.subr.bf16.mxu0 0
      %933 = vmatpush1.bf16.msra.mxu0 0
      %934 = vmatprep.mubr.bf16.mxu0 0
      %935 = vmatmul.mubr.bf16.gmra.mrb[0].mxu0 %v822
      %v936 = vpop.f32.mrb[0].mxu0
      %v937 = vadd.f32 0.0, %v936
      %v938 = vpop.f32.mrb[0].mxu0
      %v939 = vpop.f32.mrb[0].mxu0
      %v940 = vadd.f32 0.0, %v939
      %v941 = vpop.f32.mrb[0].mxu0
      %942 = vmatprep.mubr.bf16.mxu0 0
      %943 = vmatmul.mubr.bf16.gmra.mrb[0].mxu0 %v823
      %v944 = vpop.f32.mrb[0].mxu0
      %v945 = vadd.f32 0.0, %v944
      %v946 = vpop.f32.mrb[0].mxu0
      %v947 = vpop.f32.mrb[0].mxu0
      %v948 = vadd.f32 0.0, %v947
      %v949 = vpop.f32.mrb[0].mxu0
      %950 = vmatprep.mubr.bf16.mxu0 0
      %951 = vmatmul.mubr.bf16.gmra.mrb[0].mxu0 %v824
      %v952 = vpop.f32.mrb[0].mxu0
      %v953 = vadd.f32 0.0, %v952
      %v954 = vpop.f32.mrb[0].mxu0
      %v955 = vpop.f32.mrb[0].mxu0
      %v956 = vadd.f32 0.0, %v955
      %v957 = vpop.f32.mrb[0].mxu0
      %958 = vmatprep.mubr.bf16.mxu0 0
      %959 = vmatmul.mubr.bf16.gmra.mrb[0].mxu0 %v825
      %v960 = vpop.f32.mrb[0].mxu0
      %v961 = vadd.f32 0.0, %v960
      %v962 = vpop.f32.mrb[0].mxu0
      %v963 = vpop.f32.mrb[0].mxu0
      %v964 = vadd.f32 0.0, %v963
      %v965 = vpop.f32.mrb[0].mxu0
      %966 = vmatprep.mubr.bf16.mxu0 0
      %967 = vmatmul.mubr.bf16.gmra.mrb[0].mxu0 %v826
      %v968 = vpop.f32.mrb[0].mxu0
      %v969 = vadd.f32 0.0, %v968
      %v970 = vpop.f32.mrb[0].mxu0
      %v971 = vpop.f32.mrb[0].mxu0
      %v972 = vadd.f32 0.0, %v971
      %v973 = vpop.f32.mrb[0].mxu0
      %974 = vmatprep.mubr.bf16.mxu0 0
      %975 = vmatmul.mubr.bf16.gmra.mrb[0].mxu0 %v827
      %v976 = vpop.f32.mrb[0].mxu0
      %v977 = vadd.f32 0.0, %v976
      %v978 = vpop.f32.mrb[0].mxu0
      %v979 = vpop.f32.mrb[0].mxu0
      %v980 = vadd.f32 0.0, %v979
      %v981 = vpop.f32.mrb[0].mxu0
      %982 = vmatprep.mubr.bf16.mxu0 0
      %983 = vmatmul.mubr.bf16.gmra.mrb[0].mxu0 %v828
      %v984 = vpop.f32.mrb[0].mxu0
      %v985 = vadd.f32 0.0, %v984
      %v986 = vpop.f32.mrb[0].mxu0
      %v987 = vpop.f32.mrb[0].mxu0
      %v988 = vadd.f32 0.0, %v987
      %v989 = vpop.f32.mrb[0].mxu0
      %990 = vmatprep.mubr.bf16.mxu0 0
      %991 = vmatmul.mubr.bf16.gmra.mrb[0].mxu0 %v829
      %v992 = vpop.f32.mrb[0].mxu0
      %v993 = vadd.f32 0.0, %v992
      %v994 = vpop.f32.mrb[0].mxu0
      %v995 = vpop.f32.mrb[0].mxu0
      %v996 = vadd.f32 0.0, %v995
      %v997 = vpop.f32.mrb[0].mxu0
      %998 = vmatprep.mubr.bf16.mxu0 0
      %999 = vmatmul.mubr.bf16.gmra.mrb[0].mxu0 %v830
      %v1000 = vpop.f32.mrb[0].mxu0
      %v1001 = vadd.f32 0.0, %v1000
      %v1002 = vpop.f32.mrb[0].mxu0
      %v1003 = vpop.f32.mrb[0].mxu0
      %v1004 = vadd.f32 0.0, %v1003
      %v1005 = vpop.f32.mrb[0].mxu0
      %1006 = vmatprep.mubr.bf16.mxu0 0
      %1007 = vmatmul.mubr.bf16.gmra.mrb[0].mxu0 %v831
      %v1008 = vpop.f32.mrb[0].mxu0
      %v1009 = vadd.f32 0.0, %v1008
      %v1010 = vpop.f32.mrb[0].mxu0
      %v1011 = vpop.f32.mrb[0].mxu0
      %v1012 = vadd.f32 0.0, %v1011
      %v1013 = vpop.f32.mrb[0].mxu0
      %1014 = vmatprep.mubr.bf16.mxu0 0
      %1015 = vmatmul.mubr.bf16.gmra.mrb[0].mxu0 %v832
      %v1016 = vpop.f32.mrb[0].mxu0
      %v1017 = vadd.f32 0.0, %v1016
      %v1018 = vpop.f32.mrb[0].mxu0
      %v1019 = vpop.f32.mrb[0].mxu0
      %v1020 = vadd.f32 0.0, %v1019
      %v1021 = vpop.f32.mrb[0].mxu0
      %1022 = vmatprep.mubr.bf16.mxu0 0
      %1023 = vmatmul.mubr.bf16.gmra.mrb[0].mxu0 %v833
      %v1024 = vpop.f32.mrb[0].mxu0
      %v1025 = vadd.f32 0.0, %v1024
      %v1026 = vpop.f32.mrb[0].mxu0
      %v1027 = vpop.f32.mrb[0].mxu0
      %v1028 = vadd.f32 0.0, %v1027
      %v1029 = vpop.f32.mrb[0].mxu0
      %1030 = vmatprep.mubr.bf16.mxu0 0
      %1031 = vmatmul.mubr.bf16.gmra.mrb[0].mxu0 %v834
      %v1032 = vpop.f32.mrb[0].mxu0
      %v1033 = vadd.f32 0.0, %v1032
      %v1034 = vpop.f32.mrb[0].mxu0
      %v1035 = vpop.f32.mrb[0].mxu0
      %v1036 = vadd.f32 0.0, %v1035
      %v1037 = vpop.f32.mrb[0].mxu0
      %1038 = vmatprep.mubr.bf16.mxu0 0
      %1039 = vmatmul.mubr.bf16.gmra.mrb[0].mxu0 %v835
      %v1040 = vpop.f32.mrb[0].mxu0
      %v1041 = vadd.f32 0.0, %v1040
      %v1042 = vpop.f32.mrb[0].mxu0
      %v1043 = vpop.f32.mrb[0].mxu0
      %v1044 = vadd.f32 0.0, %v1043
      %v1045 = vpop.f32.mrb[0].mxu0
      %1046 = vmatprep.mubr.bf16.mxu0 0
      %1047 = vmatmul.mubr.bf16.gmra.mrb[0].mxu0 %v836
      %v1048 = vpop.f32.mrb[0].mxu0
      %v1049 = vadd.f32 0.0, %v1048
      %v1050 = vpop.f32.mrb[0].mxu0
      %v1051 = vpop.f32.mrb[0].mxu0
      %v1052 = vadd.f32 0.0, %v1051
      %v1053 = vpop.f32.mrb[0].mxu0
      %1054 = vmatprep.mubr.bf16.mxu0 0
      %1055 = vmatmul.mubr.bf16.gmra.mrb[0].mxu0 %v837
      %v1056 = vpop.f32.mrb[0].mxu0
      %v1057 = vadd.f32 0.0, %v1056
      %v1058 = vpop.f32.mrb[0].mxu0
      %v1059 = vpop.f32.mrb[0].mxu0
      %v1060 = vadd.f32 0.0, %v1059
      %v1061 = vpop.f32.mrb[0].mxu0
      %1062 = vdwg.mxu0
      %v1063 = vadd.f32 %v790, %v937
      %v1064 = vadd.f32 %v791, %v940
      %v1065 = vadd.f32 %v792, %v945
      %v1066 = vadd.f32 %v793, %v948
      %v1067 = vadd.f32 %v794, %v953
      %v1068 = vadd.f32 %v795, %v956
      %v1069 = vadd.f32 %v796, %v961
      %v1070 = vadd.f32 %v797, %v964
      %v1071 = vadd.f32 %v798, %v969
      %v1072 = vadd.f32 %v799, %v972
      %v1073 = vadd.f32 %v800, %v977
      %v1074 = vadd.f32 %v801, %v980
      %v1075 = vadd.f32 %v802, %v985
      %v1076 = vadd.f32 %v803, %v988
      %v1077 = vadd.f32 %v804, %v993
      %v1078 = vadd.f32 %v805, %v996
      %v1079 = vadd.f32 %v806, %v1001
      %v1080 = vadd.f32 %v807, %v1004
      %v1081 = vadd.f32 %v808, %v1009
      %v1082 = vadd.f32 %v809, %v1012
      %v1083 = vadd.f32 %v810, %v1017
      %v1084 = vadd.f32 %v811, %v1020
      %v1085 = vadd.f32 %v812, %v1025
      %v1086 = vadd.f32 %v813, %v1028
      %v1087 = vadd.f32 %v814, %v1033
      %v1088 = vadd.f32 %v815, %v1036
      %v1089 = vadd.f32 %v816, %v1041
      %v1090 = vadd.f32 %v817, %v1044
      %v1091 = vadd.f32 %v818, %v1049
      %v1092 = vadd.f32 %v819, %v1052
      %v1093 = vadd.f32 %v820, %v1057
      %v1094 = vadd.f32 %v821, %v1060
      %1095 = vst [vmem:[#allocation3] sm:$0xff] %v1063
      %1096 = vst [vmem:[#allocation3 + $0x8] sm:$0xff] %v1064
      %1097 = vst [vmem:[#allocation3 + $0x10] sm:$0xff] %v1065
      %1098 = vst [vmem:[#allocation3 + $0x18] sm:$0xff] %v1066
      %1099 = vst [vmem:[#allocation3 + $0x20] sm:$0xff] %v1067
      %1100 = vst [vmem:[#allocation3 + $0x28] sm:$0xff] %v1068
      %1101 = vst [vmem:[#allocation3 + $0x30] sm:$0xff] %v1069
      %1102 = vst [vmem:[#allocation3 + $0x38] sm:$0xff] %v1070
      %1103 = vst [vmem:[#allocation3 + $0x40] sm:$0xff] %v1071
      %1104 = vst [vmem:[#allocation3 + $0x48] sm:$0xff] %v1072
      %1105 = vst [vmem:[#allocation3 + $0x50] sm:$0xff] %v1073
      %1106 = vst [vmem:[#allocation3 + $0x58] sm:$0xff] %v1074
      %1107 = vst [vmem:[#allocation3 + $0x60] sm:$0xff] %v1075
      %1108 = vst [vmem:[#allocation3 + $0x68] sm:$0xff] %v1076
      %1109 = vst [vmem:[#allocation3 + $0x70] sm:$0xff] %v1077
      %1110 = vst [vmem:[#allocation3 + $0x78] sm:$0xff] %v1078
      %1111 = vst [vmem:[#allocation3 + $0x80] sm:$0xff] %v1079
      %1112 = vst [vmem:[#allocation3 + $0x88] sm:$0xff] %v1080
      %1113 = vst [vmem:[#allocation3 + $0x90] sm:$0xff] %v1081
      %1114 = vst [vmem:[#allocation3 + $0x98] sm:$0xff] %v1082
      %1115 = vst [vmem:[#allocation3 + $0xa0] sm:$0xff] %v1083
      %1116 = vst [vmem:[#allocation3 + $0xa8] sm:$0xff] %v1084
      %1117 = vst [vmem:[#allocation3 + $0xb0] sm:$0xff] %v1085
      %1118 = vst [vmem:[#allocation3 + $0xb8] sm:$0xff] %v1086
      %1119 = vst [vmem:[#allocation3 + $0xc0] sm:$0xff] %v1087
      %1120 = vst [vmem:[#allocation3 + $0xc8] sm:$0xff] %v1088
      %1121 = vst [vmem:[#allocation3 + $0xd0] sm:$0xff] %v1089
      %1122 = vst [vmem:[#allocation3 + $0xd8] sm:$0xff] %v1090
      %1123 = vst [vmem:[#allocation3 + $0xe0] sm:$0xff] %v1091
      %1124 = vst [vmem:[#allocation3 + $0xe8] sm:$0xff] %v1092
      %1125 = vst [vmem:[#allocation3 + $0xf0] sm:$0xff] %v1093
      %1126 = vst [vmem:[#allocation3 + $0xf8] sm:$0xff] %v1094
      %v1127 = vld [vmem:[#allocation2 + $0x1] sm:$0xff]
      %v1128 = vld [vmem:[#allocation2 + $0x9] sm:$0xff]
      %v1129 = vld [vmem:[#allocation2 + $0x19] sm:$0xff]
      %v1130 = vld [vmem:[#allocation2 + $0x21] sm:$0xff]
      %v1131 = vld [vmem:[#allocation2 + $0x31] sm:$0xff]
      %v1132 = vld [vmem:[#allocation2 + $0x39] sm:$0xff]
      %v1133 = vld [vmem:[#allocation2 + $0x49] sm:$0xff]
      %v1134 = vld [vmem:[#allocation2 + $0x51] sm:$0xff]
      %v1135 = vld [vmem:[#allocation2 + $0x61] sm:$0xff]
      %v1136 = vld [vmem:[#allocation2 + $0x69] sm:$0xff]
      %v1137 = vld [vmem:[#allocation2 + $0x79] sm:$0xff]
      %v1138 = vld [vmem:[#allocation2 + $0x81] sm:$0xff]
      %v1139 = vld [vmem:[#allocation2 + $0x91] sm:$0xff]
      %v1140 = vld [vmem:[#allocation2 + $0x99] sm:$0xff]
      %v1141 = vld [vmem:[#allocation2 + $0xa9] sm:$0xff]
      %v1142 = vld [vmem:[#allocation2 + $0xb1] sm:$0xff]
      %v1143 = vld [vmem:[#allocation2 + $0xc1] sm:$0xff]
      %v1144 = vld [vmem:[#allocation2 + $0xc9] sm:$0xff]
      %v1145 = vld [vmem:[#allocation2 + $0xd9] sm:$0xff]
      %v1146 = vld [vmem:[#allocation2 + $0xe1] sm:$0xff]
      %v1147 = vld [vmem:[#allocation2 + $0xf1] sm:$0xff]
      %v1148 = vld [vmem:[#allocation2 + $0xf9] sm:$0xff]
      %v1149 = vld [vmem:[#allocation2 + $0x109] sm:$0xff]
      %v1150 = vld [vmem:[#allocation2 + $0x111] sm:$0xff]
      %v1151 = vld [vmem:[#allocation2 + $0x121] sm:$0xff]
      %v1152 = vld [vmem:[#allocation2 + $0x129] sm:$0xff]
      %v1153 = vld [vmem:[#allocation2 + $0x139] sm:$0xff]
      %v1154 = vld [vmem:[#allocation2 + $0x141] sm:$0xff]
      %v1155 = vld [vmem:[#allocation2 + $0x151] sm:$0xff]
      %v1156 = vld [vmem:[#allocation2 + $0x159] sm:$0xff]
      %v1157 = vld [vmem:[#allocation2 + $0x169] sm:$0xff]
      %v1158 = vld [vmem:[#allocation2 + $0x171] sm:$0xff]
      %v1159 = vld [vmem:[#allocation3] sm:$0xff]
      %v1160 = vld [vmem:[#allocation3 + $0x8] sm:$0xff]
      %v1161 = vld [vmem:[#allocation3 + $0x10] sm:$0xff]
      %v1162 = vld [vmem:[#allocation3 + $0x18] sm:$0xff]
      %v1163 = vld [vmem:[#allocation3 + $0x20] sm:$0xff]
      %v1164 = vld [vmem:[#allocation3 + $0x28] sm:$0xff]
      %v1165 = vld [vmem:[#allocation3 + $0x30] sm:$0xff]
      %v1166 = vld [vmem:[#allocation3 + $0x38] sm:$0xff]
      %v1167 = vld [vmem:[#allocation3 + $0x40] sm:$0xff]
      %v1168 = vld [vmem:[#allocation3 + $0x48] sm:$0xff]
      %v1169 = vld [vmem:[#allocation3 + $0x50] sm:$0xff]
      %v1170 = vld [vmem:[#allocation3 + $0x58] sm:$0xff]
      %v1171 = vld [vmem:[#allocation3 + $0x60] sm:$0xff]
      %v1172 = vld [vmem:[#allocation3 + $0x68] sm:$0xff]
      %v1173 = vld [vmem:[#allocation3 + $0x70] sm:$0xff]
      %v1174 = vld [vmem:[#allocation3 + $0x78] sm:$0xff]
      %v1175 = vld [vmem:[#allocation3 + $0x80] sm:$0xff]
      %v1176 = vld [vmem:[#allocation3 + $0x88] sm:$0xff]
      %v1177 = vld [vmem:[#allocation3 + $0x90] sm:$0xff]
      %v1178 = vld [vmem:[#allocation3 + $0x98] sm:$0xff]
      %v1179 = vld [vmem:[#allocation3 + $0xa0] sm:$0xff]
      %v1180 = vld [vmem:[#allocation3 + $0xa8] sm:$0xff]
      %v1181 = vld [vmem:[#allocation3 + $0xb0] sm:$0xff]
      %v1182 = vld [vmem:[#allocation3 + $0xb8] sm:$0xff]
      %v1183 = vld [vmem:[#allocation3 + $0xc0] sm:$0xff]
      %v1184 = vld [vmem:[#allocation3 + $0xc8] sm:$0xff]
      %v1185 = vld [vmem:[#allocation3 + $0xd0] sm:$0xff]
      %v1186 = vld [vmem:[#allocation3 + $0xd8] sm:$0xff]
      %v1187 = vld [vmem:[#allocation3 + $0xe0] sm:$0xff]
      %v1188 = vld [vmem:[#allocation3 + $0xe8] sm:$0xff]
      %v1189 = vld [vmem:[#allocation3 + $0xf0] sm:$0xff]
      %v1190 = vld [vmem:[#allocation3 + $0xf8] sm:$0xff]
      %v1191 = vpack.c.bf16 %v1128, %v1127
      %v1192 = vpack.c.bf16 %v1130, %v1129
      %v1193 = vpack.c.bf16 %v1132, %v1131
      %v1194 = vpack.c.bf16 %v1134, %v1133
      %v1195 = vpack.c.bf16 %v1136, %v1135
      %v1196 = vpack.c.bf16 %v1138, %v1137
      %v1197 = vpack.c.bf16 %v1140, %v1139
      %v1198 = vpack.c.bf16 %v1142, %v1141
      %v1199 = vpack.c.bf16 %v1144, %v1143
      %v1200 = vpack.c.bf16 %v1146, %v1145
      %v1201 = vpack.c.bf16 %v1148, %v1147
      %v1202 = vpack.c.bf16 %v1150, %v1149
      %v1203 = vpack.c.bf16 %v1152, %v1151
      %v1204 = vpack.c.bf16 %v1154, %v1153
      %v1205 = vpack.c.bf16 %v1156, %v1155
      %v1206 = vpack.c.bf16 %v1158, %v1157
      %s1207 = scalar_lea.vmem %s4, 64
      %v1208 = vld [vmem:[%s1207] sm:$0xf]
      %v1209 = vld [vmem:[%s1207 + $0x4] sm:$0xf]
      %v1210 = vld [vmem:[%s1207 + $0x8] sm:$0xf]
      %v1211 = vld [vmem:[%s1207 + $0xc] sm:$0xf]
      %v1212 = vld [vmem:[%s1207 + $0x10] sm:$0xf]
      %v1213 = vld [vmem:[%s1207 + $0x14] sm:$0xf]
      %v1214 = vld [vmem:[%s1207 + $0x18] sm:$0xf]
      %v1215 = vld [vmem:[%s1207 + $0x1c] sm:$0xf]
      %v1216 = vld [vmem:[%s1207 + $0x20] sm:$0xf]
      %v1217 = vld [vmem:[%s1207 + $0x24] sm:$0xf]
      %v1218 = vld [vmem:[%s1207 + $0x28] sm:$0xf]
      %v1219 = vld [vmem:[%s1207 + $0x2c] sm:$0xf]
      %v1220 = vld [vmem:[%s1207 + $0x30] sm:$0xf]
      %v1221 = vld [vmem:[%s1207 + $0x34] sm:$0xf]
      %v1222 = vld [vmem:[%s1207 + $0x38] sm:$0xf]
      %v1223 = vld [vmem:[%s1207 + $0x3c] sm:$0xf]
      %v1240 = vunpack.c.l.b16 %v1208
      %v1241 = vunpack.c.l.b16 %v1209
      %v1242 = vunpack.c.l.b16 %v1210
      %v1243 = vunpack.c.l.b16 %v1211
      %v1244 = vunpack.c.l.b16 %v1212
      %v1245 = vunpack.c.l.b16 %v1213
      %v1246 = vunpack.c.l.b16 %v1214
      %v1247 = vunpack.c.l.b16 %v1215
      %v1248 = vunpack.c.l.b16 %v1216
      %v1249 = vunpack.c.l.b16 %v1217
      %v1250 = vunpack.c.l.b16 %v1218
      %v1251 = vunpack.c.l.b16 %v1219
      %v1252 = vunpack.c.l.b16 %v1220
      %v1253 = vunpack.c.l.b16 %v1221
      %v1254 = vunpack.c.l.b16 %v1222
      %v1255 = vunpack.c.l.b16 %v1223
      %v1256 = vpack.c.b16 %v1241, %v1240
      %v1257 = vpack.c.b16 %v1243, %v1242
      %v1258 = vpack.c.b16 %v1245, %v1244
      %v1259 = vpack.c.b16 %v1247, %v1246
      %v1260 = vpack.c.b16 %v1249, %v1248
      %v1261 = vpack.c.b16 %v1251, %v1250
      %v1262 = vpack.c.b16 %v1253, %v1252
      %v1263 = vpack.c.b16 %v1255, %v1254
      %1272 = vmatprep.subr.bf16.mxu0 0
      %1273 = vmatpush1.bf16.msra.mxu0 %v1256
      %1274 = vmatprep.subr.bf16.mxu0 0
      %1275 = vmatpush1.bf16.msra.mxu0 %v1257
      %1276 = vmatprep.subr.bf16.mxu0 0
      %1277 = vmatpush1.bf16.msra.mxu0 %v1258
      %1278 = vmatprep.subr.bf16.mxu0 0
      %1279 = vmatpush1.bf16.msra.mxu0 %v1259
      %1280 = vmatprep.subr.bf16.mxu0 0
      %1281 = vmatpush1.bf16.msra.mxu0 %v1260
      %1282 = vmatprep.subr.bf16.mxu0 0
      %1283 = vmatpush1.bf16.msra.mxu0 %v1261
      %1284 = vmatprep.subr.bf16.mxu0 0
      %1285 = vmatpush1.bf16.msra.mxu0 %v1262
      %1286 = vmatprep.subr.bf16.mxu0 0
      %1287 = vmatpush1.bf16.msra.mxu0 %v1263
      %1288 = vmatprep.subr.bf16.mxu0 0
      %1289 = vmatpush1.bf16.msra.mxu0 0
      %1290 = vmatprep.subr.bf16.mxu0 0
      %1291 = vmatpush1.bf16.msra.mxu0 0
      %1292 = vmatprep.subr.bf16.mxu0 0
      %1293 = vmatpush1.bf16.msra.mxu0 0
      %1294 = vmatprep.subr.bf16.mxu0 0
      %1295 = vmatpush1.bf16.msra.mxu0 0
      %1296 = vmatprep.subr.bf16.mxu0 0
      %1297 = vmatpush1.bf16.msra.mxu0 0
      %1298 = vmatprep.subr.bf16.mxu0 0
      %1299 = vmatpush1.bf16.msra.mxu0 0
      %1300 = vmatprep.subr.bf16.mxu0 0
      %1301 = vmatpush1.bf16.msra.mxu0 0
      %1302 = vmatprep.subr.bf16.mxu0 0
      %1303 = vmatpush1.bf16.msra.mxu0 0
      %1304 = vmatprep.mubr.bf16.mxu0 0
      %1305 = vmatmul.mubr.bf16.gmra.mrb[0].mxu0 %v1191
      %v1306 = vpop.f32.mrb[0].mxu0
      %v1307 = vadd.f32 0.0, %v1306
      %v1308 = vpop.f32.mrb[0].mxu0
      %v1309 = vpop.f32.mrb[0].mxu0
      %v1310 = vadd.f32 0.0, %v1309
      %v1311 = vpop.f32.mrb[0].mxu0
      %1312 = vmatprep.mubr.bf16.mxu0 0
      %1313 = vmatmul.mubr.bf16.gmra.mrb[0].mxu0 %v1192
      %v1314 = vpop.f32.mrb[0].mxu0
      %v1315 = vadd.f32 0.0, %v1314
      %v1316 = vpop.f32.mrb[0].mxu0
      %v1317 = vpop.f32.mrb[0].mxu0
      %v1318 = vadd.f32 0.0, %v1317
      %v1319 = vpop.f32.mrb[0].mxu0
      %1320 = vmatprep.mubr.bf16.mxu0 0
      %1321 = vmatmul.mubr.bf16.gmra.mrb[0].mxu0 %v1193
      %v1322 = vpop.f32.mrb[0].mxu0
      %v1323 = vadd.f32 0.0, %v1322
      %v1324 = vpop.f32.mrb[0].mxu0
      %v1325 = vpop.f32.mrb[0].mxu0
      %v1326 = vadd.f32 0.0, %v1325
      %v1327 = vpop.f32.mrb[0].mxu0
      %1328 = vmatprep.mubr.bf16.mxu0 0
      %1329 = vmatmul.mubr.bf16.gmra.mrb[0].mxu0 %v1194
      %v1330 = vpop.f32.mrb[0].mxu0
      %v1331 = vadd.f32 0.0, %v1330
      %v1332 = vpop.f32.mrb[0].mxu0
      %v1333 = vpop.f32.mrb[0].mxu0
      %v1334 = vadd.f32 0.0, %v1333
      %v1335 = vpop.f32.mrb[0].mxu0
      %1336 = vmatprep.mubr.bf16.mxu0 0
      %1337 = vmatmul.mubr.bf16.gmra.mrb[0].mxu0 %v1195
      %v1338 = vpop.f32.mrb[0].mxu0
      %v1339 = vadd.f32 0.0, %v1338
      %v1340 = vpop.f32.mrb[0].mxu0
      %v1341 = vpop.f32.mrb[0].mxu0
      %v1342 = vadd.f32 0.0, %v1341
      %v1343 = vpop.f32.mrb[0].mxu0
      %1344 = vmatprep.mubr.bf16.mxu0 0
      %1345 = vmatmul.mubr.bf16.gmra.mrb[0].mxu0 %v1196
      %v1346 = vpop.f32.mrb[0].mxu0
      %v1347 = vadd.f32 0.0, %v1346
      %v1348 = vpop.f32.mrb[0].mxu0
      %v1349 = vpop.f32.mrb[0].mxu0
      %v1350 = vadd.f32 0.0, %v1349
      %v1351 = vpop.f32.mrb[0].mxu0
      %1352 = vmatprep.mubr.bf16.mxu0 0
      %1353 = vmatmul.mubr.bf16.gmra.mrb[0].mxu0 %v1197
      %v1354 = vpop.f32.mrb[0].mxu0
      %v1355 = vadd.f32 0.0, %v1354
      %v1356 = vpop.f32.mrb[0].mxu0
      %v1357 = vpop.f32.mrb[0].mxu0
      %v1358 = vadd.f32 0.0, %v1357
      %v1359 = vpop.f32.mrb[0].mxu0
      %1360 = vmatprep.mubr.bf16.mxu0 0
      %1361 = vmatmul.mubr.bf16.gmra.mrb[0].mxu0 %v1198
      %v1362 = vpop.f32.mrb[0].mxu0
      %v1363 = vadd.f32 0.0, %v1362
      %v1364 = vpop.f32.mrb[0].mxu0
      %v1365 = vpop.f32.mrb[0].mxu0
      %v1366 = vadd.f32 0.0, %v1365
      %v1367 = vpop.f32.mrb[0].mxu0
      %1368 = vmatprep.mubr.bf16.mxu0 0
      %1369 = vmatmul.mubr.bf16.gmra.mrb[0].mxu0 %v1199
      %v1370 = vpop.f32.mrb[0].mxu0
      %v1371 = vadd.f32 0.0, %v1370
      %v1372 = vpop.f32.mrb[0].mxu0
      %v1373 = vpop.f32.mrb[0].mxu0
      %v1374 = vadd.f32 0.0, %v1373
      %v1375 = vpop.f32.mrb[0].mxu0
      %1376 = vmatprep.mubr.bf16.mxu0 0
      %1377 = vmatmul.mubr.bf16.gmra.mrb[0].mxu0 %v1200
      %v1378 = vpop.f32.mrb[0].mxu0
      %v1379 = vadd.f32 0.0, %v1378
      %v1380 = vpop.f32.mrb[0].mxu0
      %v1381 = vpop.f32.mrb[0].mxu0
      %v1382 = vadd.f32 0.0, %v1381
      %v1383 = vpop.f32.mrb[0].mxu0
      %1384 = vmatprep.mubr.bf16.mxu0 0
      %1385 = vmatmul.mubr.bf16.gmra.mrb[0].mxu0 %v1201
      %v1386 = vpop.f32.mrb[0].mxu0
      %v1387 = vadd.f32 0.0, %v1386
      %v1388 = vpop.f32.mrb[0].mxu0
      %v1389 = vpop.f32.mrb[0].mxu0
      %v1390 = vadd.f32 0.0, %v1389
      %v1391 = vpop.f32.mrb[0].mxu0
      %1392 = vmatprep.mubr.bf16.mxu0 0
      %1393 = vmatmul.mubr.bf16.gmra.mrb[0].mxu0 %v1202
      %v1394 = vpop.f32.mrb[0].mxu0
      %v1395 = vadd.f32 0.0, %v1394
      %v1396 = vpop.f32.mrb[0].mxu0
      %v1397 = vpop.f32.mrb[0].mxu0
      %v1398 = vadd.f32 0.0, %v1397
      %v1399 = vpop.f32.mrb[0].mxu0
      %1400 = vmatprep.mubr.bf16.mxu0 0
      %1401 = vmatmul.mubr.bf16.gmra.mrb[0].mxu0 %v1203
      %v1402 = vpop.f32.mrb[0].mxu0
      %v1403 = vadd.f32 0.0, %v1402
      %v1404 = vpop.f32.mrb[0].mxu0
      %v1405 = vpop.f32.mrb[0].mxu0
      %v1406 = vadd.f32 0.0, %v1405
      %v1407 = vpop.f32.mrb[0].mxu0
      %1408 = vmatprep.mubr.bf16.mxu0 0
      %1409 = vmatmul.mubr.bf16.gmra.mrb[0].mxu0 %v1204
      %v1410 = vpop.f32.mrb[0].mxu0
      %v1411 = vadd.f32 0.0, %v1410
      %v1412 = vpop.f32.mrb[0].mxu0
      %v1413 = vpop.f32.mrb[0].mxu0
      %v1414 = vadd.f32 0.0, %v1413
      %v1415 = vpop.f32.mrb[0].mxu0
      %1416 = vmatprep.mubr.bf16.mxu0 0
      %1417 = vmatmul.mubr.bf16.gmra.mrb[0].mxu0 %v1205
      %v1418 = vpop.f32.mrb[0].mxu0
      %v1419 = vadd.f32 0.0, %v1418
      %v1420 = vpop.f32.mrb[0].mxu0
      %v1421 = vpop.f32.mrb[0].mxu0
      %v1422 = vadd.f32 0.0, %v1421
      %v1423 = vpop.f32.mrb[0].mxu0
      %1424 = vmatprep.mubr.bf16.mxu0 0
      %1425 = vmatmul.mubr.bf16.gmra.mrb[0].mxu0 %v1206
      %v1426 = vpop.f32.mrb[0].mxu0
      %v1427 = vadd.f32 0.0, %v1426
      %v1428 = vpop.f32.mrb[0].mxu0
      %v1429 = vpop.f32.mrb[0].mxu0
      %v1430 = vadd.f32 0.0, %v1429
      %v1431 = vpop.f32.mrb[0].mxu0
      %1432 = vdwg.mxu0
      %v1433 = vadd.f32 %v1159, %v1307
      %v1434 = vadd.f32 %v1160, %v1310
      %v1435 = vadd.f32 %v1161, %v1315
      %v1436 = vadd.f32 %v1162, %v1318
      %v1437 = vadd.f32 %v1163, %v1323
      %v1438 = vadd.f32 %v1164, %v1326
      %v1439 = vadd.f32 %v1165, %v1331
      %v1440 = vadd.f32 %v1166, %v1334
      %v1441 = vadd.f32 %v1167, %v1339
      %v1442 = vadd.f32 %v1168, %v1342
      %v1443 = vadd.f32 %v1169, %v1347
      %v1444 = vadd.f32 %v1170, %v1350
      %v1445 = vadd.f32 %v1171, %v1355
      %v1446 = vadd.f32 %v1172, %v1358
      %v1447 = vadd.f32 %v1173, %v1363
      %v1448 = vadd.f32 %v1174, %v1366
      %v1449 = vadd.f32 %v1175, %v1371
      %v1450 = vadd.f32 %v1176, %v1374
      %v1451 = vadd.f32 %v1177, %v1379
      %v1452 = vadd.f32 %v1178, %v1382
      %v1453 = vadd.f32 %v1179, %v1387
      %v1454 = vadd.f32 %v1180, %v1390
      %v1455 = vadd.f32 %v1181, %v1395
      %v1456 = vadd.f32 %v1182, %v1398
      %v1457 = vadd.f32 %v1183, %v1403
      %v1458 = vadd.f32 %v1184, %v1406
      %v1459 = vadd.f32 %v1185, %v1411
      %v1460 = vadd.f32 %v1186, %v1414
      %v1461 = vadd.f32 %v1187, %v1419
      %v1462 = vadd.f32 %v1188, %v1422
      %v1463 = vadd.f32 %v1189, %v1427
      %v1464 = vadd.f32 %v1190, %v1430
      %1465 = vst [vmem:[#allocation3] sm:$0xff] %v1433
      %1466 = vst [vmem:[#allocation3 + $0x8] sm:$0xff] %v1434
      %1467 = vst [vmem:[#allocation3 + $0x10] sm:$0xff] %v1435
      %1468 = vst [vmem:[#allocation3 + $0x18] sm:$0xff] %v1436
      %1469 = vst [vmem:[#allocation3 + $0x20] sm:$0xff] %v1437
      %1470 = vst [vmem:[#allocation3 + $0x28] sm:$0xff] %v1438
      %1471 = vst [vmem:[#allocation3 + $0x30] sm:$0xff] %v1439
      %1472 = vst [vmem:[#allocation3 + $0x38] sm:$0xff] %v1440
      %1473 = vst [vmem:[#allocation3 + $0x40] sm:$0xff] %v1441
      %1474 = vst [vmem:[#allocation3 + $0x48] sm:$0xff] %v1442
      %1475 = vst [vmem:[#allocation3 + $0x50] sm:$0xff] %v1443
      %1476 = vst [vmem:[#allocation3 + $0x58] sm:$0xff] %v1444
      %1477 = vst [vmem:[#allocation3 + $0x60] sm:$0xff] %v1445
      %1478 = vst [vmem:[#allocation3 + $0x68] sm:$0xff] %v1446
      %1479 = vst [vmem:[#allocation3 + $0x70] sm:$0xff] %v1447
      %1480 = vst [vmem:[#allocation3 + $0x78] sm:$0xff] %v1448
      %1481 = vst [vmem:[#allocation3 + $0x80] sm:$0xff] %v1449
      %1482 = vst [vmem:[#allocation3 + $0x88] sm:$0xff] %v1450
      %1483 = vst [vmem:[#allocation3 + $0x90] sm:$0xff] %v1451
      %1484 = vst [vmem:[#allocation3 + $0x98] sm:$0xff] %v1452
      %1485 = vst [vmem:[#allocation3 + $0xa0] sm:$0xff] %v1453
      %1486 = vst [vmem:[#allocation3 + $0xa8] sm:$0xff] %v1454
      %1487 = vst [vmem:[#allocation3 + $0xb0] sm:$0xff] %v1455
      %1488 = vst [vmem:[#allocation3 + $0xb8] sm:$0xff] %v1456
      %1489 = vst [vmem:[#allocation3 + $0xc0] sm:$0xff] %v1457
      %1490 = vst [vmem:[#allocation3 + $0xc8] sm:$0xff] %v1458
      %1491 = vst [vmem:[#allocation3 + $0xd0] sm:$0xff] %v1459
      %1492 = vst [vmem:[#allocation3 + $0xd8] sm:$0xff] %v1460
      %1493 = vst [vmem:[#allocation3 + $0xe0] sm:$0xff] %v1461
      %1494 = vst [vmem:[#allocation3 + $0xe8] sm:$0xff] %v1462
      %1495 = vst [vmem:[#allocation3 + $0xf0] sm:$0xff] %v1463
      %1496 = vst [vmem:[#allocation3 + $0xf8] sm:$0xff] %v1464
      %v1497 = vld [vmem:[#allocation2 + $0x2] sm:$0xff]
      %v1498 = vld [vmem:[#allocation2 + $0xa] sm:$0xff]
      %v1499 = vld [vmem:[#allocation2 + $0x1a] sm:$0xff]
      %v1500 = vld [vmem:[#allocation2 + $0x22] sm:$0xff]
      %v1501 = vld [vmem:[#allocation2 + $0x32] sm:$0xff]
      %v1502 = vld [vmem:[#allocation2 + $0x3a] sm:$0xff]
      %v1503 = vld [vmem:[#allocation2 + $0x4a] sm:$0xff]
      %v1504 = vld [vmem:[#allocation2 + $0x52] sm:$0xff]
      %v1505 = vld [vmem:[#allocation2 + $0x62] sm:$0xff]
      %v1506 = vld [vmem:[#allocation2 + $0x6a] sm:$0xff]
      %v1507 = vld [vmem:[#allocation2 + $0x7a] sm:$0xff]
      %v1508 = vld [vmem:[#allocation2 + $0x82] sm:$0xff]
      %v1509 = vld [vmem:[#allocation2 + $0x92] sm:$0xff]
      %v1510 = vld [vmem:[#allocation2 + $0x9a] sm:$0xff]
      %v1511 = vld [vmem:[#allocation2 + $0xaa] sm:$0xff]
      %v1512 = vld [vmem:[#allocation2 + $0xb2] sm:$0xff]
      %v1513 = vld [vmem:[#allocation2 + $0xc2] sm:$0xff]
      %v1514 = vld [vmem:[#allocation2 + $0xca] sm:$0xff]
      %v1515 = vld [vmem:[#allocation2 + $0xda] sm:$0xff]
      %v1516 = vld [vmem:[#allocation2 + $0xe2] sm:$0xff]
      %v1517 = vld [vmem:[#allocation2 + $0xf2] sm:$0xff]
      %v1518 = vld [vmem:[#allocation2 + $0xfa] sm:$0xff]
      %v1519 = vld [vmem:[#allocation2 + $0x10a] sm:$0xff]
      %v1520 = vld [vmem:[#allocation2 + $0x112] sm:$0xff]
      %v1521 = vld [vmem:[#allocation2 + $0x122] sm:$0xff]
      %v1522 = vld [vmem:[#allocation2 + $0x12a] sm:$0xff]
      %v1523 = vld [vmem:[#allocation2 + $0x13a] sm:$0xff]
      %v1524 = vld [vmem:[#allocation2 + $0x142] sm:$0xff]
      %v1525 = vld [vmem:[#allocation2 + $0x152] sm:$0xff]
      %v1526 = vld [vmem:[#allocation2 + $0x15a] sm:$0xff]
      %v1527 = vld [vmem:[#allocation2 + $0x16a] sm:$0xff]
      %v1528 = vld [vmem:[#allocation2 + $0x172] sm:$0xff]
      %v1529 = vld [vmem:[#allocation3] sm:$0xff]
      %v1530 = vld [vmem:[#allocation3 + $0x8] sm:$0xff]
      %v1531 = vld [vmem:[#allocation3 + $0x10] sm:$0xff]
      %v1532 = vld [vmem:[#allocation3 + $0x18] sm:$0xff]
      %v1533 = vld [vmem:[#allocation3 + $0x20] sm:$0xff]
      %v1534 = vld [vmem:[#allocation3 + $0x28] sm:$0xff]
      %v1535 = vld [vmem:[#allocation3 + $0x30] sm:$0xff]
      %v1536 = vld [vmem:[#allocation3 + $0x38] sm:$0xff]
      %v1537 = vld [vmem:[#allocation3 + $0x40] sm:$0xff]
      %v1538 = vld [vmem:[#allocation3 + $0x48] sm:$0xff]
      %v1539 = vld [vmem:[#allocation3 + $0x50] sm:$0xff]
      %v1540 = vld [vmem:[#allocation3 + $0x58] sm:$0xff]
      %v1541 = vld [vmem:[#allocation3 + $0x60] sm:$0xff]
      %v1542 = vld [vmem:[#allocation3 + $0x68] sm:$0xff]
      %v1543 = vld [vmem:[#allocation3 + $0x70] sm:$0xff]
      %v1544 = vld [vmem:[#allocation3 + $0x78] sm:$0xff]
      %v1545 = vld [vmem:[#allocation3 + $0x80] sm:$0xff]
      %v1546 = vld [vmem:[#allocation3 + $0x88] sm:$0xff]
      %v1547 = vld [vmem:[#allocation3 + $0x90] sm:$0xff]
      %v1548 = vld [vmem:[#allocation3 + $0x98] sm:$0xff]
      %v1549 = vld [vmem:[#allocation3 + $0xa0] sm:$0xff]
      %v1550 = vld [vmem:[#allocation3 + $0xa8] sm:$0xff]
      %v1551 = vld [vmem:[#allocation3 + $0xb0] sm:$0xff]
      %v1552 = vld [vmem:[#allocation3 + $0xb8] sm:$0xff]
      %v1553 = vld [vmem:[#allocation3 + $0xc0] sm:$0xff]
      %v1554 = vld [vmem:[#allocation3 + $0xc8] sm:$0xff]
      %v1555 = vld [vmem:[#allocation3 + $0xd0] sm:$0xff]
      %v1556 = vld [vmem:[#allocation3 + $0xd8] sm:$0xff]
      %v1557 = vld [vmem:[#allocation3 + $0xe0] sm:$0xff]
      %v1558 = vld [vmem:[#allocation3 + $0xe8] sm:$0xff]
      %v1559 = vld [vmem:[#allocation3 + $0xf0] sm:$0xff]
      %v1560 = vld [vmem:[#allocation3 + $0xf8] sm:$0xff]
      %v1561 = vpack.c.bf16 %v1498, %v1497
      %v1562 = vpack.c.bf16 %v1500, %v1499
      %v1563 = vpack.c.bf16 %v1502, %v1501
      %v1564 = vpack.c.bf16 %v1504, %v1503
      %v1565 = vpack.c.bf16 %v1506, %v1505
      %v1566 = vpack.c.bf16 %v1508, %v1507
      %v1567 = vpack.c.bf16 %v1510, %v1509
      %v1568 = vpack.c.bf16 %v1512, %v1511
      %v1569 = vpack.c.bf16 %v1514, %v1513
      %v1570 = vpack.c.bf16 %v1516, %v1515
      %v1571 = vpack.c.bf16 %v1518, %v1517
      %v1572 = vpack.c.bf16 %v1520, %v1519
      %v1573 = vpack.c.bf16 %v1522, %v1521
      %v1574 = vpack.c.bf16 %v1524, %v1523
      %v1575 = vpack.c.bf16 %v1526, %v1525
      %v1576 = vpack.c.bf16 %v1528, %v1527
      %s1577 = scalar_lea.vmem %s4, 128
      %v1578 = vld [vmem:[%s1577] sm:$0xf]
      %v1579 = vld [vmem:[%s1577 + $0x4] sm:$0xf]
      %v1580 = vld [vmem:[%s1577 + $0x8] sm:$0xf]
      %v1581 = vld [vmem:[%s1577 + $0xc] sm:$0xf]
      %v1582 = vld [vmem:[%s1577 + $0x10] sm:$0xf]
      %v1583 = vld [vmem:[%s1577 + $0x14] sm:$0xf]
      %v1584 = vld [vmem:[%s1577 + $0x18] sm:$0xf]
      %v1585 = vld [vmem:[%s1577 + $0x1c] sm:$0xf]
      %v1586 = vld [vmem:[%s1577 + $0x20] sm:$0xf]
      %v1587 = vld [vmem:[%s1577 + $0x24] sm:$0xf]
      %v1588 = vld [vmem:[%s1577 + $0x28] sm:$0xf]
      %v1589 = vld [vmem:[%s1577 + $0x2c] sm:$0xf]
      %v1590 = vld [vmem:[%s1577 + $0x30] sm:$0xf]
      %v1591 = vld [vmem:[%s1577 + $0x34] sm:$0xf]
      %v1592 = vld [vmem:[%s1577 + $0x38] sm:$0xf]
      %v1593 = vld [vmem:[%s1577 + $0x3c] sm:$0xf]
      %v1610 = vunpack.c.l.b16 %v1578
      %v1611 = vunpack.c.l.b16 %v1579
      %v1612 = vunpack.c.l.b16 %v1580
      %v1613 = vunpack.c.l.b16 %v1581
      %v1614 = vunpack.c.l.b16 %v1582
      %v1615 = vunpack.c.l.b16 %v1583
      %v1616 = vunpack.c.l.b16 %v1584
      %v1617 = vunpack.c.l.b16 %v1585
      %v1618 = vunpack.c.l.b16 %v1586
      %v1619 = vunpack.c.l.b16 %v1587
      %v1620 = vunpack.c.l.b16 %v1588
      %v1621 = vunpack.c.l.b16 %v1589
      %v1622 = vunpack.c.l.b16 %v1590
      %v1623 = vunpack.c.l.b16 %v1591
      %v1624 = vunpack.c.l.b16 %v1592
      %v1625 = vunpack.c.l.b16 %v1593
      %v1626 = vpack.c.b16 %v1611, %v1610
      %v1627 = vpack.c.b16 %v1613, %v1612
      %v1628 = vpack.c.b16 %v1615, %v1614
      %v1629 = vpack.c.b16 %v1617, %v1616
      %v1630 = vpack.c.b16 %v1619, %v1618
      %v1631 = vpack.c.b16 %v1621, %v1620
      %v1632 = vpack.c.b16 %v1623, %v1622
      %v1633 = vpack.c.b16 %v1625, %v1624
      %1642 = vmatprep.subr.bf16.mxu0 0
      %1643 = vmatpush1.bf16.msra.mxu0 %v1626
      %1644 = vmatprep.subr.bf16.mxu0 0
      %1645 = vmatpush1.bf16.msra.mxu0 %v1627
      %1646 = vmatprep.subr.bf16.mxu0 0
      %1647 = vmatpush1.bf16.msra.mxu0 %v1628
      %1648 = vmatprep.subr.bf16.mxu0 0
      %1649 = vmatpush1.bf16.msra.mxu0 %v1629
      %1650 = vmatprep.subr.bf16.mxu0 0
      %1651 = vmatpush1.bf16.msra.mxu0 %v1630
      %1652 = vmatprep.subr.bf16.mxu0 0
      %1653 = vmatpush1.bf16.msra.mxu0 %v1631
      %1654 = vmatprep.subr.bf16.mxu0 0
      %1655 = vmatpush1.bf16.msra.mxu0 %v1632
      %1656 = vmatprep.subr.bf16.mxu0 0
      %1657 = vmatpush1.bf16.msra.mxu0 %v1633
      %1658 = vmatprep.subr.bf16.mxu0 0
      %1659 = vmatpush1.bf16.msra.mxu0 0
      %1660 = vmatprep.subr.bf16.mxu0 0
      %1661 = vmatpush1.bf16.msra.mxu0 0
      %1662 = vmatprep.subr.bf16.mxu0 0
      %1663 = vmatpush1.bf16.msra.mxu0 0
      %1664 = vmatprep.subr.bf16.mxu0 0
      %1665 = vmatpush1.bf16.msra.mxu0 0
      %1666 = vmatprep.subr.bf16.mxu0 0
      %1667 = vmatpush1.bf16.msra.mxu0 0
      %1668 = vmatprep.subr.bf16.mxu0 0
      %1669 = vmatpush1.bf16.msra.mxu0 0
      %1670 = vmatprep.subr.bf16.mxu0 0
      %1671 = vmatpush1.bf16.msra.mxu0 0
      %1672 = vmatprep.subr.bf16.mxu0 0
      %1673 = vmatpush1.bf16.msra.mxu0 0
      %1674 = vmatprep.mubr.bf16.mxu0 0
      %1675 = vmatmul.mubr.bf16.gmra.mrb[0].mxu0 %v1561
      %v1676 = vpop.f32.mrb[0].mxu0
      %v1677 = vadd.f32 0.0, %v1676
      %v1678 = vpop.f32.mrb[0].mxu0
      %v1679 = vpop.f32.mrb[0].mxu0
      %v1680 = vadd.f32 0.0, %v1679
      %v1681 = vpop.f32.mrb[0].mxu0
      %1682 = vmatprep.mubr.bf16.mxu0 0
      %1683 = vmatmul.mubr.bf16.gmra.mrb[0].mxu0 %v1562
      %v1684 = vpop.f32.mrb[0].mxu0
      %v1685 = vadd.f32 0.0, %v1684
      %v1686 = vpop.f32.mrb[0].mxu0
      %v1687 = vpop.f32.mrb[0].mxu0
      %v1688 = vadd.f32 0.0, %v1687
      %v1689 = vpop.f32.mrb[0].mxu0
      %1690 = vmatprep.mubr.bf16.mxu0 0
      %1691 = vmatmul.mubr.bf16.gmra.mrb[0].mxu0 %v1563
      %v1692 = vpop.f32.mrb[0].mxu0
      %v1693 = vadd.f32 0.0, %v1692
      %v1694 = vpop.f32.mrb[0].mxu0
      %v1695 = vpop.f32.mrb[0].mxu0
      %v1696 = vadd.f32 0.0, %v1695
      %v1697 = vpop.f32.mrb[0].mxu0
      %1698 = vmatprep.mubr.bf16.mxu0 0
      %1699 = vmatmul.mubr.bf16.gmra.mrb[0].mxu0 %v1564
      %v1700 = vpop.f32.mrb[0].mxu0
      %v1701 = vadd.f32 0.0, %v1700
      %v1702 = vpop.f32.mrb[0].mxu0
      %v1703 = vpop.f32.mrb[0].mxu0
      %v1704 = vadd.f32 0.0, %v1703
      %v1705 = vpop.f32.mrb[0].mxu0
      %1706 = vmatprep.mubr.bf16.mxu0 0
      %1707 = vmatmul.mubr.bf16.gmra.mrb[0].mxu0 %v1565
      %v1708 = vpop.f32.mrb[0].mxu0
      %v1709 = vadd.f32 0.0, %v1708
      %v1710 = vpop.f32.mrb[0].mxu0
      %v1711 = vpop.f32.mrb[0].mxu0
      %v1712 = vadd.f32 0.0, %v1711
      %v1713 = vpop.f32.mrb[0].mxu0
      %1714 = vmatprep.mubr.bf16.mxu0 0
      %1715 = vmatmul.mubr.bf16.gmra.mrb[0].mxu0 %v1566
      %v1716 = vpop.f32.mrb[0].mxu0
      %v1717 = vadd.f32 0.0, %v1716
      %v1718 = vpop.f32.mrb[0].mxu0
      %v1719 = vpop.f32.mrb[0].mxu0
      %v1720 = vadd.f32 0.0, %v1719
      %v1721 = vpop.f32.mrb[0].mxu0
      %1722 = vmatprep.mubr.bf16.mxu0 0
      %1723 = vmatmul.mubr.bf16.gmra.mrb[0].mxu0 %v1567
      %v1724 = vpop.f32.mrb[0].mxu0
      %v1725 = vadd.f32 0.0, %v1724
      %v1726 = vpop.f32.mrb[0].mxu0
      %v1727 = vpop.f32.mrb[0].mxu0
      %v1728 = vadd.f32 0.0, %v1727
      %v1729 = vpop.f32.mrb[0].mxu0
      %1730 = vmatprep.mubr.bf16.mxu0 0
      %1731 = vmatmul.mubr.bf16.gmra.mrb[0].mxu0 %v1568
      %v1732 = vpop.f32.mrb[0].mxu0
      %v1733 = vadd.f32 0.0, %v1732
      %v1734 = vpop.f32.mrb[0].mxu0
      %v1735 = vpop.f32.mrb[0].mxu0
      %v1736 = vadd.f32 0.0, %v1735
      %v1737 = vpop.f32.mrb[0].mxu0
      %1738 = vmatprep.mubr.bf16.mxu0 0
      %1739 = vmatmul.mubr.bf16.gmra.mrb[0].mxu0 %v1569
      %v1740 = vpop.f32.mrb[0].mxu0
      %v1741 = vadd.f32 0.0, %v1740
      %v1742 = vpop.f32.mrb[0].mxu0
      %v1743 = vpop.f32.mrb[0].mxu0
      %v1744 = vadd.f32 0.0, %v1743
      %v1745 = vpop.f32.mrb[0].mxu0
      %1746 = vmatprep.mubr.bf16.mxu0 0
      %1747 = vmatmul.mubr.bf16.gmra.mrb[0].mxu0 %v1570
      %v1748 = vpop.f32.mrb[0].mxu0
      %v1749 = vadd.f32 0.0, %v1748
      %v1750 = vpop.f32.mrb[0].mxu0
      %v1751 = vpop.f32.mrb[0].mxu0
      %v1752 = vadd.f32 0.0, %v1751
      %v1753 = vpop.f32.mrb[0].mxu0
      %1754 = vmatprep.mubr.bf16.mxu0 0
      %1755 = vmatmul.mubr.bf16.gmra.mrb[0].mxu0 %v1571
      %v1756 = vpop.f32.mrb[0].mxu0
      %v1757 = vadd.f32 0.0, %v1756
      %v1758 = vpop.f32.mrb[0].mxu0
      %v1759 = vpop.f32.mrb[0].mxu0
      %v1760 = vadd.f32 0.0, %v1759
      %v1761 = vpop.f32.mrb[0].mxu0
      %1762 = vmatprep.mubr.bf16.mxu0 0
      %1763 = vmatmul.mubr.bf16.gmra.mrb[0].mxu0 %v1572
      %v1764 = vpop.f32.mrb[0].mxu0
      %v1765 = vadd.f32 0.0, %v1764
      %v1766 = vpop.f32.mrb[0].mxu0
      %v1767 = vpop.f32.mrb[0].mxu0
      %v1768 = vadd.f32 0.0, %v1767
      %v1769 = vpop.f32.mrb[0].mxu0
      %1770 = vmatprep.mubr.bf16.mxu0 0
      %1771 = vmatmul.mubr.bf16.gmra.mrb[0].mxu0 %v1573
      %v1772 = vpop.f32.mrb[0].mxu0
      %v1773 = vadd.f32 0.0, %v1772
      %v1774 = vpop.f32.mrb[0].mxu0
      %v1775 = vpop.f32.mrb[0].mxu0
      %v1776 = vadd.f32 0.0, %v1775
      %v1777 = vpop.f32.mrb[0].mxu0
      %1778 = vmatprep.mubr.bf16.mxu0 0
      %1779 = vmatmul.mubr.bf16.gmra.mrb[0].mxu0 %v1574
      %v1780 = vpop.f32.mrb[0].mxu0
      %v1781 = vadd.f32 0.0, %v1780
      %v1782 = vpop.f32.mrb[0].mxu0
      %v1783 = vpop.f32.mrb[0].mxu0
      %v1784 = vadd.f32 0.0, %v1783
      %v1785 = vpop.f32.mrb[0].mxu0
      %1786 = vmatprep.mubr.bf16.mxu0 0
      %1787 = vmatmul.mubr.bf16.gmra.mrb[0].mxu0 %v1575
      %v1788 = vpop.f32.mrb[0].mxu0
      %v1789 = vadd.f32 0.0, %v1788
      %v1790 = vpop.f32.mrb[0].mxu0
      %v1791 = vpop.f32.mrb[0].mxu0
      %v1792 = vadd.f32 0.0, %v1791
      %v1793 = vpop.f32.mrb[0].mxu0
      %1794 = vmatprep.mubr.bf16.mxu0 0
      %1795 = vmatmul.mubr.bf16.gmra.mrb[0].mxu0 %v1576
      %v1796 = vpop.f32.mrb[0].mxu0
      %v1797 = vadd.f32 0.0, %v1796
      %v1798 = vpop.f32.mrb[0].mxu0
      %v1799 = vpop.f32.mrb[0].mxu0
      %v1800 = vadd.f32 0.0, %v1799
      %v1801 = vpop.f32.mrb[0].mxu0
      %1802 = vdwg.mxu0
      %v1803 = vadd.f32 %v1529, %v1677
      %v1804 = vadd.f32 %v1530, %v1680
      %v1805 = vadd.f32 %v1531, %v1685
      %v1806 = vadd.f32 %v1532, %v1688
      %v1807 = vadd.f32 %v1533, %v1693
      %v1808 = vadd.f32 %v1534, %v1696
      %v1809 = vadd.f32 %v1535, %v1701
      %v1810 = vadd.f32 %v1536, %v1704
      %v1811 = vadd.f32 %v1537, %v1709
      %v1812 = vadd.f32 %v1538, %v1712
      %v1813 = vadd.f32 %v1539, %v1717
      %v1814 = vadd.f32 %v1540, %v1720
      %v1815 = vadd.f32 %v1541, %v1725
      %v1816 = vadd.f32 %v1542, %v1728
      %v1817 = vadd.f32 %v1543, %v1733
      %v1818 = vadd.f32 %v1544, %v1736
      %v1819 = vadd.f32 %v1545, %v1741
      %v1820 = vadd.f32 %v1546, %v1744
      %v1821 = vadd.f32 %v1547, %v1749
      %v1822 = vadd.f32 %v1548, %v1752
      %v1823 = vadd.f32 %v1549, %v1757
      %v1824 = vadd.f32 %v1550, %v1760
      %v1825 = vadd.f32 %v1551, %v1765
      %v1826 = vadd.f32 %v1552, %v1768
      %v1827 = vadd.f32 %v1553, %v1773
      %v1828 = vadd.f32 %v1554, %v1776
      %v1829 = vadd.f32 %v1555, %v1781
      %v1830 = vadd.f32 %v1556, %v1784
      %v1831 = vadd.f32 %v1557, %v1789
      %v1832 = vadd.f32 %v1558, %v1792
      %v1833 = vadd.f32 %v1559, %v1797
      %v1834 = vadd.f32 %v1560, %v1800
      %1835 = vst [vmem:[#allocation3] sm:$0xff] %v1803
      %1836 = vst [vmem:[#allocation3 + $0x8] sm:$0xff] %v1804
      %1837 = vst [vmem:[#allocation3 + $0x10] sm:$0xff] %v1805
      %1838 = vst [vmem:[#allocation3 + $0x18] sm:$0xff] %v1806
      %1839 = vst [vmem:[#allocation3 + $0x20] sm:$0xff] %v1807
      %1840 = vst [vmem:[#allocation3 + $0x28] sm:$0xff] %v1808
      %1841 = vst [vmem:[#allocation3 + $0x30] sm:$0xff] %v1809
      %1842 = vst [vmem:[#allocation3 + $0x38] sm:$0xff] %v1810
      %1843 = vst [vmem:[#allocation3 + $0x40] sm:$0xff] %v1811
      %1844 = vst [vmem:[#allocation3 + $0x48] sm:$0xff] %v1812
      %1845 = vst [vmem:[#allocation3 + $0x50] sm:$0xff] %v1813
      %1846 = vst [vmem:[#allocation3 + $0x58] sm:$0xff] %v1814
      %1847 = vst [vmem:[#allocation3 + $0x60] sm:$0xff] %v1815
      %1848 = vst [vmem:[#allocation3 + $0x68] sm:$0xff] %v1816
      %1849 = vst [vmem:[#allocation3 + $0x70] sm:$0xff] %v1817
      %1850 = vst [vmem:[#allocation3 + $0x78] sm:$0xff] %v1818
      %1851 = vst [vmem:[#allocation3 + $0x80] sm:$0xff] %v1819
      %1852 = vst [vmem:[#allocation3 + $0x88] sm:$0xff] %v1820
      %1853 = vst [vmem:[#allocation3 + $0x90] sm:$0xff] %v1821
      %1854 = vst [vmem:[#allocation3 + $0x98] sm:$0xff] %v1822
      %1855 = vst [vmem:[#allocation3 + $0xa0] sm:$0xff] %v1823
      %1856 = vst [vmem:[#allocation3 + $0xa8] sm:$0xff] %v1824
      %1857 = vst [vmem:[#allocation3 + $0xb0] sm:$0xff] %v1825
      %1858 = vst [vmem:[#allocation3 + $0xb8] sm:$0xff] %v1826
      %1859 = vst [vmem:[#allocation3 + $0xc0] sm:$0xff] %v1827
      %1860 = vst [vmem:[#allocation3 + $0xc8] sm:$0xff] %v1828
      %1861 = vst [vmem:[#allocation3 + $0xd0] sm:$0xff] %v1829
      %1862 = vst [vmem:[#allocation3 + $0xd8] sm:$0xff] %v1830
      %1863 = vst [vmem:[#allocation3 + $0xe0] sm:$0xff] %v1831
      %1864 = vst [vmem:[#allocation3 + $0xe8] sm:$0xff] %v1832
      %1865 = vst [vmem:[#allocation3 + $0xf0] sm:$0xff] %v1833
      %1866 = vst [vmem:[#allocation3 + $0xf8] sm:$0xff] %v1834
      %s1867 = scalar_lea.vmem [#allocation2], 24
      %v1868 = vld [vmem:[%s1867] sm:$0xff]
      %v1869 = vld [vmem:[%s1867 + $0x8] sm:$0xff]
      %v1870 = vld [vmem:[%s1867 + $0x18] sm:$0xff]
      %v1871 = vld [vmem:[%s1867 + $0x20] sm:$0xff]
      %v1872 = vld [vmem:[%s1867 + $0x30] sm:$0xff]
      %v1873 = vld [vmem:[%s1867 + $0x38] sm:$0xff]
      %v1874 = vld [vmem:[%s1867 + $0x48] sm:$0xff]
      %v1875 = vld [vmem:[%s1867 + $0x50] sm:$0xff]
      %v1876 = vld [vmem:[%s1867 + $0x60] sm:$0xff]
      %v1877 = vld [vmem:[%s1867 + $0x68] sm:$0xff]
      %v1878 = vld [vmem:[%s1867 + $0x78] sm:$0xff]
      %v1879 = vld [vmem:[%s1867 + $0x80] sm:$0xff]
      %v1880 = vld [vmem:[%s1867 + $0x90] sm:$0xff]
      %v1881 = vld [vmem:[%s1867 + $0x98] sm:$0xff]
      %v1882 = vld [vmem:[%s1867 + $0xa8] sm:$0xff]
      %v1883 = vld [vmem:[%s1867 + $0xb0] sm:$0xff]
      %v1884 = vld [vmem:[%s1867 + $0xc0] sm:$0xff]
      %v1885 = vld [vmem:[%s1867 + $0xc8] sm:$0xff]
      %v1886 = vld [vmem:[%s1867 + $0xd8] sm:$0xff]
      %v1887 = vld [vmem:[%s1867 + $0xe0] sm:$0xff]
      %v1888 = vld [vmem:[%s1867 + $0xf0] sm:$0xff]
      %v1889 = vld [vmem:[%s1867 + $0xf8] sm:$0xff]
      %v1890 = vld [vmem:[%s1867 + $0x108] sm:$0xff]
      %v1891 = vld [vmem:[%s1867 + $0x110] sm:$0xff]
      %v1892 = vld [vmem:[%s1867 + $0x120] sm:$0xff]
      %v1893 = vld [vmem:[%s1867 + $0x128] sm:$0xff]
      %v1894 = vld [vmem:[%s1867 + $0x138] sm:$0xff]
      %v1895 = vld [vmem:[%s1867 + $0x140] sm:$0xff]
      %v1896 = vld [vmem:[%s1867 + $0x150] sm:$0xff]
      %v1897 = vld [vmem:[%s1867 + $0x158] sm:$0xff]
      %v1898 = vld [vmem:[%s1867 + $0x168] sm:$0xff]
      %v1899 = vld [vmem:[%s1867 + $0x170] sm:$0xff]
      %v1900 = vld [vmem:[#allocation3] sm:$0xff]
      %v1901 = vld [vmem:[#allocation3 + $0x8] sm:$0xff]
      %v1902 = vld [vmem:[#allocation3 + $0x10] sm:$0xff]
      %v1903 = vld [vmem:[#allocation3 + $0x18] sm:$0xff]
      %v1904 = vld [vmem:[#allocation3 + $0x20] sm:$0xff]
      %v1905 = vld [vmem:[#allocation3 + $0x28] sm:$0xff]
      %v1906 = vld [vmem:[#allocation3 + $0x30] sm:$0xff]
      %v1907 = vld [vmem:[#allocation3 + $0x38] sm:$0xff]
      %v1908 = vld [vmem:[#allocation3 + $0x40] sm:$0xff]
      %v1909 = vld [vmem:[#allocation3 + $0x48] sm:$0xff]
      %v1910 = vld [vmem:[#allocation3 + $0x50] sm:$0xff]
      %v1911 = vld [vmem:[#allocation3 + $0x58] sm:$0xff]
      %v1912 = vld [vmem:[#allocation3 + $0x60] sm:$0xff]
      %v1913 = vld [vmem:[#allocation3 + $0x68] sm:$0xff]
      %v1914 = vld [vmem:[#allocation3 + $0x70] sm:$0xff]
      %v1915 = vld [vmem:[#allocation3 + $0x78] sm:$0xff]
      %v1916 = vld [vmem:[#allocation3 + $0x80] sm:$0xff]
      %v1917 = vld [vmem:[#allocation3 + $0x88] sm:$0xff]
      %v1918 = vld [vmem:[#allocation3 + $0x90] sm:$0xff]
      %v1919 = vld [vmem:[#allocation3 + $0x98] sm:$0xff]
      %v1920 = vld [vmem:[#allocation3 + $0xa0] sm:$0xff]
      %v1921 = vld [vmem:[#allocation3 + $0xa8] sm:$0xff]
      %v1922 = vld [vmem:[#allocation3 + $0xb0] sm:$0xff]
      %v1923 = vld [vmem:[#allocation3 + $0xb8] sm:$0xff]
      %v1924 = vld [vmem:[#allocation3 + $0xc0] sm:$0xff]
      %v1925 = vld [vmem:[#allocation3 + $0xc8] sm:$0xff]
      %v1926 = vld [vmem:[#allocation3 + $0xd0] sm:$0xff]
      %v1927 = vld [vmem:[#allocation3 + $0xd8] sm:$0xff]
      %v1928 = vld [vmem:[#allocation3 + $0xe0] sm:$0xff]
      %v1929 = vld [vmem:[#allocation3 + $0xe8] sm:$0xff]
      %v1930 = vld [vmem:[#allocation3 + $0xf0] sm:$0xff]
      %v1931 = vld [vmem:[#allocation3 + $0xf8] sm:$0xff]
      %v1932 = vpack.c.bf16 %v1869, %v1868
      %v1933 = vpack.c.bf16 %v1871, %v1870
      %v1934 = vpack.c.bf16 %v1873, %v1872
      %v1935 = vpack.c.bf16 %v1875, %v1874
      %v1936 = vpack.c.bf16 %v1877, %v1876
      %v1937 = vpack.c.bf16 %v1879, %v1878
      %v1938 = vpack.c.bf16 %v1881, %v1880
      %v1939 = vpack.c.bf16 %v1883, %v1882
      %v1940 = vpack.c.bf16 %v1885, %v1884
      %v1941 = vpack.c.bf16 %v1887, %v1886
      %v1942 = vpack.c.bf16 %v1889, %v1888
      %v1943 = vpack.c.bf16 %v1891, %v1890
      %v1944 = vpack.c.bf16 %v1893, %v1892
      %v1945 = vpack.c.bf16 %v1895, %v1894
      %v1946 = vpack.c.bf16 %v1897, %v1896
      %v1947 = vpack.c.bf16 %v1899, %v1898
      %s1948 = scalar_lea.vmem %s4, 192
      %v1949 = vld [vmem:[%s1948] sm:$0xf]
      %v1950 = vld [vmem:[%s1948 + $0x4] sm:$0xf]
      %v1951 = vld [vmem:[%s1948 + $0x8] sm:$0xf]
      %v1952 = vld [vmem:[%s1948 + $0xc] sm:$0xf]
      %v1953 = vld [vmem:[%s1948 + $0x10] sm:$0xf]
      %v1954 = vld [vmem:[%s1948 + $0x14] sm:$0xf]
      %v1955 = vld [vmem:[%s1948 + $0x18] sm:$0xf]
      %v1956 = vld [vmem:[%s1948 + $0x1c] sm:$0xf]
      %v1957 = vld [vmem:[%s1948 + $0x20] sm:$0xf]
      %v1958 = vld [vmem:[%s1948 + $0x24] sm:$0xf]
      %v1959 = vld [vmem:[%s1948 + $0x28] sm:$0xf]
      %v1960 = vld [vmem:[%s1948 + $0x2c] sm:$0xf]
      %v1961 = vld [vmem:[%s1948 + $0x30] sm:$0xf]
      %v1962 = vld [vmem:[%s1948 + $0x34] sm:$0xf]
      %v1963 = vld [vmem:[%s1948 + $0x38] sm:$0xf]
      %v1964 = vld [vmem:[%s1948 + $0x3c] sm:$0xf]
      %v1981 = vunpack.c.l.b16 %v1949
      %v1982 = vunpack.c.l.b16 %v1950
      %v1983 = vunpack.c.l.b16 %v1951
      %v1984 = vunpack.c.l.b16 %v1952
      %v1985 = vunpack.c.l.b16 %v1953
      %v1986 = vunpack.c.l.b16 %v1954
      %v1987 = vunpack.c.l.b16 %v1955
      %v1988 = vunpack.c.l.b16 %v1956
      %v1989 = vunpack.c.l.b16 %v1957
      %v1990 = vunpack.c.l.b16 %v1958
      %v1991 = vunpack.c.l.b16 %v1959
      %v1992 = vunpack.c.l.b16 %v1960
      %v1993 = vunpack.c.l.b16 %v1961
      %v1994 = vunpack.c.l.b16 %v1962
      %v1995 = vunpack.c.l.b16 %v1963
      %v1996 = vunpack.c.l.b16 %v1964
      %v1997 = vpack.c.b16 %v1982, %v1981
      %v1998 = vpack.c.b16 %v1984, %v1983
      %v1999 = vpack.c.b16 %v1986, %v1985
      %v2000 = vpack.c.b16 %v1988, %v1987
      %v2001 = vpack.c.b16 %v1990, %v1989
      %v2002 = vpack.c.b16 %v1992, %v1991
      %v2003 = vpack.c.b16 %v1994, %v1993
      %v2004 = vpack.c.b16 %v1996, %v1995
      %2013 = vmatprep.subr.bf16.mxu0 0
      %2014 = vmatpush1.bf16.msra.mxu0 %v1997
      %2015 = vmatprep.subr.bf16.mxu0 0
      %2016 = vmatpush1.bf16.msra.mxu0 %v1998
      %2017 = vmatprep.subr.bf16.mxu0 0
      %2018 = vmatpush1.bf16.msra.mxu0 %v1999
      %2019 = vmatprep.subr.bf16.mxu0 0
      %2020 = vmatpush1.bf16.msra.mxu0 %v2000
      %2021 = vmatprep.subr.bf16.mxu0 0
      %2022 = vmatpush1.bf16.msra.mxu0 %v2001
      %2023 = vmatprep.subr.bf16.mxu0 0
      %2024 = vmatpush1.bf16.msra.mxu0 %v2002
      %2025 = vmatprep.subr.bf16.mxu0 0
      %2026 = vmatpush1.bf16.msra.mxu0 %v2003
      %2027 = vmatprep.subr.bf16.mxu0 0
      %2028 = vmatpush1.bf16.msra.mxu0 %v2004
      %2029 = vmatprep.subr.bf16.mxu0 0
      %2030 = vmatpush1.bf16.msra.mxu0 0
      %2031 = vmatprep.subr.bf16.mxu0 0
      %2032 = vmatpush1.bf16.msra.mxu0 0
      %2033 = vmatprep.subr.bf16.mxu0 0
      %2034 = vmatpush1.bf16.msra.mxu0 0
      %2035 = vmatprep.subr.bf16.mxu0 0
      %2036 = vmatpush1.bf16.msra.mxu0 0
      %2037 = vmatprep.subr.bf16.mxu0 0
      %2038 = vmatpush1.bf16.msra.mxu0 0
      %2039 = vmatprep.subr.bf16.mxu0 0
      %2040 = vmatpush1.bf16.msra.mxu0 0
      %2041 = vmatprep.subr.bf16.mxu0 0
      %2042 = vmatpush1.bf16.msra.mxu0 0
      %2043 = vmatprep.subr.bf16.mxu0 0
      %2044 = vmatpush1.bf16.msra.mxu0 0
      %2045 = vmatprep.mubr.bf16.mxu0 0
      %2046 = vmatmul.mubr.bf16.gmra.mrb[0].mxu0 %v1932
      %v2047 = vpop.f32.mrb[0].mxu0
      %v2048 = vadd.f32 0.0, %v2047
      %v2049 = vpop.f32.mrb[0].mxu0
      %v2050 = vpop.f32.mrb[0].mxu0
      %v2051 = vadd.f32 0.0, %v2050
      %v2052 = vpop.f32.mrb[0].mxu0
      %2053 = vmatprep.mubr.bf16.mxu0 0
      %2054 = vmatmul.mubr.bf16.gmra.mrb[0].mxu0 %v1933
      %v2055 = vpop.f32.mrb[0].mxu0
      %v2056 = vadd.f32 0.0, %v2055
      %v2057 = vpop.f32.mrb[0].mxu0
      %v2058 = vpop.f32.mrb[0].mxu0
      %v2059 = vadd.f32 0.0, %v2058
      %v2060 = vpop.f32.mrb[0].mxu0
      %2061 = vmatprep.mubr.bf16.mxu0 0
      %2062 = vmatmul.mubr.bf16.gmra.mrb[0].mxu0 %v1934
      %v2063 = vpop.f32.mrb[0].mxu0
      %v2064 = vadd.f32 0.0, %v2063
      %v2065 = vpop.f32.mrb[0].mxu0
      %v2066 = vpop.f32.mrb[0].mxu0
      %v2067 = vadd.f32 0.0, %v2066
      %v2068 = vpop.f32.mrb[0].mxu0
      %2069 = vmatprep.mubr.bf16.mxu0 0
      %2070 = vmatmul.mubr.bf16.gmra.mrb[0].mxu0 %v1935
      %v2071 = vpop.f32.mrb[0].mxu0
      %v2072 = vadd.f32 0.0, %v2071
      %v2073 = vpop.f32.mrb[0].mxu0
      %v2074 = vpop.f32.mrb[0].mxu0
      %v2075 = vadd.f32 0.0, %v2074
      %v2076 = vpop.f32.mrb[0].mxu0
      %2077 = vmatprep.mubr.bf16.mxu0 0
      %2078 = vmatmul.mubr.bf16.gmra.mrb[0].mxu0 %v1936
      %v2079 = vpop.f32.mrb[0].mxu0
      %v2080 = vadd.f32 0.0, %v2079
      %v2081 = vpop.f32.mrb[0].mxu0
      %v2082 = vpop.f32.mrb[0].mxu0
      %v2083 = vadd.f32 0.0, %v2082
      %v2084 = vpop.f32.mrb[0].mxu0
      %2085 = vmatprep.mubr.bf16.mxu0 0
      %2086 = vmatmul.mubr.bf16.gmra.mrb[0].mxu0 %v1937
      %v2087 = vpop.f32.mrb[0].mxu0
      %v2088 = vadd.f32 0.0, %v2087
      %v2089 = vpop.f32.mrb[0].mxu0
      %v2090 = vpop.f32.mrb[0].mxu0
      %v2091 = vadd.f32 0.0, %v2090
      %v2092 = vpop.f32.mrb[0].mxu0
      %2093 = vmatprep.mubr.bf16.mxu0 0
      %2094 = vmatmul.mubr.bf16.gmra.mrb[0].mxu0 %v1938
      %v2095 = vpop.f32.mrb[0].mxu0
      %v2096 = vadd.f32 0.0, %v2095
      %v2097 = vpop.f32.mrb[0].mxu0
      %v2098 = vpop.f32.mrb[0].mxu0
      %v2099 = vadd.f32 0.0, %v2098
      %v2100 = vpop.f32.mrb[0].mxu0
      %2101 = vmatprep.mubr.bf16.mxu0 0
      %2102 = vmatmul.mubr.bf16.gmra.mrb[0].mxu0 %v1939
      %v2103 = vpop.f32.mrb[0].mxu0
      %v2104 = vadd.f32 0.0, %v2103
      %v2105 = vpop.f32.mrb[0].mxu0
      %v2106 = vpop.f32.mrb[0].mxu0
      %v2107 = vadd.f32 0.0, %v2106
      %v2108 = vpop.f32.mrb[0].mxu0
      %2109 = vmatprep.mubr.bf16.mxu0 0
      %2110 = vmatmul.mubr.bf16.gmra.mrb[0].mxu0 %v1940
      %v2111 = vpop.f32.mrb[0].mxu0
      %v2112 = vadd.f32 0.0, %v2111
      %v2113 = vpop.f32.mrb[0].mxu0
      %v2114 = vpop.f32.mrb[0].mxu0
      %v2115 = vadd.f32 0.0, %v2114
      %v2116 = vpop.f32.mrb[0].mxu0
      %2117 = vmatprep.mubr.bf16.mxu0 0
      %2118 = vmatmul.mubr.bf16.gmra.mrb[0].mxu0 %v1941
      %v2119 = vpop.f32.mrb[0].mxu0
      %v2120 = vadd.f32 0.0, %v2119
      %v2121 = vpop.f32.mrb[0].mxu0
      %v2122 = vpop.f32.mrb[0].mxu0
      %v2123 = vadd.f32 0.0, %v2122
      %v2124 = vpop.f32.mrb[0].mxu0
      %2125 = vmatprep.mubr.bf16.mxu0 0
      %2126 = vmatmul.mubr.bf16.gmra.mrb[0].mxu0 %v1942
      %v2127 = vpop.f32.mrb[0].mxu0
      %v2128 = vadd.f32 0.0, %v2127
      %v2129 = vpop.f32.mrb[0].mxu0
      %v2130 = vpop.f32.mrb[0].mxu0
      %v2131 = vadd.f32 0.0, %v2130
      %v2132 = vpop.f32.mrb[0].mxu0
      %2133 = vmatprep.mubr.bf16.mxu0 0
      %2134 = vmatmul.mubr.bf16.gmra.mrb[0].mxu0 %v1943
      %v2135 = vpop.f32.mrb[0].mxu0
      %v2136 = vadd.f32 0.0, %v2135
      %v2137 = vpop.f32.mrb[0].mxu0
      %v2138 = vpop.f32.mrb[0].mxu0
      %v2139 = vadd.f32 0.0, %v2138
      %v2140 = vpop.f32.mrb[0].mxu0
      %2141 = vmatprep.mubr.bf16.mxu0 0
      %2142 = vmatmul.mubr.bf16.gmra.mrb[0].mxu0 %v1944
      %v2143 = vpop.f32.mrb[0].mxu0
      %v2144 = vadd.f32 0.0, %v2143
      %v2145 = vpop.f32.mrb[0].mxu0
      %v2146 = vpop.f32.mrb[0].mxu0
      %v2147 = vadd.f32 0.0, %v2146
      %v2148 = vpop.f32.mrb[0].mxu0
      %2149 = vmatprep.mubr.bf16.mxu0 0
      %2150 = vmatmul.mubr.bf16.gmra.mrb[0].mxu0 %v1945
      %v2151 = vpop.f32.mrb[0].mxu0
      %v2152 = vadd.f32 0.0, %v2151
      %v2153 = vpop.f32.mrb[0].mxu0
      %v2154 = vpop.f32.mrb[0].mxu0
      %v2155 = vadd.f32 0.0, %v2154
      %v2156 = vpop.f32.mrb[0].mxu0
      %2157 = vmatprep.mubr.bf16.mxu0 0
      %2158 = vmatmul.mubr.bf16.gmra.mrb[0].mxu0 %v1946
      %v2159 = vpop.f32.mrb[0].mxu0
      %v2160 = vadd.f32 0.0, %v2159
      %v2161 = vpop.f32.mrb[0].mxu0
      %v2162 = vpop.f32.mrb[0].mxu0
      %v2163 = vadd.f32 0.0, %v2162
      %v2164 = vpop.f32.mrb[0].mxu0
      %2165 = vmatprep.mubr.bf16.mxu0 0
      %2166 = vmatmul.mubr.bf16.gmra.mrb[0].mxu0 %v1947
      %v2167 = vpop.f32.mrb[0].mxu0
      %v2168 = vadd.f32 0.0, %v2167
      %v2169 = vpop.f32.mrb[0].mxu0
      %v2170 = vpop.f32.mrb[0].mxu0
      %v2171 = vadd.f32 0.0, %v2170
      %v2172 = vpop.f32.mrb[0].mxu0
      %2173 = vdwg.mxu0
      %v2174 = vadd.f32 %v1900, %v2048
      %v2175 = vadd.f32 %v1901, %v2051
      %v2176 = vadd.f32 %v1902, %v2056
      %v2177 = vadd.f32 %v1903, %v2059
      %v2178 = vadd.f32 %v1904, %v2064
      %v2179 = vadd.f32 %v1905, %v2067
      %v2180 = vadd.f32 %v1906, %v2072
      %v2181 = vadd.f32 %v1907, %v2075
      %v2182 = vadd.f32 %v1908, %v2080
      %v2183 = vadd.f32 %v1909, %v2083
      %v2184 = vadd.f32 %v1910, %v2088
      %v2185 = vadd.f32 %v1911, %v2091
      %v2186 = vadd.f32 %v1912, %v2096
      %v2187 = vadd.f32 %v1913, %v2099
      %v2188 = vadd.f32 %v1914, %v2104
      %v2189 = vadd.f32 %v1915, %v2107
      %v2190 = vadd.f32 %v1916, %v2112
      %v2191 = vadd.f32 %v1917, %v2115
      %v2192 = vadd.f32 %v1918, %v2120
      %v2193 = vadd.f32 %v1919, %v2123
      %v2194 = vadd.f32 %v1920, %v2128
      %v2195 = vadd.f32 %v1921, %v2131
      %v2196 = vadd.f32 %v1922, %v2136
      %v2197 = vadd.f32 %v1923, %v2139
      %v2198 = vadd.f32 %v1924, %v2144
      %v2199 = vadd.f32 %v1925, %v2147
      %v2200 = vadd.f32 %v1926, %v2152
      %v2201 = vadd.f32 %v1927, %v2155
      %v2202 = vadd.f32 %v1928, %v2160
      %v2203 = vadd.f32 %v1929, %v2163
      %v2204 = vadd.f32 %v1930, %v2168
      %v2205 = vadd.f32 %v1931, %v2171
      %2206 = vst [vmem:[#allocation3] sm:$0xff] %v2174
      %2207 = vst [vmem:[#allocation3 + $0x8] sm:$0xff] %v2175
      %2208 = vst [vmem:[#allocation3 + $0x10] sm:$0xff] %v2176
      %2209 = vst [vmem:[#allocation3 + $0x18] sm:$0xff] %v2177
      %2210 = vst [vmem:[#allocation3 + $0x20] sm:$0xff] %v2178
      %2211 = vst [vmem:[#allocation3 + $0x28] sm:$0xff] %v2179
      %2212 = vst [vmem:[#allocation3 + $0x30] sm:$0xff] %v2180
      %2213 = vst [vmem:[#allocation3 + $0x38] sm:$0xff] %v2181
      %2214 = vst [vmem:[#allocation3 + $0x40] sm:$0xff] %v2182
      %2215 = vst [vmem:[#allocation3 + $0x48] sm:$0xff] %v2183
      %2216 = vst [vmem:[#allocation3 + $0x50] sm:$0xff] %v2184
      %2217 = vst [vmem:[#allocation3 + $0x58] sm:$0xff] %v2185
      %2218 = vst [vmem:[#allocation3 + $0x60] sm:$0xff] %v2186
      %2219 = vst [vmem:[#allocation3 + $0x68] sm:$0xff] %v2187
      %2220 = vst [vmem:[#allocation3 + $0x70] sm:$0xff] %v2188
      %2221 = vst [vmem:[#allocation3 + $0x78] sm:$0xff] %v2189
      %2222 = vst [vmem:[#allocation3 + $0x80] sm:$0xff] %v2190
      %2223 = vst [vmem:[#allocation3 + $0x88] sm:$0xff] %v2191
      %2224 = vst [vmem:[#allocation3 + $0x90] sm:$0xff] %v2192
      %2225 = vst [vmem:[#allocation3 + $0x98] sm:$0xff] %v2193
      %2226 = vst [vmem:[#allocation3 + $0xa0] sm:$0xff] %v2194
      %2227 = vst [vmem:[#allocation3 + $0xa8] sm:$0xff] %v2195
      %2228 = vst [vmem:[#allocation3 + $0xb0] sm:$0xff] %v2196
      %2229 = vst [vmem:[#allocation3 + $0xb8] sm:$0xff] %v2197
      %2230 = vst [vmem:[#allocation3 + $0xc0] sm:$0xff] %v2198
      %2231 = vst [vmem:[#allocation3 + $0xc8] sm:$0xff] %v2199
      %2232 = vst [vmem:[#allocation3 + $0xd0] sm:$0xff] %v2200
      %2233 = vst [vmem:[#allocation3 + $0xd8] sm:$0xff] %v2201
      %2234 = vst [vmem:[#allocation3 + $0xe0] sm:$0xff] %v2202
      %2235 = vst [vmem:[#allocation3 + $0xe8] sm:$0xff] %v2203
      %2236 = vst [vmem:[#allocation3 + $0xf0] sm:$0xff] %v2204
      %2237 = vst [vmem:[#allocation3 + $0xf8] sm:$0xff] %v2205
      %v2238 = vld [vmem:[%s1867 + $0x1] sm:$0xff]
      %v2239 = vld [vmem:[%s1867 + $0x9] sm:$0xff]
      %v2240 = vld [vmem:[%s1867 + $0x19] sm:$0xff]
      %v2241 = vld [vmem:[%s1867 + $0x21] sm:$0xff]
      %v2242 = vld [vmem:[%s1867 + $0x31] sm:$0xff]
      %v2243 = vld [vmem:[%s1867 + $0x39] sm:$0xff]
      %v2244 = vld [vmem:[%s1867 + $0x49] sm:$0xff]
      %v2245 = vld [vmem:[%s1867 + $0x51] sm:$0xff]
      %v2246 = vld [vmem:[%s1867 + $0x61] sm:$0xff]
      %v2247 = vld [vmem:[%s1867 + $0x69] sm:$0xff]
      %v2248 = vld [vmem:[%s1867 + $0x79] sm:$0xff]
      %v2249 = vld [vmem:[%s1867 + $0x81] sm:$0xff]
      %v2250 = vld [vmem:[%s1867 + $0x91] sm:$0xff]
      %v2251 = vld [vmem:[%s1867 + $0x99] sm:$0xff]
      %v2252 = vld [vmem:[%s1867 + $0xa9] sm:$0xff]
      %v2253 = vld [vmem:[%s1867 + $0xb1] sm:$0xff]
      %v2254 = vld [vmem:[%s1867 + $0xc1] sm:$0xff]
      %v2255 = vld [vmem:[%s1867 + $0xc9] sm:$0xff]
      %v2256 = vld [vmem:[%s1867 + $0xd9] sm:$0xff]
      %v2257 = vld [vmem:[%s1867 + $0xe1] sm:$0xff]
      %v2258 = vld [vmem:[%s1867 + $0xf1] sm:$0xff]
      %v2259 = vld [vmem:[%s1867 + $0xf9] sm:$0xff]
      %v2260 = vld [vmem:[%s1867 + $0x109] sm:$0xff]
      %v2261 = vld [vmem:[%s1867 + $0x111] sm:$0xff]
      %v2262 = vld [vmem:[%s1867 + $0x121] sm:$0xff]
      %v2263 = vld [vmem:[%s1867 + $0x129] sm:$0xff]
      %v2264 = vld [vmem:[%s1867 + $0x139] sm:$0xff]
      %v2265 = vld [vmem:[%s1867 + $0x141] sm:$0xff]
      %v2266 = vld [vmem:[%s1867 + $0x151] sm:$0xff]
      %v2267 = vld [vmem:[%s1867 + $0x159] sm:$0xff]
      %v2268 = vld [vmem:[%s1867 + $0x169] sm:$0xff]
      %v2269 = vld [vmem:[%s1867 + $0x171] sm:$0xff]
      %v2270 = vld [vmem:[#allocation3] sm:$0xff]
      %v2271 = vld [vmem:[#allocation3 + $0x8] sm:$0xff]
      %v2272 = vld [vmem:[#allocation3 + $0x10] sm:$0xff]
      %v2273 = vld [vmem:[#allocation3 + $0x18] sm:$0xff]
      %v2274 = vld [vmem:[#allocation3 + $0x20] sm:$0xff]
      %v2275 = vld [vmem:[#allocation3 + $0x28] sm:$0xff]
      %v2276 = vld [vmem:[#allocation3 + $0x30] sm:$0xff]
      %v2277 = vld [vmem:[#allocation3 + $0x38] sm:$0xff]
      %v2278 = vld [vmem:[#allocation3 + $0x40] sm:$0xff]
      %v2279 = vld [vmem:[#allocation3 + $0x48] sm:$0xff]
      %v2280 = vld [vmem:[#allocation3 + $0x50] sm:$0xff]
      %v2281 = vld [vmem:[#allocation3 + $0x58] sm:$0xff]
      %v2282 = vld [vmem:[#allocation3 + $0x60] sm:$0xff]
      %v2283 = vld [vmem:[#allocation3 + $0x68] sm:$0xff]
      %v2284 = vld [vmem:[#allocation3 + $0x70] sm:$0xff]
      %v2285 = vld [vmem:[#allocation3 + $0x78] sm:$0xff]
      %v2286 = vld [vmem:[#allocation3 + $0x80] sm:$0xff]
      %v2287 = vld [vmem:[#allocation3 + $0x88] sm:$0xff]
      %v2288 = vld [vmem:[#allocation3 + $0x90] sm:$0xff]
      %v2289 = vld [vmem:[#allocation3 + $0x98] sm:$0xff]
      %v2290 = vld [vmem:[#allocation3 + $0xa0] sm:$0xff]
      %v2291 = vld [vmem:[#allocation3 + $0xa8] sm:$0xff]
      %v2292 = vld [vmem:[#allocation3 + $0xb0] sm:$0xff]
      %v2293 = vld [vmem:[#allocation3 + $0xb8] sm:$0xff]
      %v2294 = vld [vmem:[#allocation3 + $0xc0] sm:$0xff]
      %v2295 = vld [vmem:[#allocation3 + $0xc8] sm:$0xff]
      %v2296 = vld [vmem:[#allocation3 + $0xd0] sm:$0xff]
      %v2297 = vld [vmem:[#allocation3 + $0xd8] sm:$0xff]
      %v2298 = vld [vmem:[#allocation3 + $0xe0] sm:$0xff]
      %v2299 = vld [vmem:[#allocation3 + $0xe8] sm:$0xff]
      %v2300 = vld [vmem:[#allocation3 + $0xf0] sm:$0xff]
      %v2301 = vld [vmem:[#allocation3 + $0xf8] sm:$0xff]
      %v2302 = vpack.c.bf16 %v2239, %v2238
      %v2303 = vpack.c.bf16 %v2241, %v2240
      %v2304 = vpack.c.bf16 %v2243, %v2242
      %v2305 = vpack.c.bf16 %v2245, %v2244
      %v2306 = vpack.c.bf16 %v2247, %v2246
      %v2307 = vpack.c.bf16 %v2249, %v2248
      %v2308 = vpack.c.bf16 %v2251, %v2250
      %v2309 = vpack.c.bf16 %v2253, %v2252
      %v2310 = vpack.c.bf16 %v2255, %v2254
      %v2311 = vpack.c.bf16 %v2257, %v2256
      %v2312 = vpack.c.bf16 %v2259, %v2258
      %v2313 = vpack.c.bf16 %v2261, %v2260
      %v2314 = vpack.c.bf16 %v2263, %v2262
      %v2315 = vpack.c.bf16 %v2265, %v2264
      %v2316 = vpack.c.bf16 %v2267, %v2266
      %v2317 = vpack.c.bf16 %v2269, %v2268
      %s2318 = scalar_lea.vmem %s4, 256
      %v2319 = vld [vmem:[%s2318] sm:$0xf]
      %v2320 = vld [vmem:[%s2318 + $0x4] sm:$0xf]
      %v2321 = vld [vmem:[%s2318 + $0x8] sm:$0xf]
      %v2322 = vld [vmem:[%s2318 + $0xc] sm:$0xf]
      %v2323 = vld [vmem:[%s2318 + $0x10] sm:$0xf]
      %v2324 = vld [vmem:[%s2318 + $0x14] sm:$0xf]
      %v2325 = vld [vmem:[%s2318 + $0x18] sm:$0xf]
      %v2326 = vld [vmem:[%s2318 + $0x1c] sm:$0xf]
      %v2327 = vld [vmem:[%s2318 + $0x20] sm:$0xf]
      %v2328 = vld [vmem:[%s2318 + $0x24] sm:$0xf]
      %v2329 = vld [vmem:[%s2318 + $0x28] sm:$0xf]
      %v2330 = vld [vmem:[%s2318 + $0x2c] sm:$0xf]
      %v2331 = vld [vmem:[%s2318 + $0x30] sm:$0xf]
      %v2332 = vld [vmem:[%s2318 + $0x34] sm:$0xf]
      %v2333 = vld [vmem:[%s2318 + $0x38] sm:$0xf]
      %v2334 = vld [vmem:[%s2318 + $0x3c] sm:$0xf]
      %v2351 = vunpack.c.l.b16 %v2319
      %v2352 = vunpack.c.l.b16 %v2320
      %v2353 = vunpack.c.l.b16 %v2321
      %v2354 = vunpack.c.l.b16 %v2322
      %v2355 = vunpack.c.l.b16 %v2323
      %v2356 = vunpack.c.l.b16 %v2324
      %v2357 = vunpack.c.l.b16 %v2325
      %v2358 = vunpack.c.l.b16 %v2326
      %v2359 = vunpack.c.l.b16 %v2327
      %v2360 = vunpack.c.l.b16 %v2328
      %v2361 = vunpack.c.l.b16 %v2329
      %v2362 = vunpack.c.l.b16 %v2330
      %v2363 = vunpack.c.l.b16 %v2331
      %v2364 = vunpack.c.l.b16 %v2332
      %v2365 = vunpack.c.l.b16 %v2333
      %v2366 = vunpack.c.l.b16 %v2334
      %v2367 = vpack.c.b16 %v2352, %v2351
      %v2368 = vpack.c.b16 %v2354, %v2353
      %v2369 = vpack.c.b16 %v2356, %v2355
      %v2370 = vpack.c.b16 %v2358, %v2357
      %v2371 = vpack.c.b16 %v2360, %v2359
      %v2372 = vpack.c.b16 %v2362, %v2361
      %v2373 = vpack.c.b16 %v2364, %v2363
      %v2374 = vpack.c.b16 %v2366, %v2365
      %2383 = vmatprep.subr.bf16.mxu0 0
      %2384 = vmatpush1.bf16.msra.mxu0 %v2367
      %2385 = vmatprep.subr.bf16.mxu0 0
      %2386 = vmatpush1.bf16.msra.mxu0 %v2368
      %2387 = vmatprep.subr.bf16.mxu0 0
      %2388 = vmatpush1.bf16.msra.mxu0 %v2369
      %2389 = vmatprep.subr.bf16.mxu0 0
      %2390 = vmatpush1.bf16.msra.mxu0 %v2370
      %2391 = vmatprep.subr.bf16.mxu0 0
      %2392 = vmatpush1.bf16.msra.mxu0 %v2371
      %2393 = vmatprep.subr.bf16.mxu0 0
      %2394 = vmatpush1.bf16.msra.mxu0 %v2372
      %2395 = vmatprep.subr.bf16.mxu0 0
      %2396 = vmatpush1.bf16.msra.mxu0 %v2373
      %2397 = vmatprep.subr.bf16.mxu0 0
      %2398 = vmatpush1.bf16.msra.mxu0 %v2374
      %2399 = vmatprep.subr.bf16.mxu0 0
      %2400 = vmatpush1.bf16.msra.mxu0 0
      %2401 = vmatprep.subr.bf16.mxu0 0
      %2402 = vmatpush1.bf16.msra.mxu0 0
      %2403 = vmatprep.subr.bf16.mxu0 0
      %2404 = vmatpush1.bf16.msra.mxu0 0
      %2405 = vmatprep.subr.bf16.mxu0 0
      %2406 = vmatpush1.bf16.msra.mxu0 0
      %2407 = vmatprep.subr.bf16.mxu0 0
      %2408 = vmatpush1.bf16.msra.mxu0 0
      %2409 = vmatprep.subr.bf16.mxu0 0
      %2410 = vmatpush1.bf16.msra.mxu0 0
      %2411 = vmatprep.subr.bf16.mxu0 0
      %2412 = vmatpush1.bf16.msra.mxu0 0
      %2413 = vmatprep.subr.bf16.mxu0 0
      %2414 = vmatpush1.bf16.msra.mxu0 0
      %2415 = vmatprep.mubr.bf16.mxu0 0
      %2416 = vmatmul.mubr.bf16.gmra.mrb[0].mxu0 %v2302
      %v2417 = vpop.f32.mrb[0].mxu0
      %v2418 = vadd.f32 0.0, %v2417
      %v2419 = vpop.f32.mrb[0].mxu0
      %v2420 = vpop.f32.mrb[0].mxu0
      %v2421 = vadd.f32 0.0, %v2420
      %v2422 = vpop.f32.mrb[0].mxu0
      %2423 = vmatprep.mubr.bf16.mxu0 0
      %2424 = vmatmul.mubr.bf16.gmra.mrb[0].mxu0 %v2303
      %v2425 = vpop.f32.mrb[0].mxu0
      %v2426 = vadd.f32 0.0, %v2425
      %v2427 = vpop.f32.mrb[0].mxu0
      %v2428 = vpop.f32.mrb[0].mxu0
      %v2429 = vadd.f32 0.0, %v2428
      %v2430 = vpop.f32.mrb[0].mxu0
      %2431 = vmatprep.mubr.bf16.mxu0 0
      %2432 = vmatmul.mubr.bf16.gmra.mrb[0].mxu0 %v2304
      %v2433 = vpop.f32.mrb[0].mxu0
      %v2434 = vadd.f32 0.0, %v2433
      %v2435 = vpop.f32.mrb[0].mxu0
      %v2436 = vpop.f32.mrb[0].mxu0
      %v2437 = vadd.f32 0.0, %v2436
      %v2438 = vpop.f32.mrb[0].mxu0
      %2439 = vmatprep.mubr.bf16.mxu0 0
      %2440 = vmatmul.mubr.bf16.gmra.mrb[0].mxu0 %v2305
      %v2441 = vpop.f32.mrb[0].mxu0
      %v2442 = vadd.f32 0.0, %v2441
      %v2443 = vpop.f32.mrb[0].mxu0
      %v2444 = vpop.f32.mrb[0].mxu0
      %v2445 = vadd.f32 0.0, %v2444
      %v2446 = vpop.f32.mrb[0].mxu0
      %2447 = vmatprep.mubr.bf16.mxu0 0
      %2448 = vmatmul.mubr.bf16.gmra.mrb[0].mxu0 %v2306
      %v2449 = vpop.f32.mrb[0].mxu0
      %v2450 = vadd.f32 0.0, %v2449
      %v2451 = vpop.f32.mrb[0].mxu0
      %v2452 = vpop.f32.mrb[0].mxu0
      %v2453 = vadd.f32 0.0, %v2452
      %v2454 = vpop.f32.mrb[0].mxu0
      %2455 = vmatprep.mubr.bf16.mxu0 0
      %2456 = vmatmul.mubr.bf16.gmra.mrb[0].mxu0 %v2307
      %v2457 = vpop.f32.mrb[0].mxu0
      %v2458 = vadd.f32 0.0, %v2457
      %v2459 = vpop.f32.mrb[0].mxu0
      %v2460 = vpop.f32.mrb[0].mxu0
      %v2461 = vadd.f32 0.0, %v2460
      %v2462 = vpop.f32.mrb[0].mxu0
      %2463 = vmatprep.mubr.bf16.mxu0 0
      %2464 = vmatmul.mubr.bf16.gmra.mrb[0].mxu0 %v2308
      %v2465 = vpop.f32.mrb[0].mxu0
      %v2466 = vadd.f32 0.0, %v2465
      %v2467 = vpop.f32.mrb[0].mxu0
      %v2468 = vpop.f32.mrb[0].mxu0
      %v2469 = vadd.f32 0.0, %v2468
      %v2470 = vpop.f32.mrb[0].mxu0
      %2471 = vmatprep.mubr.bf16.mxu0 0
      %2472 = vmatmul.mubr.bf16.gmra.mrb[0].mxu0 %v2309
      %v2473 = vpop.f32.mrb[0].mxu0
      %v2474 = vadd.f32 0.0, %v2473
      %v2475 = vpop.f32.mrb[0].mxu0
      %v2476 = vpop.f32.mrb[0].mxu0
      %v2477 = vadd.f32 0.0, %v2476
      %v2478 = vpop.f32.mrb[0].mxu0
      %2479 = vmatprep.mubr.bf16.mxu0 0
      %2480 = vmatmul.mubr.bf16.gmra.mrb[0].mxu0 %v2310
      %v2481 = vpop.f32.mrb[0].mxu0
      %v2482 = vadd.f32 0.0, %v2481
      %v2483 = vpop.f32.mrb[0].mxu0
      %v2484 = vpop.f32.mrb[0].mxu0
      %v2485 = vadd.f32 0.0, %v2484
      %v2486 = vpop.f32.mrb[0].mxu0
      %2487 = vmatprep.mubr.bf16.mxu0 0
      %2488 = vmatmul.mubr.bf16.gmra.mrb[0].mxu0 %v2311
      %v2489 = vpop.f32.mrb[0].mxu0
      %v2490 = vadd.f32 0.0, %v2489
      %v2491 = vpop.f32.mrb[0].mxu0
      %v2492 = vpop.f32.mrb[0].mxu0
      %v2493 = vadd.f32 0.0, %v2492
      %v2494 = vpop.f32.mrb[0].mxu0
      %2495 = vmatprep.mubr.bf16.mxu0 0
      %2496 = vmatmul.mubr.bf16.gmra.mrb[0].mxu0 %v2312
      %v2497 = vpop.f32.mrb[0].mxu0
      %v2498 = vadd.f32 0.0, %v2497
      %v2499 = vpop.f32.mrb[0].mxu0
      %v2500 = vpop.f32.mrb[0].mxu0
      %v2501 = vadd.f32 0.0, %v2500
      %v2502 = vpop.f32.mrb[0].mxu0
      %2503 = vmatprep.mubr.bf16.mxu0 0
      %2504 = vmatmul.mubr.bf16.gmra.mrb[0].mxu0 %v2313
      %v2505 = vpop.f32.mrb[0].mxu0
      %v2506 = vadd.f32 0.0, %v2505
      %v2507 = vpop.f32.mrb[0].mxu0
      %v2508 = vpop.f32.mrb[0].mxu0
      %v2509 = vadd.f32 0.0, %v2508
      %v2510 = vpop.f32.mrb[0].mxu0
      %2511 = vmatprep.mubr.bf16.mxu0 0
      %2512 = vmatmul.mubr.bf16.gmra.mrb[0].mxu0 %v2314
      %v2513 = vpop.f32.mrb[0].mxu0
      %v2514 = vadd.f32 0.0, %v2513
      %v2515 = vpop.f32.mrb[0].mxu0
      %v2516 = vpop.f32.mrb[0].mxu0
      %v2517 = vadd.f32 0.0, %v2516
      %v2518 = vpop.f32.mrb[0].mxu0
      %2519 = vmatprep.mubr.bf16.mxu0 0
      %2520 = vmatmul.mubr.bf16.gmra.mrb[0].mxu0 %v2315
      %v2521 = vpop.f32.mrb[0].mxu0
      %v2522 = vadd.f32 0.0, %v2521
      %v2523 = vpop.f32.mrb[0].mxu0
      %v2524 = vpop.f32.mrb[0].mxu0
      %v2525 = vadd.f32 0.0, %v2524
      %v2526 = vpop.f32.mrb[0].mxu0
      %2527 = vmatprep.mubr.bf16.mxu0 0
      %2528 = vmatmul.mubr.bf16.gmra.mrb[0].mxu0 %v2316
      %v2529 = vpop.f32.mrb[0].mxu0
      %v2530 = vadd.f32 0.0, %v2529
      %v2531 = vpop.f32.mrb[0].mxu0
      %v2532 = vpop.f32.mrb[0].mxu0
      %v2533 = vadd.f32 0.0, %v2532
      %v2534 = vpop.f32.mrb[0].mxu0
      %2535 = vmatprep.mubr.bf16.mxu0 0
      %2536 = vmatmul.mubr.bf16.gmra.mrb[0].mxu0 %v2317
      %v2537 = vpop.f32.mrb[0].mxu0
      %v2538 = vadd.f32 0.0, %v2537
      %v2539 = vpop.f32.mrb[0].mxu0
      %v2540 = vpop.f32.mrb[0].mxu0
      %v2541 = vadd.f32 0.0, %v2540
      %v2542 = vpop.f32.mrb[0].mxu0
      %2543 = vdwg.mxu0
      %v2544 = vadd.f32 %v2270, %v2418
      %v2545 = vadd.f32 %v2271, %v2421
      %v2546 = vadd.f32 %v2272, %v2426
      %v2547 = vadd.f32 %v2273, %v2429
      %v2548 = vadd.f32 %v2274, %v2434
      %v2549 = vadd.f32 %v2275, %v2437
      %v2550 = vadd.f32 %v2276, %v2442
      %v2551 = vadd.f32 %v2277, %v2445
      %v2552 = vadd.f32 %v2278, %v2450
      %v2553 = vadd.f32 %v2279, %v2453
      %v2554 = vadd.f32 %v2280, %v2458
      %v2555 = vadd.f32 %v2281, %v2461
      %v2556 = vadd.f32 %v2282, %v2466
      %v2557 = vadd.f32 %v2283, %v2469
      %v2558 = vadd.f32 %v2284, %v2474
      %v2559 = vadd.f32 %v2285, %v2477
      %v2560 = vadd.f32 %v2286, %v2482
      %v2561 = vadd.f32 %v2287, %v2485
      %v2562 = vadd.f32 %v2288, %v2490
      %v2563 = vadd.f32 %v2289, %v2493
      %v2564 = vadd.f32 %v2290, %v2498
      %v2565 = vadd.f32 %v2291, %v2501
      %v2566 = vadd.f32 %v2292, %v2506
      %v2567 = vadd.f32 %v2293, %v2509
      %v2568 = vadd.f32 %v2294, %v2514
      %v2569 = vadd.f32 %v2295, %v2517
      %v2570 = vadd.f32 %v2296, %v2522
      %v2571 = vadd.f32 %v2297, %v2525
      %v2572 = vadd.f32 %v2298, %v2530
      %v2573 = vadd.f32 %v2299, %v2533
      %v2574 = vadd.f32 %v2300, %v2538
      %v2575 = vadd.f32 %v2301, %v2541
      %2576 = vst [vmem:[#allocation3] sm:$0xff] %v2544
      %2577 = vst [vmem:[#allocation3 + $0x8] sm:$0xff] %v2545
      %2578 = vst [vmem:[#allocation3 + $0x10] sm:$0xff] %v2546
      %2579 = vst [vmem:[#allocation3 + $0x18] sm:$0xff] %v2547
      %2580 = vst [vmem:[#allocation3 + $0x20] sm:$0xff] %v2548
      %2581 = vst [vmem:[#allocation3 + $0x28] sm:$0xff] %v2549
      %2582 = vst [vmem:[#allocation3 + $0x30] sm:$0xff] %v2550
      %2583 = vst [vmem:[#allocation3 + $0x38] sm:$0xff] %v2551
      %2584 = vst [vmem:[#allocation3 + $0x40] sm:$0xff] %v2552
      %2585 = vst [vmem:[#allocation3 + $0x48] sm:$0xff] %v2553
      %2586 = vst [vmem:[#allocation3 + $0x50] sm:$0xff] %v2554
      %2587 = vst [vmem:[#allocation3 + $0x58] sm:$0xff] %v2555
      %2588 = vst [vmem:[#allocation3 + $0x60] sm:$0xff] %v2556
      %2589 = vst [vmem:[#allocation3 + $0x68] sm:$0xff] %v2557
      %2590 = vst [vmem:[#allocation3 + $0x70] sm:$0xff] %v2558
      %2591 = vst [vmem:[#allocation3 + $0x78] sm:$0xff] %v2559
      %2592 = vst [vmem:[#allocation3 + $0x80] sm:$0xff] %v2560
      %2593 = vst [vmem:[#allocation3 + $0x88] sm:$0xff] %v2561
      %2594 = vst [vmem:[#allocation3 + $0x90] sm:$0xff] %v2562
      %2595 = vst [vmem:[#allocation3 + $0x98] sm:$0xff] %v2563
      %2596 = vst [vmem:[#allocation3 + $0xa0] sm:$0xff] %v2564
      %2597 = vst [vmem:[#allocation3 + $0xa8] sm:$0xff] %v2565
      %2598 = vst [vmem:[#allocation3 + $0xb0] sm:$0xff] %v2566
      %2599 = vst [vmem:[#allocation3 + $0xb8] sm:$0xff] %v2567
      %2600 = vst [vmem:[#allocation3 + $0xc0] sm:$0xff] %v2568
      %2601 = vst [vmem:[#allocation3 + $0xc8] sm:$0xff] %v2569
      %2602 = vst [vmem:[#allocation3 + $0xd0] sm:$0xff] %v2570
      %2603 = vst [vmem:[#allocation3 + $0xd8] sm:$0xff] %v2571
      %2604 = vst [vmem:[#allocation3 + $0xe0] sm:$0xff] %v2572
      %2605 = vst [vmem:[#allocation3 + $0xe8] sm:$0xff] %v2573
      %2606 = vst [vmem:[#allocation3 + $0xf0] sm:$0xff] %v2574
      %2607 = vst [vmem:[#allocation3 + $0xf8] sm:$0xff] %v2575
      %v2608 = vld [vmem:[%s1867 + $0x2] sm:$0xff]
      %v2609 = vld [vmem:[%s1867 + $0xa] sm:$0xff]
      %v2610 = vld [vmem:[%s1867 + $0x1a] sm:$0xff]
      %v2611 = vld [vmem:[%s1867 + $0x22] sm:$0xff]
      %v2612 = vld [vmem:[%s1867 + $0x32] sm:$0xff]
      %v2613 = vld [vmem:[%s1867 + $0x3a] sm:$0xff]
      %v2614 = vld [vmem:[%s1867 + $0x4a] sm:$0xff]
      %v2615 = vld [vmem:[%s1867 + $0x52] sm:$0xff]
      %v2616 = vld [vmem:[%s1867 + $0x62] sm:$0xff]
      %v2617 = vld [vmem:[%s1867 + $0x6a] sm:$0xff]
      %v2618 = vld [vmem:[%s1867 + $0x7a] sm:$0xff]
      %v2619 = vld [vmem:[%s1867 + $0x82] sm:$0xff]
      %v2620 = vld [vmem:[%s1867 + $0x92] sm:$0xff]
      %v2621 = vld [vmem:[%s1867 + $0x9a] sm:$0xff]
      %v2622 = vld [vmem:[%s1867 + $0xaa] sm:$0xff]
      %v2623 = vld [vmem:[%s1867 + $0xb2] sm:$0xff]
      %v2624 = vld [vmem:[%s1867 + $0xc2] sm:$0xff]
      %v2625 = vld [vmem:[%s1867 + $0xca] sm:$0xff]
      %v2626 = vld [vmem:[%s1867 + $0xda] sm:$0xff]
      %v2627 = vld [vmem:[%s1867 + $0xe2] sm:$0xff]
      %v2628 = vld [vmem:[%s1867 + $0xf2] sm:$0xff]
      %v2629 = vld [vmem:[%s1867 + $0xfa] sm:$0xff]
      %v2630 = vld [vmem:[%s1867 + $0x10a] sm:$0xff]
      %v2631 = vld [vmem:[%s1867 + $0x112] sm:$0xff]
      %v2632 = vld [vmem:[%s1867 + $0x122] sm:$0xff]
      %v2633 = vld [vmem:[%s1867 + $0x12a] sm:$0xff]
      %v2634 = vld [vmem:[%s1867 + $0x13a] sm:$0xff]
      %v2635 = vld [vmem:[%s1867 + $0x142] sm:$0xff]
      %v2636 = vld [vmem:[%s1867 + $0x152] sm:$0xff]
      %v2637 = vld [vmem:[%s1867 + $0x15a] sm:$0xff]
      %v2638 = vld [vmem:[%s1867 + $0x16a] sm:$0xff]
      %v2639 = vld [vmem:[%s1867 + $0x172] sm:$0xff]
      %v2640 = vld [vmem:[#allocation3] sm:$0xff]
      %v2641 = vld [vmem:[#allocation3 + $0x8] sm:$0xff]
      %v2642 = vld [vmem:[#allocation3 + $0x10] sm:$0xff]
      %v2643 = vld [vmem:[#allocation3 + $0x18] sm:$0xff]
      %v2644 = vld [vmem:[#allocation3 + $0x20] sm:$0xff]
      %v2645 = vld [vmem:[#allocation3 + $0x28] sm:$0xff]
      %v2646 = vld [vmem:[#allocation3 + $0x30] sm:$0xff]
      %v2647 = vld [vmem:[#allocation3 + $0x38] sm:$0xff]
      %v2648 = vld [vmem:[#allocation3 + $0x40] sm:$0xff]
      %v2649 = vld [vmem:[#allocation3 + $0x48] sm:$0xff]
      %v2650 = vld [vmem:[#allocation3 + $0x50] sm:$0xff]
      %v2651 = vld [vmem:[#allocation3 + $0x58] sm:$0xff]
      %v2652 = vld [vmem:[#allocation3 + $0x60] sm:$0xff]
      %v2653 = vld [vmem:[#allocation3 + $0x68] sm:$0xff]
      %v2654 = vld [vmem:[#allocation3 + $0x70] sm:$0xff]
      %v2655 = vld [vmem:[#allocation3 + $0x78] sm:$0xff]
      %v2656 = vld [vmem:[#allocation3 + $0x80] sm:$0xff]
      %v2657 = vld [vmem:[#allocation3 + $0x88] sm:$0xff]
      %v2658 = vld [vmem:[#allocation3 + $0x90] sm:$0xff]
      %v2659 = vld [vmem:[#allocation3 + $0x98] sm:$0xff]
      %v2660 = vld [vmem:[#allocation3 + $0xa0] sm:$0xff]
      %v2661 = vld [vmem:[#allocation3 + $0xa8] sm:$0xff]
      %v2662 = vld [vmem:[#allocation3 + $0xb0] sm:$0xff]
      %v2663 = vld [vmem:[#allocation3 + $0xb8] sm:$0xff]
      %v2664 = vld [vmem:[#allocation3 + $0xc0] sm:$0xff]
      %v2665 = vld [vmem:[#allocation3 + $0xc8] sm:$0xff]
      %v2666 = vld [vmem:[#allocation3 + $0xd0] sm:$0xff]
      %v2667 = vld [vmem:[#allocation3 + $0xd8] sm:$0xff]
      %v2668 = vld [vmem:[#allocation3 + $0xe0] sm:$0xff]
      %v2669 = vld [vmem:[#allocation3 + $0xe8] sm:$0xff]
      %v2670 = vld [vmem:[#allocation3 + $0xf0] sm:$0xff]
      %v2671 = vld [vmem:[#allocation3 + $0xf8] sm:$0xff]
      %v2672 = vpack.c.bf16 %v2609, %v2608
      %v2673 = vpack.c.bf16 %v2611, %v2610
      %v2674 = vpack.c.bf16 %v2613, %v2612
      %v2675 = vpack.c.bf16 %v2615, %v2614
      %v2676 = vpack.c.bf16 %v2617, %v2616
      %v2677 = vpack.c.bf16 %v2619, %v2618
      %v2678 = vpack.c.bf16 %v2621, %v2620
      %v2679 = vpack.c.bf16 %v2623, %v2622
      %v2680 = vpack.c.bf16 %v2625, %v2624
      %v2681 = vpack.c.bf16 %v2627, %v2626
      %v2682 = vpack.c.bf16 %v2629, %v2628
      %v2683 = vpack.c.bf16 %v2631, %v2630
      %v2684 = vpack.c.bf16 %v2633, %v2632
      %v2685 = vpack.c.bf16 %v2635, %v2634
      %v2686 = vpack.c.bf16 %v2637, %v2636
      %v2687 = vpack.c.bf16 %v2639, %v2638
      %s2688 = scalar_lea.vmem %s4, 320
      %v2689 = vld [vmem:[%s2688] sm:$0xf]
      %v2690 = vld [vmem:[%s2688 + $0x4] sm:$0xf]
      %v2691 = vld [vmem:[%s2688 + $0x8] sm:$0xf]
      %v2692 = vld [vmem:[%s2688 + $0xc] sm:$0xf]
      %v2693 = vld [vmem:[%s2688 + $0x10] sm:$0xf]
      %v2694 = vld [vmem:[%s2688 + $0x14] sm:$0xf]
      %v2695 = vld [vmem:[%s2688 + $0x18] sm:$0xf]
      %v2696 = vld [vmem:[%s2688 + $0x1c] sm:$0xf]
      %v2697 = vld [vmem:[%s2688 + $0x20] sm:$0xf]
      %v2698 = vld [vmem:[%s2688 + $0x24] sm:$0xf]
      %v2699 = vld [vmem:[%s2688 + $0x28] sm:$0xf]
      %v2700 = vld [vmem:[%s2688 + $0x2c] sm:$0xf]
      %v2701 = vld [vmem:[%s2688 + $0x30] sm:$0xf]
      %v2702 = vld [vmem:[%s2688 + $0x34] sm:$0xf]
      %v2703 = vld [vmem:[%s2688 + $0x38] sm:$0xf]
      %v2704 = vld [vmem:[%s2688 + $0x3c] sm:$0xf]
      %v2721 = vunpack.c.l.b16 %v2689
      %v2722 = vunpack.c.l.b16 %v2690
      %v2723 = vunpack.c.l.b16 %v2691
      %v2724 = vunpack.c.l.b16 %v2692
      %v2725 = vunpack.c.l.b16 %v2693
      %v2726 = vunpack.c.l.b16 %v2694
      %v2727 = vunpack.c.l.b16 %v2695
      %v2728 = vunpack.c.l.b16 %v2696
      %v2729 = vunpack.c.l.b16 %v2697
      %v2730 = vunpack.c.l.b16 %v2698
      %v2731 = vunpack.c.l.b16 %v2699
      %v2732 = vunpack.c.l.b16 %v2700
      %v2733 = vunpack.c.l.b16 %v2701
      %v2734 = vunpack.c.l.b16 %v2702
      %v2735 = vunpack.c.l.b16 %v2703
      %v2736 = vunpack.c.l.b16 %v2704
      %v2737 = vpack.c.b16 %v2722, %v2721
      %v2738 = vpack.c.b16 %v2724, %v2723
      %v2739 = vpack.c.b16 %v2726, %v2725
      %v2740 = vpack.c.b16 %v2728, %v2727
      %v2741 = vpack.c.b16 %v2730, %v2729
      %v2742 = vpack.c.b16 %v2732, %v2731
      %v2743 = vpack.c.b16 %v2734, %v2733
      %v2744 = vpack.c.b16 %v2736, %v2735
      %2753 = vmatprep.subr.bf16.mxu0 0
      %2754 = vmatpush1.bf16.msra.mxu0 %v2737
      %2755 = vmatprep.subr.bf16.mxu0 0
      %2756 = vmatpush1.bf16.msra.mxu0 %v2738
      %2757 = vmatprep.subr.bf16.mxu0 0
      %2758 = vmatpush1.bf16.msra.mxu0 %v2739
      %2759 = vmatprep.subr.bf16.mxu0 0
      %2760 = vmatpush1.bf16.msra.mxu0 %v2740
      %2761 = vmatprep.subr.bf16.mxu0 0
      %2762 = vmatpush1.bf16.msra.mxu0 %v2741
      %2763 = vmatprep.subr.bf16.mxu0 0
      %2764 = vmatpush1.bf16.msra.mxu0 %v2742
      %2765 = vmatprep.subr.bf16.mxu0 0
      %2766 = vmatpush1.bf16.msra.mxu0 %v2743
      %2767 = vmatprep.subr.bf16.mxu0 0
      %2768 = vmatpush1.bf16.msra.mxu0 %v2744
      %2769 = vmatprep.subr.bf16.mxu0 0
      %2770 = vmatpush1.bf16.msra.mxu0 0
      %2771 = vmatprep.subr.bf16.mxu0 0
      %2772 = vmatpush1.bf16.msra.mxu0 0
      %2773 = vmatprep.subr.bf16.mxu0 0
      %2774 = vmatpush1.bf16.msra.mxu0 0
      %2775 = vmatprep.subr.bf16.mxu0 0
      %2776 = vmatpush1.bf16.msra.mxu0 0
      %2777 = vmatprep.subr.bf16.mxu0 0
      %2778 = vmatpush1.bf16.msra.mxu0 0
      %2779 = vmatprep.subr.bf16.mxu0 0
      %2780 = vmatpush1.bf16.msra.mxu0 0
      %2781 = vmatprep.subr.bf16.mxu0 0
      %2782 = vmatpush1.bf16.msra.mxu0 0
      %2783 = vmatprep.subr.bf16.mxu0 0
      %2784 = vmatpush1.bf16.msra.mxu0 0
      %2785 = vmatprep.mubr.bf16.mxu0 0
      %2786 = vmatmul.mubr.bf16.gmra.mrb[0].mxu0 %v2672
      %v2787 = vpop.f32.mrb[0].mxu0
      %v2788 = vadd.f32 0.0, %v2787
      %v2789 = vpop.f32.mrb[0].mxu0
      %v2790 = vpop.f32.mrb[0].mxu0
      %v2791 = vadd.f32 0.0, %v2790
      %v2792 = vpop.f32.mrb[0].mxu0
      %2793 = vmatprep.mubr.bf16.mxu0 0
      %2794 = vmatmul.mubr.bf16.gmra.mrb[0].mxu0 %v2673
      %v2795 = vpop.f32.mrb[0].mxu0
      %v2796 = vadd.f32 0.0, %v2795
      %v2797 = vpop.f32.mrb[0].mxu0
      %v2798 = vpop.f32.mrb[0].mxu0
      %v2799 = vadd.f32 0.0, %v2798
      %v2800 = vpop.f32.mrb[0].mxu0
      %2801 = vmatprep.mubr.bf16.mxu0 0
      %2802 = vmatmul.mubr.bf16.gmra.mrb[0].mxu0 %v2674
      %v2803 = vpop.f32.mrb[0].mxu0
      %v2804 = vadd.f32 0.0, %v2803
      %v2805 = vpop.f32.mrb[0].mxu0
      %v2806 = vpop.f32.mrb[0].mxu0
      %v2807 = vadd.f32 0.0, %v2806
      %v2808 = vpop.f32.mrb[0].mxu0
      %2809 = vmatprep.mubr.bf16.mxu0 0
      %2810 = vmatmul.mubr.bf16.gmra.mrb[0].mxu0 %v2675
      %v2811 = vpop.f32.mrb[0].mxu0
      %v2812 = vadd.f32 0.0, %v2811
      %v2813 = vpop.f32.mrb[0].mxu0
      %v2814 = vpop.f32.mrb[0].mxu0
      %v2815 = vadd.f32 0.0, %v2814
      %v2816 = vpop.f32.mrb[0].mxu0
      %2817 = vmatprep.mubr.bf16.mxu0 0
      %2818 = vmatmul.mubr.bf16.gmra.mrb[0].mxu0 %v2676
      %v2819 = vpop.f32.mrb[0].mxu0
      %v2820 = vadd.f32 0.0, %v2819
      %v2821 = vpop.f32.mrb[0].mxu0
      %v2822 = vpop.f32.mrb[0].mxu0
      %v2823 = vadd.f32 0.0, %v2822
      %v2824 = vpop.f32.mrb[0].mxu0
      %2825 = vmatprep.mubr.bf16.mxu0 0
      %2826 = vmatmul.mubr.bf16.gmra.mrb[0].mxu0 %v2677
      %v2827 = vpop.f32.mrb[0].mxu0
      %v2828 = vadd.f32 0.0, %v2827
      %v2829 = vpop.f32.mrb[0].mxu0
      %v2830 = vpop.f32.mrb[0].mxu0
      %v2831 = vadd.f32 0.0, %v2830
      %v2832 = vpop.f32.mrb[0].mxu0
      %2833 = vmatprep.mubr.bf16.mxu0 0
      %2834 = vmatmul.mubr.bf16.gmra.mrb[0].mxu0 %v2678
      %v2835 = vpop.f32.mrb[0].mxu0
      %v2836 = vadd.f32 0.0, %v2835
      %v2837 = vpop.f32.mrb[0].mxu0
      %v2838 = vpop.f32.mrb[0].mxu0
      %v2839 = vadd.f32 0.0, %v2838
      %v2840 = vpop.f32.mrb[0].mxu0
      %2841 = vmatprep.mubr.bf16.mxu0 0
      %2842 = vmatmul.mubr.bf16.gmra.mrb[0].mxu0 %v2679
      %v2843 = vpop.f32.mrb[0].mxu0
      %v2844 = vadd.f32 0.0, %v2843
      %v2845 = vpop.f32.mrb[0].mxu0
      %v2846 = vpop.f32.mrb[0].mxu0
      %v2847 = vadd.f32 0.0, %v2846
      %v2848 = vpop.f32.mrb[0].mxu0
      %2849 = vmatprep.mubr.bf16.mxu0 0
      %2850 = vmatmul.mubr.bf16.gmra.mrb[0].mxu0 %v2680
      %v2851 = vpop.f32.mrb[0].mxu0
      %v2852 = vadd.f32 0.0, %v2851
      %v2853 = vpop.f32.mrb[0].mxu0
      %v2854 = vpop.f32.mrb[0].mxu0
      %v2855 = vadd.f32 0.0, %v2854
      %v2856 = vpop.f32.mrb[0].mxu0
      %2857 = vmatprep.mubr.bf16.mxu0 0
      %2858 = vmatmul.mubr.bf16.gmra.mrb[0].mxu0 %v2681
      %v2859 = vpop.f32.mrb[0].mxu0
      %v2860 = vadd.f32 0.0, %v2859
      %v2861 = vpop.f32.mrb[0].mxu0
      %v2862 = vpop.f32.mrb[0].mxu0
      %v2863 = vadd.f32 0.0, %v2862
      %v2864 = vpop.f32.mrb[0].mxu0
      %2865 = vmatprep.mubr.bf16.mxu0 0
      %2866 = vmatmul.mubr.bf16.gmra.mrb[0].mxu0 %v2682
      %v2867 = vpop.f32.mrb[0].mxu0
      %v2868 = vadd.f32 0.0, %v2867
      %v2869 = vpop.f32.mrb[0].mxu0
      %v2870 = vpop.f32.mrb[0].mxu0
      %v2871 = vadd.f32 0.0, %v2870
      %v2872 = vpop.f32.mrb[0].mxu0
      %2873 = vmatprep.mubr.bf16.mxu0 0
      %2874 = vmatmul.mubr.bf16.gmra.mrb[0].mxu0 %v2683
      %v2875 = vpop.f32.mrb[0].mxu0
      %v2876 = vadd.f32 0.0, %v2875
      %v2877 = vpop.f32.mrb[0].mxu0
      %v2878 = vpop.f32.mrb[0].mxu0
      %v2879 = vadd.f32 0.0, %v2878
      %v2880 = vpop.f32.mrb[0].mxu0
      %2881 = vmatprep.mubr.bf16.mxu0 0
      %2882 = vmatmul.mubr.bf16.gmra.mrb[0].mxu0 %v2684
      %v2883 = vpop.f32.mrb[0].mxu0
      %v2884 = vadd.f32 0.0, %v2883
      %v2885 = vpop.f32.mrb[0].mxu0
      %v2886 = vpop.f32.mrb[0].mxu0
      %v2887 = vadd.f32 0.0, %v2886
      %v2888 = vpop.f32.mrb[0].mxu0
      %2889 = vmatprep.mubr.bf16.mxu0 0
      %2890 = vmatmul.mubr.bf16.gmra.mrb[0].mxu0 %v2685
      %v2891 = vpop.f32.mrb[0].mxu0
      %v2892 = vadd.f32 0.0, %v2891
      %v2893 = vpop.f32.mrb[0].mxu0
      %v2894 = vpop.f32.mrb[0].mxu0
      %v2895 = vadd.f32 0.0, %v2894
      %v2896 = vpop.f32.mrb[0].mxu0
      %2897 = vmatprep.mubr.bf16.mxu0 0
      %2898 = vmatmul.mubr.bf16.gmra.mrb[0].mxu0 %v2686
      %v2899 = vpop.f32.mrb[0].mxu0
      %v2900 = vadd.f32 0.0, %v2899
      %v2901 = vpop.f32.mrb[0].mxu0
      %v2902 = vpop.f32.mrb[0].mxu0
      %v2903 = vadd.f32 0.0, %v2902
      %v2904 = vpop.f32.mrb[0].mxu0
      %2905 = vmatprep.mubr.bf16.mxu0 0
      %2906 = vmatmul.mubr.bf16.gmra.mrb[0].mxu0 %v2687
      %v2907 = vpop.f32.mrb[0].mxu0
      %v2908 = vadd.f32 0.0, %v2907
      %v2909 = vpop.f32.mrb[0].mxu0
      %v2910 = vpop.f32.mrb[0].mxu0
      %v2911 = vadd.f32 0.0, %v2910
      %v2912 = vpop.f32.mrb[0].mxu0
      %2913 = vdwg.mxu0
      %v2914 = vadd.f32 %v2640, %v2788
      %v2915 = vadd.f32 %v2641, %v2791
      %v2916 = vadd.f32 %v2642, %v2796
      %v2917 = vadd.f32 %v2643, %v2799
      %v2918 = vadd.f32 %v2644, %v2804
      %v2919 = vadd.f32 %v2645, %v2807
      %v2920 = vadd.f32 %v2646, %v2812
      %v2921 = vadd.f32 %v2647, %v2815
      %v2922 = vadd.f32 %v2648, %v2820
      %v2923 = vadd.f32 %v2649, %v2823
      %v2924 = vadd.f32 %v2650, %v2828
      %v2925 = vadd.f32 %v2651, %v2831
      %v2926 = vadd.f32 %v2652, %v2836
      %v2927 = vadd.f32 %v2653, %v2839
      %v2928 = vadd.f32 %v2654, %v2844
      %v2929 = vadd.f32 %v2655, %v2847
      %v2930 = vadd.f32 %v2656, %v2852
      %v2931 = vadd.f32 %v2657, %v2855
      %v2932 = vadd.f32 %v2658, %v2860
      %v2933 = vadd.f32 %v2659, %v2863
      %v2934 = vadd.f32 %v2660, %v2868
      %v2935 = vadd.f32 %v2661, %v2871
      %v2936 = vadd.f32 %v2662, %v2876
      %v2937 = vadd.f32 %v2663, %v2879
      %v2938 = vadd.f32 %v2664, %v2884
      %v2939 = vadd.f32 %v2665, %v2887
      %v2940 = vadd.f32 %v2666, %v2892
      %v2941 = vadd.f32 %v2667, %v2895
      %v2942 = vadd.f32 %v2668, %v2900
      %v2943 = vadd.f32 %v2669, %v2903
      %v2944 = vadd.f32 %v2670, %v2908
      %v2945 = vadd.f32 %v2671, %v2911
      %2946 = vst [vmem:[#allocation3] sm:$0xff] %v2914
      %2947 = vst [vmem:[#allocation3 + $0x8] sm:$0xff] %v2915
      %2948 = vst [vmem:[#allocation3 + $0x10] sm:$0xff] %v2916
      %2949 = vst [vmem:[#allocation3 + $0x18] sm:$0xff] %v2917
      %2950 = vst [vmem:[#allocation3 + $0x20] sm:$0xff] %v2918
      %2951 = vst [vmem:[#allocation3 + $0x28] sm:$0xff] %v2919
      %2952 = vst [vmem:[#allocation3 + $0x30] sm:$0xff] %v2920
      %2953 = vst [vmem:[#allocation3 + $0x38] sm:$0xff] %v2921
      %2954 = vst [vmem:[#allocation3 + $0x40] sm:$0xff] %v2922
      %2955 = vst [vmem:[#allocation3 + $0x48] sm:$0xff] %v2923
      %2956 = vst [vmem:[#allocation3 + $0x50] sm:$0xff] %v2924
      %2957 = vst [vmem:[#allocation3 + $0x58] sm:$0xff] %v2925
      %2958 = vst [vmem:[#allocation3 + $0x60] sm:$0xff] %v2926
      %2959 = vst [vmem:[#allocation3 + $0x68] sm:$0xff] %v2927
      %2960 = vst [vmem:[#allocation3 + $0x70] sm:$0xff] %v2928
      %2961 = vst [vmem:[#allocation3 + $0x78] sm:$0xff] %v2929
      %2962 = vst [vmem:[#allocation3 + $0x80] sm:$0xff] %v2930
      %2963 = vst [vmem:[#allocation3 + $0x88] sm:$0xff] %v2931
      %2964 = vst [vmem:[#allocation3 + $0x90] sm:$0xff] %v2932
      %2965 = vst [vmem:[#allocation3 + $0x98] sm:$0xff] %v2933
      %2966 = vst [vmem:[#allocation3 + $0xa0] sm:$0xff] %v2934
      %2967 = vst [vmem:[#allocation3 + $0xa8] sm:$0xff] %v2935
      %2968 = vst [vmem:[#allocation3 + $0xb0] sm:$0xff] %v2936
      %2969 = vst [vmem:[#allocation3 + $0xb8] sm:$0xff] %v2937
      %2970 = vst [vmem:[#allocation3 + $0xc0] sm:$0xff] %v2938
      %2971 = vst [vmem:[#allocation3 + $0xc8] sm:$0xff] %v2939
      %2972 = vst [vmem:[#allocation3 + $0xd0] sm:$0xff] %v2940
      %2973 = vst [vmem:[#allocation3 + $0xd8] sm:$0xff] %v2941
      %2974 = vst [vmem:[#allocation3 + $0xe0] sm:$0xff] %v2942
      %2975 = vst [vmem:[#allocation3 + $0xe8] sm:$0xff] %v2943
      %2976 = vst [vmem:[#allocation3 + $0xf0] sm:$0xff] %v2944
      %2977 = vst [vmem:[#allocation3 + $0xf8] sm:$0xff] %v2945
      %s2978 = scalar_lea.vmem [#allocation2], 48
      %v2979 = vld [vmem:[%s2978] sm:$0xff]
      %v2980 = vld [vmem:[%s2978 + $0x8] sm:$0xff]
      %v2981 = vld [vmem:[%s2978 + $0x18] sm:$0xff]
      %v2982 = vld [vmem:[%s2978 + $0x20] sm:$0xff]
      %v2983 = vld [vmem:[%s2978 + $0x30] sm:$0xff]
      %v2984 = vld [vmem:[%s2978 + $0x38] sm:$0xff]
      %v2985 = vld [vmem:[%s2978 + $0x48] sm:$0xff]
      %v2986 = vld [vmem:[%s2978 + $0x50] sm:$0xff]
      %v2987 = vld [vmem:[%s2978 + $0x60] sm:$0xff]
      %v2988 = vld [vmem:[%s2978 + $0x68] sm:$0xff]
      %v2989 = vld [vmem:[%s2978 + $0x78] sm:$0xff]
      %v2990 = vld [vmem:[%s2978 + $0x80] sm:$0xff]
      %v2991 = vld [vmem:[%s2978 + $0x90] sm:$0xff]
      %v2992 = vld [vmem:[%s2978 + $0x98] sm:$0xff]
      %v2993 = vld [vmem:[%s2978 + $0xa8] sm:$0xff]
      %v2994 = vld [vmem:[%s2978 + $0xb0] sm:$0xff]
      %v2995 = vld [vmem:[%s2978 + $0xc0] sm:$0xff]
      %v2996 = vld [vmem:[%s2978 + $0xc8] sm:$0xff]
      %v2997 = vld [vmem:[%s2978 + $0xd8] sm:$0xff]
      %v2998 = vld [vmem:[%s2978 + $0xe0] sm:$0xff]
      %v2999 = vld [vmem:[%s2978 + $0xf0] sm:$0xff]
      %v3000 = vld [vmem:[%s2978 + $0xf8] sm:$0xff]
      %v3001 = vld [vmem:[%s2978 + $0x108] sm:$0xff]
      %v3002 = vld [vmem:[%s2978 + $0x110] sm:$0xff]
      %v3003 = vld [vmem:[%s2978 + $0x120] sm:$0xff]
      %v3004 = vld [vmem:[%s2978 + $0x128] sm:$0xff]
      %v3005 = vld [vmem:[%s2978 + $0x138] sm:$0xff]
      %v3006 = vld [vmem:[%s2978 + $0x140] sm:$0xff]
      %v3007 = vld [vmem:[%s2978 + $0x150] sm:$0xff]
      %v3008 = vld [vmem:[%s2978 + $0x158] sm:$0xff]
      %v3009 = vld [vmem:[%s2978 + $0x168] sm:$0xff]
      %v3010 = vld [vmem:[%s2978 + $0x170] sm:$0xff]
      %v3011 = vld [vmem:[#allocation3] sm:$0xff]
      %v3012 = vld [vmem:[#allocation3 + $0x8] sm:$0xff]
      %v3013 = vld [vmem:[#allocation3 + $0x10] sm:$0xff]
      %v3014 = vld [vmem:[#allocation3 + $0x18] sm:$0xff]
      %v3015 = vld [vmem:[#allocation3 + $0x20] sm:$0xff]
      %v3016 = vld [vmem:[#allocation3 + $0x28] sm:$0xff]
      %v3017 = vld [vmem:[#allocation3 + $0x30] sm:$0xff]
      %v3018 = vld [vmem:[#allocation3 + $0x38] sm:$0xff]
      %v3019 = vld [vmem:[#allocation3 + $0x40] sm:$0xff]
      %v3020 = vld [vmem:[#allocation3 + $0x48] sm:$0xff]
      %v3021 = vld [vmem:[#allocation3 + $0x50] sm:$0xff]
      %v3022 = vld [vmem:[#allocation3 + $0x58] sm:$0xff]
      %v3023 = vld [vmem:[#allocation3 + $0x60] sm:$0xff]
      %v3024 = vld [vmem:[#allocation3 + $0x68] sm:$0xff]
      %v3025 = vld [vmem:[#allocation3 + $0x70] sm:$0xff]
      %v3026 = vld [vmem:[#allocation3 + $0x78] sm:$0xff]
      %v3027 = vld [vmem:[#allocation3 + $0x80] sm:$0xff]
      %v3028 = vld [vmem:[#allocation3 + $0x88] sm:$0xff]
      %v3029 = vld [vmem:[#allocation3 + $0x90] sm:$0xff]
      %v3030 = vld [vmem:[#allocation3 + $0x98] sm:$0xff]
      %v3031 = vld [vmem:[#allocation3 + $0xa0] sm:$0xff]
      %v3032 = vld [vmem:[#allocation3 + $0xa8] sm:$0xff]
      %v3033 = vld [vmem:[#allocation3 + $0xb0] sm:$0xff]
      %v3034 = vld [vmem:[#allocation3 + $0xb8] sm:$0xff]
      %v3035 = vld [vmem:[#allocation3 + $0xc0] sm:$0xff]
      %v3036 = vld [vmem:[#allocation3 + $0xc8] sm:$0xff]
      %v3037 = vld [vmem:[#allocation3 + $0xd0] sm:$0xff]
      %v3038 = vld [vmem:[#allocation3 + $0xd8] sm:$0xff]
      %v3039 = vld [vmem:[#allocation3 + $0xe0] sm:$0xff]
      %v3040 = vld [vmem:[#allocation3 + $0xe8] sm:$0xff]
      %v3041 = vld [vmem:[#allocation3 + $0xf0] sm:$0xff]
      %v3042 = vld [vmem:[#allocation3 + $0xf8] sm:$0xff]
      %v3043 = vpack.c.bf16 %v2980, %v2979
      %v3044 = vpack.c.bf16 %v2982, %v2981
      %v3045 = vpack.c.bf16 %v2984, %v2983
      %v3046 = vpack.c.bf16 %v2986, %v2985
      %v3047 = vpack.c.bf16 %v2988, %v2987
      %v3048 = vpack.c.bf16 %v2990, %v2989
      %v3049 = vpack.c.bf16 %v2992, %v2991
      %v3050 = vpack.c.bf16 %v2994, %v2993
      %v3051 = vpack.c.bf16 %v2996, %v2995
      %v3052 = vpack.c.bf16 %v2998, %v2997
      %v3053 = vpack.c.bf16 %v3000, %v2999
      %v3054 = vpack.c.bf16 %v3002, %v3001
      %v3055 = vpack.c.bf16 %v3004, %v3003
      %v3056 = vpack.c.bf16 %v3006, %v3005
      %v3057 = vpack.c.bf16 %v3008, %v3007
      %v3058 = vpack.c.bf16 %v3010, %v3009
      %s3059 = scalar_lea.vmem %s4, 384
      %v3060 = vld [vmem:[%s3059] sm:$0xf]
      %v3061 = vld [vmem:[%s3059 + $0x4] sm:$0xf]
      %v3062 = vld [vmem:[%s3059 + $0x8] sm:$0xf]
      %v3063 = vld [vmem:[%s3059 + $0xc] sm:$0xf]
      %v3064 = vld [vmem:[%s3059 + $0x10] sm:$0xf]
      %v3065 = vld [vmem:[%s3059 + $0x14] sm:$0xf]
      %v3066 = vld [vmem:[%s3059 + $0x18] sm:$0xf]
      %v3067 = vld [vmem:[%s3059 + $0x1c] sm:$0xf]
      %v3068 = vld [vmem:[%s3059 + $0x20] sm:$0xf]
      %v3069 = vld [vmem:[%s3059 + $0x24] sm:$0xf]
      %v3070 = vld [vmem:[%s3059 + $0x28] sm:$0xf]
      %v3071 = vld [vmem:[%s3059 + $0x2c] sm:$0xf]
      %v3072 = vld [vmem:[%s3059 + $0x30] sm:$0xf]
      %v3073 = vld [vmem:[%s3059 + $0x34] sm:$0xf]
      %v3074 = vld [vmem:[%s3059 + $0x38] sm:$0xf]
      %v3075 = vld [vmem:[%s3059 + $0x3c] sm:$0xf]
      %v3092 = vunpack.c.l.b16 %v3060
      %v3093 = vunpack.c.l.b16 %v3061
      %v3094 = vunpack.c.l.b16 %v3062
      %v3095 = vunpack.c.l.b16 %v3063
      %v3096 = vunpack.c.l.b16 %v3064
      %v3097 = vunpack.c.l.b16 %v3065
      %v3098 = vunpack.c.l.b16 %v3066
      %v3099 = vunpack.c.l.b16 %v3067
      %v3100 = vunpack.c.l.b16 %v3068
      %v3101 = vunpack.c.l.b16 %v3069
      %v3102 = vunpack.c.l.b16 %v3070
      %v3103 = vunpack.c.l.b16 %v3071
      %v3104 = vunpack.c.l.b16 %v3072
      %v3105 = vunpack.c.l.b16 %v3073
      %v3106 = vunpack.c.l.b16 %v3074
      %v3107 = vunpack.c.l.b16 %v3075
      %v3108 = vpack.c.b16 %v3093, %v3092
      %v3109 = vpack.c.b16 %v3095, %v3094
      %v3110 = vpack.c.b16 %v3097, %v3096
      %v3111 = vpack.c.b16 %v3099, %v3098
      %v3112 = vpack.c.b16 %v3101, %v3100
      %v3113 = vpack.c.b16 %v3103, %v3102
      %v3114 = vpack.c.b16 %v3105, %v3104
      %v3115 = vpack.c.b16 %v3107, %v3106
      %3124 = vmatprep.subr.bf16.mxu0 0
      %3125 = vmatpush1.bf16.msra.mxu0 %v3108
      %3126 = vmatprep.subr.bf16.mxu0 0
      %3127 = vmatpush1.bf16.msra.mxu0 %v3109
      %3128 = vmatprep.subr.bf16.mxu0 0
      %3129 = vmatpush1.bf16.msra.mxu0 %v3110
      %3130 = vmatprep.subr.bf16.mxu0 0
      %3131 = vmatpush1.bf16.msra.mxu0 %v3111
      %3132 = vmatprep.subr.bf16.mxu0 0
      %3133 = vmatpush1.bf16.msra.mxu0 %v3112
      %3134 = vmatprep.subr.bf16.mxu0 0
      %3135 = vmatpush1.bf16.msra.mxu0 %v3113
      %3136 = vmatprep.subr.bf16.mxu0 0
      %3137 = vmatpush1.bf16.msra.mxu0 %v3114
      %3138 = vmatprep.subr.bf16.mxu0 0
      %3139 = vmatpush1.bf16.msra.mxu0 %v3115
      %3140 = vmatprep.subr.bf16.mxu0 0
      %3141 = vmatpush1.bf16.msra.mxu0 0
      %3142 = vmatprep.subr.bf16.mxu0 0
      %3143 = vmatpush1.bf16.msra.mxu0 0
      %3144 = vmatprep.subr.bf16.mxu0 0
      %3145 = vmatpush1.bf16.msra.mxu0 0
      %3146 = vmatprep.subr.bf16.mxu0 0
      %3147 = vmatpush1.bf16.msra.mxu0 0
      %3148 = vmatprep.subr.bf16.mxu0 0
      %3149 = vmatpush1.bf16.msra.mxu0 0
      %3150 = vmatprep.subr.bf16.mxu0 0
      %3151 = vmatpush1.bf16.msra.mxu0 0
      %3152 = vmatprep.subr.bf16.mxu0 0
      %3153 = vmatpush1.bf16.msra.mxu0 0
      %3154 = vmatprep.subr.bf16.mxu0 0
      %3155 = vmatpush1.bf16.msra.mxu0 0
      %3156 = vmatprep.mubr.bf16.mxu0 0
      %3157 = vmatmul.mubr.bf16.gmra.mrb[0].mxu0 %v3043
      %v3158 = vpop.f32.mrb[0].mxu0
      %v3159 = vadd.f32 0.0, %v3158
      %v3160 = vpop.f32.mrb[0].mxu0
      %v3161 = vpop.f32.mrb[0].mxu0
      %v3162 = vadd.f32 0.0, %v3161
      %v3163 = vpop.f32.mrb[0].mxu0
      %3164 = vmatprep.mubr.bf16.mxu0 0
      %3165 = vmatmul.mubr.bf16.gmra.mrb[0].mxu0 %v3044
      %v3166 = vpop.f32.mrb[0].mxu0
      %v3167 = vadd.f32 0.0, %v3166
      %v3168 = vpop.f32.mrb[0].mxu0
      %v3169 = vpop.f32.mrb[0].mxu0
      %v3170 = vadd.f32 0.0, %v3169
      %v3171 = vpop.f32.mrb[0].mxu0
      %3172 = vmatprep.mubr.bf16.mxu0 0
      %3173 = vmatmul.mubr.bf16.gmra.mrb[0].mxu0 %v3045
      %v3174 = vpop.f32.mrb[0].mxu0
      %v3175 = vadd.f32 0.0, %v3174
      %v3176 = vpop.f32.mrb[0].mxu0
      %v3177 = vpop.f32.mrb[0].mxu0
      %v3178 = vadd.f32 0.0, %v3177
      %v3179 = vpop.f32.mrb[0].mxu0
      %3180 = vmatprep.mubr.bf16.mxu0 0
      %3181 = vmatmul.mubr.bf16.gmra.mrb[0].mxu0 %v3046
      %v3182 = vpop.f32.mrb[0].mxu0
      %v3183 = vadd.f32 0.0, %v3182
      %v3184 = vpop.f32.mrb[0].mxu0
      %v3185 = vpop.f32.mrb[0].mxu0
      %v3186 = vadd.f32 0.0, %v3185
      %v3187 = vpop.f32.mrb[0].mxu0
      %3188 = vmatprep.mubr.bf16.mxu0 0
      %3189 = vmatmul.mubr.bf16.gmra.mrb[0].mxu0 %v3047
      %v3190 = vpop.f32.mrb[0].mxu0
      %v3191 = vadd.f32 0.0, %v3190
      %v3192 = vpop.f32.mrb[0].mxu0
      %v3193 = vpop.f32.mrb[0].mxu0
      %v3194 = vadd.f32 0.0, %v3193
      %v3195 = vpop.f32.mrb[0].mxu0
      %3196 = vmatprep.mubr.bf16.mxu0 0
      %3197 = vmatmul.mubr.bf16.gmra.mrb[0].mxu0 %v3048
      %v3198 = vpop.f32.mrb[0].mxu0
      %v3199 = vadd.f32 0.0, %v3198
      %v3200 = vpop.f32.mrb[0].mxu0
      %v3201 = vpop.f32.mrb[0].mxu0
      %v3202 = vadd.f32 0.0, %v3201
      %v3203 = vpop.f32.mrb[0].mxu0
      %3204 = vmatprep.mubr.bf16.mxu0 0
      %3205 = vmatmul.mubr.bf16.gmra.mrb[0].mxu0 %v3049
      %v3206 = vpop.f32.mrb[0].mxu0
      %v3207 = vadd.f32 0.0, %v3206
      %v3208 = vpop.f32.mrb[0].mxu0
      %v3209 = vpop.f32.mrb[0].mxu0
      %v3210 = vadd.f32 0.0, %v3209
      %v3211 = vpop.f32.mrb[0].mxu0
      %3212 = vmatprep.mubr.bf16.mxu0 0
      %3213 = vmatmul.mubr.bf16.gmra.mrb[0].mxu0 %v3050
      %v3214 = vpop.f32.mrb[0].mxu0
      %v3215 = vadd.f32 0.0, %v3214
      %v3216 = vpop.f32.mrb[0].mxu0
      %v3217 = vpop.f32.mrb[0].mxu0
      %v3218 = vadd.f32 0.0, %v3217
      %v3219 = vpop.f32.mrb[0].mxu0
      %3220 = vmatprep.mubr.bf16.mxu0 0
      %3221 = vmatmul.mubr.bf16.gmra.mrb[0].mxu0 %v3051
      %v3222 = vpop.f32.mrb[0].mxu0
      %v3223 = vadd.f32 0.0, %v3222
      %v3224 = vpop.f32.mrb[0].mxu0
      %v3225 = vpop.f32.mrb[0].mxu0
      %v3226 = vadd.f32 0.0, %v3225
      %v3227 = vpop.f32.mrb[0].mxu0
      %3228 = vmatprep.mubr.bf16.mxu0 0
      %3229 = vmatmul.mubr.bf16.gmra.mrb[0].mxu0 %v3052
      %v3230 = vpop.f32.mrb[0].mxu0
      %v3231 = vadd.f32 0.0, %v3230
      %v3232 = vpop.f32.mrb[0].mxu0
      %v3233 = vpop.f32.mrb[0].mxu0
      %v3234 = vadd.f32 0.0, %v3233
      %v3235 = vpop.f32.mrb[0].mxu0
      %3236 = vmatprep.mubr.bf16.mxu0 0
      %3237 = vmatmul.mubr.bf16.gmra.mrb[0].mxu0 %v3053
      %v3238 = vpop.f32.mrb[0].mxu0
      %v3239 = vadd.f32 0.0, %v3238
      %v3240 = vpop.f32.mrb[0].mxu0
      %v3241 = vpop.f32.mrb[0].mxu0
      %v3242 = vadd.f32 0.0, %v3241
      %v3243 = vpop.f32.mrb[0].mxu0
      %3244 = vmatprep.mubr.bf16.mxu0 0
      %3245 = vmatmul.mubr.bf16.gmra.mrb[0].mxu0 %v3054
      %v3246 = vpop.f32.mrb[0].mxu0
      %v3247 = vadd.f32 0.0, %v3246
      %v3248 = vpop.f32.mrb[0].mxu0
      %v3249 = vpop.f32.mrb[0].mxu0
      %v3250 = vadd.f32 0.0, %v3249
      %v3251 = vpop.f32.mrb[0].mxu0
      %3252 = vmatprep.mubr.bf16.mxu0 0
      %3253 = vmatmul.mubr.bf16.gmra.mrb[0].mxu0 %v3055
      %v3254 = vpop.f32.mrb[0].mxu0
      %v3255 = vadd.f32 0.0, %v3254
      %v3256 = vpop.f32.mrb[0].mxu0
      %v3257 = vpop.f32.mrb[0].mxu0
      %v3258 = vadd.f32 0.0, %v3257
      %v3259 = vpop.f32.mrb[0].mxu0
      %3260 = vmatprep.mubr.bf16.mxu0 0
      %3261 = vmatmul.mubr.bf16.gmra.mrb[0].mxu0 %v3056
      %v3262 = vpop.f32.mrb[0].mxu0
      %v3263 = vadd.f32 0.0, %v3262
      %v3264 = vpop.f32.mrb[0].mxu0
      %v3265 = vpop.f32.mrb[0].mxu0
      %v3266 = vadd.f32 0.0, %v3265
      %v3267 = vpop.f32.mrb[0].mxu0
      %3268 = vmatprep.mubr.bf16.mxu0 0
      %3269 = vmatmul.mubr.bf16.gmra.mrb[0].mxu0 %v3057
      %v3270 = vpop.f32.mrb[0].mxu0
      %v3271 = vadd.f32 0.0, %v3270
      %v3272 = vpop.f32.mrb[0].mxu0
      %v3273 = vpop.f32.mrb[0].mxu0
      %v3274 = vadd.f32 0.0, %v3273
      %v3275 = vpop.f32.mrb[0].mxu0
      %3276 = vmatprep.mubr.bf16.mxu0 0
      %3277 = vmatmul.mubr.bf16.gmra.mrb[0].mxu0 %v3058
      %v3278 = vpop.f32.mrb[0].mxu0
      %v3279 = vadd.f32 0.0, %v3278
      %v3280 = vpop.f32.mrb[0].mxu0
      %v3281 = vpop.f32.mrb[0].mxu0
      %v3282 = vadd.f32 0.0, %v3281
      %v3283 = vpop.f32.mrb[0].mxu0
      %3284 = vdwg.mxu0
      %v3285 = vadd.f32 %v3011, %v3159
      %v3286 = vadd.f32 %v3012, %v3162
      %v3287 = vadd.f32 %v3013, %v3167
      %v3288 = vadd.f32 %v3014, %v3170
      %v3289 = vadd.f32 %v3015, %v3175
      %v3290 = vadd.f32 %v3016, %v3178
      %v3291 = vadd.f32 %v3017, %v3183
      %v3292 = vadd.f32 %v3018, %v3186
      %v3293 = vadd.f32 %v3019, %v3191
      %v3294 = vadd.f32 %v3020, %v3194
      %v3295 = vadd.f32 %v3021, %v3199
      %v3296 = vadd.f32 %v3022, %v3202
      %v3297 = vadd.f32 %v3023, %v3207
      %v3298 = vadd.f32 %v3024, %v3210
      %v3299 = vadd.f32 %v3025, %v3215
      %v3300 = vadd.f32 %v3026, %v3218
      %v3301 = vadd.f32 %v3027, %v3223
      %v3302 = vadd.f32 %v3028, %v3226
      %v3303 = vadd.f32 %v3029, %v3231
      %v3304 = vadd.f32 %v3030, %v3234
      %v3305 = vadd.f32 %v3031, %v3239
      %v3306 = vadd.f32 %v3032, %v3242
      %v3307 = vadd.f32 %v3033, %v3247
      %v3308 = vadd.f32 %v3034, %v3250
      %v3309 = vadd.f32 %v3035, %v3255
      %v3310 = vadd.f32 %v3036, %v3258
      %v3311 = vadd.f32 %v3037, %v3263
      %v3312 = vadd.f32 %v3038, %v3266
      %v3313 = vadd.f32 %v3039, %v3271
      %v3314 = vadd.f32 %v3040, %v3274
      %v3315 = vadd.f32 %v3041, %v3279
      %v3316 = vadd.f32 %v3042, %v3282
      %3317 = vst [vmem:[#allocation3] sm:$0xff] %v3285
      %3318 = vst [vmem:[#allocation3 + $0x8] sm:$0xff] %v3286
      %3319 = vst [vmem:[#allocation3 + $0x10] sm:$0xff] %v3287
      %3320 = vst [vmem:[#allocation3 + $0x18] sm:$0xff] %v3288
      %3321 = vst [vmem:[#allocation3 + $0x20] sm:$0xff] %v3289
      %3322 = vst [vmem:[#allocation3 + $0x28] sm:$0xff] %v3290
      %3323 = vst [vmem:[#allocation3 + $0x30] sm:$0xff] %v3291
      %3324 = vst [vmem:[#allocation3 + $0x38] sm:$0xff] %v3292
      %3325 = vst [vmem:[#allocation3 + $0x40] sm:$0xff] %v3293
      %3326 = vst [vmem:[#allocation3 + $0x48] sm:$0xff] %v3294
      %3327 = vst [vmem:[#allocation3 + $0x50] sm:$0xff] %v3295
      %3328 = vst [vmem:[#allocation3 + $0x58] sm:$0xff] %v3296
      %3329 = vst [vmem:[#allocation3 + $0x60] sm:$0xff] %v3297
      %3330 = vst [vmem:[#allocation3 + $0x68] sm:$0xff] %v3298
      %3331 = vst [vmem:[#allocation3 + $0x70] sm:$0xff] %v3299
      %3332 = vst [vmem:[#allocation3 + $0x78] sm:$0xff] %v3300
      %3333 = vst [vmem:[#allocation3 + $0x80] sm:$0xff] %v3301
      %3334 = vst [vmem:[#allocation3 + $0x88] sm:$0xff] %v3302
      %3335 = vst [vmem:[#allocation3 + $0x90] sm:$0xff] %v3303
      %3336 = vst [vmem:[#allocation3 + $0x98] sm:$0xff] %v3304
      %3337 = vst [vmem:[#allocation3 + $0xa0] sm:$0xff] %v3305
      %3338 = vst [vmem:[#allocation3 + $0xa8] sm:$0xff] %v3306
      %3339 = vst [vmem:[#allocation3 + $0xb0] sm:$0xff] %v3307
      %3340 = vst [vmem:[#allocation3 + $0xb8] sm:$0xff] %v3308
      %3341 = vst [vmem:[#allocation3 + $0xc0] sm:$0xff] %v3309
      %3342 = vst [vmem:[#allocation3 + $0xc8] sm:$0xff] %v3310
      %3343 = vst [vmem:[#allocation3 + $0xd0] sm:$0xff] %v3311
      %3344 = vst [vmem:[#allocation3 + $0xd8] sm:$0xff] %v3312
      %3345 = vst [vmem:[#allocation3 + $0xe0] sm:$0xff] %v3313
      %3346 = vst [vmem:[#allocation3 + $0xe8] sm:$0xff] %v3314
      %3347 = vst [vmem:[#allocation3 + $0xf0] sm:$0xff] %v3315
      %3348 = vst [vmem:[#allocation3 + $0xf8] sm:$0xff] %v3316
      %v3349 = vld [vmem:[%s2978 + $0x1] sm:$0xff]
      %v3350 = vld [vmem:[%s2978 + $0x9] sm:$0xff]
      %v3351 = vld [vmem:[%s2978 + $0x19] sm:$0xff]
      %v3352 = vld [vmem:[%s2978 + $0x21] sm:$0xff]
      %v3353 = vld [vmem:[%s2978 + $0x31] sm:$0xff]
      %v3354 = vld [vmem:[%s2978 + $0x39] sm:$0xff]
      %v3355 = vld [vmem:[%s2978 + $0x49] sm:$0xff]
      %v3356 = vld [vmem:[%s2978 + $0x51] sm:$0xff]
      %v3357 = vld [vmem:[%s2978 + $0x61] sm:$0xff]
      %v3358 = vld [vmem:[%s2978 + $0x69] sm:$0xff]
      %v3359 = vld [vmem:[%s2978 + $0x79] sm:$0xff]
      %v3360 = vld [vmem:[%s2978 + $0x81] sm:$0xff]
      %v3361 = vld [vmem:[%s2978 + $0x91] sm:$0xff]
      %v3362 = vld [vmem:[%s2978 + $0x99] sm:$0xff]
      %v3363 = vld [vmem:[%s2978 + $0xa9] sm:$0xff]
      %v3364 = vld [vmem:[%s2978 + $0xb1] sm:$0xff]
      %v3365 = vld [vmem:[%s2978 + $0xc1] sm:$0xff]
      %v3366 = vld [vmem:[%s2978 + $0xc9] sm:$0xff]
      %v3367 = vld [vmem:[%s2978 + $0xd9] sm:$0xff]
      %v3368 = vld [vmem:[%s2978 + $0xe1] sm:$0xff]
      %v3369 = vld [vmem:[%s2978 + $0xf1] sm:$0xff]
      %v3370 = vld [vmem:[%s2978 + $0xf9] sm:$0xff]
      %v3371 = vld [vmem:[%s2978 + $0x109] sm:$0xff]
      %v3372 = vld [vmem:[%s2978 + $0x111] sm:$0xff]
      %v3373 = vld [vmem:[%s2978 + $0x121] sm:$0xff]
      %v3374 = vld [vmem:[%s2978 + $0x129] sm:$0xff]
      %v3375 = vld [vmem:[%s2978 + $0x139] sm:$0xff]
      %v3376 = vld [vmem:[%s2978 + $0x141] sm:$0xff]
      %v3377 = vld [vmem:[%s2978 + $0x151] sm:$0xff]
      %v3378 = vld [vmem:[%s2978 + $0x159] sm:$0xff]
      %v3379 = vld [vmem:[%s2978 + $0x169] sm:$0xff]
      %v3380 = vld [vmem:[%s2978 + $0x171] sm:$0xff]
      %v3381 = vld [vmem:[#allocation3] sm:$0xff]
      %v3382 = vld [vmem:[#allocation3 + $0x8] sm:$0xff]
      %v3383 = vld [vmem:[#allocation3 + $0x10] sm:$0xff]
      %v3384 = vld [vmem:[#allocation3 + $0x18] sm:$0xff]
      %v3385 = vld [vmem:[#allocation3 + $0x20] sm:$0xff]
      %v3386 = vld [vmem:[#allocation3 + $0x28] sm:$0xff]
      %v3387 = vld [vmem:[#allocation3 + $0x30] sm:$0xff]
      %v3388 = vld [vmem:[#allocation3 + $0x38] sm:$0xff]
      %v3389 = vld [vmem:[#allocation3 + $0x40] sm:$0xff]
      %v3390 = vld [vmem:[#allocation3 + $0x48] sm:$0xff]
      %v3391 = vld [vmem:[#allocation3 + $0x50] sm:$0xff]
      %v3392 = vld [vmem:[#allocation3 + $0x58] sm:$0xff]
      %v3393 = vld [vmem:[#allocation3 + $0x60] sm:$0xff]
      %v3394 = vld [vmem:[#allocation3 + $0x68] sm:$0xff]
      %v3395 = vld [vmem:[#allocation3 + $0x70] sm:$0xff]
      %v3396 = vld [vmem:[#allocation3 + $0x78] sm:$0xff]
      %v3397 = vld [vmem:[#allocation3 + $0x80] sm:$0xff]
      %v3398 = vld [vmem:[#allocation3 + $0x88] sm:$0xff]
      %v3399 = vld [vmem:[#allocation3 + $0x90] sm:$0xff]
      %v3400 = vld [vmem:[#allocation3 + $0x98] sm:$0xff]
      %v3401 = vld [vmem:[#allocation3 + $0xa0] sm:$0xff]
      %v3402 = vld [vmem:[#allocation3 + $0xa8] sm:$0xff]
      %v3403 = vld [vmem:[#allocation3 + $0xb0] sm:$0xff]
      %v3404 = vld [vmem:[#allocation3 + $0xb8] sm:$0xff]
      %v3405 = vld [vmem:[#allocation3 + $0xc0] sm:$0xff]
      %v3406 = vld [vmem:[#allocation3 + $0xc8] sm:$0xff]
      %v3407 = vld [vmem:[#allocation3 + $0xd0] sm:$0xff]
      %v3408 = vld [vmem:[#allocation3 + $0xd8] sm:$0xff]
      %v3409 = vld [vmem:[#allocation3 + $0xe0] sm:$0xff]
      %v3410 = vld [vmem:[#allocation3 + $0xe8] sm:$0xff]
      %v3411 = vld [vmem:[#allocation3 + $0xf0] sm:$0xff]
      %v3412 = vld [vmem:[#allocation3 + $0xf8] sm:$0xff]
      %v3413 = vpack.c.bf16 %v3350, %v3349
      %v3414 = vpack.c.bf16 %v3352, %v3351
      %v3415 = vpack.c.bf16 %v3354, %v3353
      %v3416 = vpack.c.bf16 %v3356, %v3355
      %v3417 = vpack.c.bf16 %v3358, %v3357
      %v3418 = vpack.c.bf16 %v3360, %v3359
      %v3419 = vpack.c.bf16 %v3362, %v3361
      %v3420 = vpack.c.bf16 %v3364, %v3363
      %v3421 = vpack.c.bf16 %v3366, %v3365
      %v3422 = vpack.c.bf16 %v3368, %v3367
      %v3423 = vpack.c.bf16 %v3370, %v3369
      %v3424 = vpack.c.bf16 %v3372, %v3371
      %v3425 = vpack.c.bf16 %v3374, %v3373
      %v3426 = vpack.c.bf16 %v3376, %v3375
      %v3427 = vpack.c.bf16 %v3378, %v3377
      %v3428 = vpack.c.bf16 %v3380, %v3379
      %s3429 = scalar_lea.vmem %s4, 448
      %v3430 = vld [vmem:[%s3429] sm:$0xf]
      %v3431 = vld [vmem:[%s3429 + $0x4] sm:$0xf]
      %v3432 = vld [vmem:[%s3429 + $0x8] sm:$0xf]
      %v3433 = vld [vmem:[%s3429 + $0xc] sm:$0xf]
      %v3434 = vld [vmem:[%s3429 + $0x10] sm:$0xf]
      %v3435 = vld [vmem:[%s3429 + $0x14] sm:$0xf]
      %v3436 = vld [vmem:[%s3429 + $0x18] sm:$0xf]
      %v3437 = vld [vmem:[%s3429 + $0x1c] sm:$0xf]
      %v3438 = vld [vmem:[%s3429 + $0x20] sm:$0xf]
      %v3439 = vld [vmem:[%s3429 + $0x24] sm:$0xf]
      %v3440 = vld [vmem:[%s3429 + $0x28] sm:$0xf]
      %v3441 = vld [vmem:[%s3429 + $0x2c] sm:$0xf]
      %v3442 = vld [vmem:[%s3429 + $0x30] sm:$0xf]
      %v3443 = vld [vmem:[%s3429 + $0x34] sm:$0xf]
      %v3444 = vld [vmem:[%s3429 + $0x38] sm:$0xf]
      %v3445 = vld [vmem:[%s3429 + $0x3c] sm:$0xf]
      %v3462 = vunpack.c.l.b16 %v3430
      %v3463 = vunpack.c.l.b16 %v3431
      %v3464 = vunpack.c.l.b16 %v3432
      %v3465 = vunpack.c.l.b16 %v3433
      %v3466 = vunpack.c.l.b16 %v3434
      %v3467 = vunpack.c.l.b16 %v3435
      %v3468 = vunpack.c.l.b16 %v3436
      %v3469 = vunpack.c.l.b16 %v3437
      %v3470 = vunpack.c.l.b16 %v3438
      %v3471 = vunpack.c.l.b16 %v3439
      %v3472 = vunpack.c.l.b16 %v3440
      %v3473 = vunpack.c.l.b16 %v3441
      %v3474 = vunpack.c.l.b16 %v3442
      %v3475 = vunpack.c.l.b16 %v3443
      %v3476 = vunpack.c.l.b16 %v3444
      %v3477 = vunpack.c.l.b16 %v3445
      %v3478 = vpack.c.b16 %v3463, %v3462
      %v3479 = vpack.c.b16 %v3465, %v3464
      %v3480 = vpack.c.b16 %v3467, %v3466
      %v3481 = vpack.c.b16 %v3469, %v3468
      %v3482 = vpack.c.b16 %v3471, %v3470
      %v3483 = vpack.c.b16 %v3473, %v3472
      %v3484 = vpack.c.b16 %v3475, %v3474
      %v3485 = vpack.c.b16 %v3477, %v3476
      %3494 = vmatprep.subr.bf16.mxu0 0
      %3495 = vmatpush1.bf16.msra.mxu0 %v3478
      %3496 = vmatprep.subr.bf16.mxu0 0
      %3497 = vmatpush1.bf16.msra.mxu0 %v3479
      %3498 = vmatprep.subr.bf16.mxu0 0
      %3499 = vmatpush1.bf16.msra.mxu0 %v3480
      %3500 = vmatprep.subr.bf16.mxu0 0
      %3501 = vmatpush1.bf16.msra.mxu0 %v3481
      %3502 = vmatprep.subr.bf16.mxu0 0
      %3503 = vmatpush1.bf16.msra.mxu0 %v3482
      %3504 = vmatprep.subr.bf16.mxu0 0
      %3505 = vmatpush1.bf16.msra.mxu0 %v3483
      %3506 = vmatprep.subr.bf16.mxu0 0
      %3507 = vmatpush1.bf16.msra.mxu0 %v3484
      %3508 = vmatprep.subr.bf16.mxu0 0
      %3509 = vmatpush1.bf16.msra.mxu0 %v3485
      %3510 = vmatprep.subr.bf16.mxu0 0
      %3511 = vmatpush1.bf16.msra.mxu0 0
      %3512 = vmatprep.subr.bf16.mxu0 0
      %3513 = vmatpush1.bf16.msra.mxu0 0
      %3514 = vmatprep.subr.bf16.mxu0 0
      %3515 = vmatpush1.bf16.msra.mxu0 0
      %3516 = vmatprep.subr.bf16.mxu0 0
      %3517 = vmatpush1.bf16.msra.mxu0 0
      %3518 = vmatprep.subr.bf16.mxu0 0
      %3519 = vmatpush1.bf16.msra.mxu0 0
      %3520 = vmatprep.subr.bf16.mxu0 0
      %3521 = vmatpush1.bf16.msra.mxu0 0
      %3522 = vmatprep.subr.bf16.mxu0 0
      %3523 = vmatpush1.bf16.msra.mxu0 0
      %3524 = vmatprep.subr.bf16.mxu0 0
      %3525 = vmatpush1.bf16.msra.mxu0 0
      %3526 = vmatprep.mubr.bf16.mxu0 0
      %3527 = vmatmul.mubr.bf16.gmra.mrb[0].mxu0 %v3413
      %v3528 = vpop.f32.mrb[0].mxu0
      %v3529 = vadd.f32 0.0, %v3528
      %v3530 = vpop.f32.mrb[0].mxu0
      %v3531 = vpop.f32.mrb[0].mxu0
      %v3532 = vadd.f32 0.0, %v3531
      %v3533 = vpop.f32.mrb[0].mxu0
      %3534 = vmatprep.mubr.bf16.mxu0 0
      %3535 = vmatmul.mubr.bf16.gmra.mrb[0].mxu0 %v3414
      %v3536 = vpop.f32.mrb[0].mxu0
      %v3537 = vadd.f32 0.0, %v3536
      %v3538 = vpop.f32.mrb[0].mxu0
      %v3539 = vpop.f32.mrb[0].mxu0
      %v3540 = vadd.f32 0.0, %v3539
      %v3541 = vpop.f32.mrb[0].mxu0
      %3542 = vmatprep.mubr.bf16.mxu0 0
      %3543 = vmatmul.mubr.bf16.gmra.mrb[0].mxu0 %v3415
      %v3544 = vpop.f32.mrb[0].mxu0
      %v3545 = vadd.f32 0.0, %v3544
      %v3546 = vpop.f32.mrb[0].mxu0
      %v3547 = vpop.f32.mrb[0].mxu0
      %v3548 = vadd.f32 0.0, %v3547
      %v3549 = vpop.f32.mrb[0].mxu0
      %3550 = vmatprep.mubr.bf16.mxu0 0
      %3551 = vmatmul.mubr.bf16.gmra.mrb[0].mxu0 %v3416
      %v3552 = vpop.f32.mrb[0].mxu0
      %v3553 = vadd.f32 0.0, %v3552
      %v3554 = vpop.f32.mrb[0].mxu0
      %v3555 = vpop.f32.mrb[0].mxu0
      %v3556 = vadd.f32 0.0, %v3555
      %v3557 = vpop.f32.mrb[0].mxu0
      %3558 = vmatprep.mubr.bf16.mxu0 0
      %3559 = vmatmul.mubr.bf16.gmra.mrb[0].mxu0 %v3417
      %v3560 = vpop.f32.mrb[0].mxu0
      %v3561 = vadd.f32 0.0, %v3560
      %v3562 = vpop.f32.mrb[0].mxu0
      %v3563 = vpop.f32.mrb[0].mxu0
      %v3564 = vadd.f32 0.0, %v3563
      %v3565 = vpop.f32.mrb[0].mxu0
      %3566 = vmatprep.mubr.bf16.mxu0 0
      %3567 = vmatmul.mubr.bf16.gmra.mrb[0].mxu0 %v3418
      %v3568 = vpop.f32.mrb[0].mxu0
      %v3569 = vadd.f32 0.0, %v3568
      %v3570 = vpop.f32.mrb[0].mxu0
      %v3571 = vpop.f32.mrb[0].mxu0
      %v3572 = vadd.f32 0.0, %v3571
      %v3573 = vpop.f32.mrb[0].mxu0
      %3574 = vmatprep.mubr.bf16.mxu0 0
      %3575 = vmatmul.mubr.bf16.gmra.mrb[0].mxu0 %v3419
      %v3576 = vpop.f32.mrb[0].mxu0
      %v3577 = vadd.f32 0.0, %v3576
      %v3578 = vpop.f32.mrb[0].mxu0
      %v3579 = vpop.f32.mrb[0].mxu0
      %v3580 = vadd.f32 0.0, %v3579
      %v3581 = vpop.f32.mrb[0].mxu0
      %3582 = vmatprep.mubr.bf16.mxu0 0
      %3583 = vmatmul.mubr.bf16.gmra.mrb[0].mxu0 %v3420
      %v3584 = vpop.f32.mrb[0].mxu0
      %v3585 = vadd.f32 0.0, %v3584
      %v3586 = vpop.f32.mrb[0].mxu0
      %v3587 = vpop.f32.mrb[0].mxu0
      %v3588 = vadd.f32 0.0, %v3587
      %v3589 = vpop.f32.mrb[0].mxu0
      %3590 = vmatprep.mubr.bf16.mxu0 0
      %3591 = vmatmul.mubr.bf16.gmra.mrb[0].mxu0 %v3421
      %v3592 = vpop.f32.mrb[0].mxu0
      %v3593 = vadd.f32 0.0, %v3592
      %v3594 = vpop.f32.mrb[0].mxu0
      %v3595 = vpop.f32.mrb[0].mxu0
      %v3596 = vadd.f32 0.0, %v3595
      %v3597 = vpop.f32.mrb[0].mxu0
      %3598 = vmatprep.mubr.bf16.mxu0 0
      %3599 = vmatmul.mubr.bf16.gmra.mrb[0].mxu0 %v3422
      %v3600 = vpop.f32.mrb[0].mxu0
      %v3601 = vadd.f32 0.0, %v3600
      %v3602 = vpop.f32.mrb[0].mxu0
      %v3603 = vpop.f32.mrb[0].mxu0
      %v3604 = vadd.f32 0.0, %v3603
      %v3605 = vpop.f32.mrb[0].mxu0
      %3606 = vmatprep.mubr.bf16.mxu0 0
      %3607 = vmatmul.mubr.bf16.gmra.mrb[0].mxu0 %v3423
      %v3608 = vpop.f32.mrb[0].mxu0
      %v3609 = vadd.f32 0.0, %v3608
      %v3610 = vpop.f32.mrb[0].mxu0
      %v3611 = vpop.f32.mrb[0].mxu0
      %v3612 = vadd.f32 0.0, %v3611
      %v3613 = vpop.f32.mrb[0].mxu0
      %3614 = vmatprep.mubr.bf16.mxu0 0
      %3615 = vmatmul.mubr.bf16.gmra.mrb[0].mxu0 %v3424
      %v3616 = vpop.f32.mrb[0].mxu0
      %v3617 = vadd.f32 0.0, %v3616
      %v3618 = vpop.f32.mrb[0].mxu0
      %v3619 = vpop.f32.mrb[0].mxu0
      %v3620 = vadd.f32 0.0, %v3619
      %v3621 = vpop.f32.mrb[0].mxu0
      %3622 = vmatprep.mubr.bf16.mxu0 0
      %3623 = vmatmul.mubr.bf16.gmra.mrb[0].mxu0 %v3425
      %v3624 = vpop.f32.mrb[0].mxu0
      %v3625 = vadd.f32 0.0, %v3624
      %v3626 = vpop.f32.mrb[0].mxu0
      %v3627 = vpop.f32.mrb[0].mxu0
      %v3628 = vadd.f32 0.0, %v3627
      %v3629 = vpop.f32.mrb[0].mxu0
      %3630 = vmatprep.mubr.bf16.mxu0 0
      %3631 = vmatmul.mubr.bf16.gmra.mrb[0].mxu0 %v3426
      %v3632 = vpop.f32.mrb[0].mxu0
      %v3633 = vadd.f32 0.0, %v3632
      %v3634 = vpop.f32.mrb[0].mxu0
      %v3635 = vpop.f32.mrb[0].mxu0
      %v3636 = vadd.f32 0.0, %v3635
      %v3637 = vpop.f32.mrb[0].mxu0
      %3638 = vmatprep.mubr.bf16.mxu0 0
      %3639 = vmatmul.mubr.bf16.gmra.mrb[0].mxu0 %v3427
      %v3640 = vpop.f32.mrb[0].mxu0
      %v3641 = vadd.f32 0.0, %v3640
      %v3642 = vpop.f32.mrb[0].mxu0
      %v3643 = vpop.f32.mrb[0].mxu0
      %v3644 = vadd.f32 0.0, %v3643
      %v3645 = vpop.f32.mrb[0].mxu0
      %3646 = vmatprep.mubr.bf16.mxu0 0
      %3647 = vmatmul.mubr.bf16.gmra.mrb[0].mxu0 %v3428
      %v3648 = vpop.f32.mrb[0].mxu0
      %v3649 = vadd.f32 0.0, %v3648
      %v3650 = vpop.f32.mrb[0].mxu0
      %v3651 = vpop.f32.mrb[0].mxu0
      %v3652 = vadd.f32 0.0, %v3651
      %v3653 = vpop.f32.mrb[0].mxu0
      %3654 = vdwg.mxu0
      %v3655 = vadd.f32 %v3381, %v3529
      %v3656 = vadd.f32 %v3382, %v3532
      %v3657 = vadd.f32 %v3383, %v3537
      %v3658 = vadd.f32 %v3384, %v3540
      %v3659 = vadd.f32 %v3385, %v3545
      %v3660 = vadd.f32 %v3386, %v3548
      %v3661 = vadd.f32 %v3387, %v3553
      %v3662 = vadd.f32 %v3388, %v3556
      %v3663 = vadd.f32 %v3389, %v3561
      %v3664 = vadd.f32 %v3390, %v3564
      %v3665 = vadd.f32 %v3391, %v3569
      %v3666 = vadd.f32 %v3392, %v3572
      %v3667 = vadd.f32 %v3393, %v3577
      %v3668 = vadd.f32 %v3394, %v3580
      %v3669 = vadd.f32 %v3395, %v3585
      %v3670 = vadd.f32 %v3396, %v3588
      %v3671 = vadd.f32 %v3397, %v3593
      %v3672 = vadd.f32 %v3398, %v3596
      %v3673 = vadd.f32 %v3399, %v3601
      %v3674 = vadd.f32 %v3400, %v3604
      %v3675 = vadd.f32 %v3401, %v3609
      %v3676 = vadd.f32 %v3402, %v3612
      %v3677 = vadd.f32 %v3403, %v3617
      %v3678 = vadd.f32 %v3404, %v3620
      %v3679 = vadd.f32 %v3405, %v3625
      %v3680 = vadd.f32 %v3406, %v3628
      %v3681 = vadd.f32 %v3407, %v3633
      %v3682 = vadd.f32 %v3408, %v3636
      %v3683 = vadd.f32 %v3409, %v3641
      %v3684 = vadd.f32 %v3410, %v3644
      %v3685 = vadd.f32 %v3411, %v3649
      %v3686 = vadd.f32 %v3412, %v3652
      %3687 = vst [vmem:[#allocation3] sm:$0xff] %v3655
      %3688 = vst [vmem:[#allocation3 + $0x8] sm:$0xff] %v3656
      %3689 = vst [vmem:[#allocation3 + $0x10] sm:$0xff] %v3657
      %3690 = vst [vmem:[#allocation3 + $0x18] sm:$0xff] %v3658
      %3691 = vst [vmem:[#allocation3 + $0x20] sm:$0xff] %v3659
      %3692 = vst [vmem:[#allocation3 + $0x28] sm:$0xff] %v3660
      %3693 = vst [vmem:[#allocation3 + $0x30] sm:$0xff] %v3661
      %3694 = vst [vmem:[#allocation3 + $0x38] sm:$0xff] %v3662
      %3695 = vst [vmem:[#allocation3 + $0x40] sm:$0xff] %v3663
      %3696 = vst [vmem:[#allocation3 + $0x48] sm:$0xff] %v3664
      %3697 = vst [vmem:[#allocation3 + $0x50] sm:$0xff] %v3665
      %3698 = vst [vmem:[#allocation3 + $0x58] sm:$0xff] %v3666
      %3699 = vst [vmem:[#allocation3 + $0x60] sm:$0xff] %v3667
      %3700 = vst [vmem:[#allocation3 + $0x68] sm:$0xff] %v3668
      %3701 = vst [vmem:[#allocation3 + $0x70] sm:$0xff] %v3669
      %3702 = vst [vmem:[#allocation3 + $0x78] sm:$0xff] %v3670
      %3703 = vst [vmem:[#allocation3 + $0x80] sm:$0xff] %v3671
      %3704 = vst [vmem:[#allocation3 + $0x88] sm:$0xff] %v3672
      %3705 = vst [vmem:[#allocation3 + $0x90] sm:$0xff] %v3673
      %3706 = vst [vmem:[#allocation3 + $0x98] sm:$0xff] %v3674
      %3707 = vst [vmem:[#allocation3 + $0xa0] sm:$0xff] %v3675
      %3708 = vst [vmem:[#allocation3 + $0xa8] sm:$0xff] %v3676
      %3709 = vst [vmem:[#allocation3 + $0xb0] sm:$0xff] %v3677
      %3710 = vst [vmem:[#allocation3 + $0xb8] sm:$0xff] %v3678
      %3711 = vst [vmem:[#allocation3 + $0xc0] sm:$0xff] %v3679
      %3712 = vst [vmem:[#allocation3 + $0xc8] sm:$0xff] %v3680
      %3713 = vst [vmem:[#allocation3 + $0xd0] sm:$0xff] %v3681
      %3714 = vst [vmem:[#allocation3 + $0xd8] sm:$0xff] %v3682
      %3715 = vst [vmem:[#allocation3 + $0xe0] sm:$0xff] %v3683
      %3716 = vst [vmem:[#allocation3 + $0xe8] sm:$0xff] %v3684
      %3717 = vst [vmem:[#allocation3 + $0xf0] sm:$0xff] %v3685
      %3718 = vst [vmem:[#allocation3 + $0xf8] sm:$0xff] %v3686
      %v3719 = vld [vmem:[%s2978 + $0x2] sm:$0xff]
      %v3720 = vld [vmem:[%s2978 + $0xa] sm:$0xff]
      %v3721 = vld [vmem:[%s2978 + $0x1a] sm:$0xff]
      %v3722 = vld [vmem:[%s2978 + $0x22] sm:$0xff]
      %v3723 = vld [vmem:[%s2978 + $0x32] sm:$0xff]
      %v3724 = vld [vmem:[%s2978 + $0x3a] sm:$0xff]
      %v3725 = vld [vmem:[%s2978 + $0x4a] sm:$0xff]
      %v3726 = vld [vmem:[%s2978 + $0x52] sm:$0xff]
      %v3727 = vld [vmem:[%s2978 + $0x62] sm:$0xff]
      %v3728 = vld [vmem:[%s2978 + $0x6a] sm:$0xff]
      %v3729 = vld [vmem:[%s2978 + $0x7a] sm:$0xff]
      %v3730 = vld [vmem:[%s2978 + $0x82] sm:$0xff]
      %v3731 = vld [vmem:[%s2978 + $0x92] sm:$0xff]
      %v3732 = vld [vmem:[%s2978 + $0x9a] sm:$0xff]
      %v3733 = vld [vmem:[%s2978 + $0xaa] sm:$0xff]
      %v3734 = vld [vmem:[%s2978 + $0xb2] sm:$0xff]
      %v3735 = vld [vmem:[%s2978 + $0xc2] sm:$0xff]
      %v3736 = vld [vmem:[%s2978 + $0xca] sm:$0xff]
      %v3737 = vld [vmem:[%s2978 + $0xda] sm:$0xff]
      %v3738 = vld [vmem:[%s2978 + $0xe2] sm:$0xff]
      %v3739 = vld [vmem:[%s2978 + $0xf2] sm:$0xff]
      %v3740 = vld [vmem:[%s2978 + $0xfa] sm:$0xff]
      %v3741 = vld [vmem:[%s2978 + $0x10a] sm:$0xff]
      %v3742 = vld [vmem:[%s2978 + $0x112] sm:$0xff]
      %v3743 = vld [vmem:[%s2978 + $0x122] sm:$0xff]
      %v3744 = vld [vmem:[%s2978 + $0x12a] sm:$0xff]
      %v3745 = vld [vmem:[%s2978 + $0x13a] sm:$0xff]
      %v3746 = vld [vmem:[%s2978 + $0x142] sm:$0xff]
      %v3747 = vld [vmem:[%s2978 + $0x152] sm:$0xff]
      %v3748 = vld [vmem:[%s2978 + $0x15a] sm:$0xff]
      %v3749 = vld [vmem:[%s2978 + $0x16a] sm:$0xff]
      %v3750 = vld [vmem:[%s2978 + $0x172] sm:$0xff]
      %v3751 = vld [vmem:[#allocation3] sm:$0xff]
      %v3752 = vld [vmem:[#allocation3 + $0x8] sm:$0xff]
      %v3753 = vld [vmem:[#allocation3 + $0x10] sm:$0xff]
      %v3754 = vld [vmem:[#allocation3 + $0x18] sm:$0xff]
      %v3755 = vld [vmem:[#allocation3 + $0x20] sm:$0xff]
      %v3756 = vld [vmem:[#allocation3 + $0x28] sm:$0xff]
      %v3757 = vld [vmem:[#allocation3 + $0x30] sm:$0xff]
      %v3758 = vld [vmem:[#allocation3 + $0x38] sm:$0xff]
      %v3759 = vld [vmem:[#allocation3 + $0x40] sm:$0xff]
      %v3760 = vld [vmem:[#allocation3 + $0x48] sm:$0xff]
      %v3761 = vld [vmem:[#allocation3 + $0x50] sm:$0xff]
      %v3762 = vld [vmem:[#allocation3 + $0x58] sm:$0xff]
      %v3763 = vld [vmem:[#allocation3 + $0x60] sm:$0xff]
      %v3764 = vld [vmem:[#allocation3 + $0x68] sm:$0xff]
      %v3765 = vld [vmem:[#allocation3 + $0x70] sm:$0xff]
      %v3766 = vld [vmem:[#allocation3 + $0x78] sm:$0xff]
      %v3767 = vld [vmem:[#allocation3 + $0x80] sm:$0xff]
      %v3768 = vld [vmem:[#allocation3 + $0x88] sm:$0xff]
      %v3769 = vld [vmem:[#allocation3 + $0x90] sm:$0xff]
      %v3770 = vld [vmem:[#allocation3 + $0x98] sm:$0xff]
      %v3771 = vld [vmem:[#allocation3 + $0xa0] sm:$0xff]
      %v3772 = vld [vmem:[#allocation3 + $0xa8] sm:$0xff]
      %v3773 = vld [vmem:[#allocation3 + $0xb0] sm:$0xff]
      %v3774 = vld [vmem:[#allocation3 + $0xb8] sm:$0xff]
      %v3775 = vld [vmem:[#allocation3 + $0xc0] sm:$0xff]
      %v3776 = vld [vmem:[#allocation3 + $0xc8] sm:$0xff]
      %v3777 = vld [vmem:[#allocation3 + $0xd0] sm:$0xff]
      %v3778 = vld [vmem:[#allocation3 + $0xd8] sm:$0xff]
      %v3779 = vld [vmem:[#allocation3 + $0xe0] sm:$0xff]
      %v3780 = vld [vmem:[#allocation3 + $0xe8] sm:$0xff]
      %v3781 = vld [vmem:[#allocation3 + $0xf0] sm:$0xff]
      %v3782 = vld [vmem:[#allocation3 + $0xf8] sm:$0xff]
      %v3783 = vpack.c.bf16 %v3720, %v3719
      %v3784 = vpack.c.bf16 %v3722, %v3721
      %v3785 = vpack.c.bf16 %v3724, %v3723
      %v3786 = vpack.c.bf16 %v3726, %v3725
      %v3787 = vpack.c.bf16 %v3728, %v3727
      %v3788 = vpack.c.bf16 %v3730, %v3729
      %v3789 = vpack.c.bf16 %v3732, %v3731
      %v3790 = vpack.c.bf16 %v3734, %v3733
      %v3791 = vpack.c.bf16 %v3736, %v3735
      %v3792 = vpack.c.bf16 %v3738, %v3737
      %v3793 = vpack.c.bf16 %v3740, %v3739
      %v3794 = vpack.c.bf16 %v3742, %v3741
      %v3795 = vpack.c.bf16 %v3744, %v3743
      %v3796 = vpack.c.bf16 %v3746, %v3745
      %v3797 = vpack.c.bf16 %v3748, %v3747
      %v3798 = vpack.c.bf16 %v3750, %v3749
      %s3799 = scalar_lea.vmem %s4, 512
      %v3800 = vld [vmem:[%s3799] sm:$0xf]
      %v3801 = vld [vmem:[%s3799 + $0x4] sm:$0xf]
      %v3802 = vld [vmem:[%s3799 + $0x8] sm:$0xf]
      %v3803 = vld [vmem:[%s3799 + $0xc] sm:$0xf]
      %v3804 = vld [vmem:[%s3799 + $0x10] sm:$0xf]
      %v3805 = vld [vmem:[%s3799 + $0x14] sm:$0xf]
      %v3806 = vld [vmem:[%s3799 + $0x18] sm:$0xf]
      %v3807 = vld [vmem:[%s3799 + $0x1c] sm:$0xf]
      %v3808 = vld [vmem:[%s3799 + $0x20] sm:$0xf]
      %v3809 = vld [vmem:[%s3799 + $0x24] sm:$0xf]
      %v3810 = vld [vmem:[%s3799 + $0x28] sm:$0xf]
      %v3811 = vld [vmem:[%s3799 + $0x2c] sm:$0xf]
      %v3812 = vld [vmem:[%s3799 + $0x30] sm:$0xf]
      %v3813 = vld [vmem:[%s3799 + $0x34] sm:$0xf]
      %v3814 = vld [vmem:[%s3799 + $0x38] sm:$0xf]
      %v3815 = vld [vmem:[%s3799 + $0x3c] sm:$0xf]
      %v3832 = vunpack.c.l.b16 %v3800
      %v3833 = vunpack.c.l.b16 %v3801
      %v3834 = vunpack.c.l.b16 %v3802
      %v3835 = vunpack.c.l.b16 %v3803
      %v3836 = vunpack.c.l.b16 %v3804
      %v3837 = vunpack.c.l.b16 %v3805
      %v3838 = vunpack.c.l.b16 %v3806
      %v3839 = vunpack.c.l.b16 %v3807
      %v3840 = vunpack.c.l.b16 %v3808
      %v3841 = vunpack.c.l.b16 %v3809
      %v3842 = vunpack.c.l.b16 %v3810
      %v3843 = vunpack.c.l.b16 %v3811
      %v3844 = vunpack.c.l.b16 %v3812
      %v3845 = vunpack.c.l.b16 %v3813
      %v3846 = vunpack.c.l.b16 %v3814
      %v3847 = vunpack.c.l.b16 %v3815
      %v3848 = vpack.c.b16 %v3833, %v3832
      %v3849 = vpack.c.b16 %v3835, %v3834
      %v3850 = vpack.c.b16 %v3837, %v3836
      %v3851 = vpack.c.b16 %v3839, %v3838
      %v3852 = vpack.c.b16 %v3841, %v3840
      %v3853 = vpack.c.b16 %v3843, %v3842
      %v3854 = vpack.c.b16 %v3845, %v3844
      %v3855 = vpack.c.b16 %v3847, %v3846
      %3864 = vmatprep.subr.bf16.mxu0 0
      %3865 = vmatpush1.bf16.msra.mxu0 %v3848
      %3866 = vmatprep.subr.bf16.mxu0 0
      %3867 = vmatpush1.bf16.msra.mxu0 %v3849
      %3868 = vmatprep.subr.bf16.mxu0 0
      %3869 = vmatpush1.bf16.msra.mxu0 %v3850
      %3870 = vmatprep.subr.bf16.mxu0 0
      %3871 = vmatpush1.bf16.msra.mxu0 %v3851
      %3872 = vmatprep.subr.bf16.mxu0 0
      %3873 = vmatpush1.bf16.msra.mxu0 %v3852
      %3874 = vmatprep.subr.bf16.mxu0 0
      %3875 = vmatpush1.bf16.msra.mxu0 %v3853
      %3876 = vmatprep.subr.bf16.mxu0 0
      %3877 = vmatpush1.bf16.msra.mxu0 %v3854
      %3878 = vmatprep.subr.bf16.mxu0 0
      %3879 = vmatpush1.bf16.msra.mxu0 %v3855
      %3880 = vmatprep.subr.bf16.mxu0 0
      %3881 = vmatpush1.bf16.msra.mxu0 0
      %3882 = vmatprep.subr.bf16.mxu0 0
      %3883 = vmatpush1.bf16.msra.mxu0 0
      %3884 = vmatprep.subr.bf16.mxu0 0
      %3885 = vmatpush1.bf16.msra.mxu0 0
      %3886 = vmatprep.subr.bf16.mxu0 0
      %3887 = vmatpush1.bf16.msra.mxu0 0
      %3888 = vmatprep.subr.bf16.mxu0 0
      %3889 = vmatpush1.bf16.msra.mxu0 0
      %3890 = vmatprep.subr.bf16.mxu0 0
      %3891 = vmatpush1.bf16.msra.mxu0 0
      %3892 = vmatprep.subr.bf16.mxu0 0
      %3893 = vmatpush1.bf16.msra.mxu0 0
      %3894 = vmatprep.subr.bf16.mxu0 0
      %3895 = vmatpush1.bf16.msra.mxu0 0
      %3896 = vmatprep.mubr.bf16.mxu0 0
      %3897 = vmatmul.mubr.bf16.gmra.mrb[0].mxu0 %v3783
      %v3898 = vpop.f32.mrb[0].mxu0
      %v3899 = vadd.f32 0.0, %v3898
      %v3900 = vpop.f32.mrb[0].mxu0
      %v3901 = vpop.f32.mrb[0].mxu0
      %v3902 = vadd.f32 0.0, %v3901
      %v3903 = vpop.f32.mrb[0].mxu0
      %3904 = vmatprep.mubr.bf16.mxu0 0
      %3905 = vmatmul.mubr.bf16.gmra.mrb[0].mxu0 %v3784
      %v3906 = vpop.f32.mrb[0].mxu0
      %v3907 = vadd.f32 0.0, %v3906
      %v3908 = vpop.f32.mrb[0].mxu0
      %v3909 = vpop.f32.mrb[0].mxu0
      %v3910 = vadd.f32 0.0, %v3909
      %v3911 = vpop.f32.mrb[0].mxu0
      %3912 = vmatprep.mubr.bf16.mxu0 0
      %3913 = vmatmul.mubr.bf16.gmra.mrb[0].mxu0 %v3785
      %v3914 = vpop.f32.mrb[0].mxu0
      %v3915 = vadd.f32 0.0, %v3914
      %v3916 = vpop.f32.mrb[0].mxu0
      %v3917 = vpop.f32.mrb[0].mxu0
      %v3918 = vadd.f32 0.0, %v3917
      %v3919 = vpop.f32.mrb[0].mxu0
      %3920 = vmatprep.mubr.bf16.mxu0 0
      %3921 = vmatmul.mubr.bf16.gmra.mrb[0].mxu0 %v3786
      %v3922 = vpop.f32.mrb[0].mxu0
      %v3923 = vadd.f32 0.0, %v3922
      %v3924 = vpop.f32.mrb[0].mxu0
      %v3925 = vpop.f32.mrb[0].mxu0
      %v3926 = vadd.f32 0.0, %v3925
      %v3927 = vpop.f32.mrb[0].mxu0
      %3928 = vmatprep.mubr.bf16.mxu0 0
      %3929 = vmatmul.mubr.bf16.gmra.mrb[0].mxu0 %v3787
      %v3930 = vpop.f32.mrb[0].mxu0
      %v3931 = vadd.f32 0.0, %v3930
      %v3932 = vpop.f32.mrb[0].mxu0
      %v3933 = vpop.f32.mrb[0].mxu0
      %v3934 = vadd.f32 0.0, %v3933
      %v3935 = vpop.f32.mrb[0].mxu0
      %3936 = vmatprep.mubr.bf16.mxu0 0
      %3937 = vmatmul.mubr.bf16.gmra.mrb[0].mxu0 %v3788
      %v3938 = vpop.f32.mrb[0].mxu0
      %v3939 = vadd.f32 0.0, %v3938
      %v3940 = vpop.f32.mrb[0].mxu0
      %v3941 = vpop.f32.mrb[0].mxu0
      %v3942 = vadd.f32 0.0, %v3941
      %v3943 = vpop.f32.mrb[0].mxu0
      %3944 = vmatprep.mubr.bf16.mxu0 0
      %3945 = vmatmul.mubr.bf16.gmra.mrb[0].mxu0 %v3789
      %v3946 = vpop.f32.mrb[0].mxu0
      %v3947 = vadd.f32 0.0, %v3946
      %v3948 = vpop.f32.mrb[0].mxu0
      %v3949 = vpop.f32.mrb[0].mxu0
      %v3950 = vadd.f32 0.0, %v3949
      %v3951 = vpop.f32.mrb[0].mxu0
      %3952 = vmatprep.mubr.bf16.mxu0 0
      %3953 = vmatmul.mubr.bf16.gmra.mrb[0].mxu0 %v3790
      %v3954 = vpop.f32.mrb[0].mxu0
      %v3955 = vadd.f32 0.0, %v3954
      %v3956 = vpop.f32.mrb[0].mxu0
      %v3957 = vpop.f32.mrb[0].mxu0
      %v3958 = vadd.f32 0.0, %v3957
      %v3959 = vpop.f32.mrb[0].mxu0
      %3960 = vmatprep.mubr.bf16.mxu0 0
      %3961 = vmatmul.mubr.bf16.gmra.mrb[0].mxu0 %v3791
      %v3962 = vpop.f32.mrb[0].mxu0
      %v3963 = vadd.f32 0.0, %v3962
      %v3964 = vpop.f32.mrb[0].mxu0
      %v3965 = vpop.f32.mrb[0].mxu0
      %v3966 = vadd.f32 0.0, %v3965
      %v3967 = vpop.f32.mrb[0].mxu0
      %3968 = vmatprep.mubr.bf16.mxu0 0
      %3969 = vmatmul.mubr.bf16.gmra.mrb[0].mxu0 %v3792
      %v3970 = vpop.f32.mrb[0].mxu0
      %v3971 = vadd.f32 0.0, %v3970
      %v3972 = vpop.f32.mrb[0].mxu0
      %v3973 = vpop.f32.mrb[0].mxu0
      %v3974 = vadd.f32 0.0, %v3973
      %v3975 = vpop.f32.mrb[0].mxu0
      %3976 = vmatprep.mubr.bf16.mxu0 0
      %3977 = vmatmul.mubr.bf16.gmra.mrb[0].mxu0 %v3793
      %v3978 = vpop.f32.mrb[0].mxu0
      %v3979 = vadd.f32 0.0, %v3978
      %v3980 = vpop.f32.mrb[0].mxu0
      %v3981 = vpop.f32.mrb[0].mxu0
      %v3982 = vadd.f32 0.0, %v3981
      %v3983 = vpop.f32.mrb[0].mxu0
      %3984 = vmatprep.mubr.bf16.mxu0 0
      %3985 = vmatmul.mubr.bf16.gmra.mrb[0].mxu0 %v3794
      %v3986 = vpop.f32.mrb[0].mxu0
      %v3987 = vadd.f32 0.0, %v3986
      %v3988 = vpop.f32.mrb[0].mxu0
      %v3989 = vpop.f32.mrb[0].mxu0
      %v3990 = vadd.f32 0.0, %v3989
      %v3991 = vpop.f32.mrb[0].mxu0
      %3992 = vmatprep.mubr.bf16.mxu0 0
      %3993 = vmatmul.mubr.bf16.gmra.mrb[0].mxu0 %v3795
      %v3994 = vpop.f32.mrb[0].mxu0
      %v3995 = vadd.f32 0.0, %v3994
      %v3996 = vpop.f32.mrb[0].mxu0
      %v3997 = vpop.f32.mrb[0].mxu0
      %v3998 = vadd.f32 0.0, %v3997
      %v3999 = vpop.f32.mrb[0].mxu0
      %4000 = vmatprep.mubr.bf16.mxu0 0
      %4001 = vmatmul.mubr.bf16.gmra.mrb[0].mxu0 %v3796
      %v4002 = vpop.f32.mrb[0].mxu0
      %v4003 = vadd.f32 0.0, %v4002
      %v4004 = vpop.f32.mrb[0].mxu0
      %v4005 = vpop.f32.mrb[0].mxu0
      %v4006 = vadd.f32 0.0, %v4005
      %v4007 = vpop.f32.mrb[0].mxu0
      %4008 = vmatprep.mubr.bf16.mxu0 0
      %4009 = vmatmul.mubr.bf16.gmra.mrb[0].mxu0 %v3797
      %v4010 = vpop.f32.mrb[0].mxu0
      %v4011 = vadd.f32 0.0, %v4010
      %v4012 = vpop.f32.mrb[0].mxu0
      %v4013 = vpop.f32.mrb[0].mxu0
      %v4014 = vadd.f32 0.0, %v4013
      %v4015 = vpop.f32.mrb[0].mxu0
      %4016 = vmatprep.mubr.bf16.mxu0 0
      %4017 = vmatmul.mubr.bf16.gmra.mrb[0].mxu0 %v3798
      %v4018 = vpop.f32.mrb[0].mxu0
      %v4019 = vadd.f32 0.0, %v4018
      %v4020 = vpop.f32.mrb[0].mxu0
      %v4021 = vpop.f32.mrb[0].mxu0
      %v4022 = vadd.f32 0.0, %v4021
      %v4023 = vpop.f32.mrb[0].mxu0
      %4024 = vdwg.mxu0
      %v4025 = vadd.f32 %v3751, %v3899
      %v4026 = vadd.f32 %v3752, %v3902
      %v4027 = vadd.f32 %v3753, %v3907
      %v4028 = vadd.f32 %v3754, %v3910
      %v4029 = vadd.f32 %v3755, %v3915
      %v4030 = vadd.f32 %v3756, %v3918
      %v4031 = vadd.f32 %v3757, %v3923
      %v4032 = vadd.f32 %v3758, %v3926
      %v4033 = vadd.f32 %v3759, %v3931
      %v4034 = vadd.f32 %v3760, %v3934
      %v4035 = vadd.f32 %v3761, %v3939
      %v4036 = vadd.f32 %v3762, %v3942
      %v4037 = vadd.f32 %v3763, %v3947
      %v4038 = vadd.f32 %v3764, %v3950
      %v4039 = vadd.f32 %v3765, %v3955
      %v4040 = vadd.f32 %v3766, %v3958
      %v4041 = vadd.f32 %v3767, %v3963
      %v4042 = vadd.f32 %v3768, %v3966
      %v4043 = vadd.f32 %v3769, %v3971
      %v4044 = vadd.f32 %v3770, %v3974
      %v4045 = vadd.f32 %v3771, %v3979
      %v4046 = vadd.f32 %v3772, %v3982
      %v4047 = vadd.f32 %v3773, %v3987
      %v4048 = vadd.f32 %v3774, %v3990
      %v4049 = vadd.f32 %v3775, %v3995
      %v4050 = vadd.f32 %v3776, %v3998
      %v4051 = vadd.f32 %v3777, %v4003
      %v4052 = vadd.f32 %v3778, %v4006
      %v4053 = vadd.f32 %v3779, %v4011
      %v4054 = vadd.f32 %v3780, %v4014
      %v4055 = vadd.f32 %v3781, %v4019
      %v4056 = vadd.f32 %v3782, %v4022
      %4057 = vst [vmem:[#allocation3] sm:$0xff] %v4025
      %4058 = vst [vmem:[#allocation3 + $0x8] sm:$0xff] %v4026
      %4059 = vst [vmem:[#allocation3 + $0x10] sm:$0xff] %v4027
      %4060 = vst [vmem:[#allocation3 + $0x18] sm:$0xff] %v4028
      %4061 = vst [vmem:[#allocation3 + $0x20] sm:$0xff] %v4029
      %4062 = vst [vmem:[#allocation3 + $0x28] sm:$0xff] %v4030
      %4063 = vst [vmem:[#allocation3 + $0x30] sm:$0xff] %v4031
      %4064 = vst [vmem:[#allocation3 + $0x38] sm:$0xff] %v4032
      %4065 = vst [vmem:[#allocation3 + $0x40] sm:$0xff] %v4033
      %4066 = vst [vmem:[#allocation3 + $0x48] sm:$0xff] %v4034
      %4067 = vst [vmem:[#allocation3 + $0x50] sm:$0xff] %v4035
      %4068 = vst [vmem:[#allocation3 + $0x58] sm:$0xff] %v4036
      %4069 = vst [vmem:[#allocation3 + $0x60] sm:$0xff] %v4037
      %4070 = vst [vmem:[#allocation3 + $0x68] sm:$0xff] %v4038
      %4071 = vst [vmem:[#allocation3 + $0x70] sm:$0xff] %v4039
      %4072 = vst [vmem:[#allocation3 + $0x78] sm:$0xff] %v4040
      %4073 = vst [vmem:[#allocation3 + $0x80] sm:$0xff] %v4041
      %4074 = vst [vmem:[#allocation3 + $0x88] sm:$0xff] %v4042
      %4075 = vst [vmem:[#allocation3 + $0x90] sm:$0xff] %v4043
      %4076 = vst [vmem:[#allocation3 + $0x98] sm:$0xff] %v4044
      %4077 = vst [vmem:[#allocation3 + $0xa0] sm:$0xff] %v4045
      %4078 = vst [vmem:[#allocation3 + $0xa8] sm:$0xff] %v4046
      %4079 = vst [vmem:[#allocation3 + $0xb0] sm:$0xff] %v4047
      %4080 = vst [vmem:[#allocation3 + $0xb8] sm:$0xff] %v4048
      %4081 = vst [vmem:[#allocation3 + $0xc0] sm:$0xff] %v4049
      %4082 = vst [vmem:[#allocation3 + $0xc8] sm:$0xff] %v4050
      %4083 = vst [vmem:[#allocation3 + $0xd0] sm:$0xff] %v4051
      %4084 = vst [vmem:[#allocation3 + $0xd8] sm:$0xff] %v4052
      %4085 = vst [vmem:[#allocation3 + $0xe0] sm:$0xff] %v4053
      %4086 = vst [vmem:[#allocation3 + $0xe8] sm:$0xff] %v4054
      %4087 = vst [vmem:[#allocation3 + $0xf0] sm:$0xff] %v4055
      %4088 = vst [vmem:[#allocation3 + $0xf8] sm:$0xff] %v4056
      %v4089 = vld [vmem:[#allocation3] sm:$0xff]
      %v4090 = vld [vmem:[#allocation3 + $0x8] sm:$0xff]
      %v4091 = vld [vmem:[#allocation3 + $0x10] sm:$0xff]
      %v4092 = vld [vmem:[#allocation3 + $0x18] sm:$0xff]
      %v4093 = vld [vmem:[#allocation3 + $0x20] sm:$0xff]
      %v4094 = vld [vmem:[#allocation3 + $0x28] sm:$0xff]
      %v4095 = vld [vmem:[#allocation3 + $0x30] sm:$0xff]
      %v4096 = vld [vmem:[#allocation3 + $0x38] sm:$0xff]
      %v4097 = vld [vmem:[#allocation3 + $0x40] sm:$0xff]
      %v4098 = vld [vmem:[#allocation3 + $0x48] sm:$0xff]
      %v4099 = vld [vmem:[#allocation3 + $0x50] sm:$0xff]
      %v4100 = vld [vmem:[#allocation3 + $0x58] sm:$0xff]
      %v4101 = vld [vmem:[#allocation3 + $0x60] sm:$0xff]
      %v4102 = vld [vmem:[#allocation3 + $0x68] sm:$0xff]
      %v4103 = vld [vmem:[#allocation3 + $0x70] sm:$0xff]
      %v4104 = vld [vmem:[#allocation3 + $0x78] sm:$0xff]
      %v4105 = vld [vmem:[#allocation3 + $0x80] sm:$0xff]
      %v4106 = vld [vmem:[#allocation3 + $0x88] sm:$0xff]
      %v4107 = vld [vmem:[#allocation3 + $0x90] sm:$0xff]
      %v4108 = vld [vmem:[#allocation3 + $0x98] sm:$0xff]
      %v4109 = vld [vmem:[#allocation3 + $0xa0] sm:$0xff]
      %v4110 = vld [vmem:[#allocation3 + $0xa8] sm:$0xff]
      %v4111 = vld [vmem:[#allocation3 + $0xb0] sm:$0xff]
      %v4112 = vld [vmem:[#allocation3 + $0xb8] sm:$0xff]
      %v4113 = vld [vmem:[#allocation3 + $0xc0] sm:$0xff]
      %v4114 = vld [vmem:[#allocation3 + $0xc8] sm:$0xff]
      %v4115 = vld [vmem:[#allocation3 + $0xd0] sm:$0xff]
      %v4116 = vld [vmem:[#allocation3 + $0xd8] sm:$0xff]
      %v4117 = vld [vmem:[#allocation3 + $0xe0] sm:$0xff]
      %v4118 = vld [vmem:[#allocation3 + $0xe8] sm:$0xff]
      %v4119 = vld [vmem:[#allocation3 + $0xf0] sm:$0xff]
      %v4120 = vld [vmem:[#allocation3 + $0xf8] sm:$0xff]
      %v4121 = vld [vmem:[%s5] sm:$0x1]
      %v4123 = vlaneseq
      %v4124 = vshrl.u32 %v4123, 7
      %v4125 = vsub.s32 0, %v4124
      %v4126 = vrot.slane %v4121, %v4125
      %v4128 = vadd.f32 %v4089, %v4126
      %v4129 = vadd.f32 %v4090, %v4126
      %v4130 = vadd.f32 %v4091, %v4126
      %v4131 = vadd.f32 %v4092, %v4126
      %v4132 = vadd.f32 %v4093, %v4126
      %v4133 = vadd.f32 %v4094, %v4126
      %v4134 = vadd.f32 %v4095, %v4126
      %v4135 = vadd.f32 %v4096, %v4126
      %v4136 = vadd.f32 %v4097, %v4126
      %v4137 = vadd.f32 %v4098, %v4126
      %v4138 = vadd.f32 %v4099, %v4126
      %v4139 = vadd.f32 %v4100, %v4126
      %v4140 = vadd.f32 %v4101, %v4126
      %v4141 = vadd.f32 %v4102, %v4126
      %v4142 = vadd.f32 %v4103, %v4126
      %v4143 = vadd.f32 %v4104, %v4126
      %v4144 = vadd.f32 %v4105, %v4126
      %v4145 = vadd.f32 %v4106, %v4126
      %v4146 = vadd.f32 %v4107, %v4126
      %v4147 = vadd.f32 %v4108, %v4126
      %v4148 = vadd.f32 %v4109, %v4126
      %v4149 = vadd.f32 %v4110, %v4126
      %v4150 = vadd.f32 %v4111, %v4126
      %v4151 = vadd.f32 %v4112, %v4126
      %v4152 = vadd.f32 %v4113, %v4126
      %v4153 = vadd.f32 %v4114, %v4126
      %v4154 = vadd.f32 %v4115, %v4126
      %v4155 = vadd.f32 %v4116, %v4126
      %v4156 = vadd.f32 %v4117, %v4126
      %v4157 = vadd.f32 %v4118, %v4126
      %v4158 = vadd.f32 %v4119, %v4126
      %v4159 = vadd.f32 %v4120, %v4126
      %4160 = vst [vmem:[%s285] sm:$0xff] %v4128
      %4161 = vst [vmem:[%s285 + $0x8] sm:$0xff] %v4129
      %4162 = vst [vmem:[%s285 + $0x10] sm:$0xff] %v4130
      %4163 = vst [vmem:[%s285 + $0x18] sm:$0xff] %v4131
      %4164 = vst [vmem:[%s285 + $0x20] sm:$0xff] %v4132
      %4165 = vst [vmem:[%s285 + $0x28] sm:$0xff] %v4133
      %4166 = vst [vmem:[%s285 + $0x30] sm:$0xff] %v4134
      %4167 = vst [vmem:[%s285 + $0x38] sm:$0xff] %v4135
      %4168 = vst [vmem:[%s285 + $0x40] sm:$0xff] %v4136
      %4169 = vst [vmem:[%s285 + $0x48] sm:$0xff] %v4137
      %4170 = vst [vmem:[%s285 + $0x50] sm:$0xff] %v4138
      %4171 = vst [vmem:[%s285 + $0x58] sm:$0xff] %v4139
      %4172 = vst [vmem:[%s285 + $0x60] sm:$0xff] %v4140
      %4173 = vst [vmem:[%s285 + $0x68] sm:$0xff] %v4141
      %4174 = vst [vmem:[%s285 + $0x70] sm:$0xff] %v4142
      %4175 = vst [vmem:[%s285 + $0x78] sm:$0xff] %v4143
      %4176 = vst [vmem:[%s285 + $0x80] sm:$0xff] %v4144
      %4177 = vst [vmem:[%s285 + $0x88] sm:$0xff] %v4145
      %4178 = vst [vmem:[%s285 + $0x90] sm:$0xff] %v4146
      %4179 = vst [vmem:[%s285 + $0x98] sm:$0xff] %v4147
      %4180 = vst [vmem:[%s285 + $0xa0] sm:$0xff] %v4148
      %4181 = vst [vmem:[%s285 + $0xa8] sm:$0xff] %v4149
      %4182 = vst [vmem:[%s285 + $0xb0] sm:$0xff] %v4150
      %4183 = vst [vmem:[%s285 + $0xb8] sm:$0xff] %v4151
      %4184 = vst [vmem:[%s285 + $0xc0] sm:$0xff] %v4152
      %4185 = vst [vmem:[%s285 + $0xc8] sm:$0xff] %v4153
      %4186 = vst [vmem:[%s285 + $0xd0] sm:$0xff] %v4154
      %4187 = vst [vmem:[%s285 + $0xd8] sm:$0xff] %v4155
      %4188 = vst [vmem:[%s285 + $0xe0] sm:$0xff] %v4156
      %4189 = vst [vmem:[%s285 + $0xe8] sm:$0xff] %v4157
      %4190 = vst [vmem:[%s285 + $0xf0] sm:$0xff] %v4158
      %4191 = vst [vmem:[%s285 + $0xf8] sm:$0xff] %v4159
      %v4192 = vadd.f32 %v4128, %v4129
      %v4193 = vadd.f32 %v4192, %v4130
      %v4194 = vadd.f32 %v4193, %v4131
      %v4195 = vadd.f32 %v4194, %v4132
      %v4196 = vadd.f32 %v4195, %v4133
      %v4197 = vadd.f32 %v4196, %v4134
      %v4198 = vadd.f32 %v4197, %v4135
      %v4199 = vadd.f32 %v4198, %v4136
      %v4200 = vadd.f32 %v4199, %v4137
      %v4201 = vadd.f32 %v4200, %v4138
      %v4202 = vadd.f32 %v4201, %v4139
      %v4203 = vadd.f32 %v4202, %v4140
      %v4204 = vadd.f32 %v4203, %v4141
      %v4205 = vadd.f32 %v4204, %v4142
      %v4206 = vadd.f32 %v4205, %v4143
      %v4207 = vadd.f32 %v4206, %v4144
      %v4208 = vadd.f32 %v4207, %v4145
      %v4209 = vadd.f32 %v4208, %v4146
      %v4210 = vadd.f32 %v4209, %v4147
      %v4211 = vadd.f32 %v4210, %v4148
      %v4212 = vadd.f32 %v4211, %v4149
      %v4213 = vadd.f32 %v4212, %v4150
      %v4214 = vadd.f32 %v4213, %v4151
      %v4215 = vadd.f32 %v4214, %v4152
      %v4216 = vadd.f32 %v4215, %v4153
      %v4217 = vadd.f32 %v4216, %v4154
      %v4218 = vadd.f32 %v4217, %v4155
      %v4219 = vadd.f32 %v4218, %v4156
      %v4220 = vadd.f32 %v4219, %v4157
      %v4221 = vadd.f32 %v4220, %v4158
      %v4222 = vadd.f32 %v4221, %v4159
      %v4223 = vrot.slane %v4222, 4
      %v4224 = vadd.f32 %v4222, %v4223
      %v4225 = vrot.slane %v4224, 2
      %v4226 = vadd.f32 %v4224, %v4225
      %v4227 = vrot.slane %v4226, 1
      %v4228 = vadd.f32 %v4226, %v4227
      %v4229 = vmul.f32 %v4128, %v4128
      %v4230 = vmul.f32 %v4129, %v4129
      %v4231 = vmul.f32 %v4130, %v4130
      %v4232 = vmul.f32 %v4131, %v4131
      %v4233 = vmul.f32 %v4132, %v4132
      %v4234 = vmul.f32 %v4133, %v4133
      %v4235 = vmul.f32 %v4134, %v4134
      %v4236 = vmul.f32 %v4135, %v4135
      %v4237 = vmul.f32 %v4136, %v4136
      %v4238 = vmul.f32 %v4137, %v4137
      %v4239 = vmul.f32 %v4138, %v4138
      %v4240 = vmul.f32 %v4139, %v4139
      %v4241 = vmul.f32 %v4140, %v4140
      %v4242 = vmul.f32 %v4141, %v4141
      %v4243 = vmul.f32 %v4142, %v4142
      %v4244 = vmul.f32 %v4143, %v4143
      %v4245 = vmul.f32 %v4144, %v4144
      %v4246 = vmul.f32 %v4145, %v4145
      %v4247 = vmul.f32 %v4146, %v4146
      %v4248 = vmul.f32 %v4147, %v4147
      %v4249 = vmul.f32 %v4148, %v4148
      %v4250 = vmul.f32 %v4149, %v4149
      %v4251 = vmul.f32 %v4150, %v4150
      %v4252 = vmul.f32 %v4151, %v4151
      %v4253 = vmul.f32 %v4152, %v4152
      %v4254 = vmul.f32 %v4153, %v4153
      %v4255 = vmul.f32 %v4154, %v4154
      %v4256 = vmul.f32 %v4155, %v4155
      %v4257 = vmul.f32 %v4156, %v4156
      %v4258 = vmul.f32 %v4157, %v4157
      %v4259 = vmul.f32 %v4158, %v4158
      %v4260 = vmul.f32 %v4159, %v4159
      %v4261 = vadd.f32 %v4229, %v4230
      %v4262 = vadd.f32 %v4261, %v4231
      %v4263 = vadd.f32 %v4262, %v4232
      %v4264 = vadd.f32 %v4263, %v4233
      %v4265 = vadd.f32 %v4264, %v4234
      %v4266 = vadd.f32 %v4265, %v4235
      %v4267 = vadd.f32 %v4266, %v4236
      %v4268 = vadd.f32 %v4267, %v4237
      %v4269 = vadd.f32 %v4268, %v4238
      %v4270 = vadd.f32 %v4269, %v4239
      %v4271 = vadd.f32 %v4270, %v4240
      %v4272 = vadd.f32 %v4271, %v4241
      %v4273 = vadd.f32 %v4272, %v4242
      %v4274 = vadd.f32 %v4273, %v4243
      %v4275 = vadd.f32 %v4274, %v4244
      %v4276 = vadd.f32 %v4275, %v4245
      %v4277 = vadd.f32 %v4276, %v4246
      %v4278 = vadd.f32 %v4277, %v4247
      %v4279 = vadd.f32 %v4278, %v4248
      %v4280 = vadd.f32 %v4279, %v4249
      %v4281 = vadd.f32 %v4280, %v4250
      %v4282 = vadd.f32 %v4281, %v4251
      %v4283 = vadd.f32 %v4282, %v4252
      %v4284 = vadd.f32 %v4283, %v4253
      %v4285 = vadd.f32 %v4284, %v4254
      %v4286 = vadd.f32 %v4285, %v4255
      %v4287 = vadd.f32 %v4286, %v4256
      %v4288 = vadd.f32 %v4287, %v4257
      %v4289 = vadd.f32 %v4288, %v4258
      %v4290 = vadd.f32 %v4289, %v4259
      %v4291 = vadd.f32 %v4290, %v4260
      %v4292 = vrot.slane %v4291, 4
      %v4293 = vadd.f32 %v4291, %v4292
      %v4294 = vrot.slane %v4293, 2
      %v4295 = vadd.f32 %v4293, %v4294
      %v4296 = vrot.slane %v4295, 1
      %v4297 = vadd.f32 %v4295, %v4296
      %v4298 = vsel %vm537, %v4228, %v4297
      %4299 = vst [vmem:[%s289] sm:$0x3] %v4298
      %p4300 = scmp.lt.s32.totalorder %s19, 1
      %s4301 = scalar_select %p4300, %s19, 1
      %s4302 = smul.addr %s4301, 32
      %s4303 = smul.addr %s4302, 8
      %s4304 = scalar_lea.vmem %s6, %s4303
      %p4305 = scmp.lt.s32.totalorder %s19, 1
      %s4306 = scalar_select %p4305, %s19, 1
      %s4307 = smul.addr %s4306, 2
      %s4308 = scalar_lea.vmem %s7, %s4307
      // Predicated region
      $region45: #{residual_block.4} parent=43 // pred_check
        %p4309 = pneg %p168
      $region46: #{residual_block.4} parent=43 // pred_check_branch
        %4311 = sbr.rel (%p4309) target = $region48
      $region47: #{residual_block.4} parent=43 // pred_region
        _
      $region48: #{residual_block.4} parent=43 // pred_fallthru
        _
      // Predicated region
      $region49: #{residual_block.4} parent=43 // pred_check
        %p4312 = pneg %p194
      $region50: #{residual_block.4} parent=43 // pred_check_branch
        %4314 = sbr.rel (%p4312) target = $region52
      $region51: #{residual_block.4} parent=43 // pred_region
        _
      $region52: #{residual_block.4} parent=43 // pred_fallthru
        _
    $region44: #{residual_block.4} parent=5 // pred_fallthru
      _
    %p4315 = scmp.le.s32.totalorder 2, %s14
    // Predicated region
    $region53: #{residual_block.4} parent=5 // pred_check
      %p4316 = pneg %p4315
    $region54: #{residual_block.4} parent=5 // pred_check_branch
      %4318 = sbr.rel (%p4316) target = $region56
    $region55: #{residual_block.4} parent=5 // pred_region
      %s4319 = ssub.s32 %s14, 2
      // Predicated region
      $region57: #{residual_block.4} parent=55 // pred_check
        %p4320 = pneg %p174
      $region58: #{residual_block.4} parent=55 // pred_check_branch
        %4322 = sbr.rel (%p4320) target = $region60
      $region59: #{residual_block.4} parent=55 // pred_region
        %p4323 = scmp.lt.s32.totalorder %s20, 1
        %s4324 = scalar_select %p4323, %s20, 1
        %s4325 = smul.addr %s4324, 32
        %s4326 = smul.addr %s4325, 8
        %s4327 = scalar_lea.vmem %s6, %s4326
      $region60: #{residual_block.4} parent=55 // pred_fallthru
        _
      // Predicated region
      $region61: #{residual_block.4} parent=55 // pred_check
        %p4328 = pneg %p200
      $region62: #{residual_block.4} parent=55 // pred_check_branch
        %4330 = sbr.rel (%p4328) target = $region64
      $region63: #{residual_block.4} parent=55 // pred_region
        %p4331 = scmp.lt.s32.totalorder %s20, 1
        %s4332 = scalar_select %p4331, %s20, 1
        %s4333 = smul.addr %s4332, 2
        %s4334 = scalar_lea.vmem %s7, %s4333
      $region64: #{residual_block.4} parent=55 // pred_fallthru
        _
    $region56: #{residual_block.4} parent=5 // pred_fallthru
      _
  $region6: #{residual_block.4} parent=0 // loop_footer
    %s18 = sadd.s32 1, %s14
  $region7: #{residual_block.4} parent=0 // loop_footer_branch
    %13 = sbr.rel target = $region3
  $region8: #{residual_block.4} parent=0 // loop_exit
    _

</llo_original>
